<compile_context>
chip_gen: v7x
topology: tpu7x:2x2x1
jax: 0.10.0
libtpu: 0.0.40
codegen_flags: <defaults>
</compile_context>

<pallas_src>
import math

import jax
import jax.numpy as jnp
from jax.experimental import pallas as pl
from jax.experimental.pallas import tpu as pltpu

BN_EPS = 1e-3


# ------------------------------ Pallas kernel ------------------------------- #

def _inception_kernel(x_ref, sel_s2_ref, sel_pad_ref,
                      w1_ref, s1_ref, w20_ref, s20_ref,
                      w21_ref, s21_ref, w22_ref, s22_ref,
                      out_ref):
    """One grid step = one image.  All intermediates stay in VMEM/registers.

    x_ref      : (1, H*W, Cin)        bf16   flattened NHWC image
    sel_s2_ref : (9, Ho*Wo, H*W)      bf16   one-hot stride-2 3x3 tap samplers
    sel_pad_ref: (9, H*W,  H*W)       bf16   one-hot pad-1 3x3 tap shifters
    w*_ref     : per-tap weights (BN scale folded in), bf16
    s*_ref     : (1, Cout) f32 shifts (bias + BN shift)
    out_ref    : (1, Ho*Wo, 384+96+Cin) f32  concatenated output slab
    """
    f32, bf16 = jnp.float32, jnp.bfloat16
    xf = x_ref[0]                                    # (HW, Cin) bf16
    n_taps = w1_ref.shape[0]
    m_out = sel_s2_ref.shape[1]
    c1 = w1_ref.shape[2]
    c21 = w21_ref.shape[2]
    c22 = w22_ref.shape[2]

    # ---- branch 2, stage 0: 1x1 conv + BN + ReLU (VMEM resident) ----
    h = jnp.dot(xf, w20_ref[...], preferred_element_type=f32) + s20_ref[...]
    h = jnp.maximum(h, 0.0).astype(bf16)             # (HW, 64)

    # ---- branch 2, stage 1: 3x3 pad-1 conv as 9 shift-then-matmul taps ----
    acc21 = jnp.zeros((h.shape[0], c21), f32)
    for t in range(n_taps):
        sh = jnp.dot(sel_pad_ref[t], h, preferred_element_type=f32).astype(bf16)
        acc21 = acc21 + jnp.dot(sh, w21_ref[t], preferred_element_type=f32)
    h2 = jnp.maximum(acc21 + s21_ref[...], 0.0).astype(bf16)   # (HW, 96)

    # ---- branch1 (3x3/s2 on x) + branch2 stage 2 (3x3/s2 on h2) + maxpool ----
    acc1 = jnp.zeros((m_out, c1), f32)
    acc22 = jnp.zeros((m_out, c22), f32)
    mp = jnp.full((m_out, xf.shape[1]), -jnp.inf, f32)
    for t in range(n_taps):
        px = jnp.dot(sel_s2_ref[t], xf, preferred_element_type=f32)   # exact select
        mp = jnp.maximum(mp, px)                                       # maxpool
        acc1 = acc1 + jnp.dot(px.astype(bf16), w1_ref[t],
                              preferred_element_type=f32)
        ph = jnp.dot(sel_s2_ref[t], h2, preferred_element_type=f32).astype(bf16)
        acc22 = acc22 + jnp.dot(ph, w22_ref[t], preferred_element_type=f32)
    out1 = jnp.maximum(acc1 + s1_ref[...], 0.0)       # (Mo, 384)
    out2 = jnp.maximum(acc22 + s22_ref[...], 0.0)     # (Mo, 96)

    # single lane-dense store of the concatenated slab
    out_ref[...] = jnp.concatenate([out1, out2, mp], axis=-1)[None]


def _fused_inception(x_flat, sel_s2, sel_pad, w1, s1, w20, s20, w21, s21, w22, s22):
    n, hw, cin = x_flat.shape
    m_out = sel_s2.shape[1]
    c_total = s1.shape[1] + s22.shape[1] + cin

    def resident(arr):                       # constant block, stays in VMEM
        zeros = (0,) * arr.ndim
        return pl.BlockSpec(arr.shape, lambda b: zeros)

    return pl.pallas_call(
        _inception_kernel,
        out_shape=jax.ShapeDtypeStruct((n, m_out, c_total), jnp.float32),
        grid=(n,),
        in_specs=[
            pl.BlockSpec((1, hw, cin), lambda b: (b, 0, 0)),
            resident(sel_s2), resident(sel_pad),
            resident(w1), resident(s1),
            resident(w20), resident(s20),
            resident(w21), resident(s21),
            resident(w22), resident(s22),
        ],
        out_specs=pl.BlockSpec((1, m_out, c_total), lambda b: (b, 0, 0)),
        compiler_params=pltpu.CompilerParams(
            dimension_semantics=("parallel",),
            vmem_limit_bytes=32 * 1024 * 1024,
        ),
    )(x_flat, sel_s2, sel_pad, w1, s1, w20, s20, w21, s21, w22, s22)


# ------------------------------- JAX glue ----------------------------------- #

def _fold_bn_taps(params):
    """Fold conv bias + eval-mode BN into per-tap (Cin,Cout) weights + shift."""
    w, b, gamma, beta, mean, var = params            # w: (Cout, Cin, KH, KW)
    inv_std = 1.0 / jnp.sqrt(var + BN_EPS)
    scale = gamma * inv_std                          # (Cout,)
    shift = beta + (b - mean) * scale                # (Cout,)
    wt = jnp.transpose(w, (2, 3, 1, 0)) * scale      # (KH, KW, Cin, Cout), scaled
    kh, kw, cin, cout = wt.shape
    return (wt.reshape(kh * kw, cin, cout).astype(jnp.bfloat16),
            shift.reshape(1, cout).astype(jnp.float32))


def _make_stride2_sel(H, W, ho, wo):
    """(9, ho*wo, H*W) one-hot samplers: tap (i,j) row (r,c) -> x[2r+i, 2c+j]."""
    taps = []
    r = jnp.arange(ho)
    c = jnp.arange(wo)
    for i in range(3):
        for j in range(3):
            src = ((2 * r[:, None] + i) * W + (2 * c[None, :] + j)).reshape(-1)
            taps.append(jax.nn.one_hot(src, H * W, dtype=jnp.bfloat16))
    return jnp.stack(taps, 0)


def _make_pad1_sel(H, W):
    """(9, H*W, H*W) one-hot pad-1 shifters; out-of-range rows are all-zero."""
    taps = []
    y = jnp.arange(H)
    x = jnp.arange(W)
    for i in range(3):
        for j in range(3):
            sy = y[:, None] + (i - 1)
            sx = x[None, :] + (j - 1)
            valid = (sy >= 0) & (sy < H) & (sx >= 0) & (sx < W)
            src = jnp.where(valid, sy * W + sx, -1).reshape(-1)
            taps.append(jax.nn.one_hot(src, H * W, dtype=jnp.bfloat16))
    return jnp.stack(taps, 0)


def inception_block_x2(x_nchw, params):
    n, cin, H, W = x_nchw.shape
    ho = (H - 3) // 2 + 1
    wo = (W - 3) // 2 + 1

    x = jnp.transpose(x_nchw, (0, 2, 3, 1))                 # NCHW -> NHWC
    x_flat = x.reshape(n, H * W, cin).astype(jnp.bfloat16)  # (N, HW, Cin)

    sel_s2 = _make_stride2_sel(H, W, ho, wo)                # (9, HoWo, HW)
    sel_pad = _make_pad1_sel(H, W)                          # (9, HW,   HW)

    w1, s1 = _fold_bn_taps(params["b1"])                    # (9, Cin, 384)
    w20_taps, s20 = _fold_bn_taps(params["b2_0"])           # (1, Cin, 64)
    w20 = w20_taps[0]                                       # (Cin, 64)
    w21, s21 = _fold_bn_taps(params["b2_1"])                # (9, 64, 96)
    w22, s22 = _fold_bn_taps(params["b2_2"])                # (9, 96, 96)

    out = _fused_inception(x_flat, sel_s2, sel_pad,
                           w1, s1, w20, s20, w21, s21, w22, s22)
    out = out.reshape(n, ho, wo, -1)                        # (N, Ho, Wo, 484)
    return jnp.transpose(out, (0, 3, 1, 2))                 # back to NCHW


# -------------------------- deterministic params ---------------------------- #

def init_conv_params(key, cin, cout, k):
    kw_, kb, kg, kbt, km, kv = jax.random.split(key, 6)
    fan_in = cin * k * k
    w = jax.random.normal(kw_, (cout, cin, k, k), jnp.float32) / math.sqrt(fan_in)
    b = 0.01 * jax.random.normal(kb, (cout,), jnp.float32)
    gamma = 1.0 + 0.1 * jax.random.normal(kg, (cout,), jnp.float32)
    beta = 0.1 * jax.random.normal(kbt, (cout,), jnp.float32)
    mean = 0.05 * jax.random.normal(km, (cout,), jnp.float32)
    var = 1.0 + 0.1 * jax.nn.softplus(jax.random.normal(kv, (cout,), jnp.float32))
    return (w, b, gamma, beta, mean, var)


# ------------------------- pure-JAX reference check ------------------------- #

def _ref_conv_bn_relu(x_nhwc, params, stride, padding):
    w, b, gamma, beta, mean, var = params
    y = jax.lax.conv_general_dilated(
        x_nhwc, jnp.transpose(w, (2, 3, 1, 0)),
        window_strides=(stride, stride),
        padding=[(padding, padding), (padding, padding)],
        dimension_numbers=("NHWC", "HWIO", "NHWC"),
        precision=jax.lax.Precision.HIGHEST,
    ) + b
    y = (y - mean) / jnp.sqrt(var + BN_EPS) * gamma + beta
    return jnp.maximum(y, 0.0)


def _ref_forward(x_nchw, params):
    x = jnp.transpose(x_nchw, (0, 2, 3, 1))
    out1 = _ref_conv_bn_relu(x, params["b1"], 2, 0)
    h = _ref_conv_bn_relu(x, params["b2_0"], 1, 0)
    h = _ref_conv_bn_relu(h, params["b2_1"], 1, 1)
    out2 = _ref_conv_bn_relu(h, params["b2_2"], 2, 0)
    out3 = jax.lax.reduce_window(
        x, -jnp.inf, jax.lax.max, (1, 3, 3, 1), (1, 2, 2, 1), "VALID")
    out = jnp.concatenate([out1, out2, out3], axis=-1)
    return jnp.transpose(out, (0, 3, 1, 2))


if __name__ == "__main__":
    key = jax.random.PRNGKey(0)
    kx, k1, k2, k3, k4 = jax.random.split(key, 5)
    in_chan = 4
    x = jax.random.normal(kx, (2, in_chan, 16, 16), jnp.float32)
    params = {
        "b1":   init_conv_params(k1, in_chan, 384, 3),
        "b2_0": init_conv_params(k2, in_chan, 64, 1),
        "b2_1": init_conv_params(k3, 64, 96, 3),
        "b2_2": init_conv_params(k4, 96, 96, 3),
    }

    out = jax.jit(inception_block_x2)(x, params)
    out = jax.block_until_ready(out)

    assert out.shape == (2, 384 + 96 + in_chan, 7, 7), out.shape
    ref = _ref_forward(x, params)
    assert bool(jnp.allclose(out, ref, rtol=5e-2, atol=5e-2)), "mismatch vs reference"
    print("KERNEL_OK")
</pallas_src>

<mosaic_0001>
module attributes {stable_mosaic.version = 11 : i64} {
  func.func @_inception_kernel(%arg0: i32, %arg1: memref<1x256x4xbf16, #tpu.memory_space<vmem>>, %arg2: memref<9x49x256xbf16, #tpu.memory_space<vmem>>, %arg3: memref<9x256x256xbf16, #tpu.memory_space<vmem>>, %arg4: memref<9x4x384xbf16, #tpu.memory_space<vmem>>, %arg5: memref<1x384xf32, #tpu.memory_space<vmem>>, %arg6: memref<4x64xbf16, #tpu.memory_space<vmem>>, %arg7: memref<1x64xf32, #tpu.memory_space<vmem>>, %arg8: memref<9x64x96xbf16, #tpu.memory_space<vmem>>, %arg9: memref<1x96xf32, #tpu.memory_space<vmem>>, %arg10: memref<9x96x96xbf16, #tpu.memory_space<vmem>>, %arg11: memref<1x96xf32, #tpu.memory_space<vmem>>, %arg12: memref<1x49x484xf32, #tpu.memory_space<vmem>>) attributes {dimension_semantics = [#tpu.dimension_semantics<parallel>], iteration_bounds = array<i64: 2>, scalar_prefetch = 0 : i64, scratch_operands = 0 : i64, tpu.core_type = #tpu.core_type<tc>, window_params = [{transform_indices = @transform_0, window_bounds = array<i64: 1, 256, 4>}, {pipeline_mode = #tpu.pipeline_mode<synchronous>, transform_indices = @transform_1, window_bounds = array<i64: 9, 49, 256>}, {pipeline_mode = #tpu.pipeline_mode<synchronous>, transform_indices = @transform_2, window_bounds = array<i64: 9, 256, 256>}, {pipeline_mode = #tpu.pipeline_mode<synchronous>, transform_indices = @transform_3, window_bounds = array<i64: 9, 4, 384>}, {pipeline_mode = #tpu.pipeline_mode<synchronous>, transform_indices = @transform_4, window_bounds = array<i64: 1, 384>}, {pipeline_mode = #tpu.pipeline_mode<synchronous>, transform_indices = @transform_5, window_bounds = array<i64: 4, 64>}, {pipeline_mode = #tpu.pipeline_mode<synchronous>, transform_indices = @transform_6, window_bounds = array<i64: 1, 64>}, {pipeline_mode = #tpu.pipeline_mode<synchronous>, transform_indices = @transform_7, window_bounds = array<i64: 9, 64, 96>}, {pipeline_mode = #tpu.pipeline_mode<synchronous>, transform_indices = @transform_8, window_bounds = array<i64: 1, 96>}, {pipeline_mode = #tpu.pipeline_mode<synchronous>, transform_indices = @transform_9, window_bounds = array<i64: 9, 96, 96>}, {pipeline_mode = #tpu.pipeline_mode<synchronous>, transform_indices = @transform_10, window_bounds = array<i64: 1, 96>}, {transform_indices = @transform_11, window_bounds = array<i64: 1, 49, 484>}]} {
    %c0 = arith.constant 0 : index
    %c0_0 = arith.constant 0 : index
    %c0_1 = arith.constant 0 : index
    %0 = vector.load %arg1[%c0, %c0_0, %c0_1] : memref<1x256x4xbf16, #tpu.memory_space<vmem>>, vector<1x256x4xbf16>
    %1 = vector.shape_cast %0 : vector<1x256x4xbf16> to vector<256x4xbf16>
    %c0_2 = arith.constant 0 : index
    %c0_3 = arith.constant 0 : index
    %2 = vector.load %arg6[%c0_2, %c0_3] : memref<4x64xbf16, #tpu.memory_space<vmem>>, vector<4x64xbf16>
    %cst = arith.constant dense<0.000000e+00> : vector<256x64xf32>
    %3 = tpu.matmul %1, %2, %cst {dimension_numbers = #tpu.dot_dimension_numbers<[1], [0], [0], [1], [0, 0, 1, 1], [], []>} : vector<256x4xbf16>, vector<4x64xbf16>, vector<256x64xf32> -> vector<256x64xf32>
    %c0_4 = arith.constant 0 : index
    %c0_5 = arith.constant 0 : index
    %4 = vector.load %arg7[%c0_4, %c0_5] : memref<1x64xf32, #tpu.memory_space<vmem>>, vector<1x64xf32>
    %5 = vector.broadcast %4 : vector<1x64xf32> to vector<256x64xf32>
    %6 = arith.addf %3, %5 : vector<256x64xf32>
    %cst_6 = arith.constant 0.000000e+00 : f32
    %7 = vector.broadcast %cst_6 : f32 to vector<256x64xf32>
    %8 = arith.maximumf %6, %7 : vector<256x64xf32>
    %9 = arith.truncf %8 : vector<256x64xf32> to vector<256x64xbf16>
    %cst_7 = arith.constant 0.000000e+00 : f32
    %10 = vector.broadcast %cst_7 : f32 to vector<256x96xf32>
    %c0_8 = arith.constant 0 : index
    %c0_9 = arith.constant 0 : index
    %c0_10 = arith.constant 0 : index
    %11 = vector.load %arg3[%c0_8, %c0_9, %c0_10] : memref<9x256x256xbf16, #tpu.memory_space<vmem>>, vector<1x256x256xbf16>
    %12 = vector.shape_cast %11 : vector<1x256x256xbf16> to vector<256x256xbf16>
    %cst_11 = arith.constant dense<0.000000e+00> : vector<256x64xf32>
    %13 = tpu.matmul %12, %9, %cst_11 {dimension_numbers = #tpu.dot_dimension_numbers<[1], [0], [0], [1], [0, 0, 1, 1], [], []>} : vector<256x256xbf16>, vector<256x64xbf16>, vector<256x64xf32> -> vector<256x64xf32>
    %14 = arith.truncf %13 : vector<256x64xf32> to vector<256x64xbf16>
    %c0_12 = arith.constant 0 : index
    %c0_13 = arith.constant 0 : index
    %c0_14 = arith.constant 0 : index
    %15 = vector.load %arg8[%c0_12, %c0_13, %c0_14] : memref<9x64x96xbf16, #tpu.memory_space<vmem>>, vector<1x64x96xbf16>
    %16 = vector.shape_cast %15 : vector<1x64x96xbf16> to vector<64x96xbf16>
    %cst_15 = arith.constant dense<0.000000e+00> : vector<256x96xf32>
    %17 = tpu.matmul %14, %16, %cst_15 {dimension_numbers = #tpu.dot_dimension_numbers<[1], [0], [0], [1], [0, 0, 1, 1], [], []>} : vector<256x64xbf16>, vector<64x96xbf16>, vector<256x96xf32> -> vector<256x96xf32>
    %18 = arith.addf %10, %17 : vector<256x96xf32>
    %c1 = arith.constant 1 : index
    %c0_16 = arith.constant 0 : index
    %c0_17 = arith.constant 0 : index
    %19 = vector.load %arg3[%c1, %c0_16, %c0_17] : memref<9x256x256xbf16, #tpu.memory_space<vmem>>, vector<1x256x256xbf16>
    %20 = vector.shape_cast %19 : vector<1x256x256xbf16> to vector<256x256xbf16>
    %cst_18 = arith.constant dense<0.000000e+00> : vector<256x64xf32>
    %21 = tpu.matmul %20, %9, %cst_18 {dimension_numbers = #tpu.dot_dimension_numbers<[1], [0], [0], [1], [0, 0, 1, 1], [], []>} : vector<256x256xbf16>, vector<256x64xbf16>, vector<256x64xf32> -> vector<256x64xf32>
    %22 = arith.truncf %21 : vector<256x64xf32> to vector<256x64xbf16>
    %c1_19 = arith.constant 1 : index
    %c0_20 = arith.constant 0 : index
    %c0_21 = arith.constant 0 : index
    %23 = vector.load %arg8[%c1_19, %c0_20, %c0_21] : memref<9x64x96xbf16, #tpu.memory_space<vmem>>, vector<1x64x96xbf16>
    %24 = vector.shape_cast %23 : vector<1x64x96xbf16> to vector<64x96xbf16>
    %cst_22 = arith.constant dense<0.000000e+00> : vector<256x96xf32>
    %25 = tpu.matmul %22, %24, %cst_22 {dimension_numbers = #tpu.dot_dimension_numbers<[1], [0], [0], [1], [0, 0, 1, 1], [], []>} : vector<256x64xbf16>, vector<64x96xbf16>, vector<256x96xf32> -> vector<256x96xf32>
    %26 = arith.addf %18, %25 : vector<256x96xf32>
    %c2 = arith.constant 2 : index
    %c0_23 = arith.constant 0 : index
    %c0_24 = arith.constant 0 : index
    %27 = vector.load %arg3[%c2, %c0_23, %c0_24] : memref<9x256x256xbf16, #tpu.memory_space<vmem>>, vector<1x256x256xbf16>
    %28 = vector.shape_cast %27 : vector<1x256x256xbf16> to vector<256x256xbf16>
    %cst_25 = arith.constant dense<0.000000e+00> : vector<256x64xf32>
    %29 = tpu.matmul %28, %9, %cst_25 {dimension_numbers = #tpu.dot_dimension_numbers<[1], [0], [0], [1], [0, 0, 1, 1], [], []>} : vector<256x256xbf16>, vector<256x64xbf16>, vector<256x64xf32> -> vector<256x64xf32>
    %30 = arith.truncf %29 : vector<256x64xf32> to vector<256x64xbf16>
    %c2_26 = arith.constant 2 : index
    %c0_27 = arith.constant 0 : index
    %c0_28 = arith.constant 0 : index
    %31 = vector.load %arg8[%c2_26, %c0_27, %c0_28] : memref<9x64x96xbf16, #tpu.memory_space<vmem>>, vector<1x64x96xbf16>
    %32 = vector.shape_cast %31 : vector<1x64x96xbf16> to vector<64x96xbf16>
    %cst_29 = arith.constant dense<0.000000e+00> : vector<256x96xf32>
    %33 = tpu.matmul %30, %32, %cst_29 {dimension_numbers = #tpu.dot_dimension_numbers<[1], [0], [0], [1], [0, 0, 1, 1], [], []>} : vector<256x64xbf16>, vector<64x96xbf16>, vector<256x96xf32> -> vector<256x96xf32>
    %34 = arith.addf %26, %33 : vector<256x96xf32>
    %c3 = arith.constant 3 : index
    %c0_30 = arith.constant 0 : index
    %c0_31 = arith.constant 0 : index
    %35 = vector.load %arg3[%c3, %c0_30, %c0_31] : memref<9x256x256xbf16, #tpu.memory_space<vmem>>, vector<1x256x256xbf16>
    %36 = vector.shape_cast %35 : vector<1x256x256xbf16> to vector<256x256xbf16>
    %cst_32 = arith.constant dense<0.000000e+00> : vector<256x64xf32>
    %37 = tpu.matmul %36, %9, %cst_32 {dimension_numbers = #tpu.dot_dimension_numbers<[1], [0], [0], [1], [0, 0, 1, 1], [], []>} : vector<256x256xbf16>, vector<256x64xbf16>, vector<256x64xf32> -> vector<256x64xf32>
    %38 = arith.truncf %37 : vector<256x64xf32> to vector<256x64xbf16>
    %c3_33 = arith.constant 3 : index
    %c0_34 = arith.constant 0 : index
    %c0_35 = arith.constant 0 : index
    %39 = vector.load %arg8[%c3_33, %c0_34, %c0_35] : memref<9x64x96xbf16, #tpu.memory_space<vmem>>, vector<1x64x96xbf16>
    %40 = vector.shape_cast %39 : vector<1x64x96xbf16> to vector<64x96xbf16>
    %cst_36 = arith.constant dense<0.000000e+00> : vector<256x96xf32>
    %41 = tpu.matmul %38, %40, %cst_36 {dimension_numbers = #tpu.dot_dimension_numbers<[1], [0], [0], [1], [0, 0, 1, 1], [], []>} : vector<256x64xbf16>, vector<64x96xbf16>, vector<256x96xf32> -> vector<256x96xf32>
    %42 = arith.addf %34, %41 : vector<256x96xf32>
    %c4 = arith.constant 4 : index
    %c0_37 = arith.constant 0 : index
    %c0_38 = arith.constant 0 : index
    %43 = vector.load %arg3[%c4, %c0_37, %c0_38] : memref<9x256x256xbf16, #tpu.memory_space<vmem>>, vector<1x256x256xbf16>
    %44 = vector.shape_cast %43 : vector<1x256x256xbf16> to vector<256x256xbf16>
    %cst_39 = arith.constant dense<0.000000e+00> : vector<256x64xf32>
    %45 = tpu.matmul %44, %9, %cst_39 {dimension_numbers = #tpu.dot_dimension_numbers<[1], [0], [0], [1], [0, 0, 1, 1], [], []>} : vector<256x256xbf16>, vector<256x64xbf16>, vector<256x64xf32> -> vector<256x64xf32>
    %46 = arith.truncf %45 : vector<256x64xf32> to vector<256x64xbf16>
    %c4_40 = arith.constant 4 : index
    %c0_41 = arith.constant 0 : index
    %c0_42 = arith.constant 0 : index
    %47 = vector.load %arg8[%c4_40, %c0_41, %c0_42] : memref<9x64x96xbf16, #tpu.memory_space<vmem>>, vector<1x64x96xbf16>
    %48 = vector.shape_cast %47 : vector<1x64x96xbf16> to vector<64x96xbf16>
    %cst_43 = arith.constant dense<0.000000e+00> : vector<256x96xf32>
    %49 = tpu.matmul %46, %48, %cst_43 {dimension_numbers = #tpu.dot_dimension_numbers<[1], [0], [0], [1], [0, 0, 1, 1], [], []>} : vector<256x64xbf16>, vector<64x96xbf16>, vector<256x96xf32> -> vector<256x96xf32>
    %50 = arith.addf %42, %49 : vector<256x96xf32>
    %c5 = arith.constant 5 : index
    %c0_44 = arith.constant 0 : index
    %c0_45 = arith.constant 0 : index
    %51 = vector.load %arg3[%c5, %c0_44, %c0_45] : memref<9x256x256xbf16, #tpu.memory_space<vmem>>, vector<1x256x256xbf16>
    %52 = vector.shape_cast %51 : vector<1x256x256xbf16> to vector<256x256xbf16>
    %cst_46 = arith.constant dense<0.000000e+00> : vector<256x64xf32>
    %53 = tpu.matmul %52, %9, %cst_46 {dimension_numbers = #tpu.dot_dimension_numbers<[1], [0], [0], [1], [0, 0, 1, 1], [], []>} : vector<256x256xbf16>, vector<256x64xbf16>, vector<256x64xf32> -> vector<256x64xf32>
    %54 = arith.truncf %53 : vector<256x64xf32> to vector<256x64xbf16>
    %c5_47 = arith.constant 5 : index
    %c0_48 = arith.constant 0 : index
    %c0_49 = arith.constant 0 : index
    %55 = vector.load %arg8[%c5_47, %c0_48, %c0_49] : memref<9x64x96xbf16, #tpu.memory_space<vmem>>, vector<1x64x96xbf16>
    %56 = vector.shape_cast %55 : vector<1x64x96xbf16> to vector<64x96xbf16>
    %cst_50 = arith.constant dense<0.000000e+00> : vector<256x96xf32>
    %57 = tpu.matmul %54, %56, %cst_50 {dimension_numbers = #tpu.dot_dimension_numbers<[1], [0], [0], [1], [0, 0, 1, 1], [], []>} : vector<256x64xbf16>, vector<64x96xbf16>, vector<256x96xf32> -> vector<256x96xf32>
    %58 = arith.addf %50, %57 : vector<256x96xf32>
    %c6 = arith.constant 6 : index
    %c0_51 = arith.constant 0 : index
    %c0_52 = arith.constant 0 : index
    %59 = vector.load %arg3[%c6, %c0_51, %c0_52] : memref<9x256x256xbf16, #tpu.memory_space<vmem>>, vector<1x256x256xbf16>
    %60 = vector.shape_cast %59 : vector<1x256x256xbf16> to vector<256x256xbf16>
    %cst_53 = arith.constant dense<0.000000e+00> : vector<256x64xf32>
    %61 = tpu.matmul %60, %9, %cst_53 {dimension_numbers = #tpu.dot_dimension_numbers<[1], [0], [0], [1], [0, 0, 1, 1], [], []>} : vector<256x256xbf16>, vector<256x64xbf16>, vector<256x64xf32> -> vector<256x64xf32>
    %62 = arith.truncf %61 : vector<256x64xf32> to vector<256x64xbf16>
    %c6_54 = arith.constant 6 : index
    %c0_55 = arith.constant 0 : index
    %c0_56 = arith.constant 0 : index
    %63 = vector.load %arg8[%c6_54, %c0_55, %c0_56] : memref<9x64x96xbf16, #tpu.memory_space<vmem>>, vector<1x64x96xbf16>
    %64 = vector.shape_cast %63 : vector<1x64x96xbf16> to vector<64x96xbf16>
    %cst_57 = arith.constant dense<0.000000e+00> : vector<256x96xf32>
    %65 = tpu.matmul %62, %64, %cst_57 {dimension_numbers = #tpu.dot_dimension_numbers<[1], [0], [0], [1], [0, 0, 1, 1], [], []>} : vector<256x64xbf16>, vector<64x96xbf16>, vector<256x96xf32> -> vector<256x96xf32>
    %66 = arith.addf %58, %65 : vector<256x96xf32>
    %c7 = arith.constant 7 : index
    %c0_58 = arith.constant 0 : index
    %c0_59 = arith.constant 0 : index
    %67 = vector.load %arg3[%c7, %c0_58, %c0_59] : memref<9x256x256xbf16, #tpu.memory_space<vmem>>, vector<1x256x256xbf16>
    %68 = vector.shape_cast %67 : vector<1x256x256xbf16> to vector<256x256xbf16>
    %cst_60 = arith.constant dense<0.000000e+00> : vector<256x64xf32>
    %69 = tpu.matmul %68, %9, %cst_60 {dimension_numbers = #tpu.dot_dimension_numbers<[1], [0], [0], [1], [0, 0, 1, 1], [], []>} : vector<256x256xbf16>, vector<256x64xbf16>, vector<256x64xf32> -> vector<256x64xf32>
    %70 = arith.truncf %69 : vector<256x64xf32> to vector<256x64xbf16>
    %c7_61 = arith.constant 7 : index
    %c0_62 = arith.constant 0 : index
    %c0_63 = arith.constant 0 : index
    %71 = vector.load %arg8[%c7_61, %c0_62, %c0_63] : memref<9x64x96xbf16, #tpu.memory_space<vmem>>, vector<1x64x96xbf16>
    %72 = vector.shape_cast %71 : vector<1x64x96xbf16> to vector<64x96xbf16>
    %cst_64 = arith.constant dense<0.000000e+00> : vector<256x96xf32>
    %73 = tpu.matmul %70, %72, %cst_64 {dimension_numbers = #tpu.dot_dimension_numbers<[1], [0], [0], [1], [0, 0, 1, 1], [], []>} : vector<256x64xbf16>, vector<64x96xbf16>, vector<256x96xf32> -> vector<256x96xf32>
    %74 = arith.addf %66, %73 : vector<256x96xf32>
    %c8 = arith.constant 8 : index
    %c0_65 = arith.constant 0 : index
    %c0_66 = arith.constant 0 : index
    %75 = vector.load %arg3[%c8, %c0_65, %c0_66] : memref<9x256x256xbf16, #tpu.memory_space<vmem>>, vector<1x256x256xbf16>
    %76 = vector.shape_cast %75 : vector<1x256x256xbf16> to vector<256x256xbf16>
    %cst_67 = arith.constant dense<0.000000e+00> : vector<256x64xf32>
    %77 = tpu.matmul %76, %9, %cst_67 {dimension_numbers = #tpu.dot_dimension_numbers<[1], [0], [0], [1], [0, 0, 1, 1], [], []>} : vector<256x256xbf16>, vector<256x64xbf16>, vector<256x64xf32> -> vector<256x64xf32>
    %78 = arith.truncf %77 : vector<256x64xf32> to vector<256x64xbf16>
    %c8_68 = arith.constant 8 : index
    %c0_69 = arith.constant 0 : index
    %c0_70 = arith.constant 0 : index
    %79 = vector.load %arg8[%c8_68, %c0_69, %c0_70] : memref<9x64x96xbf16, #tpu.memory_space<vmem>>, vector<1x64x96xbf16>
    %80 = vector.shape_cast %79 : vector<1x64x96xbf16> to vector<64x96xbf16>
    %cst_71 = arith.constant dense<0.000000e+00> : vector<256x96xf32>
    %81 = tpu.matmul %78, %80, %cst_71 {dimension_numbers = #tpu.dot_dimension_numbers<[1], [0], [0], [1], [0, 0, 1, 1], [], []>} : vector<256x64xbf16>, vector<64x96xbf16>, vector<256x96xf32> -> vector<256x96xf32>
    %82 = arith.addf %74, %81 : vector<256x96xf32>
    %c0_72 = arith.constant 0 : index
    %c0_73 = arith.constant 0 : index
    %83 = vector.load %arg9[%c0_72, %c0_73] : memref<1x96xf32, #tpu.memory_space<vmem>>, vector<1x96xf32>
    %84 = vector.broadcast %83 : vector<1x96xf32> to vector<256x96xf32>
    %85 = arith.addf %82, %84 : vector<256x96xf32>
    %cst_74 = arith.constant 0.000000e+00 : f32
    %86 = vector.broadcast %cst_74 : f32 to vector<256x96xf32>
    %87 = arith.maximumf %85, %86 : vector<256x96xf32>
    %88 = arith.truncf %87 : vector<256x96xf32> to vector<256x96xbf16>
    %cst_75 = arith.constant 0.000000e+00 : f32
    %89 = vector.broadcast %cst_75 : f32 to vector<49x384xf32>
    %cst_76 = arith.constant 0.000000e+00 : f32
    %90 = vector.broadcast %cst_76 : f32 to vector<49x96xf32>
    %cst_77 = arith.constant 0xFF800000 : f32
    %91 = vector.broadcast %cst_77 : f32 to vector<49x4xf32>
    %c0_78 = arith.constant 0 : index
    %c0_79 = arith.constant 0 : index
    %c0_80 = arith.constant 0 : index
    %92 = vector.load %arg2[%c0_78, %c0_79, %c0_80] : memref<9x49x256xbf16, #tpu.memory_space<vmem>>, vector<1x49x256xbf16>
    %93 = vector.shape_cast %92 : vector<1x49x256xbf16> to vector<49x256xbf16>
    %cst_81 = arith.constant dense<0.000000e+00> : vector<49x4xf32>
    %94 = tpu.matmul %93, %1, %cst_81 {dimension_numbers = #tpu.dot_dimension_numbers<[1], [0], [0], [1], [0, 0, 1, 1], [], []>} : vector<49x256xbf16>, vector<256x4xbf16>, vector<49x4xf32> -> vector<49x4xf32>
    %95 = arith.maximumf %91, %94 : vector<49x4xf32>
    %96 = arith.truncf %94 : vector<49x4xf32> to vector<49x4xbf16>
    %c0_82 = arith.constant 0 : index
    %c0_83 = arith.constant 0 : index
    %c0_84 = arith.constant 0 : index
    %97 = vector.load %arg4[%c0_82, %c0_83, %c0_84] : memref<9x4x384xbf16, #tpu.memory_space<vmem>>, vector<1x4x384xbf16>
    %98 = vector.shape_cast %97 : vector<1x4x384xbf16> to vector<4x384xbf16>
    %cst_85 = arith.constant dense<0.000000e+00> : vector<49x384xf32>
    %99 = tpu.matmul %96, %98, %cst_85 {dimension_numbers = #tpu.dot_dimension_numbers<[1], [0], [0], [1], [0, 0, 1, 1], [], []>} : vector<49x4xbf16>, vector<4x384xbf16>, vector<49x384xf32> -> vector<49x384xf32>
    %100 = arith.addf %89, %99 : vector<49x384xf32>
    %c0_86 = arith.constant 0 : index
    %c0_87 = arith.constant 0 : index
    %c0_88 = arith.constant 0 : index
    %101 = vector.load %arg2[%c0_86, %c0_87, %c0_88] : memref<9x49x256xbf16, #tpu.memory_space<vmem>>, vector<1x49x256xbf16>
    %102 = vector.shape_cast %101 : vector<1x49x256xbf16> to vector<49x256xbf16>
    %cst_89 = arith.constant dense<0.000000e+00> : vector<49x96xf32>
    %103 = tpu.matmul %102, %88, %cst_89 {dimension_numbers = #tpu.dot_dimension_numbers<[1], [0], [0], [1], [0, 0, 1, 1], [], []>} : vector<49x256xbf16>, vector<256x96xbf16>, vector<49x96xf32> -> vector<49x96xf32>
    %104 = arith.truncf %103 : vector<49x96xf32> to vector<49x96xbf16>
    %c0_90 = arith.constant 0 : index
    %c0_91 = arith.constant 0 : index
    %c0_92 = arith.constant 0 : index
    %105 = vector.load %arg10[%c0_90, %c0_91, %c0_92] : memref<9x96x96xbf16, #tpu.memory_space<vmem>>, vector<1x96x96xbf16>
    %106 = vector.shape_cast %105 : vector<1x96x96xbf16> to vector<96x96xbf16>
    %cst_93 = arith.constant dense<0.000000e+00> : vector<49x96xf32>
    %107 = tpu.matmul %104, %106, %cst_93 {dimension_numbers = #tpu.dot_dimension_numbers<[1], [0], [0], [1], [0, 0, 1, 1], [], []>} : vector<49x96xbf16>, vector<96x96xbf16>, vector<49x96xf32> -> vector<49x96xf32>
    %108 = arith.addf %90, %107 : vector<49x96xf32>
    %c1_94 = arith.constant 1 : index
    %c0_95 = arith.constant 0 : index
    %c0_96 = arith.constant 0 : index
    %109 = vector.load %arg2[%c1_94, %c0_95, %c0_96] : memref<9x49x256xbf16, #tpu.memory_space<vmem>>, vector<1x49x256xbf16>
    %110 = vector.shape_cast %109 : vector<1x49x256xbf16> to vector<49x256xbf16>
    %cst_97 = arith.constant dense<0.000000e+00> : vector<49x4xf32>
    %111 = tpu.matmul %110, %1, %cst_97 {dimension_numbers = #tpu.dot_dimension_numbers<[1], [0], [0], [1], [0, 0, 1, 1], [], []>} : vector<49x256xbf16>, vector<256x4xbf16>, vector<49x4xf32> -> vector<49x4xf32>
    %112 = arith.maximumf %95, %111 : vector<49x4xf32>
    %113 = arith.truncf %111 : vector<49x4xf32> to vector<49x4xbf16>
    %c1_98 = arith.constant 1 : index
    %c0_99 = arith.constant 0 : index
    %c0_100 = arith.constant 0 : index
    %114 = vector.load %arg4[%c1_98, %c0_99, %c0_100] : memref<9x4x384xbf16, #tpu.memory_space<vmem>>, vector<1x4x384xbf16>
    %115 = vector.shape_cast %114 : vector<1x4x384xbf16> to vector<4x384xbf16>
    %cst_101 = arith.constant dense<0.000000e+00> : vector<49x384xf32>
    %116 = tpu.matmul %113, %115, %cst_101 {dimension_numbers = #tpu.dot_dimension_numbers<[1], [0], [0], [1], [0, 0, 1, 1], [], []>} : vector<49x4xbf16>, vector<4x384xbf16>, vector<49x384xf32> -> vector<49x384xf32>
    %117 = arith.addf %100, %116 : vector<49x384xf32>
    %c1_102 = arith.constant 1 : index
    %c0_103 = arith.constant 0 : index
    %c0_104 = arith.constant 0 : index
    %118 = vector.load %arg2[%c1_102, %c0_103, %c0_104] : memref<9x49x256xbf16, #tpu.memory_space<vmem>>, vector<1x49x256xbf16>
    %119 = vector.shape_cast %118 : vector<1x49x256xbf16> to vector<49x256xbf16>
    %cst_105 = arith.constant dense<0.000000e+00> : vector<49x96xf32>
    %120 = tpu.matmul %119, %88, %cst_105 {dimension_numbers = #tpu.dot_dimension_numbers<[1], [0], [0], [1], [0, 0, 1, 1], [], []>} : vector<49x256xbf16>, vector<256x96xbf16>, vector<49x96xf32> -> vector<49x96xf32>
    %121 = arith.truncf %120 : vector<49x96xf32> to vector<49x96xbf16>
    %c1_106 = arith.constant 1 : index
    %c0_107 = arith.constant 0 : index
    %c0_108 = arith.constant 0 : index
    %122 = vector.load %arg10[%c1_106, %c0_107, %c0_108] : memref<9x96x96xbf16, #tpu.memory_space<vmem>>, vector<1x96x96xbf16>
    %123 = vector.shape_cast %122 : vector<1x96x96xbf16> to vector<96x96xbf16>
    %cst_109 = arith.constant dense<0.000000e+00> : vector<49x96xf32>
    %124 = tpu.matmul %121, %123, %cst_109 {dimension_numbers = #tpu.dot_dimension_numbers<[1], [0], [0], [1], [0, 0, 1, 1], [], []>} : vector<49x96xbf16>, vector<96x96xbf16>, vector<49x96xf32> -> vector<49x96xf32>
    %125 = arith.addf %108, %124 : vector<49x96xf32>
    %c2_110 = arith.constant 2 : index
    %c0_111 = arith.constant 0 : index
    %c0_112 = arith.constant 0 : index
    %126 = vector.load %arg2[%c2_110, %c0_111, %c0_112] : memref<9x49x256xbf16, #tpu.memory_space<vmem>>, vector<1x49x256xbf16>
    %127 = vector.shape_cast %126 : vector<1x49x256xbf16> to vector<49x256xbf16>
    %cst_113 = arith.constant dense<0.000000e+00> : vector<49x4xf32>
    %128 = tpu.matmul %127, %1, %cst_113 {dimension_numbers = #tpu.dot_dimension_numbers<[1], [0], [0], [1], [0, 0, 1, 1], [], []>} : vector<49x256xbf16>, vector<256x4xbf16>, vector<49x4xf32> -> vector<49x4xf32>
    %129 = arith.maximumf %112, %128 : vector<49x4xf32>
    %130 = arith.truncf %128 : vector<49x4xf32> to vector<49x4xbf16>
    %c2_114 = arith.constant 2 : index
    %c0_115 = arith.constant 0 : index
    %c0_116 = arith.constant 0 : index
    %131 = vector.load %arg4[%c2_114, %c0_115, %c0_116] : memref<9x4x384xbf16, #tpu.memory_space<vmem>>, vector<1x4x384xbf16>
    %132 = vector.shape_cast %131 : vector<1x4x384xbf16> to vector<4x384xbf16>
    %cst_117 = arith.constant dense<0.000000e+00> : vector<49x384xf32>
    %133 = tpu.matmul %130, %132, %cst_117 {dimension_numbers = #tpu.dot_dimension_numbers<[1], [0], [0], [1], [0, 0, 1, 1], [], []>} : vector<49x4xbf16>, vector<4x384xbf16>, vector<49x384xf32> -> vector<49x384xf32>
    %134 = arith.addf %117, %133 : vector<49x384xf32>
    %c2_118 = arith.constant 2 : index
    %c0_119 = arith.constant 0 : index
    %c0_120 = arith.constant 0 : index
    %135 = vector.load %arg2[%c2_118, %c0_119, %c0_120] : memref<9x49x256xbf16, #tpu.memory_space<vmem>>, vector<1x49x256xbf16>
    %136 = vector.shape_cast %135 : vector<1x49x256xbf16> to vector<49x256xbf16>
    %cst_121 = arith.constant dense<0.000000e+00> : vector<49x96xf32>
    %137 = tpu.matmul %136, %88, %cst_121 {dimension_numbers = #tpu.dot_dimension_numbers<[1], [0], [0], [1], [0, 0, 1, 1], [], []>} : vector<49x256xbf16>, vector<256x96xbf16>, vector<49x96xf32> -> vector<49x96xf32>
    %138 = arith.truncf %137 : vector<49x96xf32> to vector<49x96xbf16>
    %c2_122 = arith.constant 2 : index
    %c0_123 = arith.constant 0 : index
    %c0_124 = arith.constant 0 : index
    %139 = vector.load %arg10[%c2_122, %c0_123, %c0_124] : memref<9x96x96xbf16, #tpu.memory_space<vmem>>, vector<1x96x96xbf16>
    %140 = vector.shape_cast %139 : vector<1x96x96xbf16> to vector<96x96xbf16>
    %cst_125 = arith.constant dense<0.000000e+00> : vector<49x96xf32>
    %141 = tpu.matmul %138, %140, %cst_125 {dimension_numbers = #tpu.dot_dimension_numbers<[1], [0], [0], [1], [0, 0, 1, 1], [], []>} : vector<49x96xbf16>, vector<96x96xbf16>, vector<49x96xf32> -> vector<49x96xf32>
    %142 = arith.addf %125, %141 : vector<49x96xf32>
    %c3_126 = arith.constant 3 : index
    %c0_127 = arith.constant 0 : index
    %c0_128 = arith.constant 0 : index
    %143 = vector.load %arg2[%c3_126, %c0_127, %c0_128] : memref<9x49x256xbf16, #tpu.memory_space<vmem>>, vector<1x49x256xbf16>
    %144 = vector.shape_cast %143 : vector<1x49x256xbf16> to vector<49x256xbf16>
    %cst_129 = arith.constant dense<0.000000e+00> : vector<49x4xf32>
    %145 = tpu.matmul %144, %1, %cst_129 {dimension_numbers = #tpu.dot_dimension_numbers<[1], [0], [0], [1], [0, 0, 1, 1], [], []>} : vector<49x256xbf16>, vector<256x4xbf16>, vector<49x4xf32> -> vector<49x4xf32>
    %146 = arith.maximumf %129, %145 : vector<49x4xf32>
    %147 = arith.truncf %145 : vector<49x4xf32> to vector<49x4xbf16>
    %c3_130 = arith.constant 3 : index
    %c0_131 = arith.constant 0 : index
    %c0_132 = arith.constant 0 : index
    %148 = vector.load %arg4[%c3_130, %c0_131, %c0_132] : memref<9x4x384xbf16, #tpu.memory_space<vmem>>, vector<1x4x384xbf16>
    %149 = vector.shape_cast %148 : vector<1x4x384xbf16> to vector<4x384xbf16>
    %cst_133 = arith.constant dense<0.000000e+00> : vector<49x384xf32>
    %150 = tpu.matmul %147, %149, %cst_133 {dimension_numbers = #tpu.dot_dimension_numbers<[1], [0], [0], [1], [0, 0, 1, 1], [], []>} : vector<49x4xbf16>, vector<4x384xbf16>, vector<49x384xf32> -> vector<49x384xf32>
    %151 = arith.addf %134, %150 : vector<49x384xf32>
    %c3_134 = arith.constant 3 : index
    %c0_135 = arith.constant 0 : index
    %c0_136 = arith.constant 0 : index
    %152 = vector.load %arg2[%c3_134, %c0_135, %c0_136] : memref<9x49x256xbf16, #tpu.memory_space<vmem>>, vector<1x49x256xbf16>
    %153 = vector.shape_cast %152 : vector<1x49x256xbf16> to vector<49x256xbf16>
    %cst_137 = arith.constant dense<0.000000e+00> : vector<49x96xf32>
    %154 = tpu.matmul %153, %88, %cst_137 {dimension_numbers = #tpu.dot_dimension_numbers<[1], [0], [0], [1], [0, 0, 1, 1], [], []>} : vector<49x256xbf16>, vector<256x96xbf16>, vector<49x96xf32> -> vector<49x96xf32>
    %155 = arith.truncf %154 : vector<49x96xf32> to vector<49x96xbf16>
    %c3_138 = arith.constant 3 : index
    %c0_139 = arith.constant 0 : index
    %c0_140 = arith.constant 0 : index
    %156 = vector.load %arg10[%c3_138, %c0_139, %c0_140] : memref<9x96x96xbf16, #tpu.memory_space<vmem>>, vector<1x96x96xbf16>
    %157 = vector.shape_cast %156 : vector<1x96x96xbf16> to vector<96x96xbf16>
    %cst_141 = arith.constant dense<0.000000e+00> : vector<49x96xf32>
    %158 = tpu.matmul %155, %157, %cst_141 {dimension_numbers = #tpu.dot_dimension_numbers<[1], [0], [0], [1], [0, 0, 1, 1], [], []>} : vector<49x96xbf16>, vector<96x96xbf16>, vector<49x96xf32> -> vector<49x96xf32>
    %159 = arith.addf %142, %158 : vector<49x96xf32>
    %c4_142 = arith.constant 4 : index
    %c0_143 = arith.constant 0 : index
    %c0_144 = arith.constant 0 : index
    %160 = vector.load %arg2[%c4_142, %c0_143, %c0_144] : memref<9x49x256xbf16, #tpu.memory_space<vmem>>, vector<1x49x256xbf16>
    %161 = vector.shape_cast %160 : vector<1x49x256xbf16> to vector<49x256xbf16>
    %cst_145 = arith.constant dense<0.000000e+00> : vector<49x4xf32>
    %162 = tpu.matmul %161, %1, %cst_145 {dimension_numbers = #tpu.dot_dimension_numbers<[1], [0], [0], [1], [0, 0, 1, 1], [], []>} : vector<49x256xbf16>, vector<256x4xbf16>, vector<49x4xf32> -> vector<49x4xf32>
    %163 = arith.maximumf %146, %162 : vector<49x4xf32>
    %164 = arith.truncf %162 : vector<49x4xf32> to vector<49x4xbf16>
    %c4_146 = arith.constant 4 : index
    %c0_147 = arith.constant 0 : index
    %c0_148 = arith.constant 0 : index
    %165 = vector.load %arg4[%c4_146, %c0_147, %c0_148] : memref<9x4x384xbf16, #tpu.memory_space<vmem>>, vector<1x4x384xbf16>
    %166 = vector.shape_cast %165 : vector<1x4x384xbf16> to vector<4x384xbf16>
    %cst_149 = arith.constant dense<0.000000e+00> : vector<49x384xf32>
    %167 = tpu.matmul %164, %166, %cst_149 {dimension_numbers = #tpu.dot_dimension_numbers<[1], [0], [0], [1], [0, 0, 1, 1], [], []>} : vector<49x4xbf16>, vector<4x384xbf16>, vector<49x384xf32> -> vector<49x384xf32>
    %168 = arith.addf %151, %167 : vector<49x384xf32>
    %c4_150 = arith.constant 4 : index
    %c0_151 = arith.constant 0 : index
    %c0_152 = arith.constant 0 : index
    %169 = vector.load %arg2[%c4_150, %c0_151, %c0_152] : memref<9x49x256xbf16, #tpu.memory_space<vmem>>, vector<1x49x256xbf16>
    %170 = vector.shape_cast %169 : vector<1x49x256xbf16> to vector<49x256xbf16>
    %cst_153 = arith.constant dense<0.000000e+00> : vector<49x96xf32>
    %171 = tpu.matmul %170, %88, %cst_153 {dimension_numbers = #tpu.dot_dimension_numbers<[1], [0], [0], [1], [0, 0, 1, 1], [], []>} : vector<49x256xbf16>, vector<256x96xbf16>, vector<49x96xf32> -> vector<49x96xf32>
    %172 = arith.truncf %171 : vector<49x96xf32> to vector<49x96xbf16>
    %c4_154 = arith.constant 4 : index
    %c0_155 = arith.constant 0 : index
    %c0_156 = arith.constant 0 : index
    %173 = vector.load %arg10[%c4_154, %c0_155, %c0_156] : memref<9x96x96xbf16, #tpu.memory_space<vmem>>, vector<1x96x96xbf16>
    %174 = vector.shape_cast %173 : vector<1x96x96xbf16> to vector<96x96xbf16>
    %cst_157 = arith.constant dense<0.000000e+00> : vector<49x96xf32>
    %175 = tpu.matmul %172, %174, %cst_157 {dimension_numbers = #tpu.dot_dimension_numbers<[1], [0], [0], [1], [0, 0, 1, 1], [], []>} : vector<49x96xbf16>, vector<96x96xbf16>, vector<49x96xf32> -> vector<49x96xf32>
    %176 = arith.addf %159, %175 : vector<49x96xf32>
    %c5_158 = arith.constant 5 : index
    %c0_159 = arith.constant 0 : index
    %c0_160 = arith.constant 0 : index
    %177 = vector.load %arg2[%c5_158, %c0_159, %c0_160] : memref<9x49x256xbf16, #tpu.memory_space<vmem>>, vector<1x49x256xbf16>
    %178 = vector.shape_cast %177 : vector<1x49x256xbf16> to vector<49x256xbf16>
    %cst_161 = arith.constant dense<0.000000e+00> : vector<49x4xf32>
    %179 = tpu.matmul %178, %1, %cst_161 {dimension_numbers = #tpu.dot_dimension_numbers<[1], [0], [0], [1], [0, 0, 1, 1], [], []>} : vector<49x256xbf16>, vector<256x4xbf16>, vector<49x4xf32> -> vector<49x4xf32>
    %180 = arith.maximumf %163, %179 : vector<49x4xf32>
    %181 = arith.truncf %179 : vector<49x4xf32> to vector<49x4xbf16>
    %c5_162 = arith.constant 5 : index
    %c0_163 = arith.constant 0 : index
    %c0_164 = arith.constant 0 : index
    %182 = vector.load %arg4[%c5_162, %c0_163, %c0_164] : memref<9x4x384xbf16, #tpu.memory_space<vmem>>, vector<1x4x384xbf16>
    %183 = vector.shape_cast %182 : vector<1x4x384xbf16> to vector<4x384xbf16>
    %cst_165 = arith.constant dense<0.000000e+00> : vector<49x384xf32>
    %184 = tpu.matmul %181, %183, %cst_165 {dimension_numbers = #tpu.dot_dimension_numbers<[1], [0], [0], [1], [0, 0, 1, 1], [], []>} : vector<49x4xbf16>, vector<4x384xbf16>, vector<49x384xf32> -> vector<49x384xf32>
    %185 = arith.addf %168, %184 : vector<49x384xf32>
    %c5_166 = arith.constant 5 : index
    %c0_167 = arith.constant 0 : index
    %c0_168 = arith.constant 0 : index
    %186 = vector.load %arg2[%c5_166, %c0_167, %c0_168] : memref<9x49x256xbf16, #tpu.memory_space<vmem>>, vector<1x49x256xbf16>
    %187 = vector.shape_cast %186 : vector<1x49x256xbf16> to vector<49x256xbf16>
    %cst_169 = arith.constant dense<0.000000e+00> : vector<49x96xf32>
    %188 = tpu.matmul %187, %88, %cst_169 {dimension_numbers = #tpu.dot_dimension_numbers<[1], [0], [0], [1], [0, 0, 1, 1], [], []>} : vector<49x256xbf16>, vector<256x96xbf16>, vector<49x96xf32> -> vector<49x96xf32>
    %189 = arith.truncf %188 : vector<49x96xf32> to vector<49x96xbf16>
    %c5_170 = arith.constant 5 : index
    %c0_171 = arith.constant 0 : index
    %c0_172 = arith.constant 0 : index
    %190 = vector.load %arg10[%c5_170, %c0_171, %c0_172] : memref<9x96x96xbf16, #tpu.memory_space<vmem>>, vector<1x96x96xbf16>
    %191 = vector.shape_cast %190 : vector<1x96x96xbf16> to vector<96x96xbf16>
    %cst_173 = arith.constant dense<0.000000e+00> : vector<49x96xf32>
    %192 = tpu.matmul %189, %191, %cst_173 {dimension_numbers = #tpu.dot_dimension_numbers<[1], [0], [0], [1], [0, 0, 1, 1], [], []>} : vector<49x96xbf16>, vector<96x96xbf16>, vector<49x96xf32> -> vector<49x96xf32>
    %193 = arith.addf %176, %192 : vector<49x96xf32>
    %c6_174 = arith.constant 6 : index
    %c0_175 = arith.constant 0 : index
    %c0_176 = arith.constant 0 : index
    %194 = vector.load %arg2[%c6_174, %c0_175, %c0_176] : memref<9x49x256xbf16, #tpu.memory_space<vmem>>, vector<1x49x256xbf16>
    %195 = vector.shape_cast %194 : vector<1x49x256xbf16> to vector<49x256xbf16>
    %cst_177 = arith.constant dense<0.000000e+00> : vector<49x4xf32>
    %196 = tpu.matmul %195, %1, %cst_177 {dimension_numbers = #tpu.dot_dimension_numbers<[1], [0], [0], [1], [0, 0, 1, 1], [], []>} : vector<49x256xbf16>, vector<256x4xbf16>, vector<49x4xf32> -> vector<49x4xf32>
    %197 = arith.maximumf %180, %196 : vector<49x4xf32>
    %198 = arith.truncf %196 : vector<49x4xf32> to vector<49x4xbf16>
    %c6_178 = arith.constant 6 : index
    %c0_179 = arith.constant 0 : index
    %c0_180 = arith.constant 0 : index
    %199 = vector.load %arg4[%c6_178, %c0_179, %c0_180] : memref<9x4x384xbf16, #tpu.memory_space<vmem>>, vector<1x4x384xbf16>
    %200 = vector.shape_cast %199 : vector<1x4x384xbf16> to vector<4x384xbf16>
    %cst_181 = arith.constant dense<0.000000e+00> : vector<49x384xf32>
    %201 = tpu.matmul %198, %200, %cst_181 {dimension_numbers = #tpu.dot_dimension_numbers<[1], [0], [0], [1], [0, 0, 1, 1], [], []>} : vector<49x4xbf16>, vector<4x384xbf16>, vector<49x384xf32> -> vector<49x384xf32>
    %202 = arith.addf %185, %201 : vector<49x384xf32>
    %c6_182 = arith.constant 6 : index
    %c0_183 = arith.constant 0 : index
    %c0_184 = arith.constant 0 : index
    %203 = vector.load %arg2[%c6_182, %c0_183, %c0_184] : memref<9x49x256xbf16, #tpu.memory_space<vmem>>, vector<1x49x256xbf16>
    %204 = vector.shape_cast %203 : vector<1x49x256xbf16> to vector<49x256xbf16>
    %cst_185 = arith.constant dense<0.000000e+00> : vector<49x96xf32>
    %205 = tpu.matmul %204, %88, %cst_185 {dimension_numbers = #tpu.dot_dimension_numbers<[1], [0], [0], [1], [0, 0, 1, 1], [], []>} : vector<49x256xbf16>, vector<256x96xbf16>, vector<49x96xf32> -> vector<49x96xf32>
    %206 = arith.truncf %205 : vector<49x96xf32> to vector<49x96xbf16>
    %c6_186 = arith.constant 6 : index
    %c0_187 = arith.constant 0 : index
    %c0_188 = arith.constant 0 : index
    %207 = vector.load %arg10[%c6_186, %c0_187, %c0_188] : memref<9x96x96xbf16, #tpu.memory_space<vmem>>, vector<1x96x96xbf16>
    %208 = vector.shape_cast %207 : vector<1x96x96xbf16> to vector<96x96xbf16>
    %cst_189 = arith.constant dense<0.000000e+00> : vector<49x96xf32>
    %209 = tpu.matmul %206, %208, %cst_189 {dimension_numbers = #tpu.dot_dimension_numbers<[1], [0], [0], [1], [0, 0, 1, 1], [], []>} : vector<49x96xbf16>, vector<96x96xbf16>, vector<49x96xf32> -> vector<49x96xf32>
    %210 = arith.addf %193, %209 : vector<49x96xf32>
    %c7_190 = arith.constant 7 : index
    %c0_191 = arith.constant 0 : index
    %c0_192 = arith.constant 0 : index
    %211 = vector.load %arg2[%c7_190, %c0_191, %c0_192] : memref<9x49x256xbf16, #tpu.memory_space<vmem>>, vector<1x49x256xbf16>
    %212 = vector.shape_cast %211 : vector<1x49x256xbf16> to vector<49x256xbf16>
    %cst_193 = arith.constant dense<0.000000e+00> : vector<49x4xf32>
    %213 = tpu.matmul %212, %1, %cst_193 {dimension_numbers = #tpu.dot_dimension_numbers<[1], [0], [0], [1], [0, 0, 1, 1], [], []>} : vector<49x256xbf16>, vector<256x4xbf16>, vector<49x4xf32> -> vector<49x4xf32>
    %214 = arith.maximumf %197, %213 : vector<49x4xf32>
    %215 = arith.truncf %213 : vector<49x4xf32> to vector<49x4xbf16>
    %c7_194 = arith.constant 7 : index
    %c0_195 = arith.constant 0 : index
    %c0_196 = arith.constant 0 : index
    %216 = vector.load %arg4[%c7_194, %c0_195, %c0_196] : memref<9x4x384xbf16, #tpu.memory_space<vmem>>, vector<1x4x384xbf16>
    %217 = vector.shape_cast %216 : vector<1x4x384xbf16> to vector<4x384xbf16>
    %cst_197 = arith.constant dense<0.000000e+00> : vector<49x384xf32>
    %218 = tpu.matmul %215, %217, %cst_197 {dimension_numbers = #tpu.dot_dimension_numbers<[1], [0], [0], [1], [0, 0, 1, 1], [], []>} : vector<49x4xbf16>, vector<4x384xbf16>, vector<49x384xf32> -> vector<49x384xf32>
    %219 = arith.addf %202, %218 : vector<49x384xf32>
    %c7_198 = arith.constant 7 : index
    %c0_199 = arith.constant 0 : index
    %c0_200 = arith.constant 0 : index
    %220 = vector.load %arg2[%c7_198, %c0_199, %c0_200] : memref<9x49x256xbf16, #tpu.memory_space<vmem>>, vector<1x49x256xbf16>
    %221 = vector.shape_cast %220 : vector<1x49x256xbf16> to vector<49x256xbf16>
    %cst_201 = arith.constant dense<0.000000e+00> : vector<49x96xf32>
    %222 = tpu.matmul %221, %88, %cst_201 {dimension_numbers = #tpu.dot_dimension_numbers<[1], [0], [0], [1], [0, 0, 1, 1], [], []>} : vector<49x256xbf16>, vector<256x96xbf16>, vector<49x96xf32> -> vector<49x96xf32>
    %223 = arith.truncf %222 : vector<49x96xf32> to vector<49x96xbf16>
    %c7_202 = arith.constant 7 : index
    %c0_203 = arith.constant 0 : index
    %c0_204 = arith.constant 0 : index
    %224 = vector.load %arg10[%c7_202, %c0_203, %c0_204] : memref<9x96x96xbf16, #tpu.memory_space<vmem>>, vector<1x96x96xbf16>
    %225 = vector.shape_cast %224 : vector<1x96x96xbf16> to vector<96x96xbf16>
    %cst_205 = arith.constant dense<0.000000e+00> : vector<49x96xf32>
    %226 = tpu.matmul %223, %225, %cst_205 {dimension_numbers = #tpu.dot_dimension_numbers<[1], [0], [0], [1], [0, 0, 1, 1], [], []>} : vector<49x96xbf16>, vector<96x96xbf16>, vector<49x96xf32> -> vector<49x96xf32>
    %227 = arith.addf %210, %226 : vector<49x96xf32>
    %c8_206 = arith.constant 8 : index
    %c0_207 = arith.constant 0 : index
    %c0_208 = arith.constant 0 : index
    %228 = vector.load %arg2[%c8_206, %c0_207, %c0_208] : memref<9x49x256xbf16, #tpu.memory_space<vmem>>, vector<1x49x256xbf16>
    %229 = vector.shape_cast %228 : vector<1x49x256xbf16> to vector<49x256xbf16>
    %cst_209 = arith.constant dense<0.000000e+00> : vector<49x4xf32>
    %230 = tpu.matmul %229, %1, %cst_209 {dimension_numbers = #tpu.dot_dimension_numbers<[1], [0], [0], [1], [0, 0, 1, 1], [], []>} : vector<49x256xbf16>, vector<256x4xbf16>, vector<49x4xf32> -> vector<49x4xf32>
    %231 = arith.maximumf %214, %230 : vector<49x4xf32>
    %232 = arith.truncf %230 : vector<49x4xf32> to vector<49x4xbf16>
    %c8_210 = arith.constant 8 : index
    %c0_211 = arith.constant 0 : index
    %c0_212 = arith.constant 0 : index
    %233 = vector.load %arg4[%c8_210, %c0_211, %c0_212] : memref<9x4x384xbf16, #tpu.memory_space<vmem>>, vector<1x4x384xbf16>
    %234 = vector.shape_cast %233 : vector<1x4x384xbf16> to vector<4x384xbf16>
    %cst_213 = arith.constant dense<0.000000e+00> : vector<49x384xf32>
    %235 = tpu.matmul %232, %234, %cst_213 {dimension_numbers = #tpu.dot_dimension_numbers<[1], [0], [0], [1], [0, 0, 1, 1], [], []>} : vector<49x4xbf16>, vector<4x384xbf16>, vector<49x384xf32> -> vector<49x384xf32>
    %236 = arith.addf %219, %235 : vector<49x384xf32>
    %c8_214 = arith.constant 8 : index
    %c0_215 = arith.constant 0 : index
    %c0_216 = arith.constant 0 : index
    %237 = vector.load %arg2[%c8_214, %c0_215, %c0_216] : memref<9x49x256xbf16, #tpu.memory_space<vmem>>, vector<1x49x256xbf16>
    %238 = vector.shape_cast %237 : vector<1x49x256xbf16> to vector<49x256xbf16>
    %cst_217 = arith.constant dense<0.000000e+00> : vector<49x96xf32>
    %239 = tpu.matmul %238, %88, %cst_217 {dimension_numbers = #tpu.dot_dimension_numbers<[1], [0], [0], [1], [0, 0, 1, 1], [], []>} : vector<49x256xbf16>, vector<256x96xbf16>, vector<49x96xf32> -> vector<49x96xf32>
    %240 = arith.truncf %239 : vector<49x96xf32> to vector<49x96xbf16>
    %c8_218 = arith.constant 8 : index
    %c0_219 = arith.constant 0 : index
    %c0_220 = arith.constant 0 : index
    %241 = vector.load %arg10[%c8_218, %c0_219, %c0_220] : memref<9x96x96xbf16, #tpu.memory_space<vmem>>, vector<1x96x96xbf16>
    %242 = vector.shape_cast %241 : vector<1x96x96xbf16> to vector<96x96xbf16>
    %cst_221 = arith.constant dense<0.000000e+00> : vector<49x96xf32>
    %243 = tpu.matmul %240, %242, %cst_221 {dimension_numbers = #tpu.dot_dimension_numbers<[1], [0], [0], [1], [0, 0, 1, 1], [], []>} : vector<49x96xbf16>, vector<96x96xbf16>, vector<49x96xf32> -> vector<49x96xf32>
    %244 = arith.addf %227, %243 : vector<49x96xf32>
    %c0_222 = arith.constant 0 : index
    %c0_223 = arith.constant 0 : index
    %245 = vector.load %arg5[%c0_222, %c0_223] : memref<1x384xf32, #tpu.memory_space<vmem>>, vector<1x384xf32>
    %246 = vector.broadcast %245 : vector<1x384xf32> to vector<49x384xf32>
    %247 = arith.addf %236, %246 : vector<49x384xf32>
    %cst_224 = arith.constant 0.000000e+00 : f32
    %248 = vector.broadcast %cst_224 : f32 to vector<49x384xf32>
    %249 = arith.maximumf %247, %248 : vector<49x384xf32>
    %c0_225 = arith.constant 0 : index
    %c0_226 = arith.constant 0 : index
    %250 = vector.load %arg11[%c0_225, %c0_226] : memref<1x96xf32, #tpu.memory_space<vmem>>, vector<1x96xf32>
    %251 = vector.broadcast %250 : vector<1x96xf32> to vector<49x96xf32>
    %252 = arith.addf %244, %251 : vector<49x96xf32>
    %cst_227 = arith.constant 0.000000e+00 : f32
    %253 = vector.broadcast %cst_227 : f32 to vector<49x96xf32>
    %254 = arith.maximumf %252, %253 : vector<49x96xf32>
    %255 = tpu.concatenate %249, %254, %231 in 1 : vector<49x384xf32>, vector<49x96xf32>, vector<49x4xf32> -> vector<49x484xf32>
    %256 = vector.shape_cast %255 : vector<49x484xf32> to vector<1x49x484xf32>
    %c0_228 = arith.constant 0 : index
    %c0_229 = arith.constant 0 : index
    %c0_230 = arith.constant 0 : index
    %257 = vector.load %arg12[%c0_228, %c0_229, %c0_230] : memref<1x49x484xf32, #tpu.memory_space<vmem>>, vector<1x49x484xf32>
    tpu.vector_store %arg12[%c0_228, %c0_229, %c0_230], %256 {strides = array<i32>} : memref<1x49x484xf32, #tpu.memory_space<vmem>>, vector<1x49x484xf32>,
    return
  }
  func.func @transform_0(%arg0: i32) -> (i32, i32, i32) {
    %c0_i32 = arith.constant 0 : i32
    %c0_i32_0 = arith.constant 0 : i32
    %c0_i32_1 = arith.constant 0 : i32
    return %arg0, %c0_i32, %c0_i32_0 : i32, i32, i32
  }
  func.func @transform_1(%arg0: i32) -> (i32, i32, i32) {
    %c0_i32 = arith.constant 0 : i32
    %c0_i32_0 = arith.constant 0 : i32
    %c0_i32_1 = arith.constant 0 : i32
    %c0_i32_2 = arith.constant 0 : i32
    return %c0_i32, %c0_i32_0, %c0_i32_1 : i32, i32, i32
  }
  func.func @transform_2(%arg0: i32) -> (i32, i32, i32) {
    %c0_i32 = arith.constant 0 : i32
    %c0_i32_0 = arith.constant 0 : i32
    %c0_i32_1 = arith.constant 0 : i32
    %c0_i32_2 = arith.constant 0 : i32
    return %c0_i32, %c0_i32_0, %c0_i32_1 : i32, i32, i32
  }
  func.func @transform_3(%arg0: i32) -> (i32, i32, i32) {
    %c0_i32 = arith.constant 0 : i32
    %c0_i32_0 = arith.constant 0 : i32
    %c0_i32_1 = arith.constant 0 : i32
    %c0_i32_2 = arith.constant 0 : i32
    return %c0_i32, %c0_i32_0, %c0_i32_1 : i32, i32, i32
  }
  func.func @transform_4(%arg0: i32) -> (i32, i32) {
    %c0_i32 = arith.constant 0 : i32
    %c0_i32_0 = arith.constant 0 : i32
    %c0_i32_1 = arith.constant 0 : i32
    return %c0_i32, %c0_i32_0 : i32, i32
  }
  func.func @transform_5(%arg0: i32) -> (i32, i32) {
    %c0_i32 = arith.constant 0 : i32
    %c0_i32_0 = arith.constant 0 : i32
    %c0_i32_1 = arith.constant 0 : i32
    return %c0_i32, %c0_i32_0 : i32, i32
  }
  func.func @transform_6(%arg0: i32) -> (i32, i32) {
    %c0_i32 = arith.constant 0 : i32
    %c0_i32_0 = arith.constant 0 : i32
    %c0_i32_1 = arith.constant 0 : i32
    return %c0_i32, %c0_i32_0 : i32, i32
  }
  func.func @transform_7(%arg0: i32) -> (i32, i32, i32) {
    %c0_i32 = arith.constant 0 : i32
    %c0_i32_0 = arith.constant 0 : i32
    %c0_i32_1 = arith.constant 0 : i32
    %c0_i32_2 = arith.constant 0 : i32
    return %c0_i32, %c0_i32_0, %c0_i32_1 : i32, i32, i32
  }
  func.func @transform_8(%arg0: i32) -> (i32, i32) {
    %c0_i32 = arith.constant 0 : i32
    %c0_i32_0 = arith.constant 0 : i32
    %c0_i32_1 = arith.constant 0 : i32
    return %c0_i32, %c0_i32_0 : i32, i32
  }
  func.func @transform_9(%arg0: i32) -> (i32, i32, i32) {
    %c0_i32 = arith.constant 0 : i32
    %c0_i32_0 = arith.constant 0 : i32
    %c0_i32_1 = arith.constant 0 : i32
    %c0_i32_2 = arith.constant 0 : i32
    return %c0_i32, %c0_i32_0, %c0_i32_1 : i32, i32, i32
  }
  func.func @transform_10(%arg0: i32) -> (i32, i32) {
    %c0_i32 = arith.constant 0 : i32
    %c0_i32_0 = arith.constant 0 : i32
    %c0_i32_1 = arith.constant 0 : i32
    return %c0_i32, %c0_i32_0 : i32, i32
  }
  func.func @transform_11(%arg0: i32) -> (i32, i32, i32) {
    %c0_i32 = arith.constant 0 : i32
    %c0_i32_0 = arith.constant 0 : i32
    %c0_i32_1 = arith.constant 0 : i32
    return %arg0, %c0_i32, %c0_i32_0 : i32, i32, i32
  }
}

</mosaic_0001>

<llo_original>
// kernel: inception_block_x2.1
$region0: #{inception_block_x2.1}
  #allocation0 [shape = 'u32[]', space=smem, size = 0x4, offset = 0x4, fixed_abs, tag = 'smem constant byte address 0x4 - core index']
  #allocation1 [shape = 'u32[144,128]{1,0:T(1,128)}', space=vmem, size = 0x12000, scoped, tag = 'internal scratch']
  %s0 = inlined_call_operand.vmem [shape: bf16[2,256,4], index: 0, kind: input, shape index: {}]
  %s1 = inlined_call_operand.vmem [shape: bf16[9,49,256], index: 1, kind: input, shape index: {}]
  %s2 = inlined_call_operand.vmem [shape: bf16[9,256,256], index: 2, kind: input, shape index: {}]
  %s3 = inlined_call_operand.vmem [shape: bf16[9,4,384], index: 3, kind: input, shape index: {}]
  %s4 = inlined_call_operand.vmem [shape: f32[1,384], index: 4, kind: input, shape index: {}]
  %s5 = inlined_call_operand.vmem [shape: bf16[4,64], index: 5, kind: input, shape index: {}]
  %s6 = inlined_call_operand.vmem [shape: f32[1,64], index: 6, kind: input, shape index: {}]
  %s7 = inlined_call_operand.vmem [shape: bf16[9,64,96], index: 7, kind: input, shape index: {}]
  %s8 = inlined_call_operand.vmem [shape: f32[1,96], index: 8, kind: input, shape index: {}]
  %s9 = inlined_call_operand.vmem [shape: bf16[9,96,96], index: 9, kind: input, shape index: {}]
  %s10 = inlined_call_operand.vmem [shape: f32[1,96], index: 10, kind: input, shape index: {}]
  %s11 = inlined_call_operand.vmem [shape: f32[2,49,484], index: 11, kind: output, shape index: {}]
  %s12 = sld [smem:[#allocation0]]
  $region77: #{inception_block_x2.1} parent=0
    _
  %s14 = ssub.s32 1, %s12
  %s15 = scalar_select 0, %s14, %s12
  loop: start=0, step=1, limit=4
  $region2: #{inception_block_x2.1} parent=0 // loop_pre_header
    _
  $region3: #{inception_block_x2.1} parent=0 // loop_header
    %s17 = sphi 0, %s21
    %p18 = scmp.ge.s32.totalorder %s17, 4
    %s27 = sphi 0, %s29
    %s30 = sphi 0, %s27
    %s31 = sphi 0, %s30
    %s47 = sphi 0, %s31
    %s51 = sphi 0, %s51
    %s53 = sphi 0, %s51
    %s54 = sphi 0, %s53
    %s68 = sphi 0, %s54
    %s72 = sphi 0, %s72
    %s74 = sphi 0, %s72
    %s75 = sphi 0, %s74
    %s89 = sphi 0, %s75
    %s93 = sphi 0, %s93
    %s95 = sphi 0, %s93
    %s96 = sphi 0, %s95
    %s110 = sphi 0, %s96
    %s114 = sphi 0, %s114
    %s116 = sphi 0, %s114
    %s117 = sphi 0, %s116
    %s131 = sphi 0, %s117
    %s135 = sphi 0, %s135
    %s137 = sphi 0, %s135
    %s138 = sphi 0, %s137
    %s152 = sphi 0, %s138
    %s156 = sphi 0, %s156
    %s158 = sphi 0, %s156
    %s159 = sphi 0, %s158
    %s173 = sphi 0, %s159
    %s177 = sphi 0, %s177
    %s179 = sphi 0, %s177
    %s180 = sphi 0, %s179
    %s194 = sphi 0, %s180
    %s198 = sphi 0, %s198
    %s200 = sphi 0, %s198
    %s201 = sphi 0, %s200
    %s215 = sphi 0, %s201
    %s219 = sphi 0, %s219
    %s221 = sphi 0, %s219
    %s222 = sphi 0, %s221
    %s236 = sphi 0, %s222
    %s240 = sphi 0, %s240
    %s242 = sphi 0, %s240
    %s243 = sphi 0, %s242
    %s257 = sphi 0, %s243
    %s263 = sphi 0, %s265
    %s266 = sphi 0, %s263
    %s267 = sphi 0, %s266
    %s283 = sphi 0, %s267
  $region4: #{inception_block_x2.1} parent=0 // loop_header_branch
    %20 = sbr.rel (%p18) target = $region8
  $region5: #{inception_block_x2.1} parent=0 // loop_body
    %s22 = ssub.s32 %s17, 1
    %s23 = ssub.s32 %s17, 2
    %s24 = sadd.s32 %s17, 1
    %s25 = ssub.s32 %s17, %s24
    %p26 = scmp.eq.s32.totalorder %s25, 0
    %s28 = sadd.s32 %s27, 1
    %s29 = scalar_select %p26, %s27, %s28
    %p32 = pneg %p26
    %p33 = scmp.eq.s32.totalorder %s17, 1
    %p34 = por %p32, %p33
    %p35 = scmp.ne.s32.totalorder %s27, %s30
    %p36 = scmp.eq.s32.totalorder %s17, 0
    %p37 = por %p35, %p36
    %p38 = scmp.ne.s32.totalorder %s27, %s30
    %p39 = scmp.eq.s32.totalorder %s22, 1
    %p40 = por %p38, %p39
    %p41 = scmp.ne.s32.totalorder %s30, %s31
    %p42 = scmp.eq.s32.totalorder %s22, 0
    %p43 = por %p41, %p42
    %p44 = scmp.ne.s32.totalorder %s30, %s31
    %p45 = scmp.eq.s32.totalorder %s23, 1
    %p46 = por %p44, %p45
    %p48 = scmp.ne.s32.totalorder %s31, %s47
    %p49 = scmp.eq.s32.totalorder %s23, 0
    %p50 = por %p48, %p49
    %s52 = sadd.s32 %s51, 1
    %p55 = scmp.eq.s32.totalorder %s17, 1
    %p56 = scmp.ne.s32.totalorder %s51, %s53
    %p57 = scmp.eq.s32.totalorder %s17, 0
    %p58 = por %p56, %p57
    %p59 = scmp.ne.s32.totalorder %s51, %s53
    %p60 = scmp.eq.s32.totalorder %s22, 1
    %p61 = por %p59, %p60
    %p62 = scmp.ne.s32.totalorder %s53, %s54
    %p63 = scmp.eq.s32.totalorder %s22, 0
    %p64 = por %p62, %p63
    %p65 = scmp.ne.s32.totalorder %s53, %s54
    %p66 = scmp.eq.s32.totalorder %s23, 1
    %p67 = por %p65, %p66
    %p69 = scmp.ne.s32.totalorder %s54, %s68
    %p70 = scmp.eq.s32.totalorder %s23, 0
    %p71 = por %p69, %p70
    %s73 = sadd.s32 %s72, 1
    %p76 = scmp.eq.s32.totalorder %s17, 1
    %p77 = scmp.ne.s32.totalorder %s72, %s74
    %p78 = scmp.eq.s32.totalorder %s17, 0
    %p79 = por %p77, %p78
    %p80 = scmp.ne.s32.totalorder %s72, %s74
    %p81 = scmp.eq.s32.totalorder %s22, 1
    %p82 = por %p80, %p81
    %p83 = scmp.ne.s32.totalorder %s74, %s75
    %p84 = scmp.eq.s32.totalorder %s22, 0
    %p85 = por %p83, %p84
    %p86 = scmp.ne.s32.totalorder %s74, %s75
    %p87 = scmp.eq.s32.totalorder %s23, 1
    %p88 = por %p86, %p87
    %p90 = scmp.ne.s32.totalorder %s75, %s89
    %p91 = scmp.eq.s32.totalorder %s23, 0
    %p92 = por %p90, %p91
    %s94 = sadd.s32 %s93, 1
    %p97 = scmp.eq.s32.totalorder %s17, 1
    %p98 = scmp.ne.s32.totalorder %s93, %s95
    %p99 = scmp.eq.s32.totalorder %s17, 0
    %p100 = por %p98, %p99
    %p101 = scmp.ne.s32.totalorder %s93, %s95
    %p102 = scmp.eq.s32.totalorder %s22, 1
    %p103 = por %p101, %p102
    %p104 = scmp.ne.s32.totalorder %s95, %s96
    %p105 = scmp.eq.s32.totalorder %s22, 0
    %p106 = por %p104, %p105
    %p107 = scmp.ne.s32.totalorder %s95, %s96
    %p108 = scmp.eq.s32.totalorder %s23, 1
    %p109 = por %p107, %p108
    %p111 = scmp.ne.s32.totalorder %s96, %s110
    %p112 = scmp.eq.s32.totalorder %s23, 0
    %p113 = por %p111, %p112
    %s115 = sadd.s32 %s114, 1
    %p118 = scmp.eq.s32.totalorder %s17, 1
    %p119 = scmp.ne.s32.totalorder %s114, %s116
    %p120 = scmp.eq.s32.totalorder %s17, 0
    %p121 = por %p119, %p120
    %p122 = scmp.ne.s32.totalorder %s114, %s116
    %p123 = scmp.eq.s32.totalorder %s22, 1
    %p124 = por %p122, %p123
    %p125 = scmp.ne.s32.totalorder %s116, %s117
    %p126 = scmp.eq.s32.totalorder %s22, 0
    %p127 = por %p125, %p126
    %p128 = scmp.ne.s32.totalorder %s116, %s117
    %p129 = scmp.eq.s32.totalorder %s23, 1
    %p130 = por %p128, %p129
    %p132 = scmp.ne.s32.totalorder %s117, %s131
    %p133 = scmp.eq.s32.totalorder %s23, 0
    %p134 = por %p132, %p133
    %s136 = sadd.s32 %s135, 1
    %p139 = scmp.eq.s32.totalorder %s17, 1
    %p140 = scmp.ne.s32.totalorder %s135, %s137
    %p141 = scmp.eq.s32.totalorder %s17, 0
    %p142 = por %p140, %p141
    %p143 = scmp.ne.s32.totalorder %s135, %s137
    %p144 = scmp.eq.s32.totalorder %s22, 1
    %p145 = por %p143, %p144
    %p146 = scmp.ne.s32.totalorder %s137, %s138
    %p147 = scmp.eq.s32.totalorder %s22, 0
    %p148 = por %p146, %p147
    %p149 = scmp.ne.s32.totalorder %s137, %s138
    %p150 = scmp.eq.s32.totalorder %s23, 1
    %p151 = por %p149, %p150
    %p153 = scmp.ne.s32.totalorder %s138, %s152
    %p154 = scmp.eq.s32.totalorder %s23, 0
    %p155 = por %p153, %p154
    %s157 = sadd.s32 %s156, 1
    %p160 = scmp.eq.s32.totalorder %s17, 1
    %p161 = scmp.ne.s32.totalorder %s156, %s158
    %p162 = scmp.eq.s32.totalorder %s17, 0
    %p163 = por %p161, %p162
    %p164 = scmp.ne.s32.totalorder %s156, %s158
    %p165 = scmp.eq.s32.totalorder %s22, 1
    %p166 = por %p164, %p165
    %p167 = scmp.ne.s32.totalorder %s158, %s159
    %p168 = scmp.eq.s32.totalorder %s22, 0
    %p169 = por %p167, %p168
    %p170 = scmp.ne.s32.totalorder %s158, %s159
    %p171 = scmp.eq.s32.totalorder %s23, 1
    %p172 = por %p170, %p171
    %p174 = scmp.ne.s32.totalorder %s159, %s173
    %p175 = scmp.eq.s32.totalorder %s23, 0
    %p176 = por %p174, %p175
    %s178 = sadd.s32 %s177, 1
    %p181 = scmp.eq.s32.totalorder %s17, 1
    %p182 = scmp.ne.s32.totalorder %s177, %s179
    %p183 = scmp.eq.s32.totalorder %s17, 0
    %p184 = por %p182, %p183
    %p185 = scmp.ne.s32.totalorder %s177, %s179
    %p186 = scmp.eq.s32.totalorder %s22, 1
    %p187 = por %p185, %p186
    %p188 = scmp.ne.s32.totalorder %s179, %s180
    %p189 = scmp.eq.s32.totalorder %s22, 0
    %p190 = por %p188, %p189
    %p191 = scmp.ne.s32.totalorder %s179, %s180
    %p192 = scmp.eq.s32.totalorder %s23, 1
    %p193 = por %p191, %p192
    %p195 = scmp.ne.s32.totalorder %s180, %s194
    %p196 = scmp.eq.s32.totalorder %s23, 0
    %p197 = por %p195, %p196
    %s199 = sadd.s32 %s198, 1
    %p202 = scmp.eq.s32.totalorder %s17, 1
    %p203 = scmp.ne.s32.totalorder %s198, %s200
    %p204 = scmp.eq.s32.totalorder %s17, 0
    %p205 = por %p203, %p204
    %p206 = scmp.ne.s32.totalorder %s198, %s200
    %p207 = scmp.eq.s32.totalorder %s22, 1
    %p208 = por %p206, %p207
    %p209 = scmp.ne.s32.totalorder %s200, %s201
    %p210 = scmp.eq.s32.totalorder %s22, 0
    %p211 = por %p209, %p210
    %p212 = scmp.ne.s32.totalorder %s200, %s201
    %p213 = scmp.eq.s32.totalorder %s23, 1
    %p214 = por %p212, %p213
    %p216 = scmp.ne.s32.totalorder %s201, %s215
    %p217 = scmp.eq.s32.totalorder %s23, 0
    %p218 = por %p216, %p217
    %s220 = sadd.s32 %s219, 1
    %p223 = scmp.eq.s32.totalorder %s17, 1
    %p224 = scmp.ne.s32.totalorder %s219, %s221
    %p225 = scmp.eq.s32.totalorder %s17, 0
    %p226 = por %p224, %p225
    %p227 = scmp.ne.s32.totalorder %s219, %s221
    %p228 = scmp.eq.s32.totalorder %s22, 1
    %p229 = por %p227, %p228
    %p230 = scmp.ne.s32.totalorder %s221, %s222
    %p231 = scmp.eq.s32.totalorder %s22, 0
    %p232 = por %p230, %p231
    %p233 = scmp.ne.s32.totalorder %s221, %s222
    %p234 = scmp.eq.s32.totalorder %s23, 1
    %p235 = por %p233, %p234
    %p237 = scmp.ne.s32.totalorder %s222, %s236
    %p238 = scmp.eq.s32.totalorder %s23, 0
    %p239 = por %p237, %p238
    %s241 = sadd.s32 %s240, 1
    %p244 = scmp.eq.s32.totalorder %s17, 1
    %p245 = scmp.ne.s32.totalorder %s240, %s242
    %p246 = scmp.eq.s32.totalorder %s17, 0
    %p247 = por %p245, %p246
    %p248 = scmp.ne.s32.totalorder %s240, %s242
    %p249 = scmp.eq.s32.totalorder %s22, 1
    %p250 = por %p248, %p249
    %p251 = scmp.ne.s32.totalorder %s242, %s243
    %p252 = scmp.eq.s32.totalorder %s22, 0
    %p253 = por %p251, %p252
    %p254 = scmp.ne.s32.totalorder %s242, %s243
    %p255 = scmp.eq.s32.totalorder %s23, 1
    %p256 = por %p254, %p255
    %p258 = scmp.ne.s32.totalorder %s243, %s257
    %p259 = scmp.eq.s32.totalorder %s23, 0
    %p260 = por %p258, %p259
    %s261 = ssub.s32 %s17, %s24
    %p262 = scmp.eq.s32.totalorder %s261, 0
    %s264 = sadd.s32 %s263, 1
    %s265 = scalar_select %p262, %s263, %s264
    %p268 = pneg %p262
    %p269 = scmp.eq.s32.totalorder %s17, 1
    %p270 = por %p268, %p269
    %p271 = scmp.ne.s32.totalorder %s263, %s266
    %p272 = scmp.eq.s32.totalorder %s17, 0
    %p273 = por %p271, %p272
    %p274 = scmp.ne.s32.totalorder %s263, %s266
    %p275 = scmp.eq.s32.totalorder %s22, 1
    %p276 = por %p274, %p275
    %p277 = scmp.ne.s32.totalorder %s266, %s267
    %p278 = scmp.eq.s32.totalorder %s22, 0
    %p279 = por %p277, %p278
    %p280 = scmp.ne.s32.totalorder %s266, %s267
    %p281 = scmp.eq.s32.totalorder %s23, 1
    %p282 = por %p280, %p281
    %p284 = scmp.ne.s32.totalorder %s267, %s283
    %p285 = scmp.eq.s32.totalorder %s23, 0
    %p286 = por %p284, %p285
    %p287 = scmp.le.s32.totalorder 1, %s17
    %p288 = scmp.lt.s32.totalorder %s17, 3
    %p289 = pnand %p287, %p288
    %p290 = pneg %p289
    // Predicated region
    $region9: #{inception_block_x2.1} parent=5 // pred_check
      _
    $region10: #{inception_block_x2.1} parent=5 // pred_check_branch
      %292 = sbr.rel (%p289) target = $region12
    $region11: #{inception_block_x2.1} parent=5 // pred_region
      %s293 = ssub.s32 %s17, 1
      // Predicated region
      $region13: #{inception_block_x2.1} parent=11 // pred_check
        %p294 = pneg %p64
      $region14: #{inception_block_x2.1} parent=11 // pred_check_branch
        %296 = sbr.rel (%p294) target = $region16
      $region15: #{inception_block_x2.1} parent=11 // pred_region
        _
      $region16: #{inception_block_x2.1} parent=11 // pred_fallthru
        _
      // Predicated region
      $region17: #{inception_block_x2.1} parent=11 // pred_check
        %p297 = pneg %p85
      $region18: #{inception_block_x2.1} parent=11 // pred_check_branch
        %299 = sbr.rel (%p297) target = $region20
      $region19: #{inception_block_x2.1} parent=11 // pred_region
        _
      $region20: #{inception_block_x2.1} parent=11 // pred_fallthru
        _
      // Predicated region
      $region21: #{inception_block_x2.1} parent=11 // pred_check
        %p300 = pneg %p106
      $region22: #{inception_block_x2.1} parent=11 // pred_check_branch
        %302 = sbr.rel (%p300) target = $region24
      $region23: #{inception_block_x2.1} parent=11 // pred_region
        _
      $region24: #{inception_block_x2.1} parent=11 // pred_fallthru
        _
      // Predicated region
      $region25: #{inception_block_x2.1} parent=11 // pred_check
        %p303 = pneg %p127
      $region26: #{inception_block_x2.1} parent=11 // pred_check_branch
        %305 = sbr.rel (%p303) target = $region28
      $region27: #{inception_block_x2.1} parent=11 // pred_region
        _
      $region28: #{inception_block_x2.1} parent=11 // pred_fallthru
        _
      // Predicated region
      $region29: #{inception_block_x2.1} parent=11 // pred_check
        %p306 = pneg %p148
      $region30: #{inception_block_x2.1} parent=11 // pred_check_branch
        %308 = sbr.rel (%p306) target = $region32
      $region31: #{inception_block_x2.1} parent=11 // pred_region
        _
      $region32: #{inception_block_x2.1} parent=11 // pred_fallthru
        _
      // Predicated region
      $region33: #{inception_block_x2.1} parent=11 // pred_check
        %p309 = pneg %p169
      $region34: #{inception_block_x2.1} parent=11 // pred_check_branch
        %311 = sbr.rel (%p309) target = $region36
      $region35: #{inception_block_x2.1} parent=11 // pred_region
        _
      $region36: #{inception_block_x2.1} parent=11 // pred_fallthru
        _
      // Predicated region
      $region37: #{inception_block_x2.1} parent=11 // pred_check
        %p312 = pneg %p190
      $region38: #{inception_block_x2.1} parent=11 // pred_check_branch
        %314 = sbr.rel (%p312) target = $region40
      $region39: #{inception_block_x2.1} parent=11 // pred_region
        _
      $region40: #{inception_block_x2.1} parent=11 // pred_fallthru
        _
      // Predicated region
      $region41: #{inception_block_x2.1} parent=11 // pred_check
        %p315 = pneg %p211
      $region42: #{inception_block_x2.1} parent=11 // pred_check_branch
        %317 = sbr.rel (%p315) target = $region44
      $region43: #{inception_block_x2.1} parent=11 // pred_region
        _
      $region44: #{inception_block_x2.1} parent=11 // pred_fallthru
        _
      // Predicated region
      $region45: #{inception_block_x2.1} parent=11 // pred_check
        %p318 = pneg %p232
      $region46: #{inception_block_x2.1} parent=11 // pred_check_branch
        %320 = sbr.rel (%p318) target = $region48
      $region47: #{inception_block_x2.1} parent=11 // pred_region
        _
      $region48: #{inception_block_x2.1} parent=11 // pred_fallthru
        _
      // Predicated region
      $region49: #{inception_block_x2.1} parent=11 // pred_check
        %p321 = pneg %p253
      $region50: #{inception_block_x2.1} parent=11 // pred_check_branch
        %323 = sbr.rel (%p321) target = $region52
      $region51: #{inception_block_x2.1} parent=11 // pred_region
        _
      $region52: #{inception_block_x2.1} parent=11 // pred_fallthru
        _
    $region12: #{inception_block_x2.1} parent=5 // pred_fallthru
      _
    %p324 = scmp.lt.s32.totalorder %s17, 2
    // Predicated region
    $region53: #{inception_block_x2.1} parent=5 // pred_check
      %p325 = pneg %p324
    $region54: #{inception_block_x2.1} parent=5 // pred_check_branch
      %327 = sbr.rel (%p325) target = $region56
    $region55: #{inception_block_x2.1} parent=5 // pred_region
      // Predicated region
      $region57: #{inception_block_x2.1} parent=55 // pred_check
        %p328 = pneg %p37
      $region58: #{inception_block_x2.1} parent=55 // pred_check_branch
        %330 = sbr.rel (%p328) target = $region60
      $region59: #{inception_block_x2.1} parent=55 // pred_region
        %p331 = scmp.lt.s32.totalorder %s17, 1
        %s332 = scalar_select %p331, %s17, 1
        %s333 = smul.addr %s332, 32
        %s334 = smul.addr %s333, 4
        %s335 = scalar_lea.vmem %s0, %s334
      $region60: #{inception_block_x2.1} parent=55 // pred_fallthru
        _
    $region56: #{inception_block_x2.1} parent=5 // pred_fallthru
      _
    %p336 = scmp.le.s32.totalorder 1, %s17
    %p337 = scmp.lt.s32.totalorder %s17, 3
    %p338 = pnand %p336, %p337
    %p339 = pneg %p338
    // Predicated region
    $region61: #{inception_block_x2.1} parent=5 // pred_check
      _
    $region62: #{inception_block_x2.1} parent=5 // pred_check_branch
      %341 = sbr.rel (%p338) target = $region64
    $region63: #{inception_block_x2.1} parent=5 // pred_region
      %s342 = ssub.s32 %s17, 1
      %p343 = scmp.lt.s32.totalorder %s22, 1
      %s344 = scalar_select %p343, %s22, 1
      %s345 = smul.addr %s344, 32
      %s346 = smul.addr %s345, 4
      %s347 = scalar_lea.vmem %s0, %s346
      %p348 = pneg %p43
      %p349 = pneg %p40
      %p350 = pneg %p64
      %p351 = pneg %p61
      %p352 = pneg %p85
      %p353 = pneg %p82
      %p354 = pneg %p106
      %p355 = pneg %p103
      %p356 = pneg %p127
      %p357 = pneg %p124
      %p358 = pneg %p148
      %p359 = pneg %p145
      %p360 = pneg %p169
      %p361 = pneg %p166
      %p362 = pneg %p190
      %p363 = pneg %p187
      %p364 = pneg %p211
      %p365 = pneg %p208
      %p366 = pneg %p232
      %p367 = pneg %p229
      %p368 = pneg %p253
      %p369 = pneg %p250
      %p370 = pneg %p279
      %p371 = pneg %p276
      %p372 = scmp.lt.s32.totalorder %s22, 1
      %s373 = scalar_select %p372, %s22, 1
      %s374 = smul.addr %s373, 28
      %s375 = smul.addr %s374, 8
      %s376 = scalar_lea.vmem %s11, %s375
      %p377 = scmp.lt.s32.totalorder %s22, 1
      %s378 = scalar_select %p377, %s22, 1
      %s379 = smul.addr %s378, 32
      %s380 = smul.addr %s379, 4
      %s381 = scalar_lea.vmem %s0, %s380
      %p382 = scmp.lt.s32.totalorder %s22, 1
      %s383 = scalar_select %p382, %s22, 1
      %s384 = smul.addr %s383, 28
      %s385 = smul.addr %s384, 8
      %s386 = scalar_lea.vmem %s11, %s385
      %v388 = vld [vmem:[%s381] sm:$0xf]
      %v389 = vld [vmem:[%s381 + $0x4] sm:$0xf]
      %v390 = vld [vmem:[%s381 + $0x8] sm:$0xf]
      %v391 = vld [vmem:[%s381 + $0xc] sm:$0xf]
      %v392 = vld [vmem:[%s381 + $0x10] sm:$0xf]
      %v393 = vld [vmem:[%s381 + $0x14] sm:$0xf]
      %v394 = vld [vmem:[%s381 + $0x18] sm:$0xf]
      %v395 = vld [vmem:[%s381 + $0x1c] sm:$0xf]
      %v396 = vld [vmem:[%s381 + $0x20] sm:$0xf]
      %v397 = vld [vmem:[%s381 + $0x24] sm:$0xf]
      %v398 = vld [vmem:[%s381 + $0x28] sm:$0xf]
      %v399 = vld [vmem:[%s381 + $0x2c] sm:$0xf]
      %v400 = vld [vmem:[%s381 + $0x30] sm:$0xf]
      %v401 = vld [vmem:[%s381 + $0x34] sm:$0xf]
      %v402 = vld [vmem:[%s381 + $0x38] sm:$0xf]
      %v403 = vld [vmem:[%s381 + $0x3c] sm:$0xf]
      %v404 = vld [vmem:[%s381 + $0x40] sm:$0xf]
      %v405 = vld [vmem:[%s381 + $0x44] sm:$0xf]
      %v406 = vld [vmem:[%s381 + $0x48] sm:$0xf]
      %v407 = vld [vmem:[%s381 + $0x4c] sm:$0xf]
      %v408 = vld [vmem:[%s381 + $0x50] sm:$0xf]
      %v409 = vld [vmem:[%s381 + $0x54] sm:$0xf]
      %v410 = vld [vmem:[%s381 + $0x58] sm:$0xf]
      %v411 = vld [vmem:[%s381 + $0x5c] sm:$0xf]
      %v412 = vld [vmem:[%s381 + $0x60] sm:$0xf]
      %v413 = vld [vmem:[%s381 + $0x64] sm:$0xf]
      %v414 = vld [vmem:[%s381 + $0x68] sm:$0xf]
      %v415 = vld [vmem:[%s381 + $0x6c] sm:$0xf]
      %v416 = vld [vmem:[%s381 + $0x70] sm:$0xf]
      %v417 = vld [vmem:[%s381 + $0x74] sm:$0xf]
      %v418 = vld [vmem:[%s381 + $0x78] sm:$0xf]
      %v419 = vld [vmem:[%s381 + $0x7c] sm:$0xf]
      %v420 = vld [vmem:[%s5] sm:$0x3]
      %v421 = vld [vmem:[%s6] sm:$0x1]
      %v423 = vlaneseq
      %v424 = vshrl.u32 %v423, 7
      %v425 = vsub.s32 0, %v424
      %v426 = vrot.slane %v421, %v425
      %v460 = vunpack.c.l.b16 %v388
      %v461 = vunpack.c.l.b16 %v389
      %v462 = vunpack.c.l.b16 %v390
      %v463 = vunpack.c.l.b16 %v391
      %v464 = vunpack.c.l.b16 %v392
      %v465 = vunpack.c.l.b16 %v393
      %v466 = vunpack.c.l.b16 %v394
      %v467 = vunpack.c.l.b16 %v395
      %v468 = vunpack.c.l.b16 %v396
      %v469 = vunpack.c.l.b16 %v397
      %v470 = vunpack.c.l.b16 %v398
      %v471 = vunpack.c.l.b16 %v399
      %v472 = vunpack.c.l.b16 %v400
      %v473 = vunpack.c.l.b16 %v401
      %v474 = vunpack.c.l.b16 %v402
      %v475 = vunpack.c.l.b16 %v403
      %v476 = vunpack.c.l.b16 %v404
      %v477 = vunpack.c.l.b16 %v405
      %v478 = vunpack.c.l.b16 %v406
      %v479 = vunpack.c.l.b16 %v407
      %v480 = vunpack.c.l.b16 %v408
      %v481 = vunpack.c.l.b16 %v409
      %v482 = vunpack.c.l.b16 %v410
      %v483 = vunpack.c.l.b16 %v411
      %v484 = vunpack.c.l.b16 %v412
      %v485 = vunpack.c.l.b16 %v413
      %v486 = vunpack.c.l.b16 %v414
      %v487 = vunpack.c.l.b16 %v415
      %v488 = vunpack.c.l.b16 %v416
      %v489 = vunpack.c.l.b16 %v417
      %v490 = vunpack.c.l.b16 %v418
      %v491 = vunpack.c.l.b16 %v419
      %v492 = vpack.c.b16 %v461, %v460
      %v493 = vpack.c.b16 %v463, %v462
      %v494 = vpack.c.b16 %v465, %v464
      %v495 = vpack.c.b16 %v467, %v466
      %v496 = vpack.c.b16 %v469, %v468
      %v497 = vpack.c.b16 %v471, %v470
      %v498 = vpack.c.b16 %v473, %v472
      %v499 = vpack.c.b16 %v475, %v474
      %v500 = vpack.c.b16 %v477, %v476
      %v501 = vpack.c.b16 %v479, %v478
      %v502 = vpack.c.b16 %v481, %v480
      %v503 = vpack.c.b16 %v483, %v482
      %v504 = vpack.c.b16 %v485, %v484
      %v505 = vpack.c.b16 %v487, %v486
      %v506 = vpack.c.b16 %v489, %v488
      %v507 = vpack.c.b16 %v491, %v490
      %vm508 = vcmask 31744
      %v510 = vsel %vm508, %v492, 0
      %v513 = vsel %vm508, %v493, 0
      %v516 = vsel %vm508, %v494, 0
      %v519 = vsel %vm508, %v495, 0
      %v522 = vsel %vm508, %v496, 0
      %v525 = vsel %vm508, %v497, 0
      %v528 = vsel %vm508, %v498, 0
      %v531 = vsel %vm508, %v499, 0
      %v534 = vsel %vm508, %v500, 0
      %v537 = vsel %vm508, %v501, 0
      %v540 = vsel %vm508, %v502, 0
      %v543 = vsel %vm508, %v503, 0
      %v546 = vsel %vm508, %v504, 0
      %v549 = vsel %vm508, %v505, 0
      %v552 = vsel %vm508, %v506, 0
      %v555 = vsel %vm508, %v507, 0
      %vm557 = vcmask 1041408
      %v559 = vsel %vm557, %v420, 0
      %561 = vmatprep.subr.bf16.mxu0 0
      %562 = vmatpush1.bf16.msra.mxu0 %v559
      %563 = vmatprep.subr.bf16.mxu0 0
      %564 = vmatpush1.bf16.msra.mxu0 0
      %565 = vmatprep.subr.bf16.mxu0 0
      %566 = vmatpush1.bf16.msra.mxu0 0
      %567 = vmatprep.subr.bf16.mxu0 0
      %568 = vmatpush1.bf16.msra.mxu0 0
      %569 = vmatprep.subr.bf16.mxu0 0
      %570 = vmatpush1.bf16.msra.mxu0 0
      %571 = vmatprep.subr.bf16.mxu0 0
      %572 = vmatpush1.bf16.msra.mxu0 0
      %573 = vmatprep.subr.bf16.mxu0 0
      %574 = vmatpush1.bf16.msra.mxu0 0
      %575 = vmatprep.subr.bf16.mxu0 0
      %576 = vmatpush1.bf16.msra.mxu0 0
      %577 = vmatprep.subr.bf16.mxu0 0
      %578 = vmatpush1.bf16.msra.mxu0 0
      %579 = vmatprep.subr.bf16.mxu0 0
      %580 = vmatpush1.bf16.msra.mxu0 0
      %581 = vmatprep.subr.bf16.mxu0 0
      %582 = vmatpush1.bf16.msra.mxu0 0
      %583 = vmatprep.subr.bf16.mxu0 0
      %584 = vmatpush1.bf16.msra.mxu0 0
      %585 = vmatprep.subr.bf16.mxu0 0
      %586 = vmatpush1.bf16.msra.mxu0 0
      %587 = vmatprep.subr.bf16.mxu0 0
      %588 = vmatpush1.bf16.msra.mxu0 0
      %589 = vmatprep.subr.bf16.mxu0 0
      %590 = vmatpush1.bf16.msra.mxu0 0
      %591 = vmatprep.subr.bf16.mxu0 0
      %592 = vmatpush1.bf16.msra.mxu0 0
      %593 = vmatprep.mubr.bf16.mxu0 0
      %594 = vmatmul.mubr.bf16.gmra.mrb[0].mxu0 %v510
      %v595 = vpop.f32.mrb[0].mxu0
      %v596 = vadd.f32 %v426, %v595
      %v597 = vpop.f32.mrb[0].mxu0
      %v598 = vpop.f32.mrb[0].mxu0
      %v599 = vadd.f32 %v426, %v598
      %v600 = vpop.f32.mrb[0].mxu0
      %601 = vmatprep.mubr.bf16.mxu0 0
      %602 = vmatmul.mubr.bf16.gmra.mrb[0].mxu0 %v513
      %v603 = vpop.f32.mrb[0].mxu0
      %v604 = vadd.f32 %v426, %v603
      %v605 = vpop.f32.mrb[0].mxu0
      %v606 = vpop.f32.mrb[0].mxu0
      %v607 = vadd.f32 %v426, %v606
      %v608 = vpop.f32.mrb[0].mxu0
      %609 = vmatprep.mubr.bf16.mxu0 0
      %610 = vmatmul.mubr.bf16.gmra.mrb[0].mxu0 %v516
      %v611 = vpop.f32.mrb[0].mxu0
      %v612 = vadd.f32 %v426, %v611
      %v613 = vpop.f32.mrb[0].mxu0
      %v614 = vpop.f32.mrb[0].mxu0
      %v615 = vadd.f32 %v426, %v614
      %v616 = vpop.f32.mrb[0].mxu0
      %617 = vmatprep.mubr.bf16.mxu0 0
      %618 = vmatmul.mubr.bf16.gmra.mrb[0].mxu0 %v519
      %v619 = vpop.f32.mrb[0].mxu0
      %v620 = vadd.f32 %v426, %v619
      %v621 = vpop.f32.mrb[0].mxu0
      %v622 = vpop.f32.mrb[0].mxu0
      %v623 = vadd.f32 %v426, %v622
      %v624 = vpop.f32.mrb[0].mxu0
      %625 = vmatprep.mubr.bf16.mxu0 0
      %626 = vmatmul.mubr.bf16.gmra.mrb[0].mxu0 %v522
      %v627 = vpop.f32.mrb[0].mxu0
      %v628 = vadd.f32 %v426, %v627
      %v629 = vpop.f32.mrb[0].mxu0
      %v630 = vpop.f32.mrb[0].mxu0
      %v631 = vadd.f32 %v426, %v630
      %v632 = vpop.f32.mrb[0].mxu0
      %633 = vmatprep.mubr.bf16.mxu0 0
      %634 = vmatmul.mubr.bf16.gmra.mrb[0].mxu0 %v525
      %v635 = vpop.f32.mrb[0].mxu0
      %v636 = vadd.f32 %v426, %v635
      %v637 = vpop.f32.mrb[0].mxu0
      %v638 = vpop.f32.mrb[0].mxu0
      %v639 = vadd.f32 %v426, %v638
      %v640 = vpop.f32.mrb[0].mxu0
      %641 = vmatprep.mubr.bf16.mxu0 0
      %642 = vmatmul.mubr.bf16.gmra.mrb[0].mxu0 %v528
      %v643 = vpop.f32.mrb[0].mxu0
      %v644 = vadd.f32 %v426, %v643
      %v645 = vpop.f32.mrb[0].mxu0
      %v646 = vpop.f32.mrb[0].mxu0
      %v647 = vadd.f32 %v426, %v646
      %v648 = vpop.f32.mrb[0].mxu0
      %649 = vmatprep.mubr.bf16.mxu0 0
      %650 = vmatmul.mubr.bf16.gmra.mrb[0].mxu0 %v531
      %v651 = vpop.f32.mrb[0].mxu0
      %v652 = vadd.f32 %v426, %v651
      %v653 = vpop.f32.mrb[0].mxu0
      %v654 = vpop.f32.mrb[0].mxu0
      %v655 = vadd.f32 %v426, %v654
      %v656 = vpop.f32.mrb[0].mxu0
      %657 = vmatprep.mubr.bf16.mxu0 0
      %658 = vmatmul.mubr.bf16.gmra.mrb[0].mxu0 %v534
      %v659 = vpop.f32.mrb[0].mxu0
      %v660 = vadd.f32 %v426, %v659
      %v661 = vpop.f32.mrb[0].mxu0
      %v662 = vpop.f32.mrb[0].mxu0
      %v663 = vadd.f32 %v426, %v662
      %v664 = vpop.f32.mrb[0].mxu0
      %665 = vmatprep.mubr.bf16.mxu0 0
      %666 = vmatmul.mubr.bf16.gmra.mrb[0].mxu0 %v537
      %v667 = vpop.f32.mrb[0].mxu0
      %v668 = vadd.f32 %v426, %v667
      %v669 = vpop.f32.mrb[0].mxu0
      %v670 = vpop.f32.mrb[0].mxu0
      %v671 = vadd.f32 %v426, %v670
      %v672 = vpop.f32.mrb[0].mxu0
      %673 = vmatprep.mubr.bf16.mxu0 0
      %674 = vmatmul.mubr.bf16.gmra.mrb[0].mxu0 %v540
      %v675 = vpop.f32.mrb[0].mxu0
      %v676 = vadd.f32 %v426, %v675
      %v677 = vpop.f32.mrb[0].mxu0
      %v678 = vpop.f32.mrb[0].mxu0
      %v679 = vadd.f32 %v426, %v678
      %v680 = vpop.f32.mrb[0].mxu0
      %681 = vmatprep.mubr.bf16.mxu0 0
      %682 = vmatmul.mubr.bf16.gmra.mrb[0].mxu0 %v543
      %v683 = vpop.f32.mrb[0].mxu0
      %v684 = vadd.f32 %v426, %v683
      %v685 = vpop.f32.mrb[0].mxu0
      %v686 = vpop.f32.mrb[0].mxu0
      %v687 = vadd.f32 %v426, %v686
      %v688 = vpop.f32.mrb[0].mxu0
      %689 = vmatprep.mubr.bf16.mxu0 0
      %690 = vmatmul.mubr.bf16.gmra.mrb[0].mxu0 %v546
      %v691 = vpop.f32.mrb[0].mxu0
      %v692 = vadd.f32 %v426, %v691
      %v693 = vpop.f32.mrb[0].mxu0
      %v694 = vpop.f32.mrb[0].mxu0
      %v695 = vadd.f32 %v426, %v694
      %v696 = vpop.f32.mrb[0].mxu0
      %697 = vmatprep.mubr.bf16.mxu0 0
      %698 = vmatmul.mubr.bf16.gmra.mrb[0].mxu0 %v549
      %v699 = vpop.f32.mrb[0].mxu0
      %v700 = vadd.f32 %v426, %v699
      %v701 = vpop.f32.mrb[0].mxu0
      %v702 = vpop.f32.mrb[0].mxu0
      %v703 = vadd.f32 %v426, %v702
      %v704 = vpop.f32.mrb[0].mxu0
      %705 = vmatprep.mubr.bf16.mxu0 0
      %706 = vmatmul.mubr.bf16.gmra.mrb[0].mxu0 %v552
      %v707 = vpop.f32.mrb[0].mxu0
      %v708 = vadd.f32 %v426, %v707
      %v709 = vpop.f32.mrb[0].mxu0
      %v710 = vpop.f32.mrb[0].mxu0
      %v711 = vadd.f32 %v426, %v710
      %v712 = vpop.f32.mrb[0].mxu0
      %713 = vmatprep.mubr.bf16.mxu0 0
      %714 = vmatmul.mubr.bf16.gmra.mrb[0].mxu0 %v555
      %v715 = vpop.f32.mrb[0].mxu0
      %v716 = vadd.f32 %v426, %v715
      %v717 = vpop.f32.mrb[0].mxu0
      %v718 = vpop.f32.mrb[0].mxu0
      %v719 = vadd.f32 %v426, %v718
      %v720 = vpop.f32.mrb[0].mxu0
      %721 = vdwg.mxu0
      %v722 = vmax.f32 %v596, 0.0
      %v723 = vmax.f32 %v599, 0.0
      %v724 = vmax.f32 %v604, 0.0
      %v725 = vmax.f32 %v607, 0.0
      %v726 = vmax.f32 %v612, 0.0
      %v727 = vmax.f32 %v615, 0.0
      %v728 = vmax.f32 %v620, 0.0
      %v729 = vmax.f32 %v623, 0.0
      %v730 = vmax.f32 %v628, 0.0
      %v731 = vmax.f32 %v631, 0.0
      %v732 = vmax.f32 %v636, 0.0
      %v733 = vmax.f32 %v639, 0.0
      %v734 = vmax.f32 %v644, 0.0
      %v735 = vmax.f32 %v647, 0.0
      %v736 = vmax.f32 %v652, 0.0
      %v737 = vmax.f32 %v655, 0.0
      %v738 = vmax.f32 %v660, 0.0
      %v739 = vmax.f32 %v663, 0.0
      %v740 = vmax.f32 %v668, 0.0
      %v741 = vmax.f32 %v671, 0.0
      %v742 = vmax.f32 %v676, 0.0
      %v743 = vmax.f32 %v679, 0.0
      %v744 = vmax.f32 %v684, 0.0
      %v745 = vmax.f32 %v687, 0.0
      %v746 = vmax.f32 %v692, 0.0
      %v747 = vmax.f32 %v695, 0.0
      %v748 = vmax.f32 %v700, 0.0
      %v749 = vmax.f32 %v703, 0.0
      %v750 = vmax.f32 %v708, 0.0
      %v751 = vmax.f32 %v711, 0.0
      %v752 = vmax.f32 %v716, 0.0
      %v753 = vmax.f32 %v719, 0.0
      %v754 = vpack.c.bf16 %v723, %v722
      %v755 = vpack.c.bf16 %v725, %v724
      %v756 = vpack.c.bf16 %v727, %v726
      %v757 = vpack.c.bf16 %v729, %v728
      %v758 = vpack.c.bf16 %v731, %v730
      %v759 = vpack.c.bf16 %v733, %v732
      %v760 = vpack.c.bf16 %v735, %v734
      %v761 = vpack.c.bf16 %v737, %v736
      %v762 = vpack.c.bf16 %v739, %v738
      %v763 = vpack.c.bf16 %v741, %v740
      %v764 = vpack.c.bf16 %v743, %v742
      %v765 = vpack.c.bf16 %v745, %v744
      %v766 = vpack.c.bf16 %v747, %v746
      %v767 = vpack.c.bf16 %v749, %v748
      %v768 = vpack.c.bf16 %v751, %v750
      %v769 = vpack.c.bf16 %v753, %v752
      %v770 = vld [vmem:[%s2] sm:$0xff]
      %v771 = vld [vmem:[%s2 + $0x8] sm:$0xff]
      %v772 = vld [vmem:[%s2 + $0x10] sm:$0xff]
      %v773 = vld [vmem:[%s2 + $0x18] sm:$0xff]
      %v774 = vld [vmem:[%s2 + $0x20] sm:$0xff]
      %v775 = vld [vmem:[%s2 + $0x28] sm:$0xff]
      %v776 = vld [vmem:[%s2 + $0x30] sm:$0xff]
      %v777 = vld [vmem:[%s2 + $0x38] sm:$0xff]
      %v778 = vld [vmem:[%s2 + $0x40] sm:$0xff]
      %v779 = vld [vmem:[%s2 + $0x48] sm:$0xff]
      %v780 = vld [vmem:[%s2 + $0x50] sm:$0xff]
      %v781 = vld [vmem:[%s2 + $0x58] sm:$0xff]
      %v782 = vld [vmem:[%s2 + $0x60] sm:$0xff]
      %v783 = vld [vmem:[%s2 + $0x68] sm:$0xff]
      %v784 = vld [vmem:[%s2 + $0x70] sm:$0xff]
      %v785 = vld [vmem:[%s2 + $0x78] sm:$0xff]
      %v786 = vld [vmem:[%s2 + $0x80] sm:$0xff]
      %v787 = vld [vmem:[%s2 + $0x88] sm:$0xff]
      %v788 = vld [vmem:[%s2 + $0x90] sm:$0xff]
      %v789 = vld [vmem:[%s2 + $0x98] sm:$0xff]
      %v790 = vld [vmem:[%s2 + $0xa0] sm:$0xff]
      %v791 = vld [vmem:[%s2 + $0xa8] sm:$0xff]
      %v792 = vld [vmem:[%s2 + $0xb0] sm:$0xff]
      %v793 = vld [vmem:[%s2 + $0xb8] sm:$0xff]
      %v794 = vld [vmem:[%s2 + $0xc0] sm:$0xff]
      %v795 = vld [vmem:[%s2 + $0xc8] sm:$0xff]
      %v796 = vld [vmem:[%s2 + $0xd0] sm:$0xff]
      %v797 = vld [vmem:[%s2 + $0xd8] sm:$0xff]
      %v798 = vld [vmem:[%s2 + $0xe0] sm:$0xff]
      %v799 = vld [vmem:[%s2 + $0xe8] sm:$0xff]
      %v800 = vld [vmem:[%s2 + $0xf0] sm:$0xff]
      %v801 = vld [vmem:[%s2 + $0xf8] sm:$0xff]
      %v834 = vunpack.c.l.b16 %v770
      %v835 = vunpack.c.h.b16 %v770
      %v836 = vunpack.c.l.b16 %v771
      %v837 = vunpack.c.h.b16 %v771
      %v838 = vunpack.c.l.b16 %v772
      %v839 = vunpack.c.h.b16 %v772
      %v840 = vunpack.c.l.b16 %v773
      %v841 = vunpack.c.h.b16 %v773
      %v842 = vunpack.c.l.b16 %v774
      %v843 = vunpack.c.h.b16 %v774
      %v844 = vunpack.c.l.b16 %v775
      %v845 = vunpack.c.h.b16 %v775
      %v846 = vunpack.c.l.b16 %v776
      %v847 = vunpack.c.h.b16 %v776
      %v848 = vunpack.c.l.b16 %v777
      %v849 = vunpack.c.h.b16 %v777
      %v850 = vunpack.c.l.b16 %v778
      %v851 = vunpack.c.h.b16 %v778
      %v852 = vunpack.c.l.b16 %v779
      %v853 = vunpack.c.h.b16 %v779
      %v854 = vunpack.c.l.b16 %v780
      %v855 = vunpack.c.h.b16 %v780
      %v856 = vunpack.c.l.b16 %v781
      %v857 = vunpack.c.h.b16 %v781
      %v858 = vunpack.c.l.b16 %v782
      %v859 = vunpack.c.h.b16 %v782
      %v860 = vunpack.c.l.b16 %v783
      %v861 = vunpack.c.h.b16 %v783
      %v862 = vunpack.c.l.b16 %v784
      %v863 = vunpack.c.h.b16 %v784
      %v864 = vunpack.c.l.b16 %v785
      %v865 = vunpack.c.h.b16 %v785
      %v866 = vunpack.c.l.b16 %v786
      %v867 = vunpack.c.h.b16 %v786
      %v868 = vunpack.c.l.b16 %v787
      %v869 = vunpack.c.h.b16 %v787
      %v870 = vunpack.c.l.b16 %v788
      %v871 = vunpack.c.h.b16 %v788
      %v872 = vunpack.c.l.b16 %v789
      %v873 = vunpack.c.h.b16 %v789
      %v874 = vunpack.c.l.b16 %v790
      %v875 = vunpack.c.h.b16 %v790
      %v876 = vunpack.c.l.b16 %v791
      %v877 = vunpack.c.h.b16 %v791
      %v878 = vunpack.c.l.b16 %v792
      %v879 = vunpack.c.h.b16 %v792
      %v880 = vunpack.c.l.b16 %v793
      %v881 = vunpack.c.h.b16 %v793
      %v882 = vunpack.c.l.b16 %v794
      %v883 = vunpack.c.h.b16 %v794
      %v884 = vunpack.c.l.b16 %v795
      %v885 = vunpack.c.h.b16 %v795
      %v886 = vunpack.c.l.b16 %v796
      %v887 = vunpack.c.h.b16 %v796
      %v888 = vunpack.c.l.b16 %v797
      %v889 = vunpack.c.h.b16 %v797
      %v890 = vunpack.c.l.b16 %v798
      %v891 = vunpack.c.h.b16 %v798
      %v892 = vunpack.c.l.b16 %v799
      %v893 = vunpack.c.h.b16 %v799
      %v894 = vunpack.c.l.b16 %v800
      %v895 = vunpack.c.h.b16 %v800
      %v896 = vunpack.c.l.b16 %v801
      %v897 = vunpack.c.h.b16 %v801
      %v898 = vpack.c.b16 %v836, %v834
      %v899 = vpack.c.b16 %v837, %v835
      %v900 = vpack.c.b16 %v840, %v838
      %v901 = vpack.c.b16 %v841, %v839
      %v902 = vpack.c.b16 %v844, %v842
      %v903 = vpack.c.b16 %v845, %v843
      %v904 = vpack.c.b16 %v848, %v846
      %v905 = vpack.c.b16 %v849, %v847
      %v906 = vpack.c.b16 %v852, %v850
      %v907 = vpack.c.b16 %v853, %v851
      %v908 = vpack.c.b16 %v856, %v854
      %v909 = vpack.c.b16 %v857, %v855
      %v910 = vpack.c.b16 %v860, %v858
      %v911 = vpack.c.b16 %v861, %v859
      %v912 = vpack.c.b16 %v864, %v862
      %v913 = vpack.c.b16 %v865, %v863
      %v914 = vpack.c.b16 %v868, %v866
      %v915 = vpack.c.b16 %v869, %v867
      %v916 = vpack.c.b16 %v872, %v870
      %v917 = vpack.c.b16 %v873, %v871
      %v918 = vpack.c.b16 %v876, %v874
      %v919 = vpack.c.b16 %v877, %v875
      %v920 = vpack.c.b16 %v880, %v878
      %v921 = vpack.c.b16 %v881, %v879
      %v922 = vpack.c.b16 %v884, %v882
      %v923 = vpack.c.b16 %v885, %v883
      %v924 = vpack.c.b16 %v888, %v886
      %v925 = vpack.c.b16 %v889, %v887
      %v926 = vpack.c.b16 %v892, %v890
      %v927 = vpack.c.b16 %v893, %v891
      %v928 = vpack.c.b16 %v896, %v894
      %v929 = vpack.c.b16 %v897, %v895
      %962 = vmatprep.subr.bf16.mxu0 0
      %963 = vmatpush1.bf16.msra.mxu0 %v754
      %964 = vmatprep.subr.bf16.mxu0 0
      %965 = vmatpush1.bf16.msra.mxu0 %v755
      %966 = vmatprep.subr.bf16.mxu0 0
      %967 = vmatpush1.bf16.msra.mxu0 %v756
      %968 = vmatprep.subr.bf16.mxu0 0
      %969 = vmatpush1.bf16.msra.mxu0 %v757
      %970 = vmatprep.subr.bf16.mxu0 0
      %971 = vmatpush1.bf16.msra.mxu0 %v758
      %972 = vmatprep.subr.bf16.mxu0 0
      %973 = vmatpush1.bf16.msra.mxu0 %v759
      %974 = vmatprep.subr.bf16.mxu0 0
      %975 = vmatpush1.bf16.msra.mxu0 %v760
      %976 = vmatprep.subr.bf16.mxu0 0
      %977 = vmatpush1.bf16.msra.mxu0 %v761
      %978 = vmatprep.subr.bf16.mxu0 0
      %979 = vmatpush1.bf16.msra.mxu0 %v762
      %980 = vmatprep.subr.bf16.mxu0 0
      %981 = vmatpush1.bf16.msra.mxu0 %v763
      %982 = vmatprep.subr.bf16.mxu0 0
      %983 = vmatpush1.bf16.msra.mxu0 %v764
      %984 = vmatprep.subr.bf16.mxu0 0
      %985 = vmatpush1.bf16.msra.mxu0 %v765
      %986 = vmatprep.subr.bf16.mxu0 0
      %987 = vmatpush1.bf16.msra.mxu0 %v766
      %988 = vmatprep.subr.bf16.mxu0 0
      %989 = vmatpush1.bf16.msra.mxu0 %v767
      %990 = vmatprep.subr.bf16.mxu0 0
      %991 = vmatpush1.bf16.msra.mxu0 %v768
      %992 = vmatprep.subr.bf16.mxu0 0
      %993 = vmatpush1.bf16.msra.mxu0 %v769
      %994 = vmatprep.mubr.bf16.mxu0 %v899
      %995 = vmatmul.mubr.bf16.gmra.mrb[0].mxu0 %v898
      %v996 = vpop.f32.mrb[0].mxu0
      %v997 = vadd.f32 0.0, %v996
      %v998 = vpop.f32.mrb[0].mxu0
      %v999 = vpop.f32.mrb[0].mxu0
      %v1000 = vadd.f32 0.0, %v999
      %v1001 = vpop.f32.mrb[0].mxu0
      %1002 = vmatprep.mubr.bf16.mxu0 %v901
      %1003 = vmatmul.mubr.bf16.gmra.mrb[0].mxu0 %v900
      %v1004 = vpop.f32.mrb[0].mxu0
      %v1005 = vadd.f32 0.0, %v1004
      %v1006 = vpop.f32.mrb[0].mxu0
      %v1007 = vpop.f32.mrb[0].mxu0
      %v1008 = vadd.f32 0.0, %v1007
      %v1009 = vpop.f32.mrb[0].mxu0
      %1010 = vmatprep.mubr.bf16.mxu0 %v903
      %1011 = vmatmul.mubr.bf16.gmra.mrb[0].mxu0 %v902
      %v1012 = vpop.f32.mrb[0].mxu0
      %v1013 = vadd.f32 0.0, %v1012
      %v1014 = vpop.f32.mrb[0].mxu0
      %v1015 = vpop.f32.mrb[0].mxu0
      %v1016 = vadd.f32 0.0, %v1015
      %v1017 = vpop.f32.mrb[0].mxu0
      %1018 = vmatprep.mubr.bf16.mxu0 %v905
      %1019 = vmatmul.mubr.bf16.gmra.mrb[0].mxu0 %v904
      %v1020 = vpop.f32.mrb[0].mxu0
      %v1021 = vadd.f32 0.0, %v1020
      %v1022 = vpop.f32.mrb[0].mxu0
      %v1023 = vpop.f32.mrb[0].mxu0
      %v1024 = vadd.f32 0.0, %v1023
      %v1025 = vpop.f32.mrb[0].mxu0
      %1026 = vmatprep.mubr.bf16.mxu0 %v907
      %1027 = vmatmul.mubr.bf16.gmra.mrb[0].mxu0 %v906
      %v1028 = vpop.f32.mrb[0].mxu0
      %v1029 = vadd.f32 0.0, %v1028
      %v1030 = vpop.f32.mrb[0].mxu0
      %v1031 = vpop.f32.mrb[0].mxu0
      %v1032 = vadd.f32 0.0, %v1031
      %v1033 = vpop.f32.mrb[0].mxu0
      %1034 = vmatprep.mubr.bf16.mxu0 %v909
      %1035 = vmatmul.mubr.bf16.gmra.mrb[0].mxu0 %v908
      %v1036 = vpop.f32.mrb[0].mxu0
      %v1037 = vadd.f32 0.0, %v1036
      %v1038 = vpop.f32.mrb[0].mxu0
      %v1039 = vpop.f32.mrb[0].mxu0
      %v1040 = vadd.f32 0.0, %v1039
      %v1041 = vpop.f32.mrb[0].mxu0
      %1042 = vmatprep.mubr.bf16.mxu0 %v911
      %1043 = vmatmul.mubr.bf16.gmra.mrb[0].mxu0 %v910
      %v1044 = vpop.f32.mrb[0].mxu0
      %v1045 = vadd.f32 0.0, %v1044
      %v1046 = vpop.f32.mrb[0].mxu0
      %v1047 = vpop.f32.mrb[0].mxu0
      %v1048 = vadd.f32 0.0, %v1047
      %v1049 = vpop.f32.mrb[0].mxu0
      %1050 = vmatprep.mubr.bf16.mxu0 %v913
      %1051 = vmatmul.mubr.bf16.gmra.mrb[0].mxu0 %v912
      %v1052 = vpop.f32.mrb[0].mxu0
      %v1053 = vadd.f32 0.0, %v1052
      %v1054 = vpop.f32.mrb[0].mxu0
      %v1055 = vpop.f32.mrb[0].mxu0
      %v1056 = vadd.f32 0.0, %v1055
      %v1057 = vpop.f32.mrb[0].mxu0
      %1058 = vmatprep.mubr.bf16.mxu0 %v915
      %1059 = vmatmul.mubr.bf16.gmra.mrb[0].mxu0 %v914
      %v1060 = vpop.f32.mrb[0].mxu0
      %v1061 = vadd.f32 0.0, %v1060
      %v1062 = vpop.f32.mrb[0].mxu0
      %v1063 = vpop.f32.mrb[0].mxu0
      %v1064 = vadd.f32 0.0, %v1063
      %v1065 = vpop.f32.mrb[0].mxu0
      %1066 = vmatprep.mubr.bf16.mxu0 %v917
      %1067 = vmatmul.mubr.bf16.gmra.mrb[0].mxu0 %v916
      %v1068 = vpop.f32.mrb[0].mxu0
      %v1069 = vadd.f32 0.0, %v1068
      %v1070 = vpop.f32.mrb[0].mxu0
      %v1071 = vpop.f32.mrb[0].mxu0
      %v1072 = vadd.f32 0.0, %v1071
      %v1073 = vpop.f32.mrb[0].mxu0
      %1074 = vmatprep.mubr.bf16.mxu0 %v919
      %1075 = vmatmul.mubr.bf16.gmra.mrb[0].mxu0 %v918
      %v1076 = vpop.f32.mrb[0].mxu0
      %v1077 = vadd.f32 0.0, %v1076
      %v1078 = vpop.f32.mrb[0].mxu0
      %v1079 = vpop.f32.mrb[0].mxu0
      %v1080 = vadd.f32 0.0, %v1079
      %v1081 = vpop.f32.mrb[0].mxu0
      %1082 = vmatprep.mubr.bf16.mxu0 %v921
      %1083 = vmatmul.mubr.bf16.gmra.mrb[0].mxu0 %v920
      %v1084 = vpop.f32.mrb[0].mxu0
      %v1085 = vadd.f32 0.0, %v1084
      %v1086 = vpop.f32.mrb[0].mxu0
      %v1087 = vpop.f32.mrb[0].mxu0
      %v1088 = vadd.f32 0.0, %v1087
      %v1089 = vpop.f32.mrb[0].mxu0
      %1090 = vmatprep.mubr.bf16.mxu0 %v923
      %1091 = vmatmul.mubr.bf16.gmra.mrb[0].mxu0 %v922
      %v1092 = vpop.f32.mrb[0].mxu0
      %v1093 = vadd.f32 0.0, %v1092
      %v1094 = vpop.f32.mrb[0].mxu0
      %v1095 = vpop.f32.mrb[0].mxu0
      %v1096 = vadd.f32 0.0, %v1095
      %v1097 = vpop.f32.mrb[0].mxu0
      %1098 = vmatprep.mubr.bf16.mxu0 %v925
      %1099 = vmatmul.mubr.bf16.gmra.mrb[0].mxu0 %v924
      %v1100 = vpop.f32.mrb[0].mxu0
      %v1101 = vadd.f32 0.0, %v1100
      %v1102 = vpop.f32.mrb[0].mxu0
      %v1103 = vpop.f32.mrb[0].mxu0
      %v1104 = vadd.f32 0.0, %v1103
      %v1105 = vpop.f32.mrb[0].mxu0
      %1106 = vmatprep.mubr.bf16.mxu0 %v927
      %1107 = vmatmul.mubr.bf16.gmra.mrb[0].mxu0 %v926
      %v1108 = vpop.f32.mrb[0].mxu0
      %v1109 = vadd.f32 0.0, %v1108
      %v1110 = vpop.f32.mrb[0].mxu0
      %v1111 = vpop.f32.mrb[0].mxu0
      %v1112 = vadd.f32 0.0, %v1111
      %v1113 = vpop.f32.mrb[0].mxu0
      %1114 = vmatprep.mubr.bf16.mxu0 %v929
      %1115 = vmatmul.mubr.bf16.gmra.mrb[0].mxu0 %v928
      %v1116 = vpop.f32.mrb[0].mxu0
      %v1117 = vadd.f32 0.0, %v1116
      %v1118 = vpop.f32.mrb[0].mxu0
      %v1119 = vpop.f32.mrb[0].mxu0
      %v1120 = vadd.f32 0.0, %v1119
      %v1121 = vpop.f32.mrb[0].mxu0
      %1122 = vdwg.mxu0
      %v1123 = vpack.c.bf16 %v1000, %v997
      %v1124 = vpack.c.bf16 %v1008, %v1005
      %v1125 = vpack.c.bf16 %v1016, %v1013
      %v1126 = vpack.c.bf16 %v1024, %v1021
      %v1127 = vpack.c.bf16 %v1032, %v1029
      %v1128 = vpack.c.bf16 %v1040, %v1037
      %v1129 = vpack.c.bf16 %v1048, %v1045
      %v1130 = vpack.c.bf16 %v1056, %v1053
      %v1131 = vpack.c.bf16 %v1064, %v1061
      %v1132 = vpack.c.bf16 %v1072, %v1069
      %v1133 = vpack.c.bf16 %v1080, %v1077
      %v1134 = vpack.c.bf16 %v1088, %v1085
      %v1135 = vpack.c.bf16 %v1096, %v1093
      %v1136 = vpack.c.bf16 %v1104, %v1101
      %v1137 = vpack.c.bf16 %v1112, %v1109
      %v1138 = vpack.c.bf16 %v1120, %v1117
      %v1139 = vld [vmem:[%s7] sm:$0xf]
      %v1140 = vld [vmem:[%s7 + $0x4] sm:$0xf]
      %v1141 = vld [vmem:[%s7 + $0x8] sm:$0xf]
      %v1142 = vld [vmem:[%s7 + $0xc] sm:$0xf]
      %v1143 = vld [vmem:[%s7 + $0x10] sm:$0xf]
      %v1144 = vld [vmem:[%s7 + $0x14] sm:$0xf]
      %v1145 = vld [vmem:[%s7 + $0x18] sm:$0xf]
      %v1146 = vld [vmem:[%s7 + $0x1c] sm:$0xf]
      %s1147 = scalar_lea.vmem %s2, 256
      %v1148 = vld [vmem:[%s1147] sm:$0xff]
      %v1149 = vld [vmem:[%s1147 + $0x8] sm:$0xff]
      %v1150 = vld [vmem:[%s1147 + $0x10] sm:$0xff]
      %v1151 = vld [vmem:[%s1147 + $0x18] sm:$0xff]
      %v1152 = vld [vmem:[%s1147 + $0x20] sm:$0xff]
      %v1153 = vld [vmem:[%s1147 + $0x28] sm:$0xff]
      %v1154 = vld [vmem:[%s1147 + $0x30] sm:$0xff]
      %v1155 = vld [vmem:[%s1147 + $0x38] sm:$0xff]
      %v1156 = vld [vmem:[%s1147 + $0x40] sm:$0xff]
      %v1157 = vld [vmem:[%s1147 + $0x48] sm:$0xff]
      %v1158 = vld [vmem:[%s1147 + $0x50] sm:$0xff]
      %v1159 = vld [vmem:[%s1147 + $0x58] sm:$0xff]
      %v1160 = vld [vmem:[%s1147 + $0x60] sm:$0xff]
      %v1161 = vld [vmem:[%s1147 + $0x68] sm:$0xff]
      %v1162 = vld [vmem:[%s1147 + $0x70] sm:$0xff]
      %v1163 = vld [vmem:[%s1147 + $0x78] sm:$0xff]
      %v1164 = vld [vmem:[%s1147 + $0x80] sm:$0xff]
      %v1165 = vld [vmem:[%s1147 + $0x88] sm:$0xff]
      %v1166 = vld [vmem:[%s1147 + $0x90] sm:$0xff]
      %v1167 = vld [vmem:[%s1147 + $0x98] sm:$0xff]
      %v1168 = vld [vmem:[%s1147 + $0xa0] sm:$0xff]
      %v1169 = vld [vmem:[%s1147 + $0xa8] sm:$0xff]
      %v1170 = vld [vmem:[%s1147 + $0xb0] sm:$0xff]
      %v1171 = vld [vmem:[%s1147 + $0xb8] sm:$0xff]
      %v1172 = vld [vmem:[%s1147 + $0xc0] sm:$0xff]
      %v1173 = vld [vmem:[%s1147 + $0xc8] sm:$0xff]
      %v1174 = vld [vmem:[%s1147 + $0xd0] sm:$0xff]
      %v1175 = vld [vmem:[%s1147 + $0xd8] sm:$0xff]
      %v1176 = vld [vmem:[%s1147 + $0xe0] sm:$0xff]
      %v1177 = vld [vmem:[%s1147 + $0xe8] sm:$0xff]
      %v1178 = vld [vmem:[%s1147 + $0xf0] sm:$0xff]
      %v1179 = vld [vmem:[%s1147 + $0xf8] sm:$0xff]
      %v1212 = vunpack.c.l.b16 %v1148
      %v1213 = vunpack.c.h.b16 %v1148
      %v1214 = vunpack.c.l.b16 %v1149
      %v1215 = vunpack.c.h.b16 %v1149
      %v1216 = vunpack.c.l.b16 %v1150
      %v1217 = vunpack.c.h.b16 %v1150
      %v1218 = vunpack.c.l.b16 %v1151
      %v1219 = vunpack.c.h.b16 %v1151
      %v1220 = vunpack.c.l.b16 %v1152
      %v1221 = vunpack.c.h.b16 %v1152
      %v1222 = vunpack.c.l.b16 %v1153
      %v1223 = vunpack.c.h.b16 %v1153
      %v1224 = vunpack.c.l.b16 %v1154
      %v1225 = vunpack.c.h.b16 %v1154
      %v1226 = vunpack.c.l.b16 %v1155
      %v1227 = vunpack.c.h.b16 %v1155
      %v1228 = vunpack.c.l.b16 %v1156
      %v1229 = vunpack.c.h.b16 %v1156
      %v1230 = vunpack.c.l.b16 %v1157
      %v1231 = vunpack.c.h.b16 %v1157
      %v1232 = vunpack.c.l.b16 %v1158
      %v1233 = vunpack.c.h.b16 %v1158
      %v1234 = vunpack.c.l.b16 %v1159
      %v1235 = vunpack.c.h.b16 %v1159
      %v1236 = vunpack.c.l.b16 %v1160
      %v1237 = vunpack.c.h.b16 %v1160
      %v1238 = vunpack.c.l.b16 %v1161
      %v1239 = vunpack.c.h.b16 %v1161
      %v1240 = vunpack.c.l.b16 %v1162
      %v1241 = vunpack.c.h.b16 %v1162
      %v1242 = vunpack.c.l.b16 %v1163
      %v1243 = vunpack.c.h.b16 %v1163
      %v1244 = vunpack.c.l.b16 %v1164
      %v1245 = vunpack.c.h.b16 %v1164
      %v1246 = vunpack.c.l.b16 %v1165
      %v1247 = vunpack.c.h.b16 %v1165
      %v1248 = vunpack.c.l.b16 %v1166
      %v1249 = vunpack.c.h.b16 %v1166
      %v1250 = vunpack.c.l.b16 %v1167
      %v1251 = vunpack.c.h.b16 %v1167
      %v1252 = vunpack.c.l.b16 %v1168
      %v1253 = vunpack.c.h.b16 %v1168
      %v1254 = vunpack.c.l.b16 %v1169
      %v1255 = vunpack.c.h.b16 %v1169
      %v1256 = vunpack.c.l.b16 %v1170
      %v1257 = vunpack.c.h.b16 %v1170
      %v1258 = vunpack.c.l.b16 %v1171
      %v1259 = vunpack.c.h.b16 %v1171
      %v1260 = vunpack.c.l.b16 %v1172
      %v1261 = vunpack.c.h.b16 %v1172
      %v1262 = vunpack.c.l.b16 %v1173
      %v1263 = vunpack.c.h.b16 %v1173
      %v1264 = vunpack.c.l.b16 %v1174
      %v1265 = vunpack.c.h.b16 %v1174
      %v1266 = vunpack.c.l.b16 %v1175
      %v1267 = vunpack.c.h.b16 %v1175
      %v1268 = vunpack.c.l.b16 %v1176
      %v1269 = vunpack.c.h.b16 %v1176
      %v1270 = vunpack.c.l.b16 %v1177
      %v1271 = vunpack.c.h.b16 %v1177
      %v1272 = vunpack.c.l.b16 %v1178
      %v1273 = vunpack.c.h.b16 %v1178
      %v1274 = vunpack.c.l.b16 %v1179
      %v1275 = vunpack.c.h.b16 %v1179
      %v1276 = vpack.c.b16 %v1214, %v1212
      %v1277 = vpack.c.b16 %v1215, %v1213
      %v1278 = vpack.c.b16 %v1218, %v1216
      %v1279 = vpack.c.b16 %v1219, %v1217
      %v1280 = vpack.c.b16 %v1222, %v1220
      %v1281 = vpack.c.b16 %v1223, %v1221
      %v1282 = vpack.c.b16 %v1226, %v1224
      %v1283 = vpack.c.b16 %v1227, %v1225
      %v1284 = vpack.c.b16 %v1230, %v1228
      %v1285 = vpack.c.b16 %v1231, %v1229
      %v1286 = vpack.c.b16 %v1234, %v1232
      %v1287 = vpack.c.b16 %v1235, %v1233
      %v1288 = vpack.c.b16 %v1238, %v1236
      %v1289 = vpack.c.b16 %v1239, %v1237
      %v1290 = vpack.c.b16 %v1242, %v1240
      %v1291 = vpack.c.b16 %v1243, %v1241
      %v1292 = vpack.c.b16 %v1246, %v1244
      %v1293 = vpack.c.b16 %v1247, %v1245
      %v1294 = vpack.c.b16 %v1250, %v1248
      %v1295 = vpack.c.b16 %v1251, %v1249
      %v1296 = vpack.c.b16 %v1254, %v1252
      %v1297 = vpack.c.b16 %v1255, %v1253
      %v1298 = vpack.c.b16 %v1258, %v1256
      %v1299 = vpack.c.b16 %v1259, %v1257
      %v1300 = vpack.c.b16 %v1262, %v1260
      %v1301 = vpack.c.b16 %v1263, %v1261
      %v1302 = vpack.c.b16 %v1266, %v1264
      %v1303 = vpack.c.b16 %v1267, %v1265
      %v1304 = vpack.c.b16 %v1270, %v1268
      %v1305 = vpack.c.b16 %v1271, %v1269
      %v1306 = vpack.c.b16 %v1274, %v1272
      %v1307 = vpack.c.b16 %v1275, %v1273
      %1340 = vmatprep.subr.bf16.mxu0 0
      %1341 = vmatpush1.bf16.msra.mxu0 %v754
      %1342 = vmatprep.subr.bf16.mxu0 0
      %1343 = vmatpush1.bf16.msra.mxu0 %v755
      %1344 = vmatprep.subr.bf16.mxu0 0
      %1345 = vmatpush1.bf16.msra.mxu0 %v756
      %1346 = vmatprep.subr.bf16.mxu0 0
      %1347 = vmatpush1.bf16.msra.mxu0 %v757
      %1348 = vmatprep.subr.bf16.mxu0 0
      %1349 = vmatpush1.bf16.msra.mxu0 %v758
      %1350 = vmatprep.subr.bf16.mxu0 0
      %1351 = vmatpush1.bf16.msra.mxu0 %v759
      %1352 = vmatprep.subr.bf16.mxu0 0
      %1353 = vmatpush1.bf16.msra.mxu0 %v760
      %1354 = vmatprep.subr.bf16.mxu0 0
      %1355 = vmatpush1.bf16.msra.mxu0 %v761
      %1356 = vmatprep.subr.bf16.mxu0 0
      %1357 = vmatpush1.bf16.msra.mxu0 %v762
      %1358 = vmatprep.subr.bf16.mxu0 0
      %1359 = vmatpush1.bf16.msra.mxu0 %v763
      %1360 = vmatprep.subr.bf16.mxu0 0
      %1361 = vmatpush1.bf16.msra.mxu0 %v764
      %1362 = vmatprep.subr.bf16.mxu0 0
      %1363 = vmatpush1.bf16.msra.mxu0 %v765
      %1364 = vmatprep.subr.bf16.mxu0 0
      %1365 = vmatpush1.bf16.msra.mxu0 %v766
      %1366 = vmatprep.subr.bf16.mxu0 0
      %1367 = vmatpush1.bf16.msra.mxu0 %v767
      %1368 = vmatprep.subr.bf16.mxu0 0
      %1369 = vmatpush1.bf16.msra.mxu0 %v768
      %1370 = vmatprep.subr.bf16.mxu0 0
      %1371 = vmatpush1.bf16.msra.mxu0 %v769
      %1372 = vmatprep.mubr.bf16.mxu0 %v1277
      %1373 = vmatmul.mubr.bf16.gmra.mrb[0].mxu0 %v1276
      %v1374 = vpop.f32.mrb[0].mxu0
      %v1375 = vadd.f32 0.0, %v1374
      %v1376 = vpop.f32.mrb[0].mxu0
      %v1377 = vpop.f32.mrb[0].mxu0
      %v1378 = vadd.f32 0.0, %v1377
      %v1379 = vpop.f32.mrb[0].mxu0
      %1380 = vmatprep.mubr.bf16.mxu0 %v1279
      %1381 = vmatmul.mubr.bf16.gmra.mrb[0].mxu0 %v1278
      %v1382 = vpop.f32.mrb[0].mxu0
      %v1383 = vadd.f32 0.0, %v1382
      %v1384 = vpop.f32.mrb[0].mxu0
      %v1385 = vpop.f32.mrb[0].mxu0
      %v1386 = vadd.f32 0.0, %v1385
      %v1387 = vpop.f32.mrb[0].mxu0
      %1388 = vmatprep.mubr.bf16.mxu0 %v1281
      %1389 = vmatmul.mubr.bf16.gmra.mrb[0].mxu0 %v1280
      %v1390 = vpop.f32.mrb[0].mxu0
      %v1391 = vadd.f32 0.0, %v1390
      %v1392 = vpop.f32.mrb[0].mxu0
      %v1393 = vpop.f32.mrb[0].mxu0
      %v1394 = vadd.f32 0.0, %v1393
      %v1395 = vpop.f32.mrb[0].mxu0
      %1396 = vmatprep.mubr.bf16.mxu0 %v1283
      %1397 = vmatmul.mubr.bf16.gmra.mrb[0].mxu0 %v1282
      %v1398 = vpop.f32.mrb[0].mxu0
      %v1399 = vadd.f32 0.0, %v1398
      %v1400 = vpop.f32.mrb[0].mxu0
      %v1401 = vpop.f32.mrb[0].mxu0
      %v1402 = vadd.f32 0.0, %v1401
      %v1403 = vpop.f32.mrb[0].mxu0
      %1404 = vmatprep.mubr.bf16.mxu0 %v1285
      %1405 = vmatmul.mubr.bf16.gmra.mrb[0].mxu0 %v1284
      %v1406 = vpop.f32.mrb[0].mxu0
      %v1407 = vadd.f32 0.0, %v1406
      %v1408 = vpop.f32.mrb[0].mxu0
      %v1409 = vpop.f32.mrb[0].mxu0
      %v1410 = vadd.f32 0.0, %v1409
      %v1411 = vpop.f32.mrb[0].mxu0
      %1412 = vmatprep.mubr.bf16.mxu0 %v1287
      %1413 = vmatmul.mubr.bf16.gmra.mrb[0].mxu0 %v1286
      %v1414 = vpop.f32.mrb[0].mxu0
      %v1415 = vadd.f32 0.0, %v1414
      %v1416 = vpop.f32.mrb[0].mxu0
      %v1417 = vpop.f32.mrb[0].mxu0
      %v1418 = vadd.f32 0.0, %v1417
      %v1419 = vpop.f32.mrb[0].mxu0
      %1420 = vmatprep.mubr.bf16.mxu0 %v1289
      %1421 = vmatmul.mubr.bf16.gmra.mrb[0].mxu0 %v1288
      %v1422 = vpop.f32.mrb[0].mxu0
      %v1423 = vadd.f32 0.0, %v1422
      %v1424 = vpop.f32.mrb[0].mxu0
      %v1425 = vpop.f32.mrb[0].mxu0
      %v1426 = vadd.f32 0.0, %v1425
      %v1427 = vpop.f32.mrb[0].mxu0
      %1428 = vmatprep.mubr.bf16.mxu0 %v1291
      %1429 = vmatmul.mubr.bf16.gmra.mrb[0].mxu0 %v1290
      %v1430 = vpop.f32.mrb[0].mxu0
      %v1431 = vadd.f32 0.0, %v1430
      %v1432 = vpop.f32.mrb[0].mxu0
      %v1433 = vpop.f32.mrb[0].mxu0
      %v1434 = vadd.f32 0.0, %v1433
      %v1435 = vpop.f32.mrb[0].mxu0
      %1436 = vmatprep.mubr.bf16.mxu0 %v1293
      %1437 = vmatmul.mubr.bf16.gmra.mrb[0].mxu0 %v1292
      %v1438 = vpop.f32.mrb[0].mxu0
      %v1439 = vadd.f32 0.0, %v1438
      %v1440 = vpop.f32.mrb[0].mxu0
      %v1441 = vpop.f32.mrb[0].mxu0
      %v1442 = vadd.f32 0.0, %v1441
      %v1443 = vpop.f32.mrb[0].mxu0
      %1444 = vmatprep.mubr.bf16.mxu0 %v1295
      %1445 = vmatmul.mubr.bf16.gmra.mrb[0].mxu0 %v1294
      %v1446 = vpop.f32.mrb[0].mxu0
      %v1447 = vadd.f32 0.0, %v1446
      %v1448 = vpop.f32.mrb[0].mxu0
      %v1449 = vpop.f32.mrb[0].mxu0
      %v1450 = vadd.f32 0.0, %v1449
      %v1451 = vpop.f32.mrb[0].mxu0
      %1452 = vmatprep.mubr.bf16.mxu0 %v1297
      %1453 = vmatmul.mubr.bf16.gmra.mrb[0].mxu0 %v1296
      %v1454 = vpop.f32.mrb[0].mxu0
      %v1455 = vadd.f32 0.0, %v1454
      %v1456 = vpop.f32.mrb[0].mxu0
      %v1457 = vpop.f32.mrb[0].mxu0
      %v1458 = vadd.f32 0.0, %v1457
      %v1459 = vpop.f32.mrb[0].mxu0
      %1460 = vmatprep.mubr.bf16.mxu0 %v1299
      %1461 = vmatmul.mubr.bf16.gmra.mrb[0].mxu0 %v1298
      %v1462 = vpop.f32.mrb[0].mxu0
      %v1463 = vadd.f32 0.0, %v1462
      %v1464 = vpop.f32.mrb[0].mxu0
      %v1465 = vpop.f32.mrb[0].mxu0
      %v1466 = vadd.f32 0.0, %v1465
      %v1467 = vpop.f32.mrb[0].mxu0
      %1468 = vmatprep.mubr.bf16.mxu0 %v1301
      %1469 = vmatmul.mubr.bf16.gmra.mrb[0].mxu0 %v1300
      %v1470 = vpop.f32.mrb[0].mxu0
      %v1471 = vadd.f32 0.0, %v1470
      %v1472 = vpop.f32.mrb[0].mxu0
      %v1473 = vpop.f32.mrb[0].mxu0
      %v1474 = vadd.f32 0.0, %v1473
      %v1475 = vpop.f32.mrb[0].mxu0
      %1476 = vmatprep.mubr.bf16.mxu0 %v1303
      %1477 = vmatmul.mubr.bf16.gmra.mrb[0].mxu0 %v1302
      %v1478 = vpop.f32.mrb[0].mxu0
      %v1479 = vadd.f32 0.0, %v1478
      %v1480 = vpop.f32.mrb[0].mxu0
      %v1481 = vpop.f32.mrb[0].mxu0
      %v1482 = vadd.f32 0.0, %v1481
      %v1483 = vpop.f32.mrb[0].mxu0
      %1484 = vmatprep.mubr.bf16.mxu0 %v1305
      %1485 = vmatmul.mubr.bf16.gmra.mrb[0].mxu0 %v1304
      %v1486 = vpop.f32.mrb[0].mxu0
      %v1487 = vadd.f32 0.0, %v1486
      %v1488 = vpop.f32.mrb[0].mxu0
      %v1489 = vpop.f32.mrb[0].mxu0
      %v1490 = vadd.f32 0.0, %v1489
      %v1491 = vpop.f32.mrb[0].mxu0
      %1492 = vmatprep.mubr.bf16.mxu0 %v1307
      %1493 = vmatmul.mubr.bf16.gmra.mrb[0].mxu0 %v1306
      %v1494 = vpop.f32.mrb[0].mxu0
      %v1495 = vadd.f32 0.0, %v1494
      %v1496 = vpop.f32.mrb[0].mxu0
      %v1497 = vpop.f32.mrb[0].mxu0
      %v1498 = vadd.f32 0.0, %v1497
      %v1499 = vpop.f32.mrb[0].mxu0
      %1500 = vdwg.mxu0
      %v1501 = vpack.c.bf16 %v1378, %v1375
      %v1502 = vpack.c.bf16 %v1386, %v1383
      %v1503 = vpack.c.bf16 %v1394, %v1391
      %v1504 = vpack.c.bf16 %v1402, %v1399
      %v1505 = vpack.c.bf16 %v1410, %v1407
      %v1506 = vpack.c.bf16 %v1418, %v1415
      %v1507 = vpack.c.bf16 %v1426, %v1423
      %v1508 = vpack.c.bf16 %v1434, %v1431
      %v1509 = vpack.c.bf16 %v1442, %v1439
      %v1510 = vpack.c.bf16 %v1450, %v1447
      %v1511 = vpack.c.bf16 %v1458, %v1455
      %v1512 = vpack.c.bf16 %v1466, %v1463
      %v1513 = vpack.c.bf16 %v1474, %v1471
      %v1514 = vpack.c.bf16 %v1482, %v1479
      %v1515 = vpack.c.bf16 %v1490, %v1487
      %v1516 = vpack.c.bf16 %v1498, %v1495
      %s1517 = scalar_lea.vmem %s7, 32
      %v1518 = vld [vmem:[%s1517] sm:$0xf]
      %v1519 = vld [vmem:[%s1517 + $0x4] sm:$0xf]
      %v1520 = vld [vmem:[%s1517 + $0x8] sm:$0xf]
      %v1521 = vld [vmem:[%s1517 + $0xc] sm:$0xf]
      %v1522 = vld [vmem:[%s1517 + $0x10] sm:$0xf]
      %v1523 = vld [vmem:[%s1517 + $0x14] sm:$0xf]
      %v1524 = vld [vmem:[%s1517 + $0x18] sm:$0xf]
      %v1525 = vld [vmem:[%s1517 + $0x1c] sm:$0xf]
      %v1534 = vunpack.c.l.b16 %v1518
      %v1535 = vunpack.c.l.b16 %v1519
      %v1536 = vunpack.c.l.b16 %v1520
      %v1537 = vunpack.c.l.b16 %v1521
      %v1538 = vunpack.c.l.b16 %v1522
      %v1539 = vunpack.c.l.b16 %v1523
      %v1540 = vunpack.c.l.b16 %v1524
      %v1541 = vunpack.c.l.b16 %v1525
      %v1542 = vpack.c.b16 %v1535, %v1534
      %v1543 = vpack.c.b16 %v1537, %v1536
      %v1544 = vpack.c.b16 %v1539, %v1538
      %v1545 = vpack.c.b16 %v1541, %v1540
      %vm1550 = vcmask 523264
      %v1552 = vsel %vm1550, %v1501, 0
      %v1555 = vsel %vm1550, %v1502, 0
      %v1558 = vsel %vm1550, %v1503, 0
      %v1561 = vsel %vm1550, %v1504, 0
      %v1564 = vsel %vm1550, %v1505, 0
      %v1567 = vsel %vm1550, %v1506, 0
      %v1570 = vsel %vm1550, %v1507, 0
      %v1573 = vsel %vm1550, %v1508, 0
      %v1576 = vsel %vm1550, %v1509, 0
      %v1579 = vsel %vm1550, %v1510, 0
      %v1582 = vsel %vm1550, %v1511, 0
      %v1585 = vsel %vm1550, %v1512, 0
      %v1588 = vsel %vm1550, %v1513, 0
      %v1591 = vsel %vm1550, %v1514, 0
      %v1594 = vsel %vm1550, %v1515, 0
      %v1597 = vsel %vm1550, %v1516, 0
      %1599 = vmatprep.subr.bf16.mxu0 0
      %1600 = vmatpush1.bf16.msra.mxu0 %v1542
      %1601 = vmatprep.subr.bf16.mxu0 0
      %1602 = vmatpush1.bf16.msra.mxu0 %v1543
      %1603 = vmatprep.subr.bf16.mxu0 0
      %1604 = vmatpush1.bf16.msra.mxu0 %v1544
      %1605 = vmatprep.subr.bf16.mxu0 0
      %1606 = vmatpush1.bf16.msra.mxu0 %v1545
      %1607 = vmatprep.subr.bf16.mxu0 0
      %1608 = vmatpush1.bf16.msra.mxu0 0
      %1609 = vmatprep.subr.bf16.mxu0 0
      %1610 = vmatpush1.bf16.msra.mxu0 0
      %1611 = vmatprep.subr.bf16.mxu0 0
      %1612 = vmatpush1.bf16.msra.mxu0 0
      %1613 = vmatprep.subr.bf16.mxu0 0
      %1614 = vmatpush1.bf16.msra.mxu0 0
      %1615 = vmatprep.subr.bf16.mxu0 0
      %1616 = vmatpush1.bf16.msra.mxu0 0
      %1617 = vmatprep.subr.bf16.mxu0 0
      %1618 = vmatpush1.bf16.msra.mxu0 0
      %1619 = vmatprep.subr.bf16.mxu0 0
      %1620 = vmatpush1.bf16.msra.mxu0 0
      %1621 = vmatprep.subr.bf16.mxu0 0
      %1622 = vmatpush1.bf16.msra.mxu0 0
      %1623 = vmatprep.subr.bf16.mxu0 0
      %1624 = vmatpush1.bf16.msra.mxu0 0
      %1625 = vmatprep.subr.bf16.mxu0 0
      %1626 = vmatpush1.bf16.msra.mxu0 0
      %1627 = vmatprep.subr.bf16.mxu0 0
      %1628 = vmatpush1.bf16.msra.mxu0 0
      %1629 = vmatprep.subr.bf16.mxu0 0
      %1630 = vmatpush1.bf16.msra.mxu0 0
      %1631 = vmatprep.mubr.bf16.mxu0 0
      %1632 = vmatmul.mubr.bf16.gmra.mrb[0].mxu0 %v1552
      %v1633 = vpop.f32.mrb[0].mxu0
      %v1634 = vadd.f32 0.0, %v1633
      %v1635 = vpop.f32.mrb[0].mxu0
      %v1636 = vpop.f32.mrb[0].mxu0
      %v1637 = vadd.f32 0.0, %v1636
      %v1638 = vpop.f32.mrb[0].mxu0
      %1639 = vmatprep.mubr.bf16.mxu0 0
      %1640 = vmatmul.mubr.bf16.gmra.mrb[0].mxu0 %v1555
      %v1641 = vpop.f32.mrb[0].mxu0
      %v1642 = vadd.f32 0.0, %v1641
      %v1643 = vpop.f32.mrb[0].mxu0
      %v1644 = vpop.f32.mrb[0].mxu0
      %v1645 = vadd.f32 0.0, %v1644
      %v1646 = vpop.f32.mrb[0].mxu0
      %1647 = vmatprep.mubr.bf16.mxu0 0
      %1648 = vmatmul.mubr.bf16.gmra.mrb[0].mxu0 %v1558
      %v1649 = vpop.f32.mrb[0].mxu0
      %v1650 = vadd.f32 0.0, %v1649
      %v1651 = vpop.f32.mrb[0].mxu0
      %v1652 = vpop.f32.mrb[0].mxu0
      %v1653 = vadd.f32 0.0, %v1652
      %v1654 = vpop.f32.mrb[0].mxu0
      %1655 = vmatprep.mubr.bf16.mxu0 0
      %1656 = vmatmul.mubr.bf16.gmra.mrb[0].mxu0 %v1561
      %v1657 = vpop.f32.mrb[0].mxu0
      %v1658 = vadd.f32 0.0, %v1657
      %v1659 = vpop.f32.mrb[0].mxu0
      %v1660 = vpop.f32.mrb[0].mxu0
      %v1661 = vadd.f32 0.0, %v1660
      %v1662 = vpop.f32.mrb[0].mxu0
      %1663 = vmatprep.mubr.bf16.mxu0 0
      %1664 = vmatmul.mubr.bf16.gmra.mrb[0].mxu0 %v1564
      %v1665 = vpop.f32.mrb[0].mxu0
      %v1666 = vadd.f32 0.0, %v1665
      %v1667 = vpop.f32.mrb[0].mxu0
      %v1668 = vpop.f32.mrb[0].mxu0
      %v1669 = vadd.f32 0.0, %v1668
      %v1670 = vpop.f32.mrb[0].mxu0
      %1671 = vmatprep.mubr.bf16.mxu0 0
      %1672 = vmatmul.mubr.bf16.gmra.mrb[0].mxu0 %v1567
      %v1673 = vpop.f32.mrb[0].mxu0
      %v1674 = vadd.f32 0.0, %v1673
      %v1675 = vpop.f32.mrb[0].mxu0
      %v1676 = vpop.f32.mrb[0].mxu0
      %v1677 = vadd.f32 0.0, %v1676
      %v1678 = vpop.f32.mrb[0].mxu0
      %1679 = vmatprep.mubr.bf16.mxu0 0
      %1680 = vmatmul.mubr.bf16.gmra.mrb[0].mxu0 %v1570
      %v1681 = vpop.f32.mrb[0].mxu0
      %v1682 = vadd.f32 0.0, %v1681
      %v1683 = vpop.f32.mrb[0].mxu0
      %v1684 = vpop.f32.mrb[0].mxu0
      %v1685 = vadd.f32 0.0, %v1684
      %v1686 = vpop.f32.mrb[0].mxu0
      %1687 = vmatprep.mubr.bf16.mxu0 0
      %1688 = vmatmul.mubr.bf16.gmra.mrb[0].mxu0 %v1573
      %v1689 = vpop.f32.mrb[0].mxu0
      %v1690 = vadd.f32 0.0, %v1689
      %v1691 = vpop.f32.mrb[0].mxu0
      %v1692 = vpop.f32.mrb[0].mxu0
      %v1693 = vadd.f32 0.0, %v1692
      %v1694 = vpop.f32.mrb[0].mxu0
      %1695 = vmatprep.mubr.bf16.mxu0 0
      %1696 = vmatmul.mubr.bf16.gmra.mrb[0].mxu0 %v1576
      %v1697 = vpop.f32.mrb[0].mxu0
      %v1698 = vadd.f32 0.0, %v1697
      %v1699 = vpop.f32.mrb[0].mxu0
      %v1700 = vpop.f32.mrb[0].mxu0
      %v1701 = vadd.f32 0.0, %v1700
      %v1702 = vpop.f32.mrb[0].mxu0
      %1703 = vmatprep.mubr.bf16.mxu0 0
      %1704 = vmatmul.mubr.bf16.gmra.mrb[0].mxu0 %v1579
      %v1705 = vpop.f32.mrb[0].mxu0
      %v1706 = vadd.f32 0.0, %v1705
      %v1707 = vpop.f32.mrb[0].mxu0
      %v1708 = vpop.f32.mrb[0].mxu0
      %v1709 = vadd.f32 0.0, %v1708
      %v1710 = vpop.f32.mrb[0].mxu0
      %1711 = vmatprep.mubr.bf16.mxu0 0
      %1712 = vmatmul.mubr.bf16.gmra.mrb[0].mxu0 %v1582
      %v1713 = vpop.f32.mrb[0].mxu0
      %v1714 = vadd.f32 0.0, %v1713
      %v1715 = vpop.f32.mrb[0].mxu0
      %v1716 = vpop.f32.mrb[0].mxu0
      %v1717 = vadd.f32 0.0, %v1716
      %v1718 = vpop.f32.mrb[0].mxu0
      %1719 = vmatprep.mubr.bf16.mxu0 0
      %1720 = vmatmul.mubr.bf16.gmra.mrb[0].mxu0 %v1585
      %v1721 = vpop.f32.mrb[0].mxu0
      %v1722 = vadd.f32 0.0, %v1721
      %v1723 = vpop.f32.mrb[0].mxu0
      %v1724 = vpop.f32.mrb[0].mxu0
      %v1725 = vadd.f32 0.0, %v1724
      %v1726 = vpop.f32.mrb[0].mxu0
      %1727 = vmatprep.mubr.bf16.mxu0 0
      %1728 = vmatmul.mubr.bf16.gmra.mrb[0].mxu0 %v1588
      %v1729 = vpop.f32.mrb[0].mxu0
      %v1730 = vadd.f32 0.0, %v1729
      %v1731 = vpop.f32.mrb[0].mxu0
      %v1732 = vpop.f32.mrb[0].mxu0
      %v1733 = vadd.f32 0.0, %v1732
      %v1734 = vpop.f32.mrb[0].mxu0
      %1735 = vmatprep.mubr.bf16.mxu0 0
      %1736 = vmatmul.mubr.bf16.gmra.mrb[0].mxu0 %v1591
      %v1737 = vpop.f32.mrb[0].mxu0
      %v1738 = vadd.f32 0.0, %v1737
      %v1739 = vpop.f32.mrb[0].mxu0
      %v1740 = vpop.f32.mrb[0].mxu0
      %v1741 = vadd.f32 0.0, %v1740
      %v1742 = vpop.f32.mrb[0].mxu0
      %1743 = vmatprep.mubr.bf16.mxu0 0
      %1744 = vmatmul.mubr.bf16.gmra.mrb[0].mxu0 %v1594
      %v1745 = vpop.f32.mrb[0].mxu0
      %v1746 = vadd.f32 0.0, %v1745
      %v1747 = vpop.f32.mrb[0].mxu0
      %v1748 = vpop.f32.mrb[0].mxu0
      %v1749 = vadd.f32 0.0, %v1748
      %v1750 = vpop.f32.mrb[0].mxu0
      %1751 = vmatprep.mubr.bf16.mxu0 0
      %1752 = vmatmul.mubr.bf16.gmra.mrb[0].mxu0 %v1597
      %v1753 = vpop.f32.mrb[0].mxu0
      %v1754 = vadd.f32 0.0, %v1753
      %v1755 = vpop.f32.mrb[0].mxu0
      %v1756 = vpop.f32.mrb[0].mxu0
      %v1757 = vadd.f32 0.0, %v1756
      %v1758 = vpop.f32.mrb[0].mxu0
      %1759 = vdwg.mxu0
      %v1768 = vunpack.c.l.b16 %v1139
      %v1769 = vunpack.c.l.b16 %v1140
      %v1770 = vunpack.c.l.b16 %v1141
      %v1771 = vunpack.c.l.b16 %v1142
      %v1772 = vunpack.c.l.b16 %v1143
      %v1773 = vunpack.c.l.b16 %v1144
      %v1774 = vunpack.c.l.b16 %v1145
      %v1775 = vunpack.c.l.b16 %v1146
      %v1776 = vpack.c.b16 %v1769, %v1768
      %v1777 = vpack.c.b16 %v1771, %v1770
      %v1778 = vpack.c.b16 %v1773, %v1772
      %v1779 = vpack.c.b16 %v1775, %v1774
      %v1785 = vsel %vm1550, %v1123, 0
      %v1788 = vsel %vm1550, %v1124, 0
      %v1791 = vsel %vm1550, %v1125, 0
      %v1794 = vsel %vm1550, %v1126, 0
      %v1797 = vsel %vm1550, %v1127, 0
      %v1800 = vsel %vm1550, %v1128, 0
      %v1803 = vsel %vm1550, %v1129, 0
      %v1806 = vsel %vm1550, %v1130, 0
      %v1809 = vsel %vm1550, %v1131, 0
      %v1812 = vsel %vm1550, %v1132, 0
      %v1815 = vsel %vm1550, %v1133, 0
      %v1818 = vsel %vm1550, %v1134, 0
      %v1821 = vsel %vm1550, %v1135, 0
      %v1824 = vsel %vm1550, %v1136, 0
      %v1827 = vsel %vm1550, %v1137, 0
      %v1830 = vsel %vm1550, %v1138, 0
      %1832 = vmatprep.subr.bf16.mxu0 0
      %1833 = vmatpush1.bf16.msra.mxu0 %v1776
      %1834 = vmatprep.subr.bf16.mxu0 0
      %1835 = vmatpush1.bf16.msra.mxu0 %v1777
      %1836 = vmatprep.subr.bf16.mxu0 0
      %1837 = vmatpush1.bf16.msra.mxu0 %v1778
      %1838 = vmatprep.subr.bf16.mxu0 0
      %1839 = vmatpush1.bf16.msra.mxu0 %v1779
      %1840 = vmatprep.subr.bf16.mxu0 0
      %1841 = vmatpush1.bf16.msra.mxu0 0
      %1842 = vmatprep.subr.bf16.mxu0 0
      %1843 = vmatpush1.bf16.msra.mxu0 0
      %1844 = vmatprep.subr.bf16.mxu0 0
      %1845 = vmatpush1.bf16.msra.mxu0 0
      %1846 = vmatprep.subr.bf16.mxu0 0
      %1847 = vmatpush1.bf16.msra.mxu0 0
      %1848 = vmatprep.subr.bf16.mxu0 0
      %1849 = vmatpush1.bf16.msra.mxu0 0
      %1850 = vmatprep.subr.bf16.mxu0 0
      %1851 = vmatpush1.bf16.msra.mxu0 0
      %1852 = vmatprep.subr.bf16.mxu0 0
      %1853 = vmatpush1.bf16.msra.mxu0 0
      %1854 = vmatprep.subr.bf16.mxu0 0
      %1855 = vmatpush1.bf16.msra.mxu0 0
      %1856 = vmatprep.subr.bf16.mxu0 0
      %1857 = vmatpush1.bf16.msra.mxu0 0
      %1858 = vmatprep.subr.bf16.mxu0 0
      %1859 = vmatpush1.bf16.msra.mxu0 0
      %1860 = vmatprep.subr.bf16.mxu0 0
      %1861 = vmatpush1.bf16.msra.mxu0 0
      %1862 = vmatprep.subr.bf16.mxu0 0
      %1863 = vmatpush1.bf16.msra.mxu0 0
      %1864 = vmatprep.mubr.bf16.mxu0 0
      %1865 = vmatmul.mubr.bf16.gmra.mrb[0].mxu0 %v1785
      %v1866 = vpop.f32.mrb[0].mxu0
      %v1867 = vadd.f32 %v1634, %v1866
      %v1868 = vpop.f32.mrb[0].mxu0
      %v1869 = vpop.f32.mrb[0].mxu0
      %v1870 = vadd.f32 %v1637, %v1869
      %v1871 = vpop.f32.mrb[0].mxu0
      %1872 = vmatprep.mubr.bf16.mxu0 0
      %1873 = vmatmul.mubr.bf16.gmra.mrb[0].mxu0 %v1788
      %v1874 = vpop.f32.mrb[0].mxu0
      %v1875 = vadd.f32 %v1642, %v1874
      %v1876 = vpop.f32.mrb[0].mxu0
      %v1877 = vpop.f32.mrb[0].mxu0
      %v1878 = vadd.f32 %v1645, %v1877
      %v1879 = vpop.f32.mrb[0].mxu0
      %1880 = vmatprep.mubr.bf16.mxu0 0
      %1881 = vmatmul.mubr.bf16.gmra.mrb[0].mxu0 %v1791
      %v1882 = vpop.f32.mrb[0].mxu0
      %v1883 = vadd.f32 %v1650, %v1882
      %v1884 = vpop.f32.mrb[0].mxu0
      %v1885 = vpop.f32.mrb[0].mxu0
      %v1886 = vadd.f32 %v1653, %v1885
      %v1887 = vpop.f32.mrb[0].mxu0
      %1888 = vmatprep.mubr.bf16.mxu0 0
      %1889 = vmatmul.mubr.bf16.gmra.mrb[0].mxu0 %v1794
      %v1890 = vpop.f32.mrb[0].mxu0
      %v1891 = vadd.f32 %v1658, %v1890
      %v1892 = vpop.f32.mrb[0].mxu0
      %v1893 = vpop.f32.mrb[0].mxu0
      %v1894 = vadd.f32 %v1661, %v1893
      %v1895 = vpop.f32.mrb[0].mxu0
      %1896 = vmatprep.mubr.bf16.mxu0 0
      %1897 = vmatmul.mubr.bf16.gmra.mrb[0].mxu0 %v1797
      %v1898 = vpop.f32.mrb[0].mxu0
      %v1899 = vadd.f32 %v1666, %v1898
      %v1900 = vpop.f32.mrb[0].mxu0
      %v1901 = vpop.f32.mrb[0].mxu0
      %v1902 = vadd.f32 %v1669, %v1901
      %v1903 = vpop.f32.mrb[0].mxu0
      %1904 = vmatprep.mubr.bf16.mxu0 0
      %1905 = vmatmul.mubr.bf16.gmra.mrb[0].mxu0 %v1800
      %v1906 = vpop.f32.mrb[0].mxu0
      %v1907 = vadd.f32 %v1674, %v1906
      %v1908 = vpop.f32.mrb[0].mxu0
      %v1909 = vpop.f32.mrb[0].mxu0
      %v1910 = vadd.f32 %v1677, %v1909
      %v1911 = vpop.f32.mrb[0].mxu0
      %1912 = vmatprep.mubr.bf16.mxu0 0
      %1913 = vmatmul.mubr.bf16.gmra.mrb[0].mxu0 %v1803
      %v1914 = vpop.f32.mrb[0].mxu0
      %v1915 = vadd.f32 %v1682, %v1914
      %v1916 = vpop.f32.mrb[0].mxu0
      %v1917 = vpop.f32.mrb[0].mxu0
      %v1918 = vadd.f32 %v1685, %v1917
      %v1919 = vpop.f32.mrb[0].mxu0
      %1920 = vmatprep.mubr.bf16.mxu0 0
      %1921 = vmatmul.mubr.bf16.gmra.mrb[0].mxu0 %v1806
      %v1922 = vpop.f32.mrb[0].mxu0
      %v1923 = vadd.f32 %v1690, %v1922
      %v1924 = vpop.f32.mrb[0].mxu0
      %v1925 = vpop.f32.mrb[0].mxu0
      %v1926 = vadd.f32 %v1693, %v1925
      %v1927 = vpop.f32.mrb[0].mxu0
      %1928 = vmatprep.mubr.bf16.mxu0 0
      %1929 = vmatmul.mubr.bf16.gmra.mrb[0].mxu0 %v1809
      %v1930 = vpop.f32.mrb[0].mxu0
      %v1931 = vadd.f32 %v1698, %v1930
      %v1932 = vpop.f32.mrb[0].mxu0
      %v1933 = vpop.f32.mrb[0].mxu0
      %v1934 = vadd.f32 %v1701, %v1933
      %v1935 = vpop.f32.mrb[0].mxu0
      %1936 = vmatprep.mubr.bf16.mxu0 0
      %1937 = vmatmul.mubr.bf16.gmra.mrb[0].mxu0 %v1812
      %v1938 = vpop.f32.mrb[0].mxu0
      %v1939 = vadd.f32 %v1706, %v1938
      %v1940 = vpop.f32.mrb[0].mxu0
      %v1941 = vpop.f32.mrb[0].mxu0
      %v1942 = vadd.f32 %v1709, %v1941
      %v1943 = vpop.f32.mrb[0].mxu0
      %1944 = vmatprep.mubr.bf16.mxu0 0
      %1945 = vmatmul.mubr.bf16.gmra.mrb[0].mxu0 %v1815
      %v1946 = vpop.f32.mrb[0].mxu0
      %v1947 = vadd.f32 %v1714, %v1946
      %v1948 = vpop.f32.mrb[0].mxu0
      %v1949 = vpop.f32.mrb[0].mxu0
      %v1950 = vadd.f32 %v1717, %v1949
      %v1951 = vpop.f32.mrb[0].mxu0
      %1952 = vmatprep.mubr.bf16.mxu0 0
      %1953 = vmatmul.mubr.bf16.gmra.mrb[0].mxu0 %v1818
      %v1954 = vpop.f32.mrb[0].mxu0
      %v1955 = vadd.f32 %v1722, %v1954
      %v1956 = vpop.f32.mrb[0].mxu0
      %v1957 = vpop.f32.mrb[0].mxu0
      %v1958 = vadd.f32 %v1725, %v1957
      %v1959 = vpop.f32.mrb[0].mxu0
      %1960 = vmatprep.mubr.bf16.mxu0 0
      %1961 = vmatmul.mubr.bf16.gmra.mrb[0].mxu0 %v1821
      %v1962 = vpop.f32.mrb[0].mxu0
      %v1963 = vadd.f32 %v1730, %v1962
      %v1964 = vpop.f32.mrb[0].mxu0
      %v1965 = vpop.f32.mrb[0].mxu0
      %v1966 = vadd.f32 %v1733, %v1965
      %v1967 = vpop.f32.mrb[0].mxu0
      %1968 = vmatprep.mubr.bf16.mxu0 0
      %1969 = vmatmul.mubr.bf16.gmra.mrb[0].mxu0 %v1824
      %v1970 = vpop.f32.mrb[0].mxu0
      %v1971 = vadd.f32 %v1738, %v1970
      %v1972 = vpop.f32.mrb[0].mxu0
      %v1973 = vpop.f32.mrb[0].mxu0
      %v1974 = vadd.f32 %v1741, %v1973
      %v1975 = vpop.f32.mrb[0].mxu0
      %1976 = vmatprep.mubr.bf16.mxu0 0
      %1977 = vmatmul.mubr.bf16.gmra.mrb[0].mxu0 %v1827
      %v1978 = vpop.f32.mrb[0].mxu0
      %v1979 = vadd.f32 %v1746, %v1978
      %v1980 = vpop.f32.mrb[0].mxu0
      %v1981 = vpop.f32.mrb[0].mxu0
      %v1982 = vadd.f32 %v1749, %v1981
      %v1983 = vpop.f32.mrb[0].mxu0
      %1984 = vmatprep.mubr.bf16.mxu0 0
      %1985 = vmatmul.mubr.bf16.gmra.mrb[0].mxu0 %v1830
      %v1986 = vpop.f32.mrb[0].mxu0
      %v1987 = vadd.f32 %v1754, %v1986
      %v1988 = vpop.f32.mrb[0].mxu0
      %v1989 = vpop.f32.mrb[0].mxu0
      %v1990 = vadd.f32 %v1757, %v1989
      %v1991 = vpop.f32.mrb[0].mxu0
      %1992 = vdwg.mxu0
      %s1993 = scalar_lea.vmem %s2, 512
      %v1994 = vld [vmem:[%s1993] sm:$0xff]
      %v1995 = vld [vmem:[%s1993 + $0x8] sm:$0xff]
      %v1996 = vld [vmem:[%s1993 + $0x10] sm:$0xff]
      %v1997 = vld [vmem:[%s1993 + $0x18] sm:$0xff]
      %v1998 = vld [vmem:[%s1993 + $0x20] sm:$0xff]
      %v1999 = vld [vmem:[%s1993 + $0x28] sm:$0xff]
      %v2000 = vld [vmem:[%s1993 + $0x30] sm:$0xff]
      %v2001 = vld [vmem:[%s1993 + $0x38] sm:$0xff]
      %v2002 = vld [vmem:[%s1993 + $0x40] sm:$0xff]
      %v2003 = vld [vmem:[%s1993 + $0x48] sm:$0xff]
      %v2004 = vld [vmem:[%s1993 + $0x50] sm:$0xff]
      %v2005 = vld [vmem:[%s1993 + $0x58] sm:$0xff]
      %v2006 = vld [vmem:[%s1993 + $0x60] sm:$0xff]
      %v2007 = vld [vmem:[%s1993 + $0x68] sm:$0xff]
      %v2008 = vld [vmem:[%s1993 + $0x70] sm:$0xff]
      %v2009 = vld [vmem:[%s1993 + $0x78] sm:$0xff]
      %v2010 = vld [vmem:[%s1993 + $0x80] sm:$0xff]
      %v2011 = vld [vmem:[%s1993 + $0x88] sm:$0xff]
      %v2012 = vld [vmem:[%s1993 + $0x90] sm:$0xff]
      %v2013 = vld [vmem:[%s1993 + $0x98] sm:$0xff]
      %v2014 = vld [vmem:[%s1993 + $0xa0] sm:$0xff]
      %v2015 = vld [vmem:[%s1993 + $0xa8] sm:$0xff]
      %v2016 = vld [vmem:[%s1993 + $0xb0] sm:$0xff]
      %v2017 = vld [vmem:[%s1993 + $0xb8] sm:$0xff]
      %v2018 = vld [vmem:[%s1993 + $0xc0] sm:$0xff]
      %v2019 = vld [vmem:[%s1993 + $0xc8] sm:$0xff]
      %v2020 = vld [vmem:[%s1993 + $0xd0] sm:$0xff]
      %v2021 = vld [vmem:[%s1993 + $0xd8] sm:$0xff]
      %v2022 = vld [vmem:[%s1993 + $0xe0] sm:$0xff]
      %v2023 = vld [vmem:[%s1993 + $0xe8] sm:$0xff]
      %v2024 = vld [vmem:[%s1993 + $0xf0] sm:$0xff]
      %v2025 = vld [vmem:[%s1993 + $0xf8] sm:$0xff]
      %v2058 = vunpack.c.l.b16 %v1994
      %v2059 = vunpack.c.h.b16 %v1994
      %v2060 = vunpack.c.l.b16 %v1995
      %v2061 = vunpack.c.h.b16 %v1995
      %v2062 = vunpack.c.l.b16 %v1996
      %v2063 = vunpack.c.h.b16 %v1996
      %v2064 = vunpack.c.l.b16 %v1997
      %v2065 = vunpack.c.h.b16 %v1997
      %v2066 = vunpack.c.l.b16 %v1998
      %v2067 = vunpack.c.h.b16 %v1998
      %v2068 = vunpack.c.l.b16 %v1999
      %v2069 = vunpack.c.h.b16 %v1999
      %v2070 = vunpack.c.l.b16 %v2000
      %v2071 = vunpack.c.h.b16 %v2000
      %v2072 = vunpack.c.l.b16 %v2001
      %v2073 = vunpack.c.h.b16 %v2001
      %v2074 = vunpack.c.l.b16 %v2002
      %v2075 = vunpack.c.h.b16 %v2002
      %v2076 = vunpack.c.l.b16 %v2003
      %v2077 = vunpack.c.h.b16 %v2003
      %v2078 = vunpack.c.l.b16 %v2004
      %v2079 = vunpack.c.h.b16 %v2004
      %v2080 = vunpack.c.l.b16 %v2005
      %v2081 = vunpack.c.h.b16 %v2005
      %v2082 = vunpack.c.l.b16 %v2006
      %v2083 = vunpack.c.h.b16 %v2006
      %v2084 = vunpack.c.l.b16 %v2007
      %v2085 = vunpack.c.h.b16 %v2007
      %v2086 = vunpack.c.l.b16 %v2008
      %v2087 = vunpack.c.h.b16 %v2008
      %v2088 = vunpack.c.l.b16 %v2009
      %v2089 = vunpack.c.h.b16 %v2009
      %v2090 = vunpack.c.l.b16 %v2010
      %v2091 = vunpack.c.h.b16 %v2010
      %v2092 = vunpack.c.l.b16 %v2011
      %v2093 = vunpack.c.h.b16 %v2011
      %v2094 = vunpack.c.l.b16 %v2012
      %v2095 = vunpack.c.h.b16 %v2012
      %v2096 = vunpack.c.l.b16 %v2013
      %v2097 = vunpack.c.h.b16 %v2013
      %v2098 = vunpack.c.l.b16 %v2014
      %v2099 = vunpack.c.h.b16 %v2014
      %v2100 = vunpack.c.l.b16 %v2015
      %v2101 = vunpack.c.h.b16 %v2015
      %v2102 = vunpack.c.l.b16 %v2016
      %v2103 = vunpack.c.h.b16 %v2016
      %v2104 = vunpack.c.l.b16 %v2017
      %v2105 = vunpack.c.h.b16 %v2017
      %v2106 = vunpack.c.l.b16 %v2018
      %v2107 = vunpack.c.h.b16 %v2018
      %v2108 = vunpack.c.l.b16 %v2019
      %v2109 = vunpack.c.h.b16 %v2019
      %v2110 = vunpack.c.l.b16 %v2020
      %v2111 = vunpack.c.h.b16 %v2020
      %v2112 = vunpack.c.l.b16 %v2021
      %v2113 = vunpack.c.h.b16 %v2021
      %v2114 = vunpack.c.l.b16 %v2022
      %v2115 = vunpack.c.h.b16 %v2022
      %v2116 = vunpack.c.l.b16 %v2023
      %v2117 = vunpack.c.h.b16 %v2023
      %v2118 = vunpack.c.l.b16 %v2024
      %v2119 = vunpack.c.h.b16 %v2024
      %v2120 = vunpack.c.l.b16 %v2025
      %v2121 = vunpack.c.h.b16 %v2025
      %v2122 = vpack.c.b16 %v2060, %v2058
      %v2123 = vpack.c.b16 %v2061, %v2059
      %v2124 = vpack.c.b16 %v2064, %v2062
      %v2125 = vpack.c.b16 %v2065, %v2063
      %v2126 = vpack.c.b16 %v2068, %v2066
      %v2127 = vpack.c.b16 %v2069, %v2067
      %v2128 = vpack.c.b16 %v2072, %v2070
      %v2129 = vpack.c.b16 %v2073, %v2071
      %v2130 = vpack.c.b16 %v2076, %v2074
      %v2131 = vpack.c.b16 %v2077, %v2075
      %v2132 = vpack.c.b16 %v2080, %v2078
      %v2133 = vpack.c.b16 %v2081, %v2079
      %v2134 = vpack.c.b16 %v2084, %v2082
      %v2135 = vpack.c.b16 %v2085, %v2083
      %v2136 = vpack.c.b16 %v2088, %v2086
      %v2137 = vpack.c.b16 %v2089, %v2087
      %v2138 = vpack.c.b16 %v2092, %v2090
      %v2139 = vpack.c.b16 %v2093, %v2091
      %v2140 = vpack.c.b16 %v2096, %v2094
      %v2141 = vpack.c.b16 %v2097, %v2095
      %v2142 = vpack.c.b16 %v2100, %v2098
      %v2143 = vpack.c.b16 %v2101, %v2099
      %v2144 = vpack.c.b16 %v2104, %v2102
      %v2145 = vpack.c.b16 %v2105, %v2103
      %v2146 = vpack.c.b16 %v2108, %v2106
      %v2147 = vpack.c.b16 %v2109, %v2107
      %v2148 = vpack.c.b16 %v2112, %v2110
      %v2149 = vpack.c.b16 %v2113, %v2111
      %v2150 = vpack.c.b16 %v2116, %v2114
      %v2151 = vpack.c.b16 %v2117, %v2115
      %v2152 = vpack.c.b16 %v2120, %v2118
      %v2153 = vpack.c.b16 %v2121, %v2119
      %2186 = vmatprep.subr.bf16.mxu0 0
      %2187 = vmatpush1.bf16.msra.mxu0 %v754
      %2188 = vmatprep.subr.bf16.mxu0 0
      %2189 = vmatpush1.bf16.msra.mxu0 %v755
      %2190 = vmatprep.subr.bf16.mxu0 0
      %2191 = vmatpush1.bf16.msra.mxu0 %v756
      %2192 = vmatprep.subr.bf16.mxu0 0
      %2193 = vmatpush1.bf16.msra.mxu0 %v757
      %2194 = vmatprep.subr.bf16.mxu0 0
      %2195 = vmatpush1.bf16.msra.mxu0 %v758
      %2196 = vmatprep.subr.bf16.mxu0 0
      %2197 = vmatpush1.bf16.msra.mxu0 %v759
      %2198 = vmatprep.subr.bf16.mxu0 0
      %2199 = vmatpush1.bf16.msra.mxu0 %v760
      %2200 = vmatprep.subr.bf16.mxu0 0
      %2201 = vmatpush1.bf16.msra.mxu0 %v761
      %2202 = vmatprep.subr.bf16.mxu0 0
      %2203 = vmatpush1.bf16.msra.mxu0 %v762
      %2204 = vmatprep.subr.bf16.mxu0 0
      %2205 = vmatpush1.bf16.msra.mxu0 %v763
      %2206 = vmatprep.subr.bf16.mxu0 0
      %2207 = vmatpush1.bf16.msra.mxu0 %v764
      %2208 = vmatprep.subr.bf16.mxu0 0
      %2209 = vmatpush1.bf16.msra.mxu0 %v765
      %2210 = vmatprep.subr.bf16.mxu0 0
      %2211 = vmatpush1.bf16.msra.mxu0 %v766
      %2212 = vmatprep.subr.bf16.mxu0 0
      %2213 = vmatpush1.bf16.msra.mxu0 %v767
      %2214 = vmatprep.subr.bf16.mxu0 0
      %2215 = vmatpush1.bf16.msra.mxu0 %v768
      %2216 = vmatprep.subr.bf16.mxu0 0
      %2217 = vmatpush1.bf16.msra.mxu0 %v769
      %2218 = vmatprep.mubr.bf16.mxu0 %v2123
      %2219 = vmatmul.mubr.bf16.gmra.mrb[0].mxu0 %v2122
      %v2220 = vpop.f32.mrb[0].mxu0
      %v2221 = vadd.f32 0.0, %v2220
      %v2222 = vpop.f32.mrb[0].mxu0
      %v2223 = vpop.f32.mrb[0].mxu0
      %v2224 = vadd.f32 0.0, %v2223
      %v2225 = vpop.f32.mrb[0].mxu0
      %2226 = vmatprep.mubr.bf16.mxu0 %v2125
      %2227 = vmatmul.mubr.bf16.gmra.mrb[0].mxu0 %v2124
      %v2228 = vpop.f32.mrb[0].mxu0
      %v2229 = vadd.f32 0.0, %v2228
      %v2230 = vpop.f32.mrb[0].mxu0
      %v2231 = vpop.f32.mrb[0].mxu0
      %v2232 = vadd.f32 0.0, %v2231
      %v2233 = vpop.f32.mrb[0].mxu0
      %2234 = vmatprep.mubr.bf16.mxu0 %v2127
      %2235 = vmatmul.mubr.bf16.gmra.mrb[0].mxu0 %v2126
      %v2236 = vpop.f32.mrb[0].mxu0
      %v2237 = vadd.f32 0.0, %v2236
      %v2238 = vpop.f32.mrb[0].mxu0
      %v2239 = vpop.f32.mrb[0].mxu0
      %v2240 = vadd.f32 0.0, %v2239
      %v2241 = vpop.f32.mrb[0].mxu0
      %2242 = vmatprep.mubr.bf16.mxu0 %v2129
      %2243 = vmatmul.mubr.bf16.gmra.mrb[0].mxu0 %v2128
      %v2244 = vpop.f32.mrb[0].mxu0
      %v2245 = vadd.f32 0.0, %v2244
      %v2246 = vpop.f32.mrb[0].mxu0
      %v2247 = vpop.f32.mrb[0].mxu0
      %v2248 = vadd.f32 0.0, %v2247
      %v2249 = vpop.f32.mrb[0].mxu0
      %2250 = vmatprep.mubr.bf16.mxu0 %v2131
      %2251 = vmatmul.mubr.bf16.gmra.mrb[0].mxu0 %v2130
      %v2252 = vpop.f32.mrb[0].mxu0
      %v2253 = vadd.f32 0.0, %v2252
      %v2254 = vpop.f32.mrb[0].mxu0
      %v2255 = vpop.f32.mrb[0].mxu0
      %v2256 = vadd.f32 0.0, %v2255
      %v2257 = vpop.f32.mrb[0].mxu0
      %2258 = vmatprep.mubr.bf16.mxu0 %v2133
      %2259 = vmatmul.mubr.bf16.gmra.mrb[0].mxu0 %v2132
      %v2260 = vpop.f32.mrb[0].mxu0
      %v2261 = vadd.f32 0.0, %v2260
      %v2262 = vpop.f32.mrb[0].mxu0
      %v2263 = vpop.f32.mrb[0].mxu0
      %v2264 = vadd.f32 0.0, %v2263
      %v2265 = vpop.f32.mrb[0].mxu0
      %2266 = vmatprep.mubr.bf16.mxu0 %v2135
      %2267 = vmatmul.mubr.bf16.gmra.mrb[0].mxu0 %v2134
      %v2268 = vpop.f32.mrb[0].mxu0
      %v2269 = vadd.f32 0.0, %v2268
      %v2270 = vpop.f32.mrb[0].mxu0
      %v2271 = vpop.f32.mrb[0].mxu0
      %v2272 = vadd.f32 0.0, %v2271
      %v2273 = vpop.f32.mrb[0].mxu0
      %2274 = vmatprep.mubr.bf16.mxu0 %v2137
      %2275 = vmatmul.mubr.bf16.gmra.mrb[0].mxu0 %v2136
      %v2276 = vpop.f32.mrb[0].mxu0
      %v2277 = vadd.f32 0.0, %v2276
      %v2278 = vpop.f32.mrb[0].mxu0
      %v2279 = vpop.f32.mrb[0].mxu0
      %v2280 = vadd.f32 0.0, %v2279
      %v2281 = vpop.f32.mrb[0].mxu0
      %2282 = vmatprep.mubr.bf16.mxu0 %v2139
      %2283 = vmatmul.mubr.bf16.gmra.mrb[0].mxu0 %v2138
      %v2284 = vpop.f32.mrb[0].mxu0
      %v2285 = vadd.f32 0.0, %v2284
      %v2286 = vpop.f32.mrb[0].mxu0
      %v2287 = vpop.f32.mrb[0].mxu0
      %v2288 = vadd.f32 0.0, %v2287
      %v2289 = vpop.f32.mrb[0].mxu0
      %2290 = vmatprep.mubr.bf16.mxu0 %v2141
      %2291 = vmatmul.mubr.bf16.gmra.mrb[0].mxu0 %v2140
      %v2292 = vpop.f32.mrb[0].mxu0
      %v2293 = vadd.f32 0.0, %v2292
      %v2294 = vpop.f32.mrb[0].mxu0
      %v2295 = vpop.f32.mrb[0].mxu0
      %v2296 = vadd.f32 0.0, %v2295
      %v2297 = vpop.f32.mrb[0].mxu0
      %2298 = vmatprep.mubr.bf16.mxu0 %v2143
      %2299 = vmatmul.mubr.bf16.gmra.mrb[0].mxu0 %v2142
      %v2300 = vpop.f32.mrb[0].mxu0
      %v2301 = vadd.f32 0.0, %v2300
      %v2302 = vpop.f32.mrb[0].mxu0
      %v2303 = vpop.f32.mrb[0].mxu0
      %v2304 = vadd.f32 0.0, %v2303
      %v2305 = vpop.f32.mrb[0].mxu0
      %2306 = vmatprep.mubr.bf16.mxu0 %v2145
      %2307 = vmatmul.mubr.bf16.gmra.mrb[0].mxu0 %v2144
      %v2308 = vpop.f32.mrb[0].mxu0
      %v2309 = vadd.f32 0.0, %v2308
      %v2310 = vpop.f32.mrb[0].mxu0
      %v2311 = vpop.f32.mrb[0].mxu0
      %v2312 = vadd.f32 0.0, %v2311
      %v2313 = vpop.f32.mrb[0].mxu0
      %2314 = vmatprep.mubr.bf16.mxu0 %v2147
      %2315 = vmatmul.mubr.bf16.gmra.mrb[0].mxu0 %v2146
      %v2316 = vpop.f32.mrb[0].mxu0
      %v2317 = vadd.f32 0.0, %v2316
      %v2318 = vpop.f32.mrb[0].mxu0
      %v2319 = vpop.f32.mrb[0].mxu0
      %v2320 = vadd.f32 0.0, %v2319
      %v2321 = vpop.f32.mrb[0].mxu0
      %2322 = vmatprep.mubr.bf16.mxu0 %v2149
      %2323 = vmatmul.mubr.bf16.gmra.mrb[0].mxu0 %v2148
      %v2324 = vpop.f32.mrb[0].mxu0
      %v2325 = vadd.f32 0.0, %v2324
      %v2326 = vpop.f32.mrb[0].mxu0
      %v2327 = vpop.f32.mrb[0].mxu0
      %v2328 = vadd.f32 0.0, %v2327
      %v2329 = vpop.f32.mrb[0].mxu0
      %2330 = vmatprep.mubr.bf16.mxu0 %v2151
      %2331 = vmatmul.mubr.bf16.gmra.mrb[0].mxu0 %v2150
      %v2332 = vpop.f32.mrb[0].mxu0
      %v2333 = vadd.f32 0.0, %v2332
      %v2334 = vpop.f32.mrb[0].mxu0
      %v2335 = vpop.f32.mrb[0].mxu0
      %v2336 = vadd.f32 0.0, %v2335
      %v2337 = vpop.f32.mrb[0].mxu0
      %2338 = vmatprep.mubr.bf16.mxu0 %v2153
      %2339 = vmatmul.mubr.bf16.gmra.mrb[0].mxu0 %v2152
      %v2340 = vpop.f32.mrb[0].mxu0
      %v2341 = vadd.f32 0.0, %v2340
      %v2342 = vpop.f32.mrb[0].mxu0
      %v2343 = vpop.f32.mrb[0].mxu0
      %v2344 = vadd.f32 0.0, %v2343
      %v2345 = vpop.f32.mrb[0].mxu0
      %2346 = vdwg.mxu0
      %v2347 = vpack.c.bf16 %v2224, %v2221
      %v2348 = vpack.c.bf16 %v2232, %v2229
      %v2349 = vpack.c.bf16 %v2240, %v2237
      %v2350 = vpack.c.bf16 %v2248, %v2245
      %v2351 = vpack.c.bf16 %v2256, %v2253
      %v2352 = vpack.c.bf16 %v2264, %v2261
      %v2353 = vpack.c.bf16 %v2272, %v2269
      %v2354 = vpack.c.bf16 %v2280, %v2277
      %v2355 = vpack.c.bf16 %v2288, %v2285
      %v2356 = vpack.c.bf16 %v2296, %v2293
      %v2357 = vpack.c.bf16 %v2304, %v2301
      %v2358 = vpack.c.bf16 %v2312, %v2309
      %v2359 = vpack.c.bf16 %v2320, %v2317
      %v2360 = vpack.c.bf16 %v2328, %v2325
      %v2361 = vpack.c.bf16 %v2336, %v2333
      %v2362 = vpack.c.bf16 %v2344, %v2341
      %s2363 = scalar_lea.vmem %s7, 64
      %v2364 = vld [vmem:[%s2363] sm:$0xf]
      %v2365 = vld [vmem:[%s2363 + $0x4] sm:$0xf]
      %v2366 = vld [vmem:[%s2363 + $0x8] sm:$0xf]
      %v2367 = vld [vmem:[%s2363 + $0xc] sm:$0xf]
      %v2368 = vld [vmem:[%s2363 + $0x10] sm:$0xf]
      %v2369 = vld [vmem:[%s2363 + $0x14] sm:$0xf]
      %v2370 = vld [vmem:[%s2363 + $0x18] sm:$0xf]
      %v2371 = vld [vmem:[%s2363 + $0x1c] sm:$0xf]
      %v2380 = vunpack.c.l.b16 %v2364
      %v2381 = vunpack.c.l.b16 %v2365
      %v2382 = vunpack.c.l.b16 %v2366
      %v2383 = vunpack.c.l.b16 %v2367
      %v2384 = vunpack.c.l.b16 %v2368
      %v2385 = vunpack.c.l.b16 %v2369
      %v2386 = vunpack.c.l.b16 %v2370
      %v2387 = vunpack.c.l.b16 %v2371
      %v2388 = vpack.c.b16 %v2381, %v2380
      %v2389 = vpack.c.b16 %v2383, %v2382
      %v2390 = vpack.c.b16 %v2385, %v2384
      %v2391 = vpack.c.b16 %v2387, %v2386
      %v2397 = vsel %vm1550, %v2347, 0
      %v2400 = vsel %vm1550, %v2348, 0
      %v2403 = vsel %vm1550, %v2349, 0
      %v2406 = vsel %vm1550, %v2350, 0
      %v2409 = vsel %vm1550, %v2351, 0
      %v2412 = vsel %vm1550, %v2352, 0
      %v2415 = vsel %vm1550, %v2353, 0
      %v2418 = vsel %vm1550, %v2354, 0
      %v2421 = vsel %vm1550, %v2355, 0
      %v2424 = vsel %vm1550, %v2356, 0
      %v2427 = vsel %vm1550, %v2357, 0
      %v2430 = vsel %vm1550, %v2358, 0
      %v2433 = vsel %vm1550, %v2359, 0
      %v2436 = vsel %vm1550, %v2360, 0
      %v2439 = vsel %vm1550, %v2361, 0
      %v2442 = vsel %vm1550, %v2362, 0
      %2444 = vmatprep.subr.bf16.mxu0 0
      %2445 = vmatpush1.bf16.msra.mxu0 %v2388
      %2446 = vmatprep.subr.bf16.mxu0 0
      %2447 = vmatpush1.bf16.msra.mxu0 %v2389
      %2448 = vmatprep.subr.bf16.mxu0 0
      %2449 = vmatpush1.bf16.msra.mxu0 %v2390
      %2450 = vmatprep.subr.bf16.mxu0 0
      %2451 = vmatpush1.bf16.msra.mxu0 %v2391
      %2452 = vmatprep.subr.bf16.mxu0 0
      %2453 = vmatpush1.bf16.msra.mxu0 0
      %2454 = vmatprep.subr.bf16.mxu0 0
      %2455 = vmatpush1.bf16.msra.mxu0 0
      %2456 = vmatprep.subr.bf16.mxu0 0
      %2457 = vmatpush1.bf16.msra.mxu0 0
      %2458 = vmatprep.subr.bf16.mxu0 0
      %2459 = vmatpush1.bf16.msra.mxu0 0
      %2460 = vmatprep.subr.bf16.mxu0 0
      %2461 = vmatpush1.bf16.msra.mxu0 0
      %2462 = vmatprep.subr.bf16.mxu0 0
      %2463 = vmatpush1.bf16.msra.mxu0 0
      %2464 = vmatprep.subr.bf16.mxu0 0
      %2465 = vmatpush1.bf16.msra.mxu0 0
      %2466 = vmatprep.subr.bf16.mxu0 0
      %2467 = vmatpush1.bf16.msra.mxu0 0
      %2468 = vmatprep.subr.bf16.mxu0 0
      %2469 = vmatpush1.bf16.msra.mxu0 0
      %2470 = vmatprep.subr.bf16.mxu0 0
      %2471 = vmatpush1.bf16.msra.mxu0 0
      %2472 = vmatprep.subr.bf16.mxu0 0
      %2473 = vmatpush1.bf16.msra.mxu0 0
      %2474 = vmatprep.subr.bf16.mxu0 0
      %2475 = vmatpush1.bf16.msra.mxu0 0
      %2476 = vmatprep.mubr.bf16.mxu0 0
      %2477 = vmatmul.mubr.bf16.gmra.mrb[0].mxu0 %v2397
      %v2478 = vpop.f32.mrb[0].mxu0
      %v2479 = vadd.f32 0.0, %v2478
      %v2480 = vpop.f32.mrb[0].mxu0
      %v2481 = vpop.f32.mrb[0].mxu0
      %v2482 = vadd.f32 0.0, %v2481
      %v2483 = vpop.f32.mrb[0].mxu0
      %2484 = vmatprep.mubr.bf16.mxu0 0
      %2485 = vmatmul.mubr.bf16.gmra.mrb[0].mxu0 %v2400
      %v2486 = vpop.f32.mrb[0].mxu0
      %v2487 = vadd.f32 0.0, %v2486
      %v2488 = vpop.f32.mrb[0].mxu0
      %v2489 = vpop.f32.mrb[0].mxu0
      %v2490 = vadd.f32 0.0, %v2489
      %v2491 = vpop.f32.mrb[0].mxu0
      %2492 = vmatprep.mubr.bf16.mxu0 0
      %2493 = vmatmul.mubr.bf16.gmra.mrb[0].mxu0 %v2403
      %v2494 = vpop.f32.mrb[0].mxu0
      %v2495 = vadd.f32 0.0, %v2494
      %v2496 = vpop.f32.mrb[0].mxu0
      %v2497 = vpop.f32.mrb[0].mxu0
      %v2498 = vadd.f32 0.0, %v2497
      %v2499 = vpop.f32.mrb[0].mxu0
      %2500 = vmatprep.mubr.bf16.mxu0 0
      %2501 = vmatmul.mubr.bf16.gmra.mrb[0].mxu0 %v2406
      %v2502 = vpop.f32.mrb[0].mxu0
      %v2503 = vadd.f32 0.0, %v2502
      %v2504 = vpop.f32.mrb[0].mxu0
      %v2505 = vpop.f32.mrb[0].mxu0
      %v2506 = vadd.f32 0.0, %v2505
      %v2507 = vpop.f32.mrb[0].mxu0
      %2508 = vmatprep.mubr.bf16.mxu0 0
      %2509 = vmatmul.mubr.bf16.gmra.mrb[0].mxu0 %v2409
      %v2510 = vpop.f32.mrb[0].mxu0
      %v2511 = vadd.f32 0.0, %v2510
      %v2512 = vpop.f32.mrb[0].mxu0
      %v2513 = vpop.f32.mrb[0].mxu0
      %v2514 = vadd.f32 0.0, %v2513
      %v2515 = vpop.f32.mrb[0].mxu0
      %2516 = vmatprep.mubr.bf16.mxu0 0
      %2517 = vmatmul.mubr.bf16.gmra.mrb[0].mxu0 %v2412
      %v2518 = vpop.f32.mrb[0].mxu0
      %v2519 = vadd.f32 0.0, %v2518
      %v2520 = vpop.f32.mrb[0].mxu0
      %v2521 = vpop.f32.mrb[0].mxu0
      %v2522 = vadd.f32 0.0, %v2521
      %v2523 = vpop.f32.mrb[0].mxu0
      %2524 = vmatprep.mubr.bf16.mxu0 0
      %2525 = vmatmul.mubr.bf16.gmra.mrb[0].mxu0 %v2415
      %v2526 = vpop.f32.mrb[0].mxu0
      %v2527 = vadd.f32 0.0, %v2526
      %v2528 = vpop.f32.mrb[0].mxu0
      %v2529 = vpop.f32.mrb[0].mxu0
      %v2530 = vadd.f32 0.0, %v2529
      %v2531 = vpop.f32.mrb[0].mxu0
      %2532 = vmatprep.mubr.bf16.mxu0 0
      %2533 = vmatmul.mubr.bf16.gmra.mrb[0].mxu0 %v2418
      %v2534 = vpop.f32.mrb[0].mxu0
      %v2535 = vadd.f32 0.0, %v2534
      %v2536 = vpop.f32.mrb[0].mxu0
      %v2537 = vpop.f32.mrb[0].mxu0
      %v2538 = vadd.f32 0.0, %v2537
      %v2539 = vpop.f32.mrb[0].mxu0
      %2540 = vmatprep.mubr.bf16.mxu0 0
      %2541 = vmatmul.mubr.bf16.gmra.mrb[0].mxu0 %v2421
      %v2542 = vpop.f32.mrb[0].mxu0
      %v2543 = vadd.f32 0.0, %v2542
      %v2544 = vpop.f32.mrb[0].mxu0
      %v2545 = vpop.f32.mrb[0].mxu0
      %v2546 = vadd.f32 0.0, %v2545
      %v2547 = vpop.f32.mrb[0].mxu0
      %2548 = vmatprep.mubr.bf16.mxu0 0
      %2549 = vmatmul.mubr.bf16.gmra.mrb[0].mxu0 %v2424
      %v2550 = vpop.f32.mrb[0].mxu0
      %v2551 = vadd.f32 0.0, %v2550
      %v2552 = vpop.f32.mrb[0].mxu0
      %v2553 = vpop.f32.mrb[0].mxu0
      %v2554 = vadd.f32 0.0, %v2553
      %v2555 = vpop.f32.mrb[0].mxu0
      %2556 = vmatprep.mubr.bf16.mxu0 0
      %2557 = vmatmul.mubr.bf16.gmra.mrb[0].mxu0 %v2427
      %v2558 = vpop.f32.mrb[0].mxu0
      %v2559 = vadd.f32 0.0, %v2558
      %v2560 = vpop.f32.mrb[0].mxu0
      %v2561 = vpop.f32.mrb[0].mxu0
      %v2562 = vadd.f32 0.0, %v2561
      %v2563 = vpop.f32.mrb[0].mxu0
      %2564 = vmatprep.mubr.bf16.mxu0 0
      %2565 = vmatmul.mubr.bf16.gmra.mrb[0].mxu0 %v2430
      %v2566 = vpop.f32.mrb[0].mxu0
      %v2567 = vadd.f32 0.0, %v2566
      %v2568 = vpop.f32.mrb[0].mxu0
      %v2569 = vpop.f32.mrb[0].mxu0
      %v2570 = vadd.f32 0.0, %v2569
      %v2571 = vpop.f32.mrb[0].mxu0
      %2572 = vmatprep.mubr.bf16.mxu0 0
      %2573 = vmatmul.mubr.bf16.gmra.mrb[0].mxu0 %v2433
      %v2574 = vpop.f32.mrb[0].mxu0
      %v2575 = vadd.f32 0.0, %v2574
      %v2576 = vpop.f32.mrb[0].mxu0
      %v2577 = vpop.f32.mrb[0].mxu0
      %v2578 = vadd.f32 0.0, %v2577
      %v2579 = vpop.f32.mrb[0].mxu0
      %2580 = vmatprep.mubr.bf16.mxu0 0
      %2581 = vmatmul.mubr.bf16.gmra.mrb[0].mxu0 %v2436
      %v2582 = vpop.f32.mrb[0].mxu0
      %v2583 = vadd.f32 0.0, %v2582
      %v2584 = vpop.f32.mrb[0].mxu0
      %v2585 = vpop.f32.mrb[0].mxu0
      %v2586 = vadd.f32 0.0, %v2585
      %v2587 = vpop.f32.mrb[0].mxu0
      %2588 = vmatprep.mubr.bf16.mxu0 0
      %2589 = vmatmul.mubr.bf16.gmra.mrb[0].mxu0 %v2439
      %v2590 = vpop.f32.mrb[0].mxu0
      %v2591 = vadd.f32 0.0, %v2590
      %v2592 = vpop.f32.mrb[0].mxu0
      %v2593 = vpop.f32.mrb[0].mxu0
      %v2594 = vadd.f32 0.0, %v2593
      %v2595 = vpop.f32.mrb[0].mxu0
      %2596 = vmatprep.mubr.bf16.mxu0 0
      %2597 = vmatmul.mubr.bf16.gmra.mrb[0].mxu0 %v2442
      %v2598 = vpop.f32.mrb[0].mxu0
      %v2599 = vadd.f32 0.0, %v2598
      %v2600 = vpop.f32.mrb[0].mxu0
      %v2601 = vpop.f32.mrb[0].mxu0
      %v2602 = vadd.f32 0.0, %v2601
      %v2603 = vpop.f32.mrb[0].mxu0
      %2604 = vdwg.mxu0
      %v2605 = vadd.f32 %v1867, %v2479
      %v2606 = vadd.f32 %v1870, %v2482
      %v2607 = vadd.f32 %v1875, %v2487
      %v2608 = vadd.f32 %v1878, %v2490
      %v2609 = vadd.f32 %v1883, %v2495
      %v2610 = vadd.f32 %v1886, %v2498
      %v2611 = vadd.f32 %v1891, %v2503
      %v2612 = vadd.f32 %v1894, %v2506
      %v2613 = vadd.f32 %v1899, %v2511
      %v2614 = vadd.f32 %v1902, %v2514
      %v2615 = vadd.f32 %v1907, %v2519
      %v2616 = vadd.f32 %v1910, %v2522
      %v2617 = vadd.f32 %v1915, %v2527
      %v2618 = vadd.f32 %v1918, %v2530
      %v2619 = vadd.f32 %v1923, %v2535
      %v2620 = vadd.f32 %v1926, %v2538
      %v2621 = vadd.f32 %v1931, %v2543
      %v2622 = vadd.f32 %v1934, %v2546
      %v2623 = vadd.f32 %v1939, %v2551
      %v2624 = vadd.f32 %v1942, %v2554
      %v2625 = vadd.f32 %v1947, %v2559
      %v2626 = vadd.f32 %v1950, %v2562
      %v2627 = vadd.f32 %v1955, %v2567
      %v2628 = vadd.f32 %v1958, %v2570
      %v2629 = vadd.f32 %v1963, %v2575
      %v2630 = vadd.f32 %v1966, %v2578
      %v2631 = vadd.f32 %v1971, %v2583
      %v2632 = vadd.f32 %v1974, %v2586
      %v2633 = vadd.f32 %v1979, %v2591
      %v2634 = vadd.f32 %v1982, %v2594
      %v2635 = vadd.f32 %v1987, %v2599
      %v2636 = vadd.f32 %v1990, %v2602
      %s2637 = scalar_lea.vmem %s2, 768
      %v2638 = vld [vmem:[%s2637] sm:$0xff]
      %v2639 = vld [vmem:[%s2637 + $0x8] sm:$0xff]
      %v2640 = vld [vmem:[%s2637 + $0x10] sm:$0xff]
      %v2641 = vld [vmem:[%s2637 + $0x18] sm:$0xff]
      %v2642 = vld [vmem:[%s2637 + $0x20] sm:$0xff]
      %v2643 = vld [vmem:[%s2637 + $0x28] sm:$0xff]
      %v2644 = vld [vmem:[%s2637 + $0x30] sm:$0xff]
      %v2645 = vld [vmem:[%s2637 + $0x38] sm:$0xff]
      %v2646 = vld [vmem:[%s2637 + $0x40] sm:$0xff]
      %v2647 = vld [vmem:[%s2637 + $0x48] sm:$0xff]
      %v2648 = vld [vmem:[%s2637 + $0x50] sm:$0xff]
      %v2649 = vld [vmem:[%s2637 + $0x58] sm:$0xff]
      %v2650 = vld [vmem:[%s2637 + $0x60] sm:$0xff]
      %v2651 = vld [vmem:[%s2637 + $0x68] sm:$0xff]
      %v2652 = vld [vmem:[%s2637 + $0x70] sm:$0xff]
      %v2653 = vld [vmem:[%s2637 + $0x78] sm:$0xff]
      %v2654 = vld [vmem:[%s2637 + $0x80] sm:$0xff]
      %v2655 = vld [vmem:[%s2637 + $0x88] sm:$0xff]
      %v2656 = vld [vmem:[%s2637 + $0x90] sm:$0xff]
      %v2657 = vld [vmem:[%s2637 + $0x98] sm:$0xff]
      %v2658 = vld [vmem:[%s2637 + $0xa0] sm:$0xff]
      %v2659 = vld [vmem:[%s2637 + $0xa8] sm:$0xff]
      %v2660 = vld [vmem:[%s2637 + $0xb0] sm:$0xff]
      %v2661 = vld [vmem:[%s2637 + $0xb8] sm:$0xff]
      %v2662 = vld [vmem:[%s2637 + $0xc0] sm:$0xff]
      %v2663 = vld [vmem:[%s2637 + $0xc8] sm:$0xff]
      %v2664 = vld [vmem:[%s2637 + $0xd0] sm:$0xff]
      %v2665 = vld [vmem:[%s2637 + $0xd8] sm:$0xff]
      %v2666 = vld [vmem:[%s2637 + $0xe0] sm:$0xff]
      %v2667 = vld [vmem:[%s2637 + $0xe8] sm:$0xff]
      %v2668 = vld [vmem:[%s2637 + $0xf0] sm:$0xff]
      %v2669 = vld [vmem:[%s2637 + $0xf8] sm:$0xff]
      %v2702 = vunpack.c.l.b16 %v2638
      %v2703 = vunpack.c.h.b16 %v2638
      %v2704 = vunpack.c.l.b16 %v2639
      %v2705 = vunpack.c.h.b16 %v2639
      %v2706 = vunpack.c.l.b16 %v2640
      %v2707 = vunpack.c.h.b16 %v2640
      %v2708 = vunpack.c.l.b16 %v2641
      %v2709 = vunpack.c.h.b16 %v2641
      %v2710 = vunpack.c.l.b16 %v2642
      %v2711 = vunpack.c.h.b16 %v2642
      %v2712 = vunpack.c.l.b16 %v2643
      %v2713 = vunpack.c.h.b16 %v2643
      %v2714 = vunpack.c.l.b16 %v2644
      %v2715 = vunpack.c.h.b16 %v2644
      %v2716 = vunpack.c.l.b16 %v2645
      %v2717 = vunpack.c.h.b16 %v2645
      %v2718 = vunpack.c.l.b16 %v2646
      %v2719 = vunpack.c.h.b16 %v2646
      %v2720 = vunpack.c.l.b16 %v2647
      %v2721 = vunpack.c.h.b16 %v2647
      %v2722 = vunpack.c.l.b16 %v2648
      %v2723 = vunpack.c.h.b16 %v2648
      %v2724 = vunpack.c.l.b16 %v2649
      %v2725 = vunpack.c.h.b16 %v2649
      %v2726 = vunpack.c.l.b16 %v2650
      %v2727 = vunpack.c.h.b16 %v2650
      %v2728 = vunpack.c.l.b16 %v2651
      %v2729 = vunpack.c.h.b16 %v2651
      %v2730 = vunpack.c.l.b16 %v2652
      %v2731 = vunpack.c.h.b16 %v2652
      %v2732 = vunpack.c.l.b16 %v2653
      %v2733 = vunpack.c.h.b16 %v2653
      %v2734 = vunpack.c.l.b16 %v2654
      %v2735 = vunpack.c.h.b16 %v2654
      %v2736 = vunpack.c.l.b16 %v2655
      %v2737 = vunpack.c.h.b16 %v2655
      %v2738 = vunpack.c.l.b16 %v2656
      %v2739 = vunpack.c.h.b16 %v2656
      %v2740 = vunpack.c.l.b16 %v2657
      %v2741 = vunpack.c.h.b16 %v2657
      %v2742 = vunpack.c.l.b16 %v2658
      %v2743 = vunpack.c.h.b16 %v2658
      %v2744 = vunpack.c.l.b16 %v2659
      %v2745 = vunpack.c.h.b16 %v2659
      %v2746 = vunpack.c.l.b16 %v2660
      %v2747 = vunpack.c.h.b16 %v2660
      %v2748 = vunpack.c.l.b16 %v2661
      %v2749 = vunpack.c.h.b16 %v2661
      %v2750 = vunpack.c.l.b16 %v2662
      %v2751 = vunpack.c.h.b16 %v2662
      %v2752 = vunpack.c.l.b16 %v2663
      %v2753 = vunpack.c.h.b16 %v2663
      %v2754 = vunpack.c.l.b16 %v2664
      %v2755 = vunpack.c.h.b16 %v2664
      %v2756 = vunpack.c.l.b16 %v2665
      %v2757 = vunpack.c.h.b16 %v2665
      %v2758 = vunpack.c.l.b16 %v2666
      %v2759 = vunpack.c.h.b16 %v2666
      %v2760 = vunpack.c.l.b16 %v2667
      %v2761 = vunpack.c.h.b16 %v2667
      %v2762 = vunpack.c.l.b16 %v2668
      %v2763 = vunpack.c.h.b16 %v2668
      %v2764 = vunpack.c.l.b16 %v2669
      %v2765 = vunpack.c.h.b16 %v2669
      %v2766 = vpack.c.b16 %v2704, %v2702
      %v2767 = vpack.c.b16 %v2705, %v2703
      %v2768 = vpack.c.b16 %v2708, %v2706
      %v2769 = vpack.c.b16 %v2709, %v2707
      %v2770 = vpack.c.b16 %v2712, %v2710
      %v2771 = vpack.c.b16 %v2713, %v2711
      %v2772 = vpack.c.b16 %v2716, %v2714
      %v2773 = vpack.c.b16 %v2717, %v2715
      %v2774 = vpack.c.b16 %v2720, %v2718
      %v2775 = vpack.c.b16 %v2721, %v2719
      %v2776 = vpack.c.b16 %v2724, %v2722
      %v2777 = vpack.c.b16 %v2725, %v2723
      %v2778 = vpack.c.b16 %v2728, %v2726
      %v2779 = vpack.c.b16 %v2729, %v2727
      %v2780 = vpack.c.b16 %v2732, %v2730
      %v2781 = vpack.c.b16 %v2733, %v2731
      %v2782 = vpack.c.b16 %v2736, %v2734
      %v2783 = vpack.c.b16 %v2737, %v2735
      %v2784 = vpack.c.b16 %v2740, %v2738
      %v2785 = vpack.c.b16 %v2741, %v2739
      %v2786 = vpack.c.b16 %v2744, %v2742
      %v2787 = vpack.c.b16 %v2745, %v2743
      %v2788 = vpack.c.b16 %v2748, %v2746
      %v2789 = vpack.c.b16 %v2749, %v2747
      %v2790 = vpack.c.b16 %v2752, %v2750
      %v2791 = vpack.c.b16 %v2753, %v2751
      %v2792 = vpack.c.b16 %v2756, %v2754
      %v2793 = vpack.c.b16 %v2757, %v2755
      %v2794 = vpack.c.b16 %v2760, %v2758
      %v2795 = vpack.c.b16 %v2761, %v2759
      %v2796 = vpack.c.b16 %v2764, %v2762
      %v2797 = vpack.c.b16 %v2765, %v2763
      %2830 = vmatprep.subr.bf16.mxu0 0
      %2831 = vmatpush1.bf16.msra.mxu0 %v754
      %2832 = vmatprep.subr.bf16.mxu0 0
      %2833 = vmatpush1.bf16.msra.mxu0 %v755
      %2834 = vmatprep.subr.bf16.mxu0 0
      %2835 = vmatpush1.bf16.msra.mxu0 %v756
      %2836 = vmatprep.subr.bf16.mxu0 0
      %2837 = vmatpush1.bf16.msra.mxu0 %v757
      %2838 = vmatprep.subr.bf16.mxu0 0
      %2839 = vmatpush1.bf16.msra.mxu0 %v758
      %2840 = vmatprep.subr.bf16.mxu0 0
      %2841 = vmatpush1.bf16.msra.mxu0 %v759
      %2842 = vmatprep.subr.bf16.mxu0 0
      %2843 = vmatpush1.bf16.msra.mxu0 %v760
      %2844 = vmatprep.subr.bf16.mxu0 0
      %2845 = vmatpush1.bf16.msra.mxu0 %v761
      %2846 = vmatprep.subr.bf16.mxu0 0
      %2847 = vmatpush1.bf16.msra.mxu0 %v762
      %2848 = vmatprep.subr.bf16.mxu0 0
      %2849 = vmatpush1.bf16.msra.mxu0 %v763
      %2850 = vmatprep.subr.bf16.mxu0 0
      %2851 = vmatpush1.bf16.msra.mxu0 %v764
      %2852 = vmatprep.subr.bf16.mxu0 0
      %2853 = vmatpush1.bf16.msra.mxu0 %v765
      %2854 = vmatprep.subr.bf16.mxu0 0
      %2855 = vmatpush1.bf16.msra.mxu0 %v766
      %2856 = vmatprep.subr.bf16.mxu0 0
      %2857 = vmatpush1.bf16.msra.mxu0 %v767
      %2858 = vmatprep.subr.bf16.mxu0 0
      %2859 = vmatpush1.bf16.msra.mxu0 %v768
      %2860 = vmatprep.subr.bf16.mxu0 0
      %2861 = vmatpush1.bf16.msra.mxu0 %v769
      %2862 = vmatprep.mubr.bf16.mxu0 %v2767
      %2863 = vmatmul.mubr.bf16.gmra.mrb[0].mxu0 %v2766
      %v2864 = vpop.f32.mrb[0].mxu0
      %v2865 = vadd.f32 0.0, %v2864
      %v2866 = vpop.f32.mrb[0].mxu0
      %v2867 = vpop.f32.mrb[0].mxu0
      %v2868 = vadd.f32 0.0, %v2867
      %v2869 = vpop.f32.mrb[0].mxu0
      %2870 = vmatprep.mubr.bf16.mxu0 %v2769
      %2871 = vmatmul.mubr.bf16.gmra.mrb[0].mxu0 %v2768
      %v2872 = vpop.f32.mrb[0].mxu0
      %v2873 = vadd.f32 0.0, %v2872
      %v2874 = vpop.f32.mrb[0].mxu0
      %v2875 = vpop.f32.mrb[0].mxu0
      %v2876 = vadd.f32 0.0, %v2875
      %v2877 = vpop.f32.mrb[0].mxu0
      %2878 = vmatprep.mubr.bf16.mxu0 %v2771
      %2879 = vmatmul.mubr.bf16.gmra.mrb[0].mxu0 %v2770
      %v2880 = vpop.f32.mrb[0].mxu0
      %v2881 = vadd.f32 0.0, %v2880
      %v2882 = vpop.f32.mrb[0].mxu0
      %v2883 = vpop.f32.mrb[0].mxu0
      %v2884 = vadd.f32 0.0, %v2883
      %v2885 = vpop.f32.mrb[0].mxu0
      %2886 = vmatprep.mubr.bf16.mxu0 %v2773
      %2887 = vmatmul.mubr.bf16.gmra.mrb[0].mxu0 %v2772
      %v2888 = vpop.f32.mrb[0].mxu0
      %v2889 = vadd.f32 0.0, %v2888
      %v2890 = vpop.f32.mrb[0].mxu0
      %v2891 = vpop.f32.mrb[0].mxu0
      %v2892 = vadd.f32 0.0, %v2891
      %v2893 = vpop.f32.mrb[0].mxu0
      %2894 = vmatprep.mubr.bf16.mxu0 %v2775
      %2895 = vmatmul.mubr.bf16.gmra.mrb[0].mxu0 %v2774
      %v2896 = vpop.f32.mrb[0].mxu0
      %v2897 = vadd.f32 0.0, %v2896
      %v2898 = vpop.f32.mrb[0].mxu0
      %v2899 = vpop.f32.mrb[0].mxu0
      %v2900 = vadd.f32 0.0, %v2899
      %v2901 = vpop.f32.mrb[0].mxu0
      %2902 = vmatprep.mubr.bf16.mxu0 %v2777
      %2903 = vmatmul.mubr.bf16.gmra.mrb[0].mxu0 %v2776
      %v2904 = vpop.f32.mrb[0].mxu0
      %v2905 = vadd.f32 0.0, %v2904
      %v2906 = vpop.f32.mrb[0].mxu0
      %v2907 = vpop.f32.mrb[0].mxu0
      %v2908 = vadd.f32 0.0, %v2907
      %v2909 = vpop.f32.mrb[0].mxu0
      %2910 = vmatprep.mubr.bf16.mxu0 %v2779
      %2911 = vmatmul.mubr.bf16.gmra.mrb[0].mxu0 %v2778
      %v2912 = vpop.f32.mrb[0].mxu0
      %v2913 = vadd.f32 0.0, %v2912
      %v2914 = vpop.f32.mrb[0].mxu0
      %v2915 = vpop.f32.mrb[0].mxu0
      %v2916 = vadd.f32 0.0, %v2915
      %v2917 = vpop.f32.mrb[0].mxu0
      %2918 = vmatprep.mubr.bf16.mxu0 %v2781
      %2919 = vmatmul.mubr.bf16.gmra.mrb[0].mxu0 %v2780
      %v2920 = vpop.f32.mrb[0].mxu0
      %v2921 = vadd.f32 0.0, %v2920
      %v2922 = vpop.f32.mrb[0].mxu0
      %v2923 = vpop.f32.mrb[0].mxu0
      %v2924 = vadd.f32 0.0, %v2923
      %v2925 = vpop.f32.mrb[0].mxu0
      %2926 = vmatprep.mubr.bf16.mxu0 %v2783
      %2927 = vmatmul.mubr.bf16.gmra.mrb[0].mxu0 %v2782
      %v2928 = vpop.f32.mrb[0].mxu0
      %v2929 = vadd.f32 0.0, %v2928
      %v2930 = vpop.f32.mrb[0].mxu0
      %v2931 = vpop.f32.mrb[0].mxu0
      %v2932 = vadd.f32 0.0, %v2931
      %v2933 = vpop.f32.mrb[0].mxu0
      %2934 = vmatprep.mubr.bf16.mxu0 %v2785
      %2935 = vmatmul.mubr.bf16.gmra.mrb[0].mxu0 %v2784
      %v2936 = vpop.f32.mrb[0].mxu0
      %v2937 = vadd.f32 0.0, %v2936
      %v2938 = vpop.f32.mrb[0].mxu0
      %v2939 = vpop.f32.mrb[0].mxu0
      %v2940 = vadd.f32 0.0, %v2939
      %v2941 = vpop.f32.mrb[0].mxu0
      %2942 = vmatprep.mubr.bf16.mxu0 %v2787
      %2943 = vmatmul.mubr.bf16.gmra.mrb[0].mxu0 %v2786
      %v2944 = vpop.f32.mrb[0].mxu0
      %v2945 = vadd.f32 0.0, %v2944
      %v2946 = vpop.f32.mrb[0].mxu0
      %v2947 = vpop.f32.mrb[0].mxu0
      %v2948 = vadd.f32 0.0, %v2947
      %v2949 = vpop.f32.mrb[0].mxu0
      %2950 = vmatprep.mubr.bf16.mxu0 %v2789
      %2951 = vmatmul.mubr.bf16.gmra.mrb[0].mxu0 %v2788
      %v2952 = vpop.f32.mrb[0].mxu0
      %v2953 = vadd.f32 0.0, %v2952
      %v2954 = vpop.f32.mrb[0].mxu0
      %v2955 = vpop.f32.mrb[0].mxu0
      %v2956 = vadd.f32 0.0, %v2955
      %v2957 = vpop.f32.mrb[0].mxu0
      %2958 = vmatprep.mubr.bf16.mxu0 %v2791
      %2959 = vmatmul.mubr.bf16.gmra.mrb[0].mxu0 %v2790
      %v2960 = vpop.f32.mrb[0].mxu0
      %v2961 = vadd.f32 0.0, %v2960
      %v2962 = vpop.f32.mrb[0].mxu0
      %v2963 = vpop.f32.mrb[0].mxu0
      %v2964 = vadd.f32 0.0, %v2963
      %v2965 = vpop.f32.mrb[0].mxu0
      %2966 = vmatprep.mubr.bf16.mxu0 %v2793
      %2967 = vmatmul.mubr.bf16.gmra.mrb[0].mxu0 %v2792
      %v2968 = vpop.f32.mrb[0].mxu0
      %v2969 = vadd.f32 0.0, %v2968
      %v2970 = vpop.f32.mrb[0].mxu0
      %v2971 = vpop.f32.mrb[0].mxu0
      %v2972 = vadd.f32 0.0, %v2971
      %v2973 = vpop.f32.mrb[0].mxu0
      %2974 = vmatprep.mubr.bf16.mxu0 %v2795
      %2975 = vmatmul.mubr.bf16.gmra.mrb[0].mxu0 %v2794
      %v2976 = vpop.f32.mrb[0].mxu0
      %v2977 = vadd.f32 0.0, %v2976
      %v2978 = vpop.f32.mrb[0].mxu0
      %v2979 = vpop.f32.mrb[0].mxu0
      %v2980 = vadd.f32 0.0, %v2979
      %v2981 = vpop.f32.mrb[0].mxu0
      %2982 = vmatprep.mubr.bf16.mxu0 %v2797
      %2983 = vmatmul.mubr.bf16.gmra.mrb[0].mxu0 %v2796
      %v2984 = vpop.f32.mrb[0].mxu0
      %v2985 = vadd.f32 0.0, %v2984
      %v2986 = vpop.f32.mrb[0].mxu0
      %v2987 = vpop.f32.mrb[0].mxu0
      %v2988 = vadd.f32 0.0, %v2987
      %v2989 = vpop.f32.mrb[0].mxu0
      %2990 = vdwg.mxu0
      %v2991 = vpack.c.bf16 %v2868, %v2865
      %v2992 = vpack.c.bf16 %v2876, %v2873
      %v2993 = vpack.c.bf16 %v2884, %v2881
      %v2994 = vpack.c.bf16 %v2892, %v2889
      %v2995 = vpack.c.bf16 %v2900, %v2897
      %v2996 = vpack.c.bf16 %v2908, %v2905
      %v2997 = vpack.c.bf16 %v2916, %v2913
      %v2998 = vpack.c.bf16 %v2924, %v2921
      %v2999 = vpack.c.bf16 %v2932, %v2929
      %v3000 = vpack.c.bf16 %v2940, %v2937
      %v3001 = vpack.c.bf16 %v2948, %v2945
      %v3002 = vpack.c.bf16 %v2956, %v2953
      %v3003 = vpack.c.bf16 %v2964, %v2961
      %v3004 = vpack.c.bf16 %v2972, %v2969
      %v3005 = vpack.c.bf16 %v2980, %v2977
      %v3006 = vpack.c.bf16 %v2988, %v2985
      %s3007 = scalar_lea.vmem %s7, 96
      %v3008 = vld [vmem:[%s3007] sm:$0xf]
      %v3009 = vld [vmem:[%s3007 + $0x4] sm:$0xf]
      %v3010 = vld [vmem:[%s3007 + $0x8] sm:$0xf]
      %v3011 = vld [vmem:[%s3007 + $0xc] sm:$0xf]
      %v3012 = vld [vmem:[%s3007 + $0x10] sm:$0xf]
      %v3013 = vld [vmem:[%s3007 + $0x14] sm:$0xf]
      %v3014 = vld [vmem:[%s3007 + $0x18] sm:$0xf]
      %v3015 = vld [vmem:[%s3007 + $0x1c] sm:$0xf]
      %v3024 = vunpack.c.l.b16 %v3008
      %v3025 = vunpack.c.l.b16 %v3009
      %v3026 = vunpack.c.l.b16 %v3010
      %v3027 = vunpack.c.l.b16 %v3011
      %v3028 = vunpack.c.l.b16 %v3012
      %v3029 = vunpack.c.l.b16 %v3013
      %v3030 = vunpack.c.l.b16 %v3014
      %v3031 = vunpack.c.l.b16 %v3015
      %v3032 = vpack.c.b16 %v3025, %v3024
      %v3033 = vpack.c.b16 %v3027, %v3026
      %v3034 = vpack.c.b16 %v3029, %v3028
      %v3035 = vpack.c.b16 %v3031, %v3030
      %v3041 = vsel %vm1550, %v2991, 0
      %v3044 = vsel %vm1550, %v2992, 0
      %v3047 = vsel %vm1550, %v2993, 0
      %v3050 = vsel %vm1550, %v2994, 0
      %v3053 = vsel %vm1550, %v2995, 0
      %v3056 = vsel %vm1550, %v2996, 0
      %v3059 = vsel %vm1550, %v2997, 0
      %v3062 = vsel %vm1550, %v2998, 0
      %v3065 = vsel %vm1550, %v2999, 0
      %v3068 = vsel %vm1550, %v3000, 0
      %v3071 = vsel %vm1550, %v3001, 0
      %v3074 = vsel %vm1550, %v3002, 0
      %v3077 = vsel %vm1550, %v3003, 0
      %v3080 = vsel %vm1550, %v3004, 0
      %v3083 = vsel %vm1550, %v3005, 0
      %v3086 = vsel %vm1550, %v3006, 0
      %3088 = vmatprep.subr.bf16.mxu0 0
      %3089 = vmatpush1.bf16.msra.mxu0 %v3032
      %3090 = vmatprep.subr.bf16.mxu0 0
      %3091 = vmatpush1.bf16.msra.mxu0 %v3033
      %3092 = vmatprep.subr.bf16.mxu0 0
      %3093 = vmatpush1.bf16.msra.mxu0 %v3034
      %3094 = vmatprep.subr.bf16.mxu0 0
      %3095 = vmatpush1.bf16.msra.mxu0 %v3035
      %3096 = vmatprep.subr.bf16.mxu0 0
      %3097 = vmatpush1.bf16.msra.mxu0 0
      %3098 = vmatprep.subr.bf16.mxu0 0
      %3099 = vmatpush1.bf16.msra.mxu0 0
      %3100 = vmatprep.subr.bf16.mxu0 0
      %3101 = vmatpush1.bf16.msra.mxu0 0
      %3102 = vmatprep.subr.bf16.mxu0 0
      %3103 = vmatpush1.bf16.msra.mxu0 0
      %3104 = vmatprep.subr.bf16.mxu0 0
      %3105 = vmatpush1.bf16.msra.mxu0 0
      %3106 = vmatprep.subr.bf16.mxu0 0
      %3107 = vmatpush1.bf16.msra.mxu0 0
      %3108 = vmatprep.subr.bf16.mxu0 0
      %3109 = vmatpush1.bf16.msra.mxu0 0
      %3110 = vmatprep.subr.bf16.mxu0 0
      %3111 = vmatpush1.bf16.msra.mxu0 0
      %3112 = vmatprep.subr.bf16.mxu0 0
      %3113 = vmatpush1.bf16.msra.mxu0 0
      %3114 = vmatprep.subr.bf16.mxu0 0
      %3115 = vmatpush1.bf16.msra.mxu0 0
      %3116 = vmatprep.subr.bf16.mxu0 0
      %3117 = vmatpush1.bf16.msra.mxu0 0
      %3118 = vmatprep.subr.bf16.mxu0 0
      %3119 = vmatpush1.bf16.msra.mxu0 0
      %3120 = vmatprep.mubr.bf16.mxu0 0
      %3121 = vmatmul.mubr.bf16.gmra.mrb[0].mxu0 %v3041
      %v3122 = vpop.f32.mrb[0].mxu0
      %v3123 = vadd.f32 0.0, %v3122
      %v3124 = vpop.f32.mrb[0].mxu0
      %v3125 = vpop.f32.mrb[0].mxu0
      %v3126 = vadd.f32 0.0, %v3125
      %v3127 = vpop.f32.mrb[0].mxu0
      %3128 = vmatprep.mubr.bf16.mxu0 0
      %3129 = vmatmul.mubr.bf16.gmra.mrb[0].mxu0 %v3044
      %v3130 = vpop.f32.mrb[0].mxu0
      %v3131 = vadd.f32 0.0, %v3130
      %v3132 = vpop.f32.mrb[0].mxu0
      %v3133 = vpop.f32.mrb[0].mxu0
      %v3134 = vadd.f32 0.0, %v3133
      %v3135 = vpop.f32.mrb[0].mxu0
      %3136 = vmatprep.mubr.bf16.mxu0 0
      %3137 = vmatmul.mubr.bf16.gmra.mrb[0].mxu0 %v3047
      %v3138 = vpop.f32.mrb[0].mxu0
      %v3139 = vadd.f32 0.0, %v3138
      %v3140 = vpop.f32.mrb[0].mxu0
      %v3141 = vpop.f32.mrb[0].mxu0
      %v3142 = vadd.f32 0.0, %v3141
      %v3143 = vpop.f32.mrb[0].mxu0
      %3144 = vmatprep.mubr.bf16.mxu0 0
      %3145 = vmatmul.mubr.bf16.gmra.mrb[0].mxu0 %v3050
      %v3146 = vpop.f32.mrb[0].mxu0
      %v3147 = vadd.f32 0.0, %v3146
      %v3148 = vpop.f32.mrb[0].mxu0
      %v3149 = vpop.f32.mrb[0].mxu0
      %v3150 = vadd.f32 0.0, %v3149
      %v3151 = vpop.f32.mrb[0].mxu0
      %3152 = vmatprep.mubr.bf16.mxu0 0
      %3153 = vmatmul.mubr.bf16.gmra.mrb[0].mxu0 %v3053
      %v3154 = vpop.f32.mrb[0].mxu0
      %v3155 = vadd.f32 0.0, %v3154
      %v3156 = vpop.f32.mrb[0].mxu0
      %v3157 = vpop.f32.mrb[0].mxu0
      %v3158 = vadd.f32 0.0, %v3157
      %v3159 = vpop.f32.mrb[0].mxu0
      %3160 = vmatprep.mubr.bf16.mxu0 0
      %3161 = vmatmul.mubr.bf16.gmra.mrb[0].mxu0 %v3056
      %v3162 = vpop.f32.mrb[0].mxu0
      %v3163 = vadd.f32 0.0, %v3162
      %v3164 = vpop.f32.mrb[0].mxu0
      %v3165 = vpop.f32.mrb[0].mxu0
      %v3166 = vadd.f32 0.0, %v3165
      %v3167 = vpop.f32.mrb[0].mxu0
      %3168 = vmatprep.mubr.bf16.mxu0 0
      %3169 = vmatmul.mubr.bf16.gmra.mrb[0].mxu0 %v3059
      %v3170 = vpop.f32.mrb[0].mxu0
      %v3171 = vadd.f32 0.0, %v3170
      %v3172 = vpop.f32.mrb[0].mxu0
      %v3173 = vpop.f32.mrb[0].mxu0
      %v3174 = vadd.f32 0.0, %v3173
      %v3175 = vpop.f32.mrb[0].mxu0
      %3176 = vmatprep.mubr.bf16.mxu0 0
      %3177 = vmatmul.mubr.bf16.gmra.mrb[0].mxu0 %v3062
      %v3178 = vpop.f32.mrb[0].mxu0
      %v3179 = vadd.f32 0.0, %v3178
      %v3180 = vpop.f32.mrb[0].mxu0
      %v3181 = vpop.f32.mrb[0].mxu0
      %v3182 = vadd.f32 0.0, %v3181
      %v3183 = vpop.f32.mrb[0].mxu0
      %3184 = vmatprep.mubr.bf16.mxu0 0
      %3185 = vmatmul.mubr.bf16.gmra.mrb[0].mxu0 %v3065
      %v3186 = vpop.f32.mrb[0].mxu0
      %v3187 = vadd.f32 0.0, %v3186
      %v3188 = vpop.f32.mrb[0].mxu0
      %v3189 = vpop.f32.mrb[0].mxu0
      %v3190 = vadd.f32 0.0, %v3189
      %v3191 = vpop.f32.mrb[0].mxu0
      %3192 = vmatprep.mubr.bf16.mxu0 0
      %3193 = vmatmul.mubr.bf16.gmra.mrb[0].mxu0 %v3068
      %v3194 = vpop.f32.mrb[0].mxu0
      %v3195 = vadd.f32 0.0, %v3194
      %v3196 = vpop.f32.mrb[0].mxu0
      %v3197 = vpop.f32.mrb[0].mxu0
      %v3198 = vadd.f32 0.0, %v3197
      %v3199 = vpop.f32.mrb[0].mxu0
      %3200 = vmatprep.mubr.bf16.mxu0 0
      %3201 = vmatmul.mubr.bf16.gmra.mrb[0].mxu0 %v3071
      %v3202 = vpop.f32.mrb[0].mxu0
      %v3203 = vadd.f32 0.0, %v3202
      %v3204 = vpop.f32.mrb[0].mxu0
      %v3205 = vpop.f32.mrb[0].mxu0
      %v3206 = vadd.f32 0.0, %v3205
      %v3207 = vpop.f32.mrb[0].mxu0
      %3208 = vmatprep.mubr.bf16.mxu0 0
      %3209 = vmatmul.mubr.bf16.gmra.mrb[0].mxu0 %v3074
      %v3210 = vpop.f32.mrb[0].mxu0
      %v3211 = vadd.f32 0.0, %v3210
      %v3212 = vpop.f32.mrb[0].mxu0
      %v3213 = vpop.f32.mrb[0].mxu0
      %v3214 = vadd.f32 0.0, %v3213
      %v3215 = vpop.f32.mrb[0].mxu0
      %3216 = vmatprep.mubr.bf16.mxu0 0
      %3217 = vmatmul.mubr.bf16.gmra.mrb[0].mxu0 %v3077
      %v3218 = vpop.f32.mrb[0].mxu0
      %v3219 = vadd.f32 0.0, %v3218
      %v3220 = vpop.f32.mrb[0].mxu0
      %v3221 = vpop.f32.mrb[0].mxu0
      %v3222 = vadd.f32 0.0, %v3221
      %v3223 = vpop.f32.mrb[0].mxu0
      %3224 = vmatprep.mubr.bf16.mxu0 0
      %3225 = vmatmul.mubr.bf16.gmra.mrb[0].mxu0 %v3080
      %v3226 = vpop.f32.mrb[0].mxu0
      %v3227 = vadd.f32 0.0, %v3226
      %v3228 = vpop.f32.mrb[0].mxu0
      %v3229 = vpop.f32.mrb[0].mxu0
      %v3230 = vadd.f32 0.0, %v3229
      %v3231 = vpop.f32.mrb[0].mxu0
      %3232 = vmatprep.mubr.bf16.mxu0 0
      %3233 = vmatmul.mubr.bf16.gmra.mrb[0].mxu0 %v3083
      %v3234 = vpop.f32.mrb[0].mxu0
      %v3235 = vadd.f32 0.0, %v3234
      %v3236 = vpop.f32.mrb[0].mxu0
      %v3237 = vpop.f32.mrb[0].mxu0
      %v3238 = vadd.f32 0.0, %v3237
      %v3239 = vpop.f32.mrb[0].mxu0
      %3240 = vmatprep.mubr.bf16.mxu0 0
      %3241 = vmatmul.mubr.bf16.gmra.mrb[0].mxu0 %v3086
      %v3242 = vpop.f32.mrb[0].mxu0
      %v3243 = vadd.f32 0.0, %v3242
      %v3244 = vpop.f32.mrb[0].mxu0
      %v3245 = vpop.f32.mrb[0].mxu0
      %v3246 = vadd.f32 0.0, %v3245
      %v3247 = vpop.f32.mrb[0].mxu0
      %3248 = vdwg.mxu0
      %v3249 = vadd.f32 %v2605, %v3123
      %v3250 = vadd.f32 %v2606, %v3126
      %v3251 = vadd.f32 %v2607, %v3131
      %v3252 = vadd.f32 %v2608, %v3134
      %v3253 = vadd.f32 %v2609, %v3139
      %v3254 = vadd.f32 %v2610, %v3142
      %v3255 = vadd.f32 %v2611, %v3147
      %v3256 = vadd.f32 %v2612, %v3150
      %v3257 = vadd.f32 %v2613, %v3155
      %v3258 = vadd.f32 %v2614, %v3158
      %v3259 = vadd.f32 %v2615, %v3163
      %v3260 = vadd.f32 %v2616, %v3166
      %v3261 = vadd.f32 %v2617, %v3171
      %v3262 = vadd.f32 %v2618, %v3174
      %v3263 = vadd.f32 %v2619, %v3179
      %v3264 = vadd.f32 %v2620, %v3182
      %v3265 = vadd.f32 %v2621, %v3187
      %v3266 = vadd.f32 %v2622, %v3190
      %v3267 = vadd.f32 %v2623, %v3195
      %v3268 = vadd.f32 %v2624, %v3198
      %v3269 = vadd.f32 %v2625, %v3203
      %v3270 = vadd.f32 %v2626, %v3206
      %v3271 = vadd.f32 %v2627, %v3211
      %v3272 = vadd.f32 %v2628, %v3214
      %v3273 = vadd.f32 %v2629, %v3219
      %v3274 = vadd.f32 %v2630, %v3222
      %v3275 = vadd.f32 %v2631, %v3227
      %v3276 = vadd.f32 %v2632, %v3230
      %v3277 = vadd.f32 %v2633, %v3235
      %v3278 = vadd.f32 %v2634, %v3238
      %v3279 = vadd.f32 %v2635, %v3243
      %v3280 = vadd.f32 %v2636, %v3246
      %s3281 = scalar_lea.vmem %s2, 1024
      %v3282 = vld [vmem:[%s3281] sm:$0xff]
      %v3283 = vld [vmem:[%s3281 + $0x8] sm:$0xff]
      %v3284 = vld [vmem:[%s3281 + $0x10] sm:$0xff]
      %v3285 = vld [vmem:[%s3281 + $0x18] sm:$0xff]
      %v3286 = vld [vmem:[%s3281 + $0x20] sm:$0xff]
      %v3287 = vld [vmem:[%s3281 + $0x28] sm:$0xff]
      %v3288 = vld [vmem:[%s3281 + $0x30] sm:$0xff]
      %v3289 = vld [vmem:[%s3281 + $0x38] sm:$0xff]
      %v3290 = vld [vmem:[%s3281 + $0x40] sm:$0xff]
      %v3291 = vld [vmem:[%s3281 + $0x48] sm:$0xff]
      %v3292 = vld [vmem:[%s3281 + $0x50] sm:$0xff]
      %v3293 = vld [vmem:[%s3281 + $0x58] sm:$0xff]
      %v3294 = vld [vmem:[%s3281 + $0x60] sm:$0xff]
      %v3295 = vld [vmem:[%s3281 + $0x68] sm:$0xff]
      %v3296 = vld [vmem:[%s3281 + $0x70] sm:$0xff]
      %v3297 = vld [vmem:[%s3281 + $0x78] sm:$0xff]
      %v3298 = vld [vmem:[%s3281 + $0x80] sm:$0xff]
      %v3299 = vld [vmem:[%s3281 + $0x88] sm:$0xff]
      %v3300 = vld [vmem:[%s3281 + $0x90] sm:$0xff]
      %v3301 = vld [vmem:[%s3281 + $0x98] sm:$0xff]
      %v3302 = vld [vmem:[%s3281 + $0xa0] sm:$0xff]
      %v3303 = vld [vmem:[%s3281 + $0xa8] sm:$0xff]
      %v3304 = vld [vmem:[%s3281 + $0xb0] sm:$0xff]
      %v3305 = vld [vmem:[%s3281 + $0xb8] sm:$0xff]
      %v3306 = vld [vmem:[%s3281 + $0xc0] sm:$0xff]
      %v3307 = vld [vmem:[%s3281 + $0xc8] sm:$0xff]
      %v3308 = vld [vmem:[%s3281 + $0xd0] sm:$0xff]
      %v3309 = vld [vmem:[%s3281 + $0xd8] sm:$0xff]
      %v3310 = vld [vmem:[%s3281 + $0xe0] sm:$0xff]
      %v3311 = vld [vmem:[%s3281 + $0xe8] sm:$0xff]
      %v3312 = vld [vmem:[%s3281 + $0xf0] sm:$0xff]
      %v3313 = vld [vmem:[%s3281 + $0xf8] sm:$0xff]
      %v3346 = vunpack.c.l.b16 %v3282
      %v3347 = vunpack.c.h.b16 %v3282
      %v3348 = vunpack.c.l.b16 %v3283
      %v3349 = vunpack.c.h.b16 %v3283
      %v3350 = vunpack.c.l.b16 %v3284
      %v3351 = vunpack.c.h.b16 %v3284
      %v3352 = vunpack.c.l.b16 %v3285
      %v3353 = vunpack.c.h.b16 %v3285
      %v3354 = vunpack.c.l.b16 %v3286
      %v3355 = vunpack.c.h.b16 %v3286
      %v3356 = vunpack.c.l.b16 %v3287
      %v3357 = vunpack.c.h.b16 %v3287
      %v3358 = vunpack.c.l.b16 %v3288
      %v3359 = vunpack.c.h.b16 %v3288
      %v3360 = vunpack.c.l.b16 %v3289
      %v3361 = vunpack.c.h.b16 %v3289
      %v3362 = vunpack.c.l.b16 %v3290
      %v3363 = vunpack.c.h.b16 %v3290
      %v3364 = vunpack.c.l.b16 %v3291
      %v3365 = vunpack.c.h.b16 %v3291
      %v3366 = vunpack.c.l.b16 %v3292
      %v3367 = vunpack.c.h.b16 %v3292
      %v3368 = vunpack.c.l.b16 %v3293
      %v3369 = vunpack.c.h.b16 %v3293
      %v3370 = vunpack.c.l.b16 %v3294
      %v3371 = vunpack.c.h.b16 %v3294
      %v3372 = vunpack.c.l.b16 %v3295
      %v3373 = vunpack.c.h.b16 %v3295
      %v3374 = vunpack.c.l.b16 %v3296
      %v3375 = vunpack.c.h.b16 %v3296
      %v3376 = vunpack.c.l.b16 %v3297
      %v3377 = vunpack.c.h.b16 %v3297
      %v3378 = vunpack.c.l.b16 %v3298
      %v3379 = vunpack.c.h.b16 %v3298
      %v3380 = vunpack.c.l.b16 %v3299
      %v3381 = vunpack.c.h.b16 %v3299
      %v3382 = vunpack.c.l.b16 %v3300
      %v3383 = vunpack.c.h.b16 %v3300
      %v3384 = vunpack.c.l.b16 %v3301
      %v3385 = vunpack.c.h.b16 %v3301
      %v3386 = vunpack.c.l.b16 %v3302
      %v3387 = vunpack.c.h.b16 %v3302
      %v3388 = vunpack.c.l.b16 %v3303
      %v3389 = vunpack.c.h.b16 %v3303
      %v3390 = vunpack.c.l.b16 %v3304
      %v3391 = vunpack.c.h.b16 %v3304
      %v3392 = vunpack.c.l.b16 %v3305
      %v3393 = vunpack.c.h.b16 %v3305
      %v3394 = vunpack.c.l.b16 %v3306
      %v3395 = vunpack.c.h.b16 %v3306
      %v3396 = vunpack.c.l.b16 %v3307
      %v3397 = vunpack.c.h.b16 %v3307
      %v3398 = vunpack.c.l.b16 %v3308
      %v3399 = vunpack.c.h.b16 %v3308
      %v3400 = vunpack.c.l.b16 %v3309
      %v3401 = vunpack.c.h.b16 %v3309
      %v3402 = vunpack.c.l.b16 %v3310
      %v3403 = vunpack.c.h.b16 %v3310
      %v3404 = vunpack.c.l.b16 %v3311
      %v3405 = vunpack.c.h.b16 %v3311
      %v3406 = vunpack.c.l.b16 %v3312
      %v3407 = vunpack.c.h.b16 %v3312
      %v3408 = vunpack.c.l.b16 %v3313
      %v3409 = vunpack.c.h.b16 %v3313
      %v3410 = vpack.c.b16 %v3348, %v3346
      %v3411 = vpack.c.b16 %v3349, %v3347
      %v3412 = vpack.c.b16 %v3352, %v3350
      %v3413 = vpack.c.b16 %v3353, %v3351
      %v3414 = vpack.c.b16 %v3356, %v3354
      %v3415 = vpack.c.b16 %v3357, %v3355
      %v3416 = vpack.c.b16 %v3360, %v3358
      %v3417 = vpack.c.b16 %v3361, %v3359
      %v3418 = vpack.c.b16 %v3364, %v3362
      %v3419 = vpack.c.b16 %v3365, %v3363
      %v3420 = vpack.c.b16 %v3368, %v3366
      %v3421 = vpack.c.b16 %v3369, %v3367
      %v3422 = vpack.c.b16 %v3372, %v3370
      %v3423 = vpack.c.b16 %v3373, %v3371
      %v3424 = vpack.c.b16 %v3376, %v3374
      %v3425 = vpack.c.b16 %v3377, %v3375
      %v3426 = vpack.c.b16 %v3380, %v3378
      %v3427 = vpack.c.b16 %v3381, %v3379
      %v3428 = vpack.c.b16 %v3384, %v3382
      %v3429 = vpack.c.b16 %v3385, %v3383
      %v3430 = vpack.c.b16 %v3388, %v3386
      %v3431 = vpack.c.b16 %v3389, %v3387
      %v3432 = vpack.c.b16 %v3392, %v3390
      %v3433 = vpack.c.b16 %v3393, %v3391
      %v3434 = vpack.c.b16 %v3396, %v3394
      %v3435 = vpack.c.b16 %v3397, %v3395
      %v3436 = vpack.c.b16 %v3400, %v3398
      %v3437 = vpack.c.b16 %v3401, %v3399
      %v3438 = vpack.c.b16 %v3404, %v3402
      %v3439 = vpack.c.b16 %v3405, %v3403
      %v3440 = vpack.c.b16 %v3408, %v3406
      %v3441 = vpack.c.b16 %v3409, %v3407
      %3474 = vmatprep.subr.bf16.mxu0 0
      %3475 = vmatpush1.bf16.msra.mxu0 %v754
      %3476 = vmatprep.subr.bf16.mxu0 0
      %3477 = vmatpush1.bf16.msra.mxu0 %v755
      %3478 = vmatprep.subr.bf16.mxu0 0
      %3479 = vmatpush1.bf16.msra.mxu0 %v756
      %3480 = vmatprep.subr.bf16.mxu0 0
      %3481 = vmatpush1.bf16.msra.mxu0 %v757
      %3482 = vmatprep.subr.bf16.mxu0 0
      %3483 = vmatpush1.bf16.msra.mxu0 %v758
      %3484 = vmatprep.subr.bf16.mxu0 0
      %3485 = vmatpush1.bf16.msra.mxu0 %v759
      %3486 = vmatprep.subr.bf16.mxu0 0
      %3487 = vmatpush1.bf16.msra.mxu0 %v760
      %3488 = vmatprep.subr.bf16.mxu0 0
      %3489 = vmatpush1.bf16.msra.mxu0 %v761
      %3490 = vmatprep.subr.bf16.mxu0 0
      %3491 = vmatpush1.bf16.msra.mxu0 %v762
      %3492 = vmatprep.subr.bf16.mxu0 0
      %3493 = vmatpush1.bf16.msra.mxu0 %v763
      %3494 = vmatprep.subr.bf16.mxu0 0
      %3495 = vmatpush1.bf16.msra.mxu0 %v764
      %3496 = vmatprep.subr.bf16.mxu0 0
      %3497 = vmatpush1.bf16.msra.mxu0 %v765
      %3498 = vmatprep.subr.bf16.mxu0 0
      %3499 = vmatpush1.bf16.msra.mxu0 %v766
      %3500 = vmatprep.subr.bf16.mxu0 0
      %3501 = vmatpush1.bf16.msra.mxu0 %v767
      %3502 = vmatprep.subr.bf16.mxu0 0
      %3503 = vmatpush1.bf16.msra.mxu0 %v768
      %3504 = vmatprep.subr.bf16.mxu0 0
      %3505 = vmatpush1.bf16.msra.mxu0 %v769
      %3506 = vmatprep.mubr.bf16.mxu0 %v3411
      %3507 = vmatmul.mubr.bf16.gmra.mrb[0].mxu0 %v3410
      %v3508 = vpop.f32.mrb[0].mxu0
      %v3509 = vadd.f32 0.0, %v3508
      %v3510 = vpop.f32.mrb[0].mxu0
      %v3511 = vpop.f32.mrb[0].mxu0
      %v3512 = vadd.f32 0.0, %v3511
      %v3513 = vpop.f32.mrb[0].mxu0
      %3514 = vmatprep.mubr.bf16.mxu0 %v3413
      %3515 = vmatmul.mubr.bf16.gmra.mrb[0].mxu0 %v3412
      %v3516 = vpop.f32.mrb[0].mxu0
      %v3517 = vadd.f32 0.0, %v3516
      %v3518 = vpop.f32.mrb[0].mxu0
      %v3519 = vpop.f32.mrb[0].mxu0
      %v3520 = vadd.f32 0.0, %v3519
      %v3521 = vpop.f32.mrb[0].mxu0
      %3522 = vmatprep.mubr.bf16.mxu0 %v3415
      %3523 = vmatmul.mubr.bf16.gmra.mrb[0].mxu0 %v3414
      %v3524 = vpop.f32.mrb[0].mxu0
      %v3525 = vadd.f32 0.0, %v3524
      %v3526 = vpop.f32.mrb[0].mxu0
      %v3527 = vpop.f32.mrb[0].mxu0
      %v3528 = vadd.f32 0.0, %v3527
      %v3529 = vpop.f32.mrb[0].mxu0
      %3530 = vmatprep.mubr.bf16.mxu0 %v3417
      %3531 = vmatmul.mubr.bf16.gmra.mrb[0].mxu0 %v3416
      %v3532 = vpop.f32.mrb[0].mxu0
      %v3533 = vadd.f32 0.0, %v3532
      %v3534 = vpop.f32.mrb[0].mxu0
      %v3535 = vpop.f32.mrb[0].mxu0
      %v3536 = vadd.f32 0.0, %v3535
      %v3537 = vpop.f32.mrb[0].mxu0
      %3538 = vmatprep.mubr.bf16.mxu0 %v3419
      %3539 = vmatmul.mubr.bf16.gmra.mrb[0].mxu0 %v3418
      %v3540 = vpop.f32.mrb[0].mxu0
      %v3541 = vadd.f32 0.0, %v3540
      %v3542 = vpop.f32.mrb[0].mxu0
      %v3543 = vpop.f32.mrb[0].mxu0
      %v3544 = vadd.f32 0.0, %v3543
      %v3545 = vpop.f32.mrb[0].mxu0
      %3546 = vmatprep.mubr.bf16.mxu0 %v3421
      %3547 = vmatmul.mubr.bf16.gmra.mrb[0].mxu0 %v3420
      %v3548 = vpop.f32.mrb[0].mxu0
      %v3549 = vadd.f32 0.0, %v3548
      %v3550 = vpop.f32.mrb[0].mxu0
      %v3551 = vpop.f32.mrb[0].mxu0
      %v3552 = vadd.f32 0.0, %v3551
      %v3553 = vpop.f32.mrb[0].mxu0
      %3554 = vmatprep.mubr.bf16.mxu0 %v3423
      %3555 = vmatmul.mubr.bf16.gmra.mrb[0].mxu0 %v3422
      %v3556 = vpop.f32.mrb[0].mxu0
      %v3557 = vadd.f32 0.0, %v3556
      %v3558 = vpop.f32.mrb[0].mxu0
      %v3559 = vpop.f32.mrb[0].mxu0
      %v3560 = vadd.f32 0.0, %v3559
      %v3561 = vpop.f32.mrb[0].mxu0
      %3562 = vmatprep.mubr.bf16.mxu0 %v3425
      %3563 = vmatmul.mubr.bf16.gmra.mrb[0].mxu0 %v3424
      %v3564 = vpop.f32.mrb[0].mxu0
      %v3565 = vadd.f32 0.0, %v3564
      %v3566 = vpop.f32.mrb[0].mxu0
      %v3567 = vpop.f32.mrb[0].mxu0
      %v3568 = vadd.f32 0.0, %v3567
      %v3569 = vpop.f32.mrb[0].mxu0
      %3570 = vmatprep.mubr.bf16.mxu0 %v3427
      %3571 = vmatmul.mubr.bf16.gmra.mrb[0].mxu0 %v3426
      %v3572 = vpop.f32.mrb[0].mxu0
      %v3573 = vadd.f32 0.0, %v3572
      %v3574 = vpop.f32.mrb[0].mxu0
      %v3575 = vpop.f32.mrb[0].mxu0
      %v3576 = vadd.f32 0.0, %v3575
      %v3577 = vpop.f32.mrb[0].mxu0
      %3578 = vmatprep.mubr.bf16.mxu0 %v3429
      %3579 = vmatmul.mubr.bf16.gmra.mrb[0].mxu0 %v3428
      %v3580 = vpop.f32.mrb[0].mxu0
      %v3581 = vadd.f32 0.0, %v3580
      %v3582 = vpop.f32.mrb[0].mxu0
      %v3583 = vpop.f32.mrb[0].mxu0
      %v3584 = vadd.f32 0.0, %v3583
      %v3585 = vpop.f32.mrb[0].mxu0
      %3586 = vmatprep.mubr.bf16.mxu0 %v3431
      %3587 = vmatmul.mubr.bf16.gmra.mrb[0].mxu0 %v3430
      %v3588 = vpop.f32.mrb[0].mxu0
      %v3589 = vadd.f32 0.0, %v3588
      %v3590 = vpop.f32.mrb[0].mxu0
      %v3591 = vpop.f32.mrb[0].mxu0
      %v3592 = vadd.f32 0.0, %v3591
      %v3593 = vpop.f32.mrb[0].mxu0
      %3594 = vmatprep.mubr.bf16.mxu0 %v3433
      %3595 = vmatmul.mubr.bf16.gmra.mrb[0].mxu0 %v3432
      %v3596 = vpop.f32.mrb[0].mxu0
      %v3597 = vadd.f32 0.0, %v3596
      %v3598 = vpop.f32.mrb[0].mxu0
      %v3599 = vpop.f32.mrb[0].mxu0
      %v3600 = vadd.f32 0.0, %v3599
      %v3601 = vpop.f32.mrb[0].mxu0
      %3602 = vmatprep.mubr.bf16.mxu0 %v3435
      %3603 = vmatmul.mubr.bf16.gmra.mrb[0].mxu0 %v3434
      %v3604 = vpop.f32.mrb[0].mxu0
      %v3605 = vadd.f32 0.0, %v3604
      %v3606 = vpop.f32.mrb[0].mxu0
      %v3607 = vpop.f32.mrb[0].mxu0
      %v3608 = vadd.f32 0.0, %v3607
      %v3609 = vpop.f32.mrb[0].mxu0
      %3610 = vmatprep.mubr.bf16.mxu0 %v3437
      %3611 = vmatmul.mubr.bf16.gmra.mrb[0].mxu0 %v3436
      %v3612 = vpop.f32.mrb[0].mxu0
      %v3613 = vadd.f32 0.0, %v3612
      %v3614 = vpop.f32.mrb[0].mxu0
      %v3615 = vpop.f32.mrb[0].mxu0
      %v3616 = vadd.f32 0.0, %v3615
      %v3617 = vpop.f32.mrb[0].mxu0
      %3618 = vmatprep.mubr.bf16.mxu0 %v3439
      %3619 = vmatmul.mubr.bf16.gmra.mrb[0].mxu0 %v3438
      %v3620 = vpop.f32.mrb[0].mxu0
      %v3621 = vadd.f32 0.0, %v3620
      %v3622 = vpop.f32.mrb[0].mxu0
      %v3623 = vpop.f32.mrb[0].mxu0
      %v3624 = vadd.f32 0.0, %v3623
      %v3625 = vpop.f32.mrb[0].mxu0
      %3626 = vmatprep.mubr.bf16.mxu0 %v3441
      %3627 = vmatmul.mubr.bf16.gmra.mrb[0].mxu0 %v3440
      %v3628 = vpop.f32.mrb[0].mxu0
      %v3629 = vadd.f32 0.0, %v3628
      %v3630 = vpop.f32.mrb[0].mxu0
      %v3631 = vpop.f32.mrb[0].mxu0
      %v3632 = vadd.f32 0.0, %v3631
      %v3633 = vpop.f32.mrb[0].mxu0
      %3634 = vdwg.mxu0
      %v3635 = vpack.c.bf16 %v3512, %v3509
      %v3636 = vpack.c.bf16 %v3520, %v3517
      %v3637 = vpack.c.bf16 %v3528, %v3525
      %v3638 = vpack.c.bf16 %v3536, %v3533
      %v3639 = vpack.c.bf16 %v3544, %v3541
      %v3640 = vpack.c.bf16 %v3552, %v3549
      %v3641 = vpack.c.bf16 %v3560, %v3557
      %v3642 = vpack.c.bf16 %v3568, %v3565
      %v3643 = vpack.c.bf16 %v3576, %v3573
      %v3644 = vpack.c.bf16 %v3584, %v3581
      %v3645 = vpack.c.bf16 %v3592, %v3589
      %v3646 = vpack.c.bf16 %v3600, %v3597
      %v3647 = vpack.c.bf16 %v3608, %v3605
      %v3648 = vpack.c.bf16 %v3616, %v3613
      %v3649 = vpack.c.bf16 %v3624, %v3621
      %v3650 = vpack.c.bf16 %v3632, %v3629
      %s3651 = scalar_lea.vmem %s7, 128
      %v3652 = vld [vmem:[%s3651] sm:$0xf]
      %v3653 = vld [vmem:[%s3651 + $0x4] sm:$0xf]
      %v3654 = vld [vmem:[%s3651 + $0x8] sm:$0xf]
      %v3655 = vld [vmem:[%s3651 + $0xc] sm:$0xf]
      %v3656 = vld [vmem:[%s3651 + $0x10] sm:$0xf]
      %v3657 = vld [vmem:[%s3651 + $0x14] sm:$0xf]
      %v3658 = vld [vmem:[%s3651 + $0x18] sm:$0xf]
      %v3659 = vld [vmem:[%s3651 + $0x1c] sm:$0xf]
      %v3668 = vunpack.c.l.b16 %v3652
      %v3669 = vunpack.c.l.b16 %v3653
      %v3670 = vunpack.c.l.b16 %v3654
      %v3671 = vunpack.c.l.b16 %v3655
      %v3672 = vunpack.c.l.b16 %v3656
      %v3673 = vunpack.c.l.b16 %v3657
      %v3674 = vunpack.c.l.b16 %v3658
      %v3675 = vunpack.c.l.b16 %v3659
      %v3676 = vpack.c.b16 %v3669, %v3668
      %v3677 = vpack.c.b16 %v3671, %v3670
      %v3678 = vpack.c.b16 %v3673, %v3672
      %v3679 = vpack.c.b16 %v3675, %v3674
      %v3685 = vsel %vm1550, %v3635, 0
      %v3688 = vsel %vm1550, %v3636, 0
      %v3691 = vsel %vm1550, %v3637, 0
      %v3694 = vsel %vm1550, %v3638, 0
      %v3697 = vsel %vm1550, %v3639, 0
      %v3700 = vsel %vm1550, %v3640, 0
      %v3703 = vsel %vm1550, %v3641, 0
      %v3706 = vsel %vm1550, %v3642, 0
      %v3709 = vsel %vm1550, %v3643, 0
      %v3712 = vsel %vm1550, %v3644, 0
      %v3715 = vsel %vm1550, %v3645, 0
      %v3718 = vsel %vm1550, %v3646, 0
      %v3721 = vsel %vm1550, %v3647, 0
      %v3724 = vsel %vm1550, %v3648, 0
      %v3727 = vsel %vm1550, %v3649, 0
      %v3730 = vsel %vm1550, %v3650, 0
      %3732 = vmatprep.subr.bf16.mxu0 0
      %3733 = vmatpush1.bf16.msra.mxu0 %v3676
      %3734 = vmatprep.subr.bf16.mxu0 0
      %3735 = vmatpush1.bf16.msra.mxu0 %v3677
      %3736 = vmatprep.subr.bf16.mxu0 0
      %3737 = vmatpush1.bf16.msra.mxu0 %v3678
      %3738 = vmatprep.subr.bf16.mxu0 0
      %3739 = vmatpush1.bf16.msra.mxu0 %v3679
      %3740 = vmatprep.subr.bf16.mxu0 0
      %3741 = vmatpush1.bf16.msra.mxu0 0
      %3742 = vmatprep.subr.bf16.mxu0 0
      %3743 = vmatpush1.bf16.msra.mxu0 0
      %3744 = vmatprep.subr.bf16.mxu0 0
      %3745 = vmatpush1.bf16.msra.mxu0 0
      %3746 = vmatprep.subr.bf16.mxu0 0
      %3747 = vmatpush1.bf16.msra.mxu0 0
      %3748 = vmatprep.subr.bf16.mxu0 0
      %3749 = vmatpush1.bf16.msra.mxu0 0
      %3750 = vmatprep.subr.bf16.mxu0 0
      %3751 = vmatpush1.bf16.msra.mxu0 0
      %3752 = vmatprep.subr.bf16.mxu0 0
      %3753 = vmatpush1.bf16.msra.mxu0 0
      %3754 = vmatprep.subr.bf16.mxu0 0
      %3755 = vmatpush1.bf16.msra.mxu0 0
      %3756 = vmatprep.subr.bf16.mxu0 0
      %3757 = vmatpush1.bf16.msra.mxu0 0
      %3758 = vmatprep.subr.bf16.mxu0 0
      %3759 = vmatpush1.bf16.msra.mxu0 0
      %3760 = vmatprep.subr.bf16.mxu0 0
      %3761 = vmatpush1.bf16.msra.mxu0 0
      %3762 = vmatprep.subr.bf16.mxu0 0
      %3763 = vmatpush1.bf16.msra.mxu0 0
      %3764 = vmatprep.mubr.bf16.mxu0 0
      %3765 = vmatmul.mubr.bf16.gmra.mrb[0].mxu0 %v3685
      %v3766 = vpop.f32.mrb[0].mxu0
      %v3767 = vadd.f32 0.0, %v3766
      %v3768 = vpop.f32.mrb[0].mxu0
      %v3769 = vpop.f32.mrb[0].mxu0
      %v3770 = vadd.f32 0.0, %v3769
      %v3771 = vpop.f32.mrb[0].mxu0
      %3772 = vmatprep.mubr.bf16.mxu0 0
      %3773 = vmatmul.mubr.bf16.gmra.mrb[0].mxu0 %v3688
      %v3774 = vpop.f32.mrb[0].mxu0
      %v3775 = vadd.f32 0.0, %v3774
      %v3776 = vpop.f32.mrb[0].mxu0
      %v3777 = vpop.f32.mrb[0].mxu0
      %v3778 = vadd.f32 0.0, %v3777
      %v3779 = vpop.f32.mrb[0].mxu0
      %3780 = vmatprep.mubr.bf16.mxu0 0
      %3781 = vmatmul.mubr.bf16.gmra.mrb[0].mxu0 %v3691
      %v3782 = vpop.f32.mrb[0].mxu0
      %v3783 = vadd.f32 0.0, %v3782
      %v3784 = vpop.f32.mrb[0].mxu0
      %v3785 = vpop.f32.mrb[0].mxu0
      %v3786 = vadd.f32 0.0, %v3785
      %v3787 = vpop.f32.mrb[0].mxu0
      %3788 = vmatprep.mubr.bf16.mxu0 0
      %3789 = vmatmul.mubr.bf16.gmra.mrb[0].mxu0 %v3694
      %v3790 = vpop.f32.mrb[0].mxu0
      %v3791 = vadd.f32 0.0, %v3790
      %v3792 = vpop.f32.mrb[0].mxu0
      %v3793 = vpop.f32.mrb[0].mxu0
      %v3794 = vadd.f32 0.0, %v3793
      %v3795 = vpop.f32.mrb[0].mxu0
      %3796 = vmatprep.mubr.bf16.mxu0 0
      %3797 = vmatmul.mubr.bf16.gmra.mrb[0].mxu0 %v3697
      %v3798 = vpop.f32.mrb[0].mxu0
      %v3799 = vadd.f32 0.0, %v3798
      %v3800 = vpop.f32.mrb[0].mxu0
      %v3801 = vpop.f32.mrb[0].mxu0
      %v3802 = vadd.f32 0.0, %v3801
      %v3803 = vpop.f32.mrb[0].mxu0
      %3804 = vmatprep.mubr.bf16.mxu0 0
      %3805 = vmatmul.mubr.bf16.gmra.mrb[0].mxu0 %v3700
      %v3806 = vpop.f32.mrb[0].mxu0
      %v3807 = vadd.f32 0.0, %v3806
      %v3808 = vpop.f32.mrb[0].mxu0
      %v3809 = vpop.f32.mrb[0].mxu0
      %v3810 = vadd.f32 0.0, %v3809
      %v3811 = vpop.f32.mrb[0].mxu0
      %3812 = vmatprep.mubr.bf16.mxu0 0
      %3813 = vmatmul.mubr.bf16.gmra.mrb[0].mxu0 %v3703
      %v3814 = vpop.f32.mrb[0].mxu0
      %v3815 = vadd.f32 0.0, %v3814
      %v3816 = vpop.f32.mrb[0].mxu0
      %v3817 = vpop.f32.mrb[0].mxu0
      %v3818 = vadd.f32 0.0, %v3817
      %v3819 = vpop.f32.mrb[0].mxu0
      %3820 = vmatprep.mubr.bf16.mxu0 0
      %3821 = vmatmul.mubr.bf16.gmra.mrb[0].mxu0 %v3706
      %v3822 = vpop.f32.mrb[0].mxu0
      %v3823 = vadd.f32 0.0, %v3822
      %v3824 = vpop.f32.mrb[0].mxu0
      %v3825 = vpop.f32.mrb[0].mxu0
      %v3826 = vadd.f32 0.0, %v3825
      %v3827 = vpop.f32.mrb[0].mxu0
      %3828 = vmatprep.mubr.bf16.mxu0 0
      %3829 = vmatmul.mubr.bf16.gmra.mrb[0].mxu0 %v3709
      %v3830 = vpop.f32.mrb[0].mxu0
      %v3831 = vadd.f32 0.0, %v3830
      %v3832 = vpop.f32.mrb[0].mxu0
      %v3833 = vpop.f32.mrb[0].mxu0
      %v3834 = vadd.f32 0.0, %v3833
      %v3835 = vpop.f32.mrb[0].mxu0
      %3836 = vmatprep.mubr.bf16.mxu0 0
      %3837 = vmatmul.mubr.bf16.gmra.mrb[0].mxu0 %v3712
      %v3838 = vpop.f32.mrb[0].mxu0
      %v3839 = vadd.f32 0.0, %v3838
      %v3840 = vpop.f32.mrb[0].mxu0
      %v3841 = vpop.f32.mrb[0].mxu0
      %v3842 = vadd.f32 0.0, %v3841
      %v3843 = vpop.f32.mrb[0].mxu0
      %3844 = vmatprep.mubr.bf16.mxu0 0
      %3845 = vmatmul.mubr.bf16.gmra.mrb[0].mxu0 %v3715
      %v3846 = vpop.f32.mrb[0].mxu0
      %v3847 = vadd.f32 0.0, %v3846
      %v3848 = vpop.f32.mrb[0].mxu0
      %v3849 = vpop.f32.mrb[0].mxu0
      %v3850 = vadd.f32 0.0, %v3849
      %v3851 = vpop.f32.mrb[0].mxu0
      %3852 = vmatprep.mubr.bf16.mxu0 0
      %3853 = vmatmul.mubr.bf16.gmra.mrb[0].mxu0 %v3718
      %v3854 = vpop.f32.mrb[0].mxu0
      %v3855 = vadd.f32 0.0, %v3854
      %v3856 = vpop.f32.mrb[0].mxu0
      %v3857 = vpop.f32.mrb[0].mxu0
      %v3858 = vadd.f32 0.0, %v3857
      %v3859 = vpop.f32.mrb[0].mxu0
      %3860 = vmatprep.mubr.bf16.mxu0 0
      %3861 = vmatmul.mubr.bf16.gmra.mrb[0].mxu0 %v3721
      %v3862 = vpop.f32.mrb[0].mxu0
      %v3863 = vadd.f32 0.0, %v3862
      %v3864 = vpop.f32.mrb[0].mxu0
      %v3865 = vpop.f32.mrb[0].mxu0
      %v3866 = vadd.f32 0.0, %v3865
      %v3867 = vpop.f32.mrb[0].mxu0
      %3868 = vmatprep.mubr.bf16.mxu0 0
      %3869 = vmatmul.mubr.bf16.gmra.mrb[0].mxu0 %v3724
      %v3870 = vpop.f32.mrb[0].mxu0
      %v3871 = vadd.f32 0.0, %v3870
      %v3872 = vpop.f32.mrb[0].mxu0
      %v3873 = vpop.f32.mrb[0].mxu0
      %v3874 = vadd.f32 0.0, %v3873
      %v3875 = vpop.f32.mrb[0].mxu0
      %3876 = vmatprep.mubr.bf16.mxu0 0
      %3877 = vmatmul.mubr.bf16.gmra.mrb[0].mxu0 %v3727
      %v3878 = vpop.f32.mrb[0].mxu0
      %v3879 = vadd.f32 0.0, %v3878
      %v3880 = vpop.f32.mrb[0].mxu0
      %v3881 = vpop.f32.mrb[0].mxu0
      %v3882 = vadd.f32 0.0, %v3881
      %v3883 = vpop.f32.mrb[0].mxu0
      %3884 = vmatprep.mubr.bf16.mxu0 0
      %3885 = vmatmul.mubr.bf16.gmra.mrb[0].mxu0 %v3730
      %v3886 = vpop.f32.mrb[0].mxu0
      %v3887 = vadd.f32 0.0, %v3886
      %v3888 = vpop.f32.mrb[0].mxu0
      %v3889 = vpop.f32.mrb[0].mxu0
      %v3890 = vadd.f32 0.0, %v3889
      %v3891 = vpop.f32.mrb[0].mxu0
      %3892 = vdwg.mxu0
      %v3893 = vadd.f32 %v3249, %v3767
      %v3894 = vadd.f32 %v3250, %v3770
      %v3895 = vadd.f32 %v3251, %v3775
      %v3896 = vadd.f32 %v3252, %v3778
      %v3897 = vadd.f32 %v3253, %v3783
      %v3898 = vadd.f32 %v3254, %v3786
      %v3899 = vadd.f32 %v3255, %v3791
      %v3900 = vadd.f32 %v3256, %v3794
      %v3901 = vadd.f32 %v3257, %v3799
      %v3902 = vadd.f32 %v3258, %v3802
      %v3903 = vadd.f32 %v3259, %v3807
      %v3904 = vadd.f32 %v3260, %v3810
      %v3905 = vadd.f32 %v3261, %v3815
      %v3906 = vadd.f32 %v3262, %v3818
      %v3907 = vadd.f32 %v3263, %v3823
      %v3908 = vadd.f32 %v3264, %v3826
      %v3909 = vadd.f32 %v3265, %v3831
      %v3910 = vadd.f32 %v3266, %v3834
      %v3911 = vadd.f32 %v3267, %v3839
      %v3912 = vadd.f32 %v3268, %v3842
      %v3913 = vadd.f32 %v3269, %v3847
      %v3914 = vadd.f32 %v3270, %v3850
      %v3915 = vadd.f32 %v3271, %v3855
      %v3916 = vadd.f32 %v3272, %v3858
      %v3917 = vadd.f32 %v3273, %v3863
      %v3918 = vadd.f32 %v3274, %v3866
      %v3919 = vadd.f32 %v3275, %v3871
      %v3920 = vadd.f32 %v3276, %v3874
      %v3921 = vadd.f32 %v3277, %v3879
      %v3922 = vadd.f32 %v3278, %v3882
      %v3923 = vadd.f32 %v3279, %v3887
      %v3924 = vadd.f32 %v3280, %v3890
      %s3925 = scalar_lea.vmem %s2, 1280
      %v3926 = vld [vmem:[%s3925] sm:$0xff]
      %v3927 = vld [vmem:[%s3925 + $0x8] sm:$0xff]
      %v3928 = vld [vmem:[%s3925 + $0x10] sm:$0xff]
      %v3929 = vld [vmem:[%s3925 + $0x18] sm:$0xff]
      %v3930 = vld [vmem:[%s3925 + $0x20] sm:$0xff]
      %v3931 = vld [vmem:[%s3925 + $0x28] sm:$0xff]
      %v3932 = vld [vmem:[%s3925 + $0x30] sm:$0xff]
      %v3933 = vld [vmem:[%s3925 + $0x38] sm:$0xff]
      %v3934 = vld [vmem:[%s3925 + $0x40] sm:$0xff]
      %v3935 = vld [vmem:[%s3925 + $0x48] sm:$0xff]
      %v3936 = vld [vmem:[%s3925 + $0x50] sm:$0xff]
      %v3937 = vld [vmem:[%s3925 + $0x58] sm:$0xff]
      %v3938 = vld [vmem:[%s3925 + $0x60] sm:$0xff]
      %v3939 = vld [vmem:[%s3925 + $0x68] sm:$0xff]
      %v3940 = vld [vmem:[%s3925 + $0x70] sm:$0xff]
      %v3941 = vld [vmem:[%s3925 + $0x78] sm:$0xff]
      %v3942 = vld [vmem:[%s3925 + $0x80] sm:$0xff]
      %v3943 = vld [vmem:[%s3925 + $0x88] sm:$0xff]
      %v3944 = vld [vmem:[%s3925 + $0x90] sm:$0xff]
      %v3945 = vld [vmem:[%s3925 + $0x98] sm:$0xff]
      %v3946 = vld [vmem:[%s3925 + $0xa0] sm:$0xff]
      %v3947 = vld [vmem:[%s3925 + $0xa8] sm:$0xff]
      %v3948 = vld [vmem:[%s3925 + $0xb0] sm:$0xff]
      %v3949 = vld [vmem:[%s3925 + $0xb8] sm:$0xff]
      %v3950 = vld [vmem:[%s3925 + $0xc0] sm:$0xff]
      %v3951 = vld [vmem:[%s3925 + $0xc8] sm:$0xff]
      %v3952 = vld [vmem:[%s3925 + $0xd0] sm:$0xff]
      %v3953 = vld [vmem:[%s3925 + $0xd8] sm:$0xff]
      %v3954 = vld [vmem:[%s3925 + $0xe0] sm:$0xff]
      %v3955 = vld [vmem:[%s3925 + $0xe8] sm:$0xff]
      %v3956 = vld [vmem:[%s3925 + $0xf0] sm:$0xff]
      %v3957 = vld [vmem:[%s3925 + $0xf8] sm:$0xff]
      %v3990 = vunpack.c.l.b16 %v3926
      %v3991 = vunpack.c.h.b16 %v3926
      %v3992 = vunpack.c.l.b16 %v3927
      %v3993 = vunpack.c.h.b16 %v3927
      %v3994 = vunpack.c.l.b16 %v3928
      %v3995 = vunpack.c.h.b16 %v3928
      %v3996 = vunpack.c.l.b16 %v3929
      %v3997 = vunpack.c.h.b16 %v3929
      %v3998 = vunpack.c.l.b16 %v3930
      %v3999 = vunpack.c.h.b16 %v3930
      %v4000 = vunpack.c.l.b16 %v3931
      %v4001 = vunpack.c.h.b16 %v3931
      %v4002 = vunpack.c.l.b16 %v3932
      %v4003 = vunpack.c.h.b16 %v3932
      %v4004 = vunpack.c.l.b16 %v3933
      %v4005 = vunpack.c.h.b16 %v3933
      %v4006 = vunpack.c.l.b16 %v3934
      %v4007 = vunpack.c.h.b16 %v3934
      %v4008 = vunpack.c.l.b16 %v3935
      %v4009 = vunpack.c.h.b16 %v3935
      %v4010 = vunpack.c.l.b16 %v3936
      %v4011 = vunpack.c.h.b16 %v3936
      %v4012 = vunpack.c.l.b16 %v3937
      %v4013 = vunpack.c.h.b16 %v3937
      %v4014 = vunpack.c.l.b16 %v3938
      %v4015 = vunpack.c.h.b16 %v3938
      %v4016 = vunpack.c.l.b16 %v3939
      %v4017 = vunpack.c.h.b16 %v3939
      %v4018 = vunpack.c.l.b16 %v3940
      %v4019 = vunpack.c.h.b16 %v3940
      %v4020 = vunpack.c.l.b16 %v3941
      %v4021 = vunpack.c.h.b16 %v3941
      %v4022 = vunpack.c.l.b16 %v3942
      %v4023 = vunpack.c.h.b16 %v3942
      %v4024 = vunpack.c.l.b16 %v3943
      %v4025 = vunpack.c.h.b16 %v3943
      %v4026 = vunpack.c.l.b16 %v3944
      %v4027 = vunpack.c.h.b16 %v3944
      %v4028 = vunpack.c.l.b16 %v3945
      %v4029 = vunpack.c.h.b16 %v3945
      %v4030 = vunpack.c.l.b16 %v3946
      %v4031 = vunpack.c.h.b16 %v3946
      %v4032 = vunpack.c.l.b16 %v3947
      %v4033 = vunpack.c.h.b16 %v3947
      %v4034 = vunpack.c.l.b16 %v3948
      %v4035 = vunpack.c.h.b16 %v3948
      %v4036 = vunpack.c.l.b16 %v3949
      %v4037 = vunpack.c.h.b16 %v3949
      %v4038 = vunpack.c.l.b16 %v3950
      %v4039 = vunpack.c.h.b16 %v3950
      %v4040 = vunpack.c.l.b16 %v3951
      %v4041 = vunpack.c.h.b16 %v3951
      %v4042 = vunpack.c.l.b16 %v3952
      %v4043 = vunpack.c.h.b16 %v3952
      %v4044 = vunpack.c.l.b16 %v3953
      %v4045 = vunpack.c.h.b16 %v3953
      %v4046 = vunpack.c.l.b16 %v3954
      %v4047 = vunpack.c.h.b16 %v3954
      %v4048 = vunpack.c.l.b16 %v3955
      %v4049 = vunpack.c.h.b16 %v3955
      %v4050 = vunpack.c.l.b16 %v3956
      %v4051 = vunpack.c.h.b16 %v3956
      %v4052 = vunpack.c.l.b16 %v3957
      %v4053 = vunpack.c.h.b16 %v3957
      %v4054 = vpack.c.b16 %v3992, %v3990
      %v4055 = vpack.c.b16 %v3993, %v3991
      %v4056 = vpack.c.b16 %v3996, %v3994
      %v4057 = vpack.c.b16 %v3997, %v3995
      %v4058 = vpack.c.b16 %v4000, %v3998
      %v4059 = vpack.c.b16 %v4001, %v3999
      %v4060 = vpack.c.b16 %v4004, %v4002
      %v4061 = vpack.c.b16 %v4005, %v4003
      %v4062 = vpack.c.b16 %v4008, %v4006
      %v4063 = vpack.c.b16 %v4009, %v4007
      %v4064 = vpack.c.b16 %v4012, %v4010
      %v4065 = vpack.c.b16 %v4013, %v4011
      %v4066 = vpack.c.b16 %v4016, %v4014
      %v4067 = vpack.c.b16 %v4017, %v4015
      %v4068 = vpack.c.b16 %v4020, %v4018
      %v4069 = vpack.c.b16 %v4021, %v4019
      %v4070 = vpack.c.b16 %v4024, %v4022
      %v4071 = vpack.c.b16 %v4025, %v4023
      %v4072 = vpack.c.b16 %v4028, %v4026
      %v4073 = vpack.c.b16 %v4029, %v4027
      %v4074 = vpack.c.b16 %v4032, %v4030
      %v4075 = vpack.c.b16 %v4033, %v4031
      %v4076 = vpack.c.b16 %v4036, %v4034
      %v4077 = vpack.c.b16 %v4037, %v4035
      %v4078 = vpack.c.b16 %v4040, %v4038
      %v4079 = vpack.c.b16 %v4041, %v4039
      %v4080 = vpack.c.b16 %v4044, %v4042
      %v4081 = vpack.c.b16 %v4045, %v4043
      %v4082 = vpack.c.b16 %v4048, %v4046
      %v4083 = vpack.c.b16 %v4049, %v4047
      %v4084 = vpack.c.b16 %v4052, %v4050
      %v4085 = vpack.c.b16 %v4053, %v4051
      %4118 = vmatprep.subr.bf16.mxu0 0
      %4119 = vmatpush1.bf16.msra.mxu0 %v754
      %4120 = vmatprep.subr.bf16.mxu0 0
      %4121 = vmatpush1.bf16.msra.mxu0 %v755
      %4122 = vmatprep.subr.bf16.mxu0 0
      %4123 = vmatpush1.bf16.msra.mxu0 %v756
      %4124 = vmatprep.subr.bf16.mxu0 0
      %4125 = vmatpush1.bf16.msra.mxu0 %v757
      %4126 = vmatprep.subr.bf16.mxu0 0
      %4127 = vmatpush1.bf16.msra.mxu0 %v758
      %4128 = vmatprep.subr.bf16.mxu0 0
      %4129 = vmatpush1.bf16.msra.mxu0 %v759
      %4130 = vmatprep.subr.bf16.mxu0 0
      %4131 = vmatpush1.bf16.msra.mxu0 %v760
      %4132 = vmatprep.subr.bf16.mxu0 0
      %4133 = vmatpush1.bf16.msra.mxu0 %v761
      %4134 = vmatprep.subr.bf16.mxu0 0
      %4135 = vmatpush1.bf16.msra.mxu0 %v762
      %4136 = vmatprep.subr.bf16.mxu0 0
      %4137 = vmatpush1.bf16.msra.mxu0 %v763
      %4138 = vmatprep.subr.bf16.mxu0 0
      %4139 = vmatpush1.bf16.msra.mxu0 %v764
      %4140 = vmatprep.subr.bf16.mxu0 0
      %4141 = vmatpush1.bf16.msra.mxu0 %v765
      %4142 = vmatprep.subr.bf16.mxu0 0
      %4143 = vmatpush1.bf16.msra.mxu0 %v766
      %4144 = vmatprep.subr.bf16.mxu0 0
      %4145 = vmatpush1.bf16.msra.mxu0 %v767
      %4146 = vmatprep.subr.bf16.mxu0 0
      %4147 = vmatpush1.bf16.msra.mxu0 %v768
      %4148 = vmatprep.subr.bf16.mxu0 0
      %4149 = vmatpush1.bf16.msra.mxu0 %v769
      %4150 = vmatprep.mubr.bf16.mxu0 %v4055
      %4151 = vmatmul.mubr.bf16.gmra.mrb[0].mxu0 %v4054
      %v4152 = vpop.f32.mrb[0].mxu0
      %v4153 = vadd.f32 0.0, %v4152
      %v4154 = vpop.f32.mrb[0].mxu0
      %v4155 = vpop.f32.mrb[0].mxu0
      %v4156 = vadd.f32 0.0, %v4155
      %v4157 = vpop.f32.mrb[0].mxu0
      %4158 = vmatprep.mubr.bf16.mxu0 %v4057
      %4159 = vmatmul.mubr.bf16.gmra.mrb[0].mxu0 %v4056
      %v4160 = vpop.f32.mrb[0].mxu0
      %v4161 = vadd.f32 0.0, %v4160
      %v4162 = vpop.f32.mrb[0].mxu0
      %v4163 = vpop.f32.mrb[0].mxu0
      %v4164 = vadd.f32 0.0, %v4163
      %v4165 = vpop.f32.mrb[0].mxu0
      %4166 = vmatprep.mubr.bf16.mxu0 %v4059
      %4167 = vmatmul.mubr.bf16.gmra.mrb[0].mxu0 %v4058
      %v4168 = vpop.f32.mrb[0].mxu0
      %v4169 = vadd.f32 0.0, %v4168
      %v4170 = vpop.f32.mrb[0].mxu0
      %v4171 = vpop.f32.mrb[0].mxu0
      %v4172 = vadd.f32 0.0, %v4171
      %v4173 = vpop.f32.mrb[0].mxu0
      %4174 = vmatprep.mubr.bf16.mxu0 %v4061
      %4175 = vmatmul.mubr.bf16.gmra.mrb[0].mxu0 %v4060
      %v4176 = vpop.f32.mrb[0].mxu0
      %v4177 = vadd.f32 0.0, %v4176
      %v4178 = vpop.f32.mrb[0].mxu0
      %v4179 = vpop.f32.mrb[0].mxu0
      %v4180 = vadd.f32 0.0, %v4179
      %v4181 = vpop.f32.mrb[0].mxu0
      %4182 = vmatprep.mubr.bf16.mxu0 %v4063
      %4183 = vmatmul.mubr.bf16.gmra.mrb[0].mxu0 %v4062
      %v4184 = vpop.f32.mrb[0].mxu0
      %v4185 = vadd.f32 0.0, %v4184
      %v4186 = vpop.f32.mrb[0].mxu0
      %v4187 = vpop.f32.mrb[0].mxu0
      %v4188 = vadd.f32 0.0, %v4187
      %v4189 = vpop.f32.mrb[0].mxu0
      %4190 = vmatprep.mubr.bf16.mxu0 %v4065
      %4191 = vmatmul.mubr.bf16.gmra.mrb[0].mxu0 %v4064
      %v4192 = vpop.f32.mrb[0].mxu0
      %v4193 = vadd.f32 0.0, %v4192
      %v4194 = vpop.f32.mrb[0].mxu0
      %v4195 = vpop.f32.mrb[0].mxu0
      %v4196 = vadd.f32 0.0, %v4195
      %v4197 = vpop.f32.mrb[0].mxu0
      %4198 = vmatprep.mubr.bf16.mxu0 %v4067
      %4199 = vmatmul.mubr.bf16.gmra.mrb[0].mxu0 %v4066
      %v4200 = vpop.f32.mrb[0].mxu0
      %v4201 = vadd.f32 0.0, %v4200
      %v4202 = vpop.f32.mrb[0].mxu0
      %v4203 = vpop.f32.mrb[0].mxu0
      %v4204 = vadd.f32 0.0, %v4203
      %v4205 = vpop.f32.mrb[0].mxu0
      %4206 = vmatprep.mubr.bf16.mxu0 %v4069
      %4207 = vmatmul.mubr.bf16.gmra.mrb[0].mxu0 %v4068
      %v4208 = vpop.f32.mrb[0].mxu0
      %v4209 = vadd.f32 0.0, %v4208
      %v4210 = vpop.f32.mrb[0].mxu0
      %v4211 = vpop.f32.mrb[0].mxu0
      %v4212 = vadd.f32 0.0, %v4211
      %v4213 = vpop.f32.mrb[0].mxu0
      %4214 = vmatprep.mubr.bf16.mxu0 %v4071
      %4215 = vmatmul.mubr.bf16.gmra.mrb[0].mxu0 %v4070
      %v4216 = vpop.f32.mrb[0].mxu0
      %v4217 = vadd.f32 0.0, %v4216
      %v4218 = vpop.f32.mrb[0].mxu0
      %v4219 = vpop.f32.mrb[0].mxu0
      %v4220 = vadd.f32 0.0, %v4219
      %v4221 = vpop.f32.mrb[0].mxu0
      %4222 = vmatprep.mubr.bf16.mxu0 %v4073
      %4223 = vmatmul.mubr.bf16.gmra.mrb[0].mxu0 %v4072
      %v4224 = vpop.f32.mrb[0].mxu0
      %v4225 = vadd.f32 0.0, %v4224
      %v4226 = vpop.f32.mrb[0].mxu0
      %v4227 = vpop.f32.mrb[0].mxu0
      %v4228 = vadd.f32 0.0, %v4227
      %v4229 = vpop.f32.mrb[0].mxu0
      %4230 = vmatprep.mubr.bf16.mxu0 %v4075
      %4231 = vmatmul.mubr.bf16.gmra.mrb[0].mxu0 %v4074
      %v4232 = vpop.f32.mrb[0].mxu0
      %v4233 = vadd.f32 0.0, %v4232
      %v4234 = vpop.f32.mrb[0].mxu0
      %v4235 = vpop.f32.mrb[0].mxu0
      %v4236 = vadd.f32 0.0, %v4235
      %v4237 = vpop.f32.mrb[0].mxu0
      %4238 = vmatprep.mubr.bf16.mxu0 %v4077
      %4239 = vmatmul.mubr.bf16.gmra.mrb[0].mxu0 %v4076
      %v4240 = vpop.f32.mrb[0].mxu0
      %v4241 = vadd.f32 0.0, %v4240
      %v4242 = vpop.f32.mrb[0].mxu0
      %v4243 = vpop.f32.mrb[0].mxu0
      %v4244 = vadd.f32 0.0, %v4243
      %v4245 = vpop.f32.mrb[0].mxu0
      %4246 = vmatprep.mubr.bf16.mxu0 %v4079
      %4247 = vmatmul.mubr.bf16.gmra.mrb[0].mxu0 %v4078
      %v4248 = vpop.f32.mrb[0].mxu0
      %v4249 = vadd.f32 0.0, %v4248
      %v4250 = vpop.f32.mrb[0].mxu0
      %v4251 = vpop.f32.mrb[0].mxu0
      %v4252 = vadd.f32 0.0, %v4251
      %v4253 = vpop.f32.mrb[0].mxu0
      %4254 = vmatprep.mubr.bf16.mxu0 %v4081
      %4255 = vmatmul.mubr.bf16.gmra.mrb[0].mxu0 %v4080
      %v4256 = vpop.f32.mrb[0].mxu0
      %v4257 = vadd.f32 0.0, %v4256
      %v4258 = vpop.f32.mrb[0].mxu0
      %v4259 = vpop.f32.mrb[0].mxu0
      %v4260 = vadd.f32 0.0, %v4259
      %v4261 = vpop.f32.mrb[0].mxu0
      %4262 = vmatprep.mubr.bf16.mxu0 %v4083
      %4263 = vmatmul.mubr.bf16.gmra.mrb[0].mxu0 %v4082
      %v4264 = vpop.f32.mrb[0].mxu0
      %v4265 = vadd.f32 0.0, %v4264
      %v4266 = vpop.f32.mrb[0].mxu0
      %v4267 = vpop.f32.mrb[0].mxu0
      %v4268 = vadd.f32 0.0, %v4267
      %v4269 = vpop.f32.mrb[0].mxu0
      %4270 = vmatprep.mubr.bf16.mxu0 %v4085
      %4271 = vmatmul.mubr.bf16.gmra.mrb[0].mxu0 %v4084
      %v4272 = vpop.f32.mrb[0].mxu0
      %v4273 = vadd.f32 0.0, %v4272
      %v4274 = vpop.f32.mrb[0].mxu0
      %v4275 = vpop.f32.mrb[0].mxu0
      %v4276 = vadd.f32 0.0, %v4275
      %v4277 = vpop.f32.mrb[0].mxu0
      %4278 = vdwg.mxu0
      %v4279 = vpack.c.bf16 %v4156, %v4153
      %v4280 = vpack.c.bf16 %v4164, %v4161
      %v4281 = vpack.c.bf16 %v4172, %v4169
      %v4282 = vpack.c.bf16 %v4180, %v4177
      %v4283 = vpack.c.bf16 %v4188, %v4185
      %v4284 = vpack.c.bf16 %v4196, %v4193
      %v4285 = vpack.c.bf16 %v4204, %v4201
      %v4286 = vpack.c.bf16 %v4212, %v4209
      %v4287 = vpack.c.bf16 %v4220, %v4217
      %v4288 = vpack.c.bf16 %v4228, %v4225
      %v4289 = vpack.c.bf16 %v4236, %v4233
      %v4290 = vpack.c.bf16 %v4244, %v4241
      %v4291 = vpack.c.bf16 %v4252, %v4249
      %v4292 = vpack.c.bf16 %v4260, %v4257
      %v4293 = vpack.c.bf16 %v4268, %v4265
      %v4294 = vpack.c.bf16 %v4276, %v4273
      %s4295 = scalar_lea.vmem %s7, 160
      %v4296 = vld [vmem:[%s4295] sm:$0xf]
      %v4297 = vld [vmem:[%s4295 + $0x4] sm:$0xf]
      %v4298 = vld [vmem:[%s4295 + $0x8] sm:$0xf]
      %v4299 = vld [vmem:[%s4295 + $0xc] sm:$0xf]
      %v4300 = vld [vmem:[%s4295 + $0x10] sm:$0xf]
      %v4301 = vld [vmem:[%s4295 + $0x14] sm:$0xf]
      %v4302 = vld [vmem:[%s4295 + $0x18] sm:$0xf]
      %v4303 = vld [vmem:[%s4295 + $0x1c] sm:$0xf]
      %v4312 = vunpack.c.l.b16 %v4296
      %v4313 = vunpack.c.l.b16 %v4297
      %v4314 = vunpack.c.l.b16 %v4298
      %v4315 = vunpack.c.l.b16 %v4299
      %v4316 = vunpack.c.l.b16 %v4300
      %v4317 = vunpack.c.l.b16 %v4301
      %v4318 = vunpack.c.l.b16 %v4302
      %v4319 = vunpack.c.l.b16 %v4303
      %v4320 = vpack.c.b16 %v4313, %v4312
      %v4321 = vpack.c.b16 %v4315, %v4314
      %v4322 = vpack.c.b16 %v4317, %v4316
      %v4323 = vpack.c.b16 %v4319, %v4318
      %v4329 = vsel %vm1550, %v4279, 0
      %v4332 = vsel %vm1550, %v4280, 0
      %v4335 = vsel %vm1550, %v4281, 0
      %v4338 = vsel %vm1550, %v4282, 0
      %v4341 = vsel %vm1550, %v4283, 0
      %v4344 = vsel %vm1550, %v4284, 0
      %v4347 = vsel %vm1550, %v4285, 0
      %v4350 = vsel %vm1550, %v4286, 0
      %v4353 = vsel %vm1550, %v4287, 0
      %v4356 = vsel %vm1550, %v4288, 0
      %v4359 = vsel %vm1550, %v4289, 0
      %v4362 = vsel %vm1550, %v4290, 0
      %v4365 = vsel %vm1550, %v4291, 0
      %v4368 = vsel %vm1550, %v4292, 0
      %v4371 = vsel %vm1550, %v4293, 0
      %v4374 = vsel %vm1550, %v4294, 0
      %4376 = vmatprep.subr.bf16.mxu0 0
      %4377 = vmatpush1.bf16.msra.mxu0 %v4320
      %4378 = vmatprep.subr.bf16.mxu0 0
      %4379 = vmatpush1.bf16.msra.mxu0 %v4321
      %4380 = vmatprep.subr.bf16.mxu0 0
      %4381 = vmatpush1.bf16.msra.mxu0 %v4322
      %4382 = vmatprep.subr.bf16.mxu0 0
      %4383 = vmatpush1.bf16.msra.mxu0 %v4323
      %4384 = vmatprep.subr.bf16.mxu0 0
      %4385 = vmatpush1.bf16.msra.mxu0 0
      %4386 = vmatprep.subr.bf16.mxu0 0
      %4387 = vmatpush1.bf16.msra.mxu0 0
      %4388 = vmatprep.subr.bf16.mxu0 0
      %4389 = vmatpush1.bf16.msra.mxu0 0
      %4390 = vmatprep.subr.bf16.mxu0 0
      %4391 = vmatpush1.bf16.msra.mxu0 0
      %4392 = vmatprep.subr.bf16.mxu0 0
      %4393 = vmatpush1.bf16.msra.mxu0 0
      %4394 = vmatprep.subr.bf16.mxu0 0
      %4395 = vmatpush1.bf16.msra.mxu0 0
      %4396 = vmatprep.subr.bf16.mxu0 0
      %4397 = vmatpush1.bf16.msra.mxu0 0
      %4398 = vmatprep.subr.bf16.mxu0 0
      %4399 = vmatpush1.bf16.msra.mxu0 0
      %4400 = vmatprep.subr.bf16.mxu0 0
      %4401 = vmatpush1.bf16.msra.mxu0 0
      %4402 = vmatprep.subr.bf16.mxu0 0
      %4403 = vmatpush1.bf16.msra.mxu0 0
      %4404 = vmatprep.subr.bf16.mxu0 0
      %4405 = vmatpush1.bf16.msra.mxu0 0
      %4406 = vmatprep.subr.bf16.mxu0 0
      %4407 = vmatpush1.bf16.msra.mxu0 0
      %4408 = vmatprep.mubr.bf16.mxu0 0
      %4409 = vmatmul.mubr.bf16.gmra.mrb[0].mxu0 %v4329
      %v4410 = vpop.f32.mrb[0].mxu0
      %v4411 = vadd.f32 0.0, %v4410
      %v4412 = vpop.f32.mrb[0].mxu0
      %v4413 = vpop.f32.mrb[0].mxu0
      %v4414 = vadd.f32 0.0, %v4413
      %v4415 = vpop.f32.mrb[0].mxu0
      %4416 = vmatprep.mubr.bf16.mxu0 0
      %4417 = vmatmul.mubr.bf16.gmra.mrb[0].mxu0 %v4332
      %v4418 = vpop.f32.mrb[0].mxu0
      %v4419 = vadd.f32 0.0, %v4418
      %v4420 = vpop.f32.mrb[0].mxu0
      %v4421 = vpop.f32.mrb[0].mxu0
      %v4422 = vadd.f32 0.0, %v4421
      %v4423 = vpop.f32.mrb[0].mxu0
      %4424 = vmatprep.mubr.bf16.mxu0 0
      %4425 = vmatmul.mubr.bf16.gmra.mrb[0].mxu0 %v4335
      %v4426 = vpop.f32.mrb[0].mxu0
      %v4427 = vadd.f32 0.0, %v4426
      %v4428 = vpop.f32.mrb[0].mxu0
      %v4429 = vpop.f32.mrb[0].mxu0
      %v4430 = vadd.f32 0.0, %v4429
      %v4431 = vpop.f32.mrb[0].mxu0
      %4432 = vmatprep.mubr.bf16.mxu0 0
      %4433 = vmatmul.mubr.bf16.gmra.mrb[0].mxu0 %v4338
      %v4434 = vpop.f32.mrb[0].mxu0
      %v4435 = vadd.f32 0.0, %v4434
      %v4436 = vpop.f32.mrb[0].mxu0
      %v4437 = vpop.f32.mrb[0].mxu0
      %v4438 = vadd.f32 0.0, %v4437
      %v4439 = vpop.f32.mrb[0].mxu0
      %4440 = vmatprep.mubr.bf16.mxu0 0
      %4441 = vmatmul.mubr.bf16.gmra.mrb[0].mxu0 %v4341
      %v4442 = vpop.f32.mrb[0].mxu0
      %v4443 = vadd.f32 0.0, %v4442
      %v4444 = vpop.f32.mrb[0].mxu0
      %v4445 = vpop.f32.mrb[0].mxu0
      %v4446 = vadd.f32 0.0, %v4445
      %v4447 = vpop.f32.mrb[0].mxu0
      %4448 = vmatprep.mubr.bf16.mxu0 0
      %4449 = vmatmul.mubr.bf16.gmra.mrb[0].mxu0 %v4344
      %v4450 = vpop.f32.mrb[0].mxu0
      %v4451 = vadd.f32 0.0, %v4450
      %v4452 = vpop.f32.mrb[0].mxu0
      %v4453 = vpop.f32.mrb[0].mxu0
      %v4454 = vadd.f32 0.0, %v4453
      %v4455 = vpop.f32.mrb[0].mxu0
      %4456 = vmatprep.mubr.bf16.mxu0 0
      %4457 = vmatmul.mubr.bf16.gmra.mrb[0].mxu0 %v4347
      %v4458 = vpop.f32.mrb[0].mxu0
      %v4459 = vadd.f32 0.0, %v4458
      %v4460 = vpop.f32.mrb[0].mxu0
      %v4461 = vpop.f32.mrb[0].mxu0
      %v4462 = vadd.f32 0.0, %v4461
      %v4463 = vpop.f32.mrb[0].mxu0
      %4464 = vmatprep.mubr.bf16.mxu0 0
      %4465 = vmatmul.mubr.bf16.gmra.mrb[0].mxu0 %v4350
      %v4466 = vpop.f32.mrb[0].mxu0
      %v4467 = vadd.f32 0.0, %v4466
      %v4468 = vpop.f32.mrb[0].mxu0
      %v4469 = vpop.f32.mrb[0].mxu0
      %v4470 = vadd.f32 0.0, %v4469
      %v4471 = vpop.f32.mrb[0].mxu0
      %4472 = vmatprep.mubr.bf16.mxu0 0
      %4473 = vmatmul.mubr.bf16.gmra.mrb[0].mxu0 %v4353
      %v4474 = vpop.f32.mrb[0].mxu0
      %v4475 = vadd.f32 0.0, %v4474
      %v4476 = vpop.f32.mrb[0].mxu0
      %v4477 = vpop.f32.mrb[0].mxu0
      %v4478 = vadd.f32 0.0, %v4477
      %v4479 = vpop.f32.mrb[0].mxu0
      %4480 = vmatprep.mubr.bf16.mxu0 0
      %4481 = vmatmul.mubr.bf16.gmra.mrb[0].mxu0 %v4356
      %v4482 = vpop.f32.mrb[0].mxu0
      %v4483 = vadd.f32 0.0, %v4482
      %v4484 = vpop.f32.mrb[0].mxu0
      %v4485 = vpop.f32.mrb[0].mxu0
      %v4486 = vadd.f32 0.0, %v4485
      %v4487 = vpop.f32.mrb[0].mxu0
      %4488 = vmatprep.mubr.bf16.mxu0 0
      %4489 = vmatmul.mubr.bf16.gmra.mrb[0].mxu0 %v4359
      %v4490 = vpop.f32.mrb[0].mxu0
      %v4491 = vadd.f32 0.0, %v4490
      %v4492 = vpop.f32.mrb[0].mxu0
      %v4493 = vpop.f32.mrb[0].mxu0
      %v4494 = vadd.f32 0.0, %v4493
      %v4495 = vpop.f32.mrb[0].mxu0
      %4496 = vmatprep.mubr.bf16.mxu0 0
      %4497 = vmatmul.mubr.bf16.gmra.mrb[0].mxu0 %v4362
      %v4498 = vpop.f32.mrb[0].mxu0
      %v4499 = vadd.f32 0.0, %v4498
      %v4500 = vpop.f32.mrb[0].mxu0
      %v4501 = vpop.f32.mrb[0].mxu0
      %v4502 = vadd.f32 0.0, %v4501
      %v4503 = vpop.f32.mrb[0].mxu0
      %4504 = vmatprep.mubr.bf16.mxu0 0
      %4505 = vmatmul.mubr.bf16.gmra.mrb[0].mxu0 %v4365
      %v4506 = vpop.f32.mrb[0].mxu0
      %v4507 = vadd.f32 0.0, %v4506
      %v4508 = vpop.f32.mrb[0].mxu0
      %v4509 = vpop.f32.mrb[0].mxu0
      %v4510 = vadd.f32 0.0, %v4509
      %v4511 = vpop.f32.mrb[0].mxu0
      %4512 = vmatprep.mubr.bf16.mxu0 0
      %4513 = vmatmul.mubr.bf16.gmra.mrb[0].mxu0 %v4368
      %v4514 = vpop.f32.mrb[0].mxu0
      %v4515 = vadd.f32 0.0, %v4514
      %v4516 = vpop.f32.mrb[0].mxu0
      %v4517 = vpop.f32.mrb[0].mxu0
      %v4518 = vadd.f32 0.0, %v4517
      %v4519 = vpop.f32.mrb[0].mxu0
      %4520 = vmatprep.mubr.bf16.mxu0 0
      %4521 = vmatmul.mubr.bf16.gmra.mrb[0].mxu0 %v4371
      %v4522 = vpop.f32.mrb[0].mxu0
      %v4523 = vadd.f32 0.0, %v4522
      %v4524 = vpop.f32.mrb[0].mxu0
      %v4525 = vpop.f32.mrb[0].mxu0
      %v4526 = vadd.f32 0.0, %v4525
      %v4527 = vpop.f32.mrb[0].mxu0
      %4528 = vmatprep.mubr.bf16.mxu0 0
      %4529 = vmatmul.mubr.bf16.gmra.mrb[0].mxu0 %v4374
      %v4530 = vpop.f32.mrb[0].mxu0
      %v4531 = vadd.f32 0.0, %v4530
      %v4532 = vpop.f32.mrb[0].mxu0
      %v4533 = vpop.f32.mrb[0].mxu0
      %v4534 = vadd.f32 0.0, %v4533
      %v4535 = vpop.f32.mrb[0].mxu0
      %4536 = vdwg.mxu0
      %v4537 = vadd.f32 %v3893, %v4411
      %v4538 = vadd.f32 %v3894, %v4414
      %v4539 = vadd.f32 %v3895, %v4419
      %v4540 = vadd.f32 %v3896, %v4422
      %v4541 = vadd.f32 %v3897, %v4427
      %v4542 = vadd.f32 %v3898, %v4430
      %v4543 = vadd.f32 %v3899, %v4435
      %v4544 = vadd.f32 %v3900, %v4438
      %v4545 = vadd.f32 %v3901, %v4443
      %v4546 = vadd.f32 %v3902, %v4446
      %v4547 = vadd.f32 %v3903, %v4451
      %v4548 = vadd.f32 %v3904, %v4454
      %v4549 = vadd.f32 %v3905, %v4459
      %v4550 = vadd.f32 %v3906, %v4462
      %v4551 = vadd.f32 %v3907, %v4467
      %v4552 = vadd.f32 %v3908, %v4470
      %v4553 = vadd.f32 %v3909, %v4475
      %v4554 = vadd.f32 %v3910, %v4478
      %v4555 = vadd.f32 %v3911, %v4483
      %v4556 = vadd.f32 %v3912, %v4486
      %v4557 = vadd.f32 %v3913, %v4491
      %v4558 = vadd.f32 %v3914, %v4494
      %v4559 = vadd.f32 %v3915, %v4499
      %v4560 = vadd.f32 %v3916, %v4502
      %v4561 = vadd.f32 %v3917, %v4507
      %v4562 = vadd.f32 %v3918, %v4510
      %v4563 = vadd.f32 %v3919, %v4515
      %v4564 = vadd.f32 %v3920, %v4518
      %v4565 = vadd.f32 %v3921, %v4523
      %v4566 = vadd.f32 %v3922, %v4526
      %v4567 = vadd.f32 %v3923, %v4531
      %v4568 = vadd.f32 %v3924, %v4534
      %s4569 = scalar_lea.vmem %s2, 1536
      %v4570 = vld [vmem:[%s4569] sm:$0xff]
      %v4571 = vld [vmem:[%s4569 + $0x8] sm:$0xff]
      %v4572 = vld [vmem:[%s4569 + $0x10] sm:$0xff]
      %v4573 = vld [vmem:[%s4569 + $0x18] sm:$0xff]
      %v4574 = vld [vmem:[%s4569 + $0x20] sm:$0xff]
      %v4575 = vld [vmem:[%s4569 + $0x28] sm:$0xff]
      %v4576 = vld [vmem:[%s4569 + $0x30] sm:$0xff]
      %v4577 = vld [vmem:[%s4569 + $0x38] sm:$0xff]
      %v4578 = vld [vmem:[%s4569 + $0x40] sm:$0xff]
      %v4579 = vld [vmem:[%s4569 + $0x48] sm:$0xff]
      %v4580 = vld [vmem:[%s4569 + $0x50] sm:$0xff]
      %v4581 = vld [vmem:[%s4569 + $0x58] sm:$0xff]
      %v4582 = vld [vmem:[%s4569 + $0x60] sm:$0xff]
      %v4583 = vld [vmem:[%s4569 + $0x68] sm:$0xff]
      %v4584 = vld [vmem:[%s4569 + $0x70] sm:$0xff]
      %v4585 = vld [vmem:[%s4569 + $0x78] sm:$0xff]
      %v4586 = vld [vmem:[%s4569 + $0x80] sm:$0xff]
      %v4587 = vld [vmem:[%s4569 + $0x88] sm:$0xff]
      %v4588 = vld [vmem:[%s4569 + $0x90] sm:$0xff]
      %v4589 = vld [vmem:[%s4569 + $0x98] sm:$0xff]
      %v4590 = vld [vmem:[%s4569 + $0xa0] sm:$0xff]
      %v4591 = vld [vmem:[%s4569 + $0xa8] sm:$0xff]
      %v4592 = vld [vmem:[%s4569 + $0xb0] sm:$0xff]
      %v4593 = vld [vmem:[%s4569 + $0xb8] sm:$0xff]
      %v4594 = vld [vmem:[%s4569 + $0xc0] sm:$0xff]
      %v4595 = vld [vmem:[%s4569 + $0xc8] sm:$0xff]
      %v4596 = vld [vmem:[%s4569 + $0xd0] sm:$0xff]
      %v4597 = vld [vmem:[%s4569 + $0xd8] sm:$0xff]
      %v4598 = vld [vmem:[%s4569 + $0xe0] sm:$0xff]
      %v4599 = vld [vmem:[%s4569 + $0xe8] sm:$0xff]
      %v4600 = vld [vmem:[%s4569 + $0xf0] sm:$0xff]
      %v4601 = vld [vmem:[%s4569 + $0xf8] sm:$0xff]
      %v4634 = vunpack.c.l.b16 %v4570
      %v4635 = vunpack.c.h.b16 %v4570
      %v4636 = vunpack.c.l.b16 %v4571
      %v4637 = vunpack.c.h.b16 %v4571
      %v4638 = vunpack.c.l.b16 %v4572
      %v4639 = vunpack.c.h.b16 %v4572
      %v4640 = vunpack.c.l.b16 %v4573
      %v4641 = vunpack.c.h.b16 %v4573
      %v4642 = vunpack.c.l.b16 %v4574
      %v4643 = vunpack.c.h.b16 %v4574
      %v4644 = vunpack.c.l.b16 %v4575
      %v4645 = vunpack.c.h.b16 %v4575
      %v4646 = vunpack.c.l.b16 %v4576
      %v4647 = vunpack.c.h.b16 %v4576
      %v4648 = vunpack.c.l.b16 %v4577
      %v4649 = vunpack.c.h.b16 %v4577
      %v4650 = vunpack.c.l.b16 %v4578
      %v4651 = vunpack.c.h.b16 %v4578
      %v4652 = vunpack.c.l.b16 %v4579
      %v4653 = vunpack.c.h.b16 %v4579
      %v4654 = vunpack.c.l.b16 %v4580
      %v4655 = vunpack.c.h.b16 %v4580
      %v4656 = vunpack.c.l.b16 %v4581
      %v4657 = vunpack.c.h.b16 %v4581
      %v4658 = vunpack.c.l.b16 %v4582
      %v4659 = vunpack.c.h.b16 %v4582
      %v4660 = vunpack.c.l.b16 %v4583
      %v4661 = vunpack.c.h.b16 %v4583
      %v4662 = vunpack.c.l.b16 %v4584
      %v4663 = vunpack.c.h.b16 %v4584
      %v4664 = vunpack.c.l.b16 %v4585
      %v4665 = vunpack.c.h.b16 %v4585
      %v4666 = vunpack.c.l.b16 %v4586
      %v4667 = vunpack.c.h.b16 %v4586
      %v4668 = vunpack.c.l.b16 %v4587
      %v4669 = vunpack.c.h.b16 %v4587
      %v4670 = vunpack.c.l.b16 %v4588
      %v4671 = vunpack.c.h.b16 %v4588
      %v4672 = vunpack.c.l.b16 %v4589
      %v4673 = vunpack.c.h.b16 %v4589
      %v4674 = vunpack.c.l.b16 %v4590
      %v4675 = vunpack.c.h.b16 %v4590
      %v4676 = vunpack.c.l.b16 %v4591
      %v4677 = vunpack.c.h.b16 %v4591
      %v4678 = vunpack.c.l.b16 %v4592
      %v4679 = vunpack.c.h.b16 %v4592
      %v4680 = vunpack.c.l.b16 %v4593
      %v4681 = vunpack.c.h.b16 %v4593
      %v4682 = vunpack.c.l.b16 %v4594
      %v4683 = vunpack.c.h.b16 %v4594
      %v4684 = vunpack.c.l.b16 %v4595
      %v4685 = vunpack.c.h.b16 %v4595
      %v4686 = vunpack.c.l.b16 %v4596
      %v4687 = vunpack.c.h.b16 %v4596
      %v4688 = vunpack.c.l.b16 %v4597
      %v4689 = vunpack.c.h.b16 %v4597
      %v4690 = vunpack.c.l.b16 %v4598
      %v4691 = vunpack.c.h.b16 %v4598
      %v4692 = vunpack.c.l.b16 %v4599
      %v4693 = vunpack.c.h.b16 %v4599
      %v4694 = vunpack.c.l.b16 %v4600
      %v4695 = vunpack.c.h.b16 %v4600
      %v4696 = vunpack.c.l.b16 %v4601
      %v4697 = vunpack.c.h.b16 %v4601
      %v4698 = vpack.c.b16 %v4636, %v4634
      %v4699 = vpack.c.b16 %v4637, %v4635
      %v4700 = vpack.c.b16 %v4640, %v4638
      %v4701 = vpack.c.b16 %v4641, %v4639
      %v4702 = vpack.c.b16 %v4644, %v4642
      %v4703 = vpack.c.b16 %v4645, %v4643
      %v4704 = vpack.c.b16 %v4648, %v4646
      %v4705 = vpack.c.b16 %v4649, %v4647
      %v4706 = vpack.c.b16 %v4652, %v4650
      %v4707 = vpack.c.b16 %v4653, %v4651
      %v4708 = vpack.c.b16 %v4656, %v4654
      %v4709 = vpack.c.b16 %v4657, %v4655
      %v4710 = vpack.c.b16 %v4660, %v4658
      %v4711 = vpack.c.b16 %v4661, %v4659
      %v4712 = vpack.c.b16 %v4664, %v4662
      %v4713 = vpack.c.b16 %v4665, %v4663
      %v4714 = vpack.c.b16 %v4668, %v4666
      %v4715 = vpack.c.b16 %v4669, %v4667
      %v4716 = vpack.c.b16 %v4672, %v4670
      %v4717 = vpack.c.b16 %v4673, %v4671
      %v4718 = vpack.c.b16 %v4676, %v4674
      %v4719 = vpack.c.b16 %v4677, %v4675
      %v4720 = vpack.c.b16 %v4680, %v4678
      %v4721 = vpack.c.b16 %v4681, %v4679
      %v4722 = vpack.c.b16 %v4684, %v4682
      %v4723 = vpack.c.b16 %v4685, %v4683
      %v4724 = vpack.c.b16 %v4688, %v4686
      %v4725 = vpack.c.b16 %v4689, %v4687
      %v4726 = vpack.c.b16 %v4692, %v4690
      %v4727 = vpack.c.b16 %v4693, %v4691
      %v4728 = vpack.c.b16 %v4696, %v4694
      %v4729 = vpack.c.b16 %v4697, %v4695
      %4762 = vmatprep.subr.bf16.mxu0 0
      %4763 = vmatpush1.bf16.msra.mxu0 %v754
      %4764 = vmatprep.subr.bf16.mxu0 0
      %4765 = vmatpush1.bf16.msra.mxu0 %v755
      %4766 = vmatprep.subr.bf16.mxu0 0
      %4767 = vmatpush1.bf16.msra.mxu0 %v756
      %4768 = vmatprep.subr.bf16.mxu0 0
      %4769 = vmatpush1.bf16.msra.mxu0 %v757
      %4770 = vmatprep.subr.bf16.mxu0 0
      %4771 = vmatpush1.bf16.msra.mxu0 %v758
      %4772 = vmatprep.subr.bf16.mxu0 0
      %4773 = vmatpush1.bf16.msra.mxu0 %v759
      %4774 = vmatprep.subr.bf16.mxu0 0
      %4775 = vmatpush1.bf16.msra.mxu0 %v760
      %4776 = vmatprep.subr.bf16.mxu0 0
      %4777 = vmatpush1.bf16.msra.mxu0 %v761
      %4778 = vmatprep.subr.bf16.mxu0 0
      %4779 = vmatpush1.bf16.msra.mxu0 %v762
      %4780 = vmatprep.subr.bf16.mxu0 0
      %4781 = vmatpush1.bf16.msra.mxu0 %v763
      %4782 = vmatprep.subr.bf16.mxu0 0
      %4783 = vmatpush1.bf16.msra.mxu0 %v764
      %4784 = vmatprep.subr.bf16.mxu0 0
      %4785 = vmatpush1.bf16.msra.mxu0 %v765
      %4786 = vmatprep.subr.bf16.mxu0 0
      %4787 = vmatpush1.bf16.msra.mxu0 %v766
      %4788 = vmatprep.subr.bf16.mxu0 0
      %4789 = vmatpush1.bf16.msra.mxu0 %v767
      %4790 = vmatprep.subr.bf16.mxu0 0
      %4791 = vmatpush1.bf16.msra.mxu0 %v768
      %4792 = vmatprep.subr.bf16.mxu0 0
      %4793 = vmatpush1.bf16.msra.mxu0 %v769
      %4794 = vmatprep.mubr.bf16.mxu0 %v4699
      %4795 = vmatmul.mubr.bf16.gmra.mrb[0].mxu0 %v4698
      %v4796 = vpop.f32.mrb[0].mxu0
      %v4797 = vadd.f32 0.0, %v4796
      %v4798 = vpop.f32.mrb[0].mxu0
      %v4799 = vpop.f32.mrb[0].mxu0
      %v4800 = vadd.f32 0.0, %v4799
      %v4801 = vpop.f32.mrb[0].mxu0
      %4802 = vmatprep.mubr.bf16.mxu0 %v4701
      %4803 = vmatmul.mubr.bf16.gmra.mrb[0].mxu0 %v4700
      %v4804 = vpop.f32.mrb[0].mxu0
      %v4805 = vadd.f32 0.0, %v4804
      %v4806 = vpop.f32.mrb[0].mxu0
      %v4807 = vpop.f32.mrb[0].mxu0
      %v4808 = vadd.f32 0.0, %v4807
      %v4809 = vpop.f32.mrb[0].mxu0
      %4810 = vmatprep.mubr.bf16.mxu0 %v4703
      %4811 = vmatmul.mubr.bf16.gmra.mrb[0].mxu0 %v4702
      %v4812 = vpop.f32.mrb[0].mxu0
      %v4813 = vadd.f32 0.0, %v4812
      %v4814 = vpop.f32.mrb[0].mxu0
      %v4815 = vpop.f32.mrb[0].mxu0
      %v4816 = vadd.f32 0.0, %v4815
      %v4817 = vpop.f32.mrb[0].mxu0
      %4818 = vmatprep.mubr.bf16.mxu0 %v4705
      %4819 = vmatmul.mubr.bf16.gmra.mrb[0].mxu0 %v4704
      %v4820 = vpop.f32.mrb[0].mxu0
      %v4821 = vadd.f32 0.0, %v4820
      %v4822 = vpop.f32.mrb[0].mxu0
      %v4823 = vpop.f32.mrb[0].mxu0
      %v4824 = vadd.f32 0.0, %v4823
      %v4825 = vpop.f32.mrb[0].mxu0
      %4826 = vmatprep.mubr.bf16.mxu0 %v4707
      %4827 = vmatmul.mubr.bf16.gmra.mrb[0].mxu0 %v4706
      %v4828 = vpop.f32.mrb[0].mxu0
      %v4829 = vadd.f32 0.0, %v4828
      %v4830 = vpop.f32.mrb[0].mxu0
      %v4831 = vpop.f32.mrb[0].mxu0
      %v4832 = vadd.f32 0.0, %v4831
      %v4833 = vpop.f32.mrb[0].mxu0
      %4834 = vmatprep.mubr.bf16.mxu0 %v4709
      %4835 = vmatmul.mubr.bf16.gmra.mrb[0].mxu0 %v4708
      %v4836 = vpop.f32.mrb[0].mxu0
      %v4837 = vadd.f32 0.0, %v4836
      %v4838 = vpop.f32.mrb[0].mxu0
      %v4839 = vpop.f32.mrb[0].mxu0
      %v4840 = vadd.f32 0.0, %v4839
      %v4841 = vpop.f32.mrb[0].mxu0
      %4842 = vmatprep.mubr.bf16.mxu0 %v4711
      %4843 = vmatmul.mubr.bf16.gmra.mrb[0].mxu0 %v4710
      %v4844 = vpop.f32.mrb[0].mxu0
      %v4845 = vadd.f32 0.0, %v4844
      %v4846 = vpop.f32.mrb[0].mxu0
      %v4847 = vpop.f32.mrb[0].mxu0
      %v4848 = vadd.f32 0.0, %v4847
      %v4849 = vpop.f32.mrb[0].mxu0
      %4850 = vmatprep.mubr.bf16.mxu0 %v4713
      %4851 = vmatmul.mubr.bf16.gmra.mrb[0].mxu0 %v4712
      %v4852 = vpop.f32.mrb[0].mxu0
      %v4853 = vadd.f32 0.0, %v4852
      %v4854 = vpop.f32.mrb[0].mxu0
      %v4855 = vpop.f32.mrb[0].mxu0
      %v4856 = vadd.f32 0.0, %v4855
      %v4857 = vpop.f32.mrb[0].mxu0
      %4858 = vmatprep.mubr.bf16.mxu0 %v4715
      %4859 = vmatmul.mubr.bf16.gmra.mrb[0].mxu0 %v4714
      %v4860 = vpop.f32.mrb[0].mxu0
      %v4861 = vadd.f32 0.0, %v4860
      %v4862 = vpop.f32.mrb[0].mxu0
      %v4863 = vpop.f32.mrb[0].mxu0
      %v4864 = vadd.f32 0.0, %v4863
      %v4865 = vpop.f32.mrb[0].mxu0
      %4866 = vmatprep.mubr.bf16.mxu0 %v4717
      %4867 = vmatmul.mubr.bf16.gmra.mrb[0].mxu0 %v4716
      %v4868 = vpop.f32.mrb[0].mxu0
      %v4869 = vadd.f32 0.0, %v4868
      %v4870 = vpop.f32.mrb[0].mxu0
      %v4871 = vpop.f32.mrb[0].mxu0
      %v4872 = vadd.f32 0.0, %v4871
      %v4873 = vpop.f32.mrb[0].mxu0
      %4874 = vmatprep.mubr.bf16.mxu0 %v4719
      %4875 = vmatmul.mubr.bf16.gmra.mrb[0].mxu0 %v4718
      %v4876 = vpop.f32.mrb[0].mxu0
      %v4877 = vadd.f32 0.0, %v4876
      %v4878 = vpop.f32.mrb[0].mxu0
      %v4879 = vpop.f32.mrb[0].mxu0
      %v4880 = vadd.f32 0.0, %v4879
      %v4881 = vpop.f32.mrb[0].mxu0
      %4882 = vmatprep.mubr.bf16.mxu0 %v4721
      %4883 = vmatmul.mubr.bf16.gmra.mrb[0].mxu0 %v4720
      %v4884 = vpop.f32.mrb[0].mxu0
      %v4885 = vadd.f32 0.0, %v4884
      %v4886 = vpop.f32.mrb[0].mxu0
      %v4887 = vpop.f32.mrb[0].mxu0
      %v4888 = vadd.f32 0.0, %v4887
      %v4889 = vpop.f32.mrb[0].mxu0
      %4890 = vmatprep.mubr.bf16.mxu0 %v4723
      %4891 = vmatmul.mubr.bf16.gmra.mrb[0].mxu0 %v4722
      %v4892 = vpop.f32.mrb[0].mxu0
      %v4893 = vadd.f32 0.0, %v4892
      %v4894 = vpop.f32.mrb[0].mxu0
      %v4895 = vpop.f32.mrb[0].mxu0
      %v4896 = vadd.f32 0.0, %v4895
      %v4897 = vpop.f32.mrb[0].mxu0
      %4898 = vmatprep.mubr.bf16.mxu0 %v4725
      %4899 = vmatmul.mubr.bf16.gmra.mrb[0].mxu0 %v4724
      %v4900 = vpop.f32.mrb[0].mxu0
      %v4901 = vadd.f32 0.0, %v4900
      %v4902 = vpop.f32.mrb[0].mxu0
      %v4903 = vpop.f32.mrb[0].mxu0
      %v4904 = vadd.f32 0.0, %v4903
      %v4905 = vpop.f32.mrb[0].mxu0
      %4906 = vmatprep.mubr.bf16.mxu0 %v4727
      %4907 = vmatmul.mubr.bf16.gmra.mrb[0].mxu0 %v4726
      %v4908 = vpop.f32.mrb[0].mxu0
      %v4909 = vadd.f32 0.0, %v4908
      %v4910 = vpop.f32.mrb[0].mxu0
      %v4911 = vpop.f32.mrb[0].mxu0
      %v4912 = vadd.f32 0.0, %v4911
      %v4913 = vpop.f32.mrb[0].mxu0
      %4914 = vmatprep.mubr.bf16.mxu0 %v4729
      %4915 = vmatmul.mubr.bf16.gmra.mrb[0].mxu0 %v4728
      %v4916 = vpop.f32.mrb[0].mxu0
      %v4917 = vadd.f32 0.0, %v4916
      %v4918 = vpop.f32.mrb[0].mxu0
      %v4919 = vpop.f32.mrb[0].mxu0
      %v4920 = vadd.f32 0.0, %v4919
      %v4921 = vpop.f32.mrb[0].mxu0
      %4922 = vdwg.mxu0
      %v4923 = vpack.c.bf16 %v4800, %v4797
      %v4924 = vpack.c.bf16 %v4808, %v4805
      %v4925 = vpack.c.bf16 %v4816, %v4813
      %v4926 = vpack.c.bf16 %v4824, %v4821
      %v4927 = vpack.c.bf16 %v4832, %v4829
      %v4928 = vpack.c.bf16 %v4840, %v4837
      %v4929 = vpack.c.bf16 %v4848, %v4845
      %v4930 = vpack.c.bf16 %v4856, %v4853
      %v4931 = vpack.c.bf16 %v4864, %v4861
      %v4932 = vpack.c.bf16 %v4872, %v4869
      %v4933 = vpack.c.bf16 %v4880, %v4877
      %v4934 = vpack.c.bf16 %v4888, %v4885
      %v4935 = vpack.c.bf16 %v4896, %v4893
      %v4936 = vpack.c.bf16 %v4904, %v4901
      %v4937 = vpack.c.bf16 %v4912, %v4909
      %v4938 = vpack.c.bf16 %v4920, %v4917
      %s4939 = scalar_lea.vmem %s7, 192
      %v4940 = vld [vmem:[%s4939] sm:$0xf]
      %v4941 = vld [vmem:[%s4939 + $0x4] sm:$0xf]
      %v4942 = vld [vmem:[%s4939 + $0x8] sm:$0xf]
      %v4943 = vld [vmem:[%s4939 + $0xc] sm:$0xf]
      %v4944 = vld [vmem:[%s4939 + $0x10] sm:$0xf]
      %v4945 = vld [vmem:[%s4939 + $0x14] sm:$0xf]
      %v4946 = vld [vmem:[%s4939 + $0x18] sm:$0xf]
      %v4947 = vld [vmem:[%s4939 + $0x1c] sm:$0xf]
      %v4956 = vunpack.c.l.b16 %v4940
      %v4957 = vunpack.c.l.b16 %v4941
      %v4958 = vunpack.c.l.b16 %v4942
      %v4959 = vunpack.c.l.b16 %v4943
      %v4960 = vunpack.c.l.b16 %v4944
      %v4961 = vunpack.c.l.b16 %v4945
      %v4962 = vunpack.c.l.b16 %v4946
      %v4963 = vunpack.c.l.b16 %v4947
      %v4964 = vpack.c.b16 %v4957, %v4956
      %v4965 = vpack.c.b16 %v4959, %v4958
      %v4966 = vpack.c.b16 %v4961, %v4960
      %v4967 = vpack.c.b16 %v4963, %v4962
      %v4973 = vsel %vm1550, %v4923, 0
      %v4976 = vsel %vm1550, %v4924, 0
      %v4979 = vsel %vm1550, %v4925, 0
      %v4982 = vsel %vm1550, %v4926, 0
      %v4985 = vsel %vm1550, %v4927, 0
      %v4988 = vsel %vm1550, %v4928, 0
      %v4991 = vsel %vm1550, %v4929, 0
      %v4994 = vsel %vm1550, %v4930, 0
      %v4997 = vsel %vm1550, %v4931, 0
      %v5000 = vsel %vm1550, %v4932, 0
      %v5003 = vsel %vm1550, %v4933, 0
      %v5006 = vsel %vm1550, %v4934, 0
      %v5009 = vsel %vm1550, %v4935, 0
      %v5012 = vsel %vm1550, %v4936, 0
      %v5015 = vsel %vm1550, %v4937, 0
      %v5018 = vsel %vm1550, %v4938, 0
      %5020 = vmatprep.subr.bf16.mxu0 0
      %5021 = vmatpush1.bf16.msra.mxu0 %v4964
      %5022 = vmatprep.subr.bf16.mxu0 0
      %5023 = vmatpush1.bf16.msra.mxu0 %v4965
      %5024 = vmatprep.subr.bf16.mxu0 0
      %5025 = vmatpush1.bf16.msra.mxu0 %v4966
      %5026 = vmatprep.subr.bf16.mxu0 0
      %5027 = vmatpush1.bf16.msra.mxu0 %v4967
      %5028 = vmatprep.subr.bf16.mxu0 0
      %5029 = vmatpush1.bf16.msra.mxu0 0
      %5030 = vmatprep.subr.bf16.mxu0 0
      %5031 = vmatpush1.bf16.msra.mxu0 0
      %5032 = vmatprep.subr.bf16.mxu0 0
      %5033 = vmatpush1.bf16.msra.mxu0 0
      %5034 = vmatprep.subr.bf16.mxu0 0
      %5035 = vmatpush1.bf16.msra.mxu0 0
      %5036 = vmatprep.subr.bf16.mxu0 0
      %5037 = vmatpush1.bf16.msra.mxu0 0
      %5038 = vmatprep.subr.bf16.mxu0 0
      %5039 = vmatpush1.bf16.msra.mxu0 0
      %5040 = vmatprep.subr.bf16.mxu0 0
      %5041 = vmatpush1.bf16.msra.mxu0 0
      %5042 = vmatprep.subr.bf16.mxu0 0
      %5043 = vmatpush1.bf16.msra.mxu0 0
      %5044 = vmatprep.subr.bf16.mxu0 0
      %5045 = vmatpush1.bf16.msra.mxu0 0
      %5046 = vmatprep.subr.bf16.mxu0 0
      %5047 = vmatpush1.bf16.msra.mxu0 0
      %5048 = vmatprep.subr.bf16.mxu0 0
      %5049 = vmatpush1.bf16.msra.mxu0 0
      %5050 = vmatprep.subr.bf16.mxu0 0
      %5051 = vmatpush1.bf16.msra.mxu0 0
      %5052 = vmatprep.mubr.bf16.mxu0 0
      %5053 = vmatmul.mubr.bf16.gmra.mrb[0].mxu0 %v4973
      %v5054 = vpop.f32.mrb[0].mxu0
      %v5055 = vadd.f32 0.0, %v5054
      %v5056 = vpop.f32.mrb[0].mxu0
      %v5057 = vpop.f32.mrb[0].mxu0
      %v5058 = vadd.f32 0.0, %v5057
      %v5059 = vpop.f32.mrb[0].mxu0
      %5060 = vmatprep.mubr.bf16.mxu0 0
      %5061 = vmatmul.mubr.bf16.gmra.mrb[0].mxu0 %v4976
      %v5062 = vpop.f32.mrb[0].mxu0
      %v5063 = vadd.f32 0.0, %v5062
      %v5064 = vpop.f32.mrb[0].mxu0
      %v5065 = vpop.f32.mrb[0].mxu0
      %v5066 = vadd.f32 0.0, %v5065
      %v5067 = vpop.f32.mrb[0].mxu0
      %5068 = vmatprep.mubr.bf16.mxu0 0
      %5069 = vmatmul.mubr.bf16.gmra.mrb[0].mxu0 %v4979
      %v5070 = vpop.f32.mrb[0].mxu0
      %v5071 = vadd.f32 0.0, %v5070
      %v5072 = vpop.f32.mrb[0].mxu0
      %v5073 = vpop.f32.mrb[0].mxu0
      %v5074 = vadd.f32 0.0, %v5073
      %v5075 = vpop.f32.mrb[0].mxu0
      %5076 = vmatprep.mubr.bf16.mxu0 0
      %5077 = vmatmul.mubr.bf16.gmra.mrb[0].mxu0 %v4982
      %v5078 = vpop.f32.mrb[0].mxu0
      %v5079 = vadd.f32 0.0, %v5078
      %v5080 = vpop.f32.mrb[0].mxu0
      %v5081 = vpop.f32.mrb[0].mxu0
      %v5082 = vadd.f32 0.0, %v5081
      %v5083 = vpop.f32.mrb[0].mxu0
      %5084 = vmatprep.mubr.bf16.mxu0 0
      %5085 = vmatmul.mubr.bf16.gmra.mrb[0].mxu0 %v4985
      %v5086 = vpop.f32.mrb[0].mxu0
      %v5087 = vadd.f32 0.0, %v5086
      %v5088 = vpop.f32.mrb[0].mxu0
      %v5089 = vpop.f32.mrb[0].mxu0
      %v5090 = vadd.f32 0.0, %v5089
      %v5091 = vpop.f32.mrb[0].mxu0
      %5092 = vmatprep.mubr.bf16.mxu0 0
      %5093 = vmatmul.mubr.bf16.gmra.mrb[0].mxu0 %v4988
      %v5094 = vpop.f32.mrb[0].mxu0
      %v5095 = vadd.f32 0.0, %v5094
      %v5096 = vpop.f32.mrb[0].mxu0
      %v5097 = vpop.f32.mrb[0].mxu0
      %v5098 = vadd.f32 0.0, %v5097
      %v5099 = vpop.f32.mrb[0].mxu0
      %5100 = vmatprep.mubr.bf16.mxu0 0
      %5101 = vmatmul.mubr.bf16.gmra.mrb[0].mxu0 %v4991
      %v5102 = vpop.f32.mrb[0].mxu0
      %v5103 = vadd.f32 0.0, %v5102
      %v5104 = vpop.f32.mrb[0].mxu0
      %v5105 = vpop.f32.mrb[0].mxu0
      %v5106 = vadd.f32 0.0, %v5105
      %v5107 = vpop.f32.mrb[0].mxu0
      %5108 = vmatprep.mubr.bf16.mxu0 0
      %5109 = vmatmul.mubr.bf16.gmra.mrb[0].mxu0 %v4994
      %v5110 = vpop.f32.mrb[0].mxu0
      %v5111 = vadd.f32 0.0, %v5110
      %v5112 = vpop.f32.mrb[0].mxu0
      %v5113 = vpop.f32.mrb[0].mxu0
      %v5114 = vadd.f32 0.0, %v5113
      %v5115 = vpop.f32.mrb[0].mxu0
      %5116 = vmatprep.mubr.bf16.mxu0 0
      %5117 = vmatmul.mubr.bf16.gmra.mrb[0].mxu0 %v4997
      %v5118 = vpop.f32.mrb[0].mxu0
      %v5119 = vadd.f32 0.0, %v5118
      %v5120 = vpop.f32.mrb[0].mxu0
      %v5121 = vpop.f32.mrb[0].mxu0
      %v5122 = vadd.f32 0.0, %v5121
      %v5123 = vpop.f32.mrb[0].mxu0
      %5124 = vmatprep.mubr.bf16.mxu0 0
      %5125 = vmatmul.mubr.bf16.gmra.mrb[0].mxu0 %v5000
      %v5126 = vpop.f32.mrb[0].mxu0
      %v5127 = vadd.f32 0.0, %v5126
      %v5128 = vpop.f32.mrb[0].mxu0
      %v5129 = vpop.f32.mrb[0].mxu0
      %v5130 = vadd.f32 0.0, %v5129
      %v5131 = vpop.f32.mrb[0].mxu0
      %5132 = vmatprep.mubr.bf16.mxu0 0
      %5133 = vmatmul.mubr.bf16.gmra.mrb[0].mxu0 %v5003
      %v5134 = vpop.f32.mrb[0].mxu0
      %v5135 = vadd.f32 0.0, %v5134
      %v5136 = vpop.f32.mrb[0].mxu0
      %v5137 = vpop.f32.mrb[0].mxu0
      %v5138 = vadd.f32 0.0, %v5137
      %v5139 = vpop.f32.mrb[0].mxu0
      %5140 = vmatprep.mubr.bf16.mxu0 0
      %5141 = vmatmul.mubr.bf16.gmra.mrb[0].mxu0 %v5006
      %v5142 = vpop.f32.mrb[0].mxu0
      %v5143 = vadd.f32 0.0, %v5142
      %v5144 = vpop.f32.mrb[0].mxu0
      %v5145 = vpop.f32.mrb[0].mxu0
      %v5146 = vadd.f32 0.0, %v5145
      %v5147 = vpop.f32.mrb[0].mxu0
      %5148 = vmatprep.mubr.bf16.mxu0 0
      %5149 = vmatmul.mubr.bf16.gmra.mrb[0].mxu0 %v5009
      %v5150 = vpop.f32.mrb[0].mxu0
      %v5151 = vadd.f32 0.0, %v5150
      %v5152 = vpop.f32.mrb[0].mxu0
      %v5153 = vpop.f32.mrb[0].mxu0
      %v5154 = vadd.f32 0.0, %v5153
      %v5155 = vpop.f32.mrb[0].mxu0
      %5156 = vmatprep.mubr.bf16.mxu0 0
      %5157 = vmatmul.mubr.bf16.gmra.mrb[0].mxu0 %v5012
      %v5158 = vpop.f32.mrb[0].mxu0
      %v5159 = vadd.f32 0.0, %v5158
      %v5160 = vpop.f32.mrb[0].mxu0
      %v5161 = vpop.f32.mrb[0].mxu0
      %v5162 = vadd.f32 0.0, %v5161
      %v5163 = vpop.f32.mrb[0].mxu0
      %5164 = vmatprep.mubr.bf16.mxu0 0
      %5165 = vmatmul.mubr.bf16.gmra.mrb[0].mxu0 %v5015
      %v5166 = vpop.f32.mrb[0].mxu0
      %v5167 = vadd.f32 0.0, %v5166
      %v5168 = vpop.f32.mrb[0].mxu0
      %v5169 = vpop.f32.mrb[0].mxu0
      %v5170 = vadd.f32 0.0, %v5169
      %v5171 = vpop.f32.mrb[0].mxu0
      %5172 = vmatprep.mubr.bf16.mxu0 0
      %5173 = vmatmul.mubr.bf16.gmra.mrb[0].mxu0 %v5018
      %v5174 = vpop.f32.mrb[0].mxu0
      %v5175 = vadd.f32 0.0, %v5174
      %v5176 = vpop.f32.mrb[0].mxu0
      %v5177 = vpop.f32.mrb[0].mxu0
      %v5178 = vadd.f32 0.0, %v5177
      %v5179 = vpop.f32.mrb[0].mxu0
      %5180 = vdwg.mxu0
      %v5181 = vadd.f32 %v4537, %v5055
      %v5182 = vadd.f32 %v4538, %v5058
      %v5183 = vadd.f32 %v4539, %v5063
      %v5184 = vadd.f32 %v4540, %v5066
      %v5185 = vadd.f32 %v4541, %v5071
      %v5186 = vadd.f32 %v4542, %v5074
      %v5187 = vadd.f32 %v4543, %v5079
      %v5188 = vadd.f32 %v4544, %v5082
      %v5189 = vadd.f32 %v4545, %v5087
      %v5190 = vadd.f32 %v4546, %v5090
      %v5191 = vadd.f32 %v4547, %v5095
      %v5192 = vadd.f32 %v4548, %v5098
      %v5193 = vadd.f32 %v4549, %v5103
      %v5194 = vadd.f32 %v4550, %v5106
      %v5195 = vadd.f32 %v4551, %v5111
      %v5196 = vadd.f32 %v4552, %v5114
      %v5197 = vadd.f32 %v4553, %v5119
      %v5198 = vadd.f32 %v4554, %v5122
      %v5199 = vadd.f32 %v4555, %v5127
      %v5200 = vadd.f32 %v4556, %v5130
      %v5201 = vadd.f32 %v4557, %v5135
      %v5202 = vadd.f32 %v4558, %v5138
      %v5203 = vadd.f32 %v4559, %v5143
      %v5204 = vadd.f32 %v4560, %v5146
      %v5205 = vadd.f32 %v4561, %v5151
      %v5206 = vadd.f32 %v4562, %v5154
      %v5207 = vadd.f32 %v4563, %v5159
      %v5208 = vadd.f32 %v4564, %v5162
      %v5209 = vadd.f32 %v4565, %v5167
      %v5210 = vadd.f32 %v4566, %v5170
      %v5211 = vadd.f32 %v4567, %v5175
      %v5212 = vadd.f32 %v4568, %v5178
      %s5213 = scalar_lea.vmem %s2, 1792
      %v5214 = vld [vmem:[%s5213] sm:$0xff]
      %v5215 = vld [vmem:[%s5213 + $0x8] sm:$0xff]
      %v5216 = vld [vmem:[%s5213 + $0x10] sm:$0xff]
      %v5217 = vld [vmem:[%s5213 + $0x18] sm:$0xff]
      %v5218 = vld [vmem:[%s5213 + $0x20] sm:$0xff]
      %v5219 = vld [vmem:[%s5213 + $0x28] sm:$0xff]
      %v5220 = vld [vmem:[%s5213 + $0x30] sm:$0xff]
      %v5221 = vld [vmem:[%s5213 + $0x38] sm:$0xff]
      %v5222 = vld [vmem:[%s5213 + $0x40] sm:$0xff]
      %v5223 = vld [vmem:[%s5213 + $0x48] sm:$0xff]
      %v5224 = vld [vmem:[%s5213 + $0x50] sm:$0xff]
      %v5225 = vld [vmem:[%s5213 + $0x58] sm:$0xff]
      %v5226 = vld [vmem:[%s5213 + $0x60] sm:$0xff]
      %v5227 = vld [vmem:[%s5213 + $0x68] sm:$0xff]
      %v5228 = vld [vmem:[%s5213 + $0x70] sm:$0xff]
      %v5229 = vld [vmem:[%s5213 + $0x78] sm:$0xff]
      %v5230 = vld [vmem:[%s5213 + $0x80] sm:$0xff]
      %v5231 = vld [vmem:[%s5213 + $0x88] sm:$0xff]
      %v5232 = vld [vmem:[%s5213 + $0x90] sm:$0xff]
      %v5233 = vld [vmem:[%s5213 + $0x98] sm:$0xff]
      %v5234 = vld [vmem:[%s5213 + $0xa0] sm:$0xff]
      %v5235 = vld [vmem:[%s5213 + $0xa8] sm:$0xff]
      %v5236 = vld [vmem:[%s5213 + $0xb0] sm:$0xff]
      %v5237 = vld [vmem:[%s5213 + $0xb8] sm:$0xff]
      %v5238 = vld [vmem:[%s5213 + $0xc0] sm:$0xff]
      %v5239 = vld [vmem:[%s5213 + $0xc8] sm:$0xff]
      %v5240 = vld [vmem:[%s5213 + $0xd0] sm:$0xff]
      %v5241 = vld [vmem:[%s5213 + $0xd8] sm:$0xff]
      %v5242 = vld [vmem:[%s5213 + $0xe0] sm:$0xff]
      %v5243 = vld [vmem:[%s5213 + $0xe8] sm:$0xff]
      %v5244 = vld [vmem:[%s5213 + $0xf0] sm:$0xff]
      %v5245 = vld [vmem:[%s5213 + $0xf8] sm:$0xff]
      %v5278 = vunpack.c.l.b16 %v5214
      %v5279 = vunpack.c.h.b16 %v5214
      %v5280 = vunpack.c.l.b16 %v5215
      %v5281 = vunpack.c.h.b16 %v5215
      %v5282 = vunpack.c.l.b16 %v5216
      %v5283 = vunpack.c.h.b16 %v5216
      %v5284 = vunpack.c.l.b16 %v5217
      %v5285 = vunpack.c.h.b16 %v5217
      %v5286 = vunpack.c.l.b16 %v5218
      %v5287 = vunpack.c.h.b16 %v5218
      %v5288 = vunpack.c.l.b16 %v5219
      %v5289 = vunpack.c.h.b16 %v5219
      %v5290 = vunpack.c.l.b16 %v5220
      %v5291 = vunpack.c.h.b16 %v5220
      %v5292 = vunpack.c.l.b16 %v5221
      %v5293 = vunpack.c.h.b16 %v5221
      %v5294 = vunpack.c.l.b16 %v5222
      %v5295 = vunpack.c.h.b16 %v5222
      %v5296 = vunpack.c.l.b16 %v5223
      %v5297 = vunpack.c.h.b16 %v5223
      %v5298 = vunpack.c.l.b16 %v5224
      %v5299 = vunpack.c.h.b16 %v5224
      %v5300 = vunpack.c.l.b16 %v5225
      %v5301 = vunpack.c.h.b16 %v5225
      %v5302 = vunpack.c.l.b16 %v5226
      %v5303 = vunpack.c.h.b16 %v5226
      %v5304 = vunpack.c.l.b16 %v5227
      %v5305 = vunpack.c.h.b16 %v5227
      %v5306 = vunpack.c.l.b16 %v5228
      %v5307 = vunpack.c.h.b16 %v5228
      %v5308 = vunpack.c.l.b16 %v5229
      %v5309 = vunpack.c.h.b16 %v5229
      %v5310 = vunpack.c.l.b16 %v5230
      %v5311 = vunpack.c.h.b16 %v5230
      %v5312 = vunpack.c.l.b16 %v5231
      %v5313 = vunpack.c.h.b16 %v5231
      %v5314 = vunpack.c.l.b16 %v5232
      %v5315 = vunpack.c.h.b16 %v5232
      %v5316 = vunpack.c.l.b16 %v5233
      %v5317 = vunpack.c.h.b16 %v5233
      %v5318 = vunpack.c.l.b16 %v5234
      %v5319 = vunpack.c.h.b16 %v5234
      %v5320 = vunpack.c.l.b16 %v5235
      %v5321 = vunpack.c.h.b16 %v5235
      %v5322 = vunpack.c.l.b16 %v5236
      %v5323 = vunpack.c.h.b16 %v5236
      %v5324 = vunpack.c.l.b16 %v5237
      %v5325 = vunpack.c.h.b16 %v5237
      %v5326 = vunpack.c.l.b16 %v5238
      %v5327 = vunpack.c.h.b16 %v5238
      %v5328 = vunpack.c.l.b16 %v5239
      %v5329 = vunpack.c.h.b16 %v5239
      %v5330 = vunpack.c.l.b16 %v5240
      %v5331 = vunpack.c.h.b16 %v5240
      %v5332 = vunpack.c.l.b16 %v5241
      %v5333 = vunpack.c.h.b16 %v5241
      %v5334 = vunpack.c.l.b16 %v5242
      %v5335 = vunpack.c.h.b16 %v5242
      %v5336 = vunpack.c.l.b16 %v5243
      %v5337 = vunpack.c.h.b16 %v5243
      %v5338 = vunpack.c.l.b16 %v5244
      %v5339 = vunpack.c.h.b16 %v5244
      %v5340 = vunpack.c.l.b16 %v5245
      %v5341 = vunpack.c.h.b16 %v5245
      %v5342 = vpack.c.b16 %v5280, %v5278
      %v5343 = vpack.c.b16 %v5281, %v5279
      %v5344 = vpack.c.b16 %v5284, %v5282
      %v5345 = vpack.c.b16 %v5285, %v5283
      %v5346 = vpack.c.b16 %v5288, %v5286
      %v5347 = vpack.c.b16 %v5289, %v5287
      %v5348 = vpack.c.b16 %v5292, %v5290
      %v5349 = vpack.c.b16 %v5293, %v5291
      %v5350 = vpack.c.b16 %v5296, %v5294
      %v5351 = vpack.c.b16 %v5297, %v5295
      %v5352 = vpack.c.b16 %v5300, %v5298
      %v5353 = vpack.c.b16 %v5301, %v5299
      %v5354 = vpack.c.b16 %v5304, %v5302
      %v5355 = vpack.c.b16 %v5305, %v5303
      %v5356 = vpack.c.b16 %v5308, %v5306
      %v5357 = vpack.c.b16 %v5309, %v5307
      %v5358 = vpack.c.b16 %v5312, %v5310
      %v5359 = vpack.c.b16 %v5313, %v5311
      %v5360 = vpack.c.b16 %v5316, %v5314
      %v5361 = vpack.c.b16 %v5317, %v5315
      %v5362 = vpack.c.b16 %v5320, %v5318
      %v5363 = vpack.c.b16 %v5321, %v5319
      %v5364 = vpack.c.b16 %v5324, %v5322
      %v5365 = vpack.c.b16 %v5325, %v5323
      %v5366 = vpack.c.b16 %v5328, %v5326
      %v5367 = vpack.c.b16 %v5329, %v5327
      %v5368 = vpack.c.b16 %v5332, %v5330
      %v5369 = vpack.c.b16 %v5333, %v5331
      %v5370 = vpack.c.b16 %v5336, %v5334
      %v5371 = vpack.c.b16 %v5337, %v5335
      %v5372 = vpack.c.b16 %v5340, %v5338
      %v5373 = vpack.c.b16 %v5341, %v5339
      %5406 = vmatprep.subr.bf16.mxu0 0
      %5407 = vmatpush1.bf16.msra.mxu0 %v754
      %5408 = vmatprep.subr.bf16.mxu0 0
      %5409 = vmatpush1.bf16.msra.mxu0 %v755
      %5410 = vmatprep.subr.bf16.mxu0 0
      %5411 = vmatpush1.bf16.msra.mxu0 %v756
      %5412 = vmatprep.subr.bf16.mxu0 0
      %5413 = vmatpush1.bf16.msra.mxu0 %v757
      %5414 = vmatprep.subr.bf16.mxu0 0
      %5415 = vmatpush1.bf16.msra.mxu0 %v758
      %5416 = vmatprep.subr.bf16.mxu0 0
      %5417 = vmatpush1.bf16.msra.mxu0 %v759
      %5418 = vmatprep.subr.bf16.mxu0 0
      %5419 = vmatpush1.bf16.msra.mxu0 %v760
      %5420 = vmatprep.subr.bf16.mxu0 0
      %5421 = vmatpush1.bf16.msra.mxu0 %v761
      %5422 = vmatprep.subr.bf16.mxu0 0
      %5423 = vmatpush1.bf16.msra.mxu0 %v762
      %5424 = vmatprep.subr.bf16.mxu0 0
      %5425 = vmatpush1.bf16.msra.mxu0 %v763
      %5426 = vmatprep.subr.bf16.mxu0 0
      %5427 = vmatpush1.bf16.msra.mxu0 %v764
      %5428 = vmatprep.subr.bf16.mxu0 0
      %5429 = vmatpush1.bf16.msra.mxu0 %v765
      %5430 = vmatprep.subr.bf16.mxu0 0
      %5431 = vmatpush1.bf16.msra.mxu0 %v766
      %5432 = vmatprep.subr.bf16.mxu0 0
      %5433 = vmatpush1.bf16.msra.mxu0 %v767
      %5434 = vmatprep.subr.bf16.mxu0 0
      %5435 = vmatpush1.bf16.msra.mxu0 %v768
      %5436 = vmatprep.subr.bf16.mxu0 0
      %5437 = vmatpush1.bf16.msra.mxu0 %v769
      %5438 = vmatprep.mubr.bf16.mxu0 %v5343
      %5439 = vmatmul.mubr.bf16.gmra.mrb[0].mxu0 %v5342
      %v5440 = vpop.f32.mrb[0].mxu0
      %v5441 = vadd.f32 0.0, %v5440
      %v5442 = vpop.f32.mrb[0].mxu0
      %v5443 = vpop.f32.mrb[0].mxu0
      %v5444 = vadd.f32 0.0, %v5443
      %v5445 = vpop.f32.mrb[0].mxu0
      %5446 = vmatprep.mubr.bf16.mxu0 %v5345
      %5447 = vmatmul.mubr.bf16.gmra.mrb[0].mxu0 %v5344
      %v5448 = vpop.f32.mrb[0].mxu0
      %v5449 = vadd.f32 0.0, %v5448
      %v5450 = vpop.f32.mrb[0].mxu0
      %v5451 = vpop.f32.mrb[0].mxu0
      %v5452 = vadd.f32 0.0, %v5451
      %v5453 = vpop.f32.mrb[0].mxu0
      %5454 = vmatprep.mubr.bf16.mxu0 %v5347
      %5455 = vmatmul.mubr.bf16.gmra.mrb[0].mxu0 %v5346
      %v5456 = vpop.f32.mrb[0].mxu0
      %v5457 = vadd.f32 0.0, %v5456
      %v5458 = vpop.f32.mrb[0].mxu0
      %v5459 = vpop.f32.mrb[0].mxu0
      %v5460 = vadd.f32 0.0, %v5459
      %v5461 = vpop.f32.mrb[0].mxu0
      %5462 = vmatprep.mubr.bf16.mxu0 %v5349
      %5463 = vmatmul.mubr.bf16.gmra.mrb[0].mxu0 %v5348
      %v5464 = vpop.f32.mrb[0].mxu0
      %v5465 = vadd.f32 0.0, %v5464
      %v5466 = vpop.f32.mrb[0].mxu0
      %v5467 = vpop.f32.mrb[0].mxu0
      %v5468 = vadd.f32 0.0, %v5467
      %v5469 = vpop.f32.mrb[0].mxu0
      %5470 = vmatprep.mubr.bf16.mxu0 %v5351
      %5471 = vmatmul.mubr.bf16.gmra.mrb[0].mxu0 %v5350
      %v5472 = vpop.f32.mrb[0].mxu0
      %v5473 = vadd.f32 0.0, %v5472
      %v5474 = vpop.f32.mrb[0].mxu0
      %v5475 = vpop.f32.mrb[0].mxu0
      %v5476 = vadd.f32 0.0, %v5475
      %v5477 = vpop.f32.mrb[0].mxu0
      %5478 = vmatprep.mubr.bf16.mxu0 %v5353
      %5479 = vmatmul.mubr.bf16.gmra.mrb[0].mxu0 %v5352
      %v5480 = vpop.f32.mrb[0].mxu0
      %v5481 = vadd.f32 0.0, %v5480
      %v5482 = vpop.f32.mrb[0].mxu0
      %v5483 = vpop.f32.mrb[0].mxu0
      %v5484 = vadd.f32 0.0, %v5483
      %v5485 = vpop.f32.mrb[0].mxu0
      %5486 = vmatprep.mubr.bf16.mxu0 %v5355
      %5487 = vmatmul.mubr.bf16.gmra.mrb[0].mxu0 %v5354
      %v5488 = vpop.f32.mrb[0].mxu0
      %v5489 = vadd.f32 0.0, %v5488
      %v5490 = vpop.f32.mrb[0].mxu0
      %v5491 = vpop.f32.mrb[0].mxu0
      %v5492 = vadd.f32 0.0, %v5491
      %v5493 = vpop.f32.mrb[0].mxu0
      %5494 = vmatprep.mubr.bf16.mxu0 %v5357
      %5495 = vmatmul.mubr.bf16.gmra.mrb[0].mxu0 %v5356
      %v5496 = vpop.f32.mrb[0].mxu0
      %v5497 = vadd.f32 0.0, %v5496
      %v5498 = vpop.f32.mrb[0].mxu0
      %v5499 = vpop.f32.mrb[0].mxu0
      %v5500 = vadd.f32 0.0, %v5499
      %v5501 = vpop.f32.mrb[0].mxu0
      %5502 = vmatprep.mubr.bf16.mxu0 %v5359
      %5503 = vmatmul.mubr.bf16.gmra.mrb[0].mxu0 %v5358
      %v5504 = vpop.f32.mrb[0].mxu0
      %v5505 = vadd.f32 0.0, %v5504
      %v5506 = vpop.f32.mrb[0].mxu0
      %v5507 = vpop.f32.mrb[0].mxu0
      %v5508 = vadd.f32 0.0, %v5507
      %v5509 = vpop.f32.mrb[0].mxu0
      %5510 = vmatprep.mubr.bf16.mxu0 %v5361
      %5511 = vmatmul.mubr.bf16.gmra.mrb[0].mxu0 %v5360
      %v5512 = vpop.f32.mrb[0].mxu0
      %v5513 = vadd.f32 0.0, %v5512
      %v5514 = vpop.f32.mrb[0].mxu0
      %v5515 = vpop.f32.mrb[0].mxu0
      %v5516 = vadd.f32 0.0, %v5515
      %v5517 = vpop.f32.mrb[0].mxu0
      %5518 = vmatprep.mubr.bf16.mxu0 %v5363
      %5519 = vmatmul.mubr.bf16.gmra.mrb[0].mxu0 %v5362
      %v5520 = vpop.f32.mrb[0].mxu0
      %v5521 = vadd.f32 0.0, %v5520
      %v5522 = vpop.f32.mrb[0].mxu0
      %v5523 = vpop.f32.mrb[0].mxu0
      %v5524 = vadd.f32 0.0, %v5523
      %v5525 = vpop.f32.mrb[0].mxu0
      %5526 = vmatprep.mubr.bf16.mxu0 %v5365
      %5527 = vmatmul.mubr.bf16.gmra.mrb[0].mxu0 %v5364
      %v5528 = vpop.f32.mrb[0].mxu0
      %v5529 = vadd.f32 0.0, %v5528
      %v5530 = vpop.f32.mrb[0].mxu0
      %v5531 = vpop.f32.mrb[0].mxu0
      %v5532 = vadd.f32 0.0, %v5531
      %v5533 = vpop.f32.mrb[0].mxu0
      %5534 = vmatprep.mubr.bf16.mxu0 %v5367
      %5535 = vmatmul.mubr.bf16.gmra.mrb[0].mxu0 %v5366
      %v5536 = vpop.f32.mrb[0].mxu0
      %v5537 = vadd.f32 0.0, %v5536
      %v5538 = vpop.f32.mrb[0].mxu0
      %v5539 = vpop.f32.mrb[0].mxu0
      %v5540 = vadd.f32 0.0, %v5539
      %v5541 = vpop.f32.mrb[0].mxu0
      %5542 = vmatprep.mubr.bf16.mxu0 %v5369
      %5543 = vmatmul.mubr.bf16.gmra.mrb[0].mxu0 %v5368
      %v5544 = vpop.f32.mrb[0].mxu0
      %v5545 = vadd.f32 0.0, %v5544
      %v5546 = vpop.f32.mrb[0].mxu0
      %v5547 = vpop.f32.mrb[0].mxu0
      %v5548 = vadd.f32 0.0, %v5547
      %v5549 = vpop.f32.mrb[0].mxu0
      %5550 = vmatprep.mubr.bf16.mxu0 %v5371
      %5551 = vmatmul.mubr.bf16.gmra.mrb[0].mxu0 %v5370
      %v5552 = vpop.f32.mrb[0].mxu0
      %v5553 = vadd.f32 0.0, %v5552
      %v5554 = vpop.f32.mrb[0].mxu0
      %v5555 = vpop.f32.mrb[0].mxu0
      %v5556 = vadd.f32 0.0, %v5555
      %v5557 = vpop.f32.mrb[0].mxu0
      %5558 = vmatprep.mubr.bf16.mxu0 %v5373
      %5559 = vmatmul.mubr.bf16.gmra.mrb[0].mxu0 %v5372
      %v5560 = vpop.f32.mrb[0].mxu0
      %v5561 = vadd.f32 0.0, %v5560
      %v5562 = vpop.f32.mrb[0].mxu0
      %v5563 = vpop.f32.mrb[0].mxu0
      %v5564 = vadd.f32 0.0, %v5563
      %v5565 = vpop.f32.mrb[0].mxu0
      %5566 = vdwg.mxu0
      %v5567 = vpack.c.bf16 %v5444, %v5441
      %v5568 = vpack.c.bf16 %v5452, %v5449
      %v5569 = vpack.c.bf16 %v5460, %v5457
      %v5570 = vpack.c.bf16 %v5468, %v5465
      %v5571 = vpack.c.bf16 %v5476, %v5473
      %v5572 = vpack.c.bf16 %v5484, %v5481
      %v5573 = vpack.c.bf16 %v5492, %v5489
      %v5574 = vpack.c.bf16 %v5500, %v5497
      %v5575 = vpack.c.bf16 %v5508, %v5505
      %v5576 = vpack.c.bf16 %v5516, %v5513
      %v5577 = vpack.c.bf16 %v5524, %v5521
      %v5578 = vpack.c.bf16 %v5532, %v5529
      %v5579 = vpack.c.bf16 %v5540, %v5537
      %v5580 = vpack.c.bf16 %v5548, %v5545
      %v5581 = vpack.c.bf16 %v5556, %v5553
      %v5582 = vpack.c.bf16 %v5564, %v5561
      %s5583 = scalar_lea.vmem %s7, 224
      %v5584 = vld [vmem:[%s5583] sm:$0xf]
      %v5585 = vld [vmem:[%s5583 + $0x4] sm:$0xf]
      %v5586 = vld [vmem:[%s5583 + $0x8] sm:$0xf]
      %v5587 = vld [vmem:[%s5583 + $0xc] sm:$0xf]
      %v5588 = vld [vmem:[%s5583 + $0x10] sm:$0xf]
      %v5589 = vld [vmem:[%s5583 + $0x14] sm:$0xf]
      %v5590 = vld [vmem:[%s5583 + $0x18] sm:$0xf]
      %v5591 = vld [vmem:[%s5583 + $0x1c] sm:$0xf]
      %v5600 = vunpack.c.l.b16 %v5584
      %v5601 = vunpack.c.l.b16 %v5585
      %v5602 = vunpack.c.l.b16 %v5586
      %v5603 = vunpack.c.l.b16 %v5587
      %v5604 = vunpack.c.l.b16 %v5588
      %v5605 = vunpack.c.l.b16 %v5589
      %v5606 = vunpack.c.l.b16 %v5590
      %v5607 = vunpack.c.l.b16 %v5591
      %v5608 = vpack.c.b16 %v5601, %v5600
      %v5609 = vpack.c.b16 %v5603, %v5602
      %v5610 = vpack.c.b16 %v5605, %v5604
      %v5611 = vpack.c.b16 %v5607, %v5606
      %v5617 = vsel %vm1550, %v5567, 0
      %v5620 = vsel %vm1550, %v5568, 0
      %v5623 = vsel %vm1550, %v5569, 0
      %v5626 = vsel %vm1550, %v5570, 0
      %v5629 = vsel %vm1550, %v5571, 0
      %v5632 = vsel %vm1550, %v5572, 0
      %v5635 = vsel %vm1550, %v5573, 0
      %v5638 = vsel %vm1550, %v5574, 0
      %v5641 = vsel %vm1550, %v5575, 0
      %v5644 = vsel %vm1550, %v5576, 0
      %v5647 = vsel %vm1550, %v5577, 0
      %v5650 = vsel %vm1550, %v5578, 0
      %v5653 = vsel %vm1550, %v5579, 0
      %v5656 = vsel %vm1550, %v5580, 0
      %v5659 = vsel %vm1550, %v5581, 0
      %v5662 = vsel %vm1550, %v5582, 0
      %5664 = vmatprep.subr.bf16.mxu0 0
      %5665 = vmatpush1.bf16.msra.mxu0 %v5608
      %5666 = vmatprep.subr.bf16.mxu0 0
      %5667 = vmatpush1.bf16.msra.mxu0 %v5609
      %5668 = vmatprep.subr.bf16.mxu0 0
      %5669 = vmatpush1.bf16.msra.mxu0 %v5610
      %5670 = vmatprep.subr.bf16.mxu0 0
      %5671 = vmatpush1.bf16.msra.mxu0 %v5611
      %5672 = vmatprep.subr.bf16.mxu0 0
      %5673 = vmatpush1.bf16.msra.mxu0 0
      %5674 = vmatprep.subr.bf16.mxu0 0
      %5675 = vmatpush1.bf16.msra.mxu0 0
      %5676 = vmatprep.subr.bf16.mxu0 0
      %5677 = vmatpush1.bf16.msra.mxu0 0
      %5678 = vmatprep.subr.bf16.mxu0 0
      %5679 = vmatpush1.bf16.msra.mxu0 0
      %5680 = vmatprep.subr.bf16.mxu0 0
      %5681 = vmatpush1.bf16.msra.mxu0 0
      %5682 = vmatprep.subr.bf16.mxu0 0
      %5683 = vmatpush1.bf16.msra.mxu0 0
      %5684 = vmatprep.subr.bf16.mxu0 0
      %5685 = vmatpush1.bf16.msra.mxu0 0
      %5686 = vmatprep.subr.bf16.mxu0 0
      %5687 = vmatpush1.bf16.msra.mxu0 0
      %5688 = vmatprep.subr.bf16.mxu0 0
      %5689 = vmatpush1.bf16.msra.mxu0 0
      %5690 = vmatprep.subr.bf16.mxu0 0
      %5691 = vmatpush1.bf16.msra.mxu0 0
      %5692 = vmatprep.subr.bf16.mxu0 0
      %5693 = vmatpush1.bf16.msra.mxu0 0
      %5694 = vmatprep.subr.bf16.mxu0 0
      %5695 = vmatpush1.bf16.msra.mxu0 0
      %5696 = vmatprep.mubr.bf16.mxu0 0
      %5697 = vmatmul.mubr.bf16.gmra.mrb[0].mxu0 %v5617
      %v5698 = vpop.f32.mrb[0].mxu0
      %v5699 = vadd.f32 0.0, %v5698
      %v5700 = vpop.f32.mrb[0].mxu0
      %v5701 = vpop.f32.mrb[0].mxu0
      %v5702 = vadd.f32 0.0, %v5701
      %v5703 = vpop.f32.mrb[0].mxu0
      %5704 = vmatprep.mubr.bf16.mxu0 0
      %5705 = vmatmul.mubr.bf16.gmra.mrb[0].mxu0 %v5620
      %v5706 = vpop.f32.mrb[0].mxu0
      %v5707 = vadd.f32 0.0, %v5706
      %v5708 = vpop.f32.mrb[0].mxu0
      %v5709 = vpop.f32.mrb[0].mxu0
      %v5710 = vadd.f32 0.0, %v5709
      %v5711 = vpop.f32.mrb[0].mxu0
      %5712 = vmatprep.mubr.bf16.mxu0 0
      %5713 = vmatmul.mubr.bf16.gmra.mrb[0].mxu0 %v5623
      %v5714 = vpop.f32.mrb[0].mxu0
      %v5715 = vadd.f32 0.0, %v5714
      %v5716 = vpop.f32.mrb[0].mxu0
      %v5717 = vpop.f32.mrb[0].mxu0
      %v5718 = vadd.f32 0.0, %v5717
      %v5719 = vpop.f32.mrb[0].mxu0
      %5720 = vmatprep.mubr.bf16.mxu0 0
      %5721 = vmatmul.mubr.bf16.gmra.mrb[0].mxu0 %v5626
      %v5722 = vpop.f32.mrb[0].mxu0
      %v5723 = vadd.f32 0.0, %v5722
      %v5724 = vpop.f32.mrb[0].mxu0
      %v5725 = vpop.f32.mrb[0].mxu0
      %v5726 = vadd.f32 0.0, %v5725
      %v5727 = vpop.f32.mrb[0].mxu0
      %5728 = vmatprep.mubr.bf16.mxu0 0
      %5729 = vmatmul.mubr.bf16.gmra.mrb[0].mxu0 %v5629
      %v5730 = vpop.f32.mrb[0].mxu0
      %v5731 = vadd.f32 0.0, %v5730
      %v5732 = vpop.f32.mrb[0].mxu0
      %v5733 = vpop.f32.mrb[0].mxu0
      %v5734 = vadd.f32 0.0, %v5733
      %v5735 = vpop.f32.mrb[0].mxu0
      %5736 = vmatprep.mubr.bf16.mxu0 0
      %5737 = vmatmul.mubr.bf16.gmra.mrb[0].mxu0 %v5632
      %v5738 = vpop.f32.mrb[0].mxu0
      %v5739 = vadd.f32 0.0, %v5738
      %v5740 = vpop.f32.mrb[0].mxu0
      %v5741 = vpop.f32.mrb[0].mxu0
      %v5742 = vadd.f32 0.0, %v5741
      %v5743 = vpop.f32.mrb[0].mxu0
      %5744 = vmatprep.mubr.bf16.mxu0 0
      %5745 = vmatmul.mubr.bf16.gmra.mrb[0].mxu0 %v5635
      %v5746 = vpop.f32.mrb[0].mxu0
      %v5747 = vadd.f32 0.0, %v5746
      %v5748 = vpop.f32.mrb[0].mxu0
      %v5749 = vpop.f32.mrb[0].mxu0
      %v5750 = vadd.f32 0.0, %v5749
      %v5751 = vpop.f32.mrb[0].mxu0
      %5752 = vmatprep.mubr.bf16.mxu0 0
      %5753 = vmatmul.mubr.bf16.gmra.mrb[0].mxu0 %v5638
      %v5754 = vpop.f32.mrb[0].mxu0
      %v5755 = vadd.f32 0.0, %v5754
      %v5756 = vpop.f32.mrb[0].mxu0
      %v5757 = vpop.f32.mrb[0].mxu0
      %v5758 = vadd.f32 0.0, %v5757
      %v5759 = vpop.f32.mrb[0].mxu0
      %5760 = vmatprep.mubr.bf16.mxu0 0
      %5761 = vmatmul.mubr.bf16.gmra.mrb[0].mxu0 %v5641
      %v5762 = vpop.f32.mrb[0].mxu0
      %v5763 = vadd.f32 0.0, %v5762
      %v5764 = vpop.f32.mrb[0].mxu0
      %v5765 = vpop.f32.mrb[0].mxu0
      %v5766 = vadd.f32 0.0, %v5765
      %v5767 = vpop.f32.mrb[0].mxu0
      %5768 = vmatprep.mubr.bf16.mxu0 0
      %5769 = vmatmul.mubr.bf16.gmra.mrb[0].mxu0 %v5644
      %v5770 = vpop.f32.mrb[0].mxu0
      %v5771 = vadd.f32 0.0, %v5770
      %v5772 = vpop.f32.mrb[0].mxu0
      %v5773 = vpop.f32.mrb[0].mxu0
      %v5774 = vadd.f32 0.0, %v5773
      %v5775 = vpop.f32.mrb[0].mxu0
      %5776 = vmatprep.mubr.bf16.mxu0 0
      %5777 = vmatmul.mubr.bf16.gmra.mrb[0].mxu0 %v5647
      %v5778 = vpop.f32.mrb[0].mxu0
      %v5779 = vadd.f32 0.0, %v5778
      %v5780 = vpop.f32.mrb[0].mxu0
      %v5781 = vpop.f32.mrb[0].mxu0
      %v5782 = vadd.f32 0.0, %v5781
      %v5783 = vpop.f32.mrb[0].mxu0
      %5784 = vmatprep.mubr.bf16.mxu0 0
      %5785 = vmatmul.mubr.bf16.gmra.mrb[0].mxu0 %v5650
      %v5786 = vpop.f32.mrb[0].mxu0
      %v5787 = vadd.f32 0.0, %v5786
      %v5788 = vpop.f32.mrb[0].mxu0
      %v5789 = vpop.f32.mrb[0].mxu0
      %v5790 = vadd.f32 0.0, %v5789
      %v5791 = vpop.f32.mrb[0].mxu0
      %5792 = vmatprep.mubr.bf16.mxu0 0
      %5793 = vmatmul.mubr.bf16.gmra.mrb[0].mxu0 %v5653
      %v5794 = vpop.f32.mrb[0].mxu0
      %v5795 = vadd.f32 0.0, %v5794
      %v5796 = vpop.f32.mrb[0].mxu0
      %v5797 = vpop.f32.mrb[0].mxu0
      %v5798 = vadd.f32 0.0, %v5797
      %v5799 = vpop.f32.mrb[0].mxu0
      %5800 = vmatprep.mubr.bf16.mxu0 0
      %5801 = vmatmul.mubr.bf16.gmra.mrb[0].mxu0 %v5656
      %v5802 = vpop.f32.mrb[0].mxu0
      %v5803 = vadd.f32 0.0, %v5802
      %v5804 = vpop.f32.mrb[0].mxu0
      %v5805 = vpop.f32.mrb[0].mxu0
      %v5806 = vadd.f32 0.0, %v5805
      %v5807 = vpop.f32.mrb[0].mxu0
      %5808 = vmatprep.mubr.bf16.mxu0 0
      %5809 = vmatmul.mubr.bf16.gmra.mrb[0].mxu0 %v5659
      %v5810 = vpop.f32.mrb[0].mxu0
      %v5811 = vadd.f32 0.0, %v5810
      %v5812 = vpop.f32.mrb[0].mxu0
      %v5813 = vpop.f32.mrb[0].mxu0
      %v5814 = vadd.f32 0.0, %v5813
      %v5815 = vpop.f32.mrb[0].mxu0
      %5816 = vmatprep.mubr.bf16.mxu0 0
      %5817 = vmatmul.mubr.bf16.gmra.mrb[0].mxu0 %v5662
      %v5818 = vpop.f32.mrb[0].mxu0
      %v5819 = vadd.f32 0.0, %v5818
      %v5820 = vpop.f32.mrb[0].mxu0
      %v5821 = vpop.f32.mrb[0].mxu0
      %v5822 = vadd.f32 0.0, %v5821
      %v5823 = vpop.f32.mrb[0].mxu0
      %5824 = vdwg.mxu0
      %v5825 = vadd.f32 %v5181, %v5699
      %v5826 = vadd.f32 %v5182, %v5702
      %v5827 = vadd.f32 %v5183, %v5707
      %v5828 = vadd.f32 %v5184, %v5710
      %v5829 = vadd.f32 %v5185, %v5715
      %v5830 = vadd.f32 %v5186, %v5718
      %v5831 = vadd.f32 %v5187, %v5723
      %v5832 = vadd.f32 %v5188, %v5726
      %v5833 = vadd.f32 %v5189, %v5731
      %v5834 = vadd.f32 %v5190, %v5734
      %v5835 = vadd.f32 %v5191, %v5739
      %v5836 = vadd.f32 %v5192, %v5742
      %v5837 = vadd.f32 %v5193, %v5747
      %v5838 = vadd.f32 %v5194, %v5750
      %v5839 = vadd.f32 %v5195, %v5755
      %v5840 = vadd.f32 %v5196, %v5758
      %v5841 = vadd.f32 %v5197, %v5763
      %v5842 = vadd.f32 %v5198, %v5766
      %v5843 = vadd.f32 %v5199, %v5771
      %v5844 = vadd.f32 %v5200, %v5774
      %v5845 = vadd.f32 %v5201, %v5779
      %v5846 = vadd.f32 %v5202, %v5782
      %v5847 = vadd.f32 %v5203, %v5787
      %v5848 = vadd.f32 %v5204, %v5790
      %v5849 = vadd.f32 %v5205, %v5795
      %v5850 = vadd.f32 %v5206, %v5798
      %v5851 = vadd.f32 %v5207, %v5803
      %v5852 = vadd.f32 %v5208, %v5806
      %v5853 = vadd.f32 %v5209, %v5811
      %v5854 = vadd.f32 %v5210, %v5814
      %v5855 = vadd.f32 %v5211, %v5819
      %v5856 = vadd.f32 %v5212, %v5822
      %s5857 = scalar_lea.vmem %s2, 2048
      %v5858 = vld [vmem:[%s5857] sm:$0xff]
      %v5859 = vld [vmem:[%s5857 + $0x8] sm:$0xff]
      %v5860 = vld [vmem:[%s5857 + $0x10] sm:$0xff]
      %v5861 = vld [vmem:[%s5857 + $0x18] sm:$0xff]
      %v5862 = vld [vmem:[%s5857 + $0x20] sm:$0xff]
      %v5863 = vld [vmem:[%s5857 + $0x28] sm:$0xff]
      %v5864 = vld [vmem:[%s5857 + $0x30] sm:$0xff]
      %v5865 = vld [vmem:[%s5857 + $0x38] sm:$0xff]
      %v5866 = vld [vmem:[%s5857 + $0x40] sm:$0xff]
      %v5867 = vld [vmem:[%s5857 + $0x48] sm:$0xff]
      %v5868 = vld [vmem:[%s5857 + $0x50] sm:$0xff]
      %v5869 = vld [vmem:[%s5857 + $0x58] sm:$0xff]
      %v5870 = vld [vmem:[%s5857 + $0x60] sm:$0xff]
      %v5871 = vld [vmem:[%s5857 + $0x68] sm:$0xff]
      %v5872 = vld [vmem:[%s5857 + $0x70] sm:$0xff]
      %v5873 = vld [vmem:[%s5857 + $0x78] sm:$0xff]
      %v5874 = vld [vmem:[%s5857 + $0x80] sm:$0xff]
      %v5875 = vld [vmem:[%s5857 + $0x88] sm:$0xff]
      %v5876 = vld [vmem:[%s5857 + $0x90] sm:$0xff]
      %v5877 = vld [vmem:[%s5857 + $0x98] sm:$0xff]
      %v5878 = vld [vmem:[%s5857 + $0xa0] sm:$0xff]
      %v5879 = vld [vmem:[%s5857 + $0xa8] sm:$0xff]
      %v5880 = vld [vmem:[%s5857 + $0xb0] sm:$0xff]
      %v5881 = vld [vmem:[%s5857 + $0xb8] sm:$0xff]
      %v5882 = vld [vmem:[%s5857 + $0xc0] sm:$0xff]
      %v5883 = vld [vmem:[%s5857 + $0xc8] sm:$0xff]
      %v5884 = vld [vmem:[%s5857 + $0xd0] sm:$0xff]
      %v5885 = vld [vmem:[%s5857 + $0xd8] sm:$0xff]
      %v5886 = vld [vmem:[%s5857 + $0xe0] sm:$0xff]
      %v5887 = vld [vmem:[%s5857 + $0xe8] sm:$0xff]
      %v5888 = vld [vmem:[%s5857 + $0xf0] sm:$0xff]
      %v5889 = vld [vmem:[%s5857 + $0xf8] sm:$0xff]
      %v5922 = vunpack.c.l.b16 %v5858
      %v5923 = vunpack.c.h.b16 %v5858
      %v5924 = vunpack.c.l.b16 %v5859
      %v5925 = vunpack.c.h.b16 %v5859
      %v5926 = vunpack.c.l.b16 %v5860
      %v5927 = vunpack.c.h.b16 %v5860
      %v5928 = vunpack.c.l.b16 %v5861
      %v5929 = vunpack.c.h.b16 %v5861
      %v5930 = vunpack.c.l.b16 %v5862
      %v5931 = vunpack.c.h.b16 %v5862
      %v5932 = vunpack.c.l.b16 %v5863
      %v5933 = vunpack.c.h.b16 %v5863
      %v5934 = vunpack.c.l.b16 %v5864
      %v5935 = vunpack.c.h.b16 %v5864
      %v5936 = vunpack.c.l.b16 %v5865
      %v5937 = vunpack.c.h.b16 %v5865
      %v5938 = vunpack.c.l.b16 %v5866
      %v5939 = vunpack.c.h.b16 %v5866
      %v5940 = vunpack.c.l.b16 %v5867
      %v5941 = vunpack.c.h.b16 %v5867
      %v5942 = vunpack.c.l.b16 %v5868
      %v5943 = vunpack.c.h.b16 %v5868
      %v5944 = vunpack.c.l.b16 %v5869
      %v5945 = vunpack.c.h.b16 %v5869
      %v5946 = vunpack.c.l.b16 %v5870
      %v5947 = vunpack.c.h.b16 %v5870
      %v5948 = vunpack.c.l.b16 %v5871
      %v5949 = vunpack.c.h.b16 %v5871
      %v5950 = vunpack.c.l.b16 %v5872
      %v5951 = vunpack.c.h.b16 %v5872
      %v5952 = vunpack.c.l.b16 %v5873
      %v5953 = vunpack.c.h.b16 %v5873
      %v5954 = vunpack.c.l.b16 %v5874
      %v5955 = vunpack.c.h.b16 %v5874
      %v5956 = vunpack.c.l.b16 %v5875
      %v5957 = vunpack.c.h.b16 %v5875
      %v5958 = vunpack.c.l.b16 %v5876
      %v5959 = vunpack.c.h.b16 %v5876
      %v5960 = vunpack.c.l.b16 %v5877
      %v5961 = vunpack.c.h.b16 %v5877
      %v5962 = vunpack.c.l.b16 %v5878
      %v5963 = vunpack.c.h.b16 %v5878
      %v5964 = vunpack.c.l.b16 %v5879
      %v5965 = vunpack.c.h.b16 %v5879
      %v5966 = vunpack.c.l.b16 %v5880
      %v5967 = vunpack.c.h.b16 %v5880
      %v5968 = vunpack.c.l.b16 %v5881
      %v5969 = vunpack.c.h.b16 %v5881
      %v5970 = vunpack.c.l.b16 %v5882
      %v5971 = vunpack.c.h.b16 %v5882
      %v5972 = vunpack.c.l.b16 %v5883
      %v5973 = vunpack.c.h.b16 %v5883
      %v5974 = vunpack.c.l.b16 %v5884
      %v5975 = vunpack.c.h.b16 %v5884
      %v5976 = vunpack.c.l.b16 %v5885
      %v5977 = vunpack.c.h.b16 %v5885
      %v5978 = vunpack.c.l.b16 %v5886
      %v5979 = vunpack.c.h.b16 %v5886
      %v5980 = vunpack.c.l.b16 %v5887
      %v5981 = vunpack.c.h.b16 %v5887
      %v5982 = vunpack.c.l.b16 %v5888
      %v5983 = vunpack.c.h.b16 %v5888
      %v5984 = vunpack.c.l.b16 %v5889
      %v5985 = vunpack.c.h.b16 %v5889
      %v5986 = vpack.c.b16 %v5924, %v5922
      %v5987 = vpack.c.b16 %v5925, %v5923
      %v5988 = vpack.c.b16 %v5928, %v5926
      %v5989 = vpack.c.b16 %v5929, %v5927
      %v5990 = vpack.c.b16 %v5932, %v5930
      %v5991 = vpack.c.b16 %v5933, %v5931
      %v5992 = vpack.c.b16 %v5936, %v5934
      %v5993 = vpack.c.b16 %v5937, %v5935
      %v5994 = vpack.c.b16 %v5940, %v5938
      %v5995 = vpack.c.b16 %v5941, %v5939
      %v5996 = vpack.c.b16 %v5944, %v5942
      %v5997 = vpack.c.b16 %v5945, %v5943
      %v5998 = vpack.c.b16 %v5948, %v5946
      %v5999 = vpack.c.b16 %v5949, %v5947
      %v6000 = vpack.c.b16 %v5952, %v5950
      %v6001 = vpack.c.b16 %v5953, %v5951
      %v6002 = vpack.c.b16 %v5956, %v5954
      %v6003 = vpack.c.b16 %v5957, %v5955
      %v6004 = vpack.c.b16 %v5960, %v5958
      %v6005 = vpack.c.b16 %v5961, %v5959
      %v6006 = vpack.c.b16 %v5964, %v5962
      %v6007 = vpack.c.b16 %v5965, %v5963
      %v6008 = vpack.c.b16 %v5968, %v5966
      %v6009 = vpack.c.b16 %v5969, %v5967
      %v6010 = vpack.c.b16 %v5972, %v5970
      %v6011 = vpack.c.b16 %v5973, %v5971
      %v6012 = vpack.c.b16 %v5976, %v5974
      %v6013 = vpack.c.b16 %v5977, %v5975
      %v6014 = vpack.c.b16 %v5980, %v5978
      %v6015 = vpack.c.b16 %v5981, %v5979
      %v6016 = vpack.c.b16 %v5984, %v5982
      %v6017 = vpack.c.b16 %v5985, %v5983
      %6050 = vmatprep.subr.bf16.mxu0 0
      %6051 = vmatpush1.bf16.msra.mxu0 %v754
      %6052 = vmatprep.subr.bf16.mxu0 0
      %6053 = vmatpush1.bf16.msra.mxu0 %v755
      %6054 = vmatprep.subr.bf16.mxu0 0
      %6055 = vmatpush1.bf16.msra.mxu0 %v756
      %6056 = vmatprep.subr.bf16.mxu0 0
      %6057 = vmatpush1.bf16.msra.mxu0 %v757
      %6058 = vmatprep.subr.bf16.mxu0 0
      %6059 = vmatpush1.bf16.msra.mxu0 %v758
      %6060 = vmatprep.subr.bf16.mxu0 0
      %6061 = vmatpush1.bf16.msra.mxu0 %v759
      %6062 = vmatprep.subr.bf16.mxu0 0
      %6063 = vmatpush1.bf16.msra.mxu0 %v760
      %6064 = vmatprep.subr.bf16.mxu0 0
      %6065 = vmatpush1.bf16.msra.mxu0 %v761
      %6066 = vmatprep.subr.bf16.mxu0 0
      %6067 = vmatpush1.bf16.msra.mxu0 %v762
      %6068 = vmatprep.subr.bf16.mxu0 0
      %6069 = vmatpush1.bf16.msra.mxu0 %v763
      %6070 = vmatprep.subr.bf16.mxu0 0
      %6071 = vmatpush1.bf16.msra.mxu0 %v764
      %6072 = vmatprep.subr.bf16.mxu0 0
      %6073 = vmatpush1.bf16.msra.mxu0 %v765
      %6074 = vmatprep.subr.bf16.mxu0 0
      %6075 = vmatpush1.bf16.msra.mxu0 %v766
      %6076 = vmatprep.subr.bf16.mxu0 0
      %6077 = vmatpush1.bf16.msra.mxu0 %v767
      %6078 = vmatprep.subr.bf16.mxu0 0
      %6079 = vmatpush1.bf16.msra.mxu0 %v768
      %6080 = vmatprep.subr.bf16.mxu0 0
      %6081 = vmatpush1.bf16.msra.mxu0 %v769
      %6082 = vmatprep.mubr.bf16.mxu0 %v5987
      %6083 = vmatmul.mubr.bf16.gmra.mrb[0].mxu0 %v5986
      %v6084 = vpop.f32.mrb[0].mxu0
      %v6085 = vadd.f32 0.0, %v6084
      %v6086 = vpop.f32.mrb[0].mxu0
      %v6087 = vpop.f32.mrb[0].mxu0
      %v6088 = vadd.f32 0.0, %v6087
      %v6089 = vpop.f32.mrb[0].mxu0
      %6090 = vmatprep.mubr.bf16.mxu0 %v5989
      %6091 = vmatmul.mubr.bf16.gmra.mrb[0].mxu0 %v5988
      %v6092 = vpop.f32.mrb[0].mxu0
      %v6093 = vadd.f32 0.0, %v6092
      %v6094 = vpop.f32.mrb[0].mxu0
      %v6095 = vpop.f32.mrb[0].mxu0
      %v6096 = vadd.f32 0.0, %v6095
      %v6097 = vpop.f32.mrb[0].mxu0
      %6098 = vmatprep.mubr.bf16.mxu0 %v5991
      %6099 = vmatmul.mubr.bf16.gmra.mrb[0].mxu0 %v5990
      %v6100 = vpop.f32.mrb[0].mxu0
      %v6101 = vadd.f32 0.0, %v6100
      %v6102 = vpop.f32.mrb[0].mxu0
      %v6103 = vpop.f32.mrb[0].mxu0
      %v6104 = vadd.f32 0.0, %v6103
      %v6105 = vpop.f32.mrb[0].mxu0
      %6106 = vmatprep.mubr.bf16.mxu0 %v5993
      %6107 = vmatmul.mubr.bf16.gmra.mrb[0].mxu0 %v5992
      %v6108 = vpop.f32.mrb[0].mxu0
      %v6109 = vadd.f32 0.0, %v6108
      %v6110 = vpop.f32.mrb[0].mxu0
      %v6111 = vpop.f32.mrb[0].mxu0
      %v6112 = vadd.f32 0.0, %v6111
      %v6113 = vpop.f32.mrb[0].mxu0
      %6114 = vmatprep.mubr.bf16.mxu0 %v5995
      %6115 = vmatmul.mubr.bf16.gmra.mrb[0].mxu0 %v5994
      %v6116 = vpop.f32.mrb[0].mxu0
      %v6117 = vadd.f32 0.0, %v6116
      %v6118 = vpop.f32.mrb[0].mxu0
      %v6119 = vpop.f32.mrb[0].mxu0
      %v6120 = vadd.f32 0.0, %v6119
      %v6121 = vpop.f32.mrb[0].mxu0
      %6122 = vmatprep.mubr.bf16.mxu0 %v5997
      %6123 = vmatmul.mubr.bf16.gmra.mrb[0].mxu0 %v5996
      %v6124 = vpop.f32.mrb[0].mxu0
      %v6125 = vadd.f32 0.0, %v6124
      %v6126 = vpop.f32.mrb[0].mxu0
      %v6127 = vpop.f32.mrb[0].mxu0
      %v6128 = vadd.f32 0.0, %v6127
      %v6129 = vpop.f32.mrb[0].mxu0
      %6130 = vmatprep.mubr.bf16.mxu0 %v5999
      %6131 = vmatmul.mubr.bf16.gmra.mrb[0].mxu0 %v5998
      %v6132 = vpop.f32.mrb[0].mxu0
      %v6133 = vadd.f32 0.0, %v6132
      %v6134 = vpop.f32.mrb[0].mxu0
      %v6135 = vpop.f32.mrb[0].mxu0
      %v6136 = vadd.f32 0.0, %v6135
      %v6137 = vpop.f32.mrb[0].mxu0
      %6138 = vmatprep.mubr.bf16.mxu0 %v6001
      %6139 = vmatmul.mubr.bf16.gmra.mrb[0].mxu0 %v6000
      %v6140 = vpop.f32.mrb[0].mxu0
      %v6141 = vadd.f32 0.0, %v6140
      %v6142 = vpop.f32.mrb[0].mxu0
      %v6143 = vpop.f32.mrb[0].mxu0
      %v6144 = vadd.f32 0.0, %v6143
      %v6145 = vpop.f32.mrb[0].mxu0
      %6146 = vmatprep.mubr.bf16.mxu0 %v6003
      %6147 = vmatmul.mubr.bf16.gmra.mrb[0].mxu0 %v6002
      %v6148 = vpop.f32.mrb[0].mxu0
      %v6149 = vadd.f32 0.0, %v6148
      %v6150 = vpop.f32.mrb[0].mxu0
      %v6151 = vpop.f32.mrb[0].mxu0
      %v6152 = vadd.f32 0.0, %v6151
      %v6153 = vpop.f32.mrb[0].mxu0
      %6154 = vmatprep.mubr.bf16.mxu0 %v6005
      %6155 = vmatmul.mubr.bf16.gmra.mrb[0].mxu0 %v6004
      %v6156 = vpop.f32.mrb[0].mxu0
      %v6157 = vadd.f32 0.0, %v6156
      %v6158 = vpop.f32.mrb[0].mxu0
      %v6159 = vpop.f32.mrb[0].mxu0
      %v6160 = vadd.f32 0.0, %v6159
      %v6161 = vpop.f32.mrb[0].mxu0
      %6162 = vmatprep.mubr.bf16.mxu0 %v6007
      %6163 = vmatmul.mubr.bf16.gmra.mrb[0].mxu0 %v6006
      %v6164 = vpop.f32.mrb[0].mxu0
      %v6165 = vadd.f32 0.0, %v6164
      %v6166 = vpop.f32.mrb[0].mxu0
      %v6167 = vpop.f32.mrb[0].mxu0
      %v6168 = vadd.f32 0.0, %v6167
      %v6169 = vpop.f32.mrb[0].mxu0
      %6170 = vmatprep.mubr.bf16.mxu0 %v6009
      %6171 = vmatmul.mubr.bf16.gmra.mrb[0].mxu0 %v6008
      %v6172 = vpop.f32.mrb[0].mxu0
      %v6173 = vadd.f32 0.0, %v6172
      %v6174 = vpop.f32.mrb[0].mxu0
      %v6175 = vpop.f32.mrb[0].mxu0
      %v6176 = vadd.f32 0.0, %v6175
      %v6177 = vpop.f32.mrb[0].mxu0
      %6178 = vmatprep.mubr.bf16.mxu0 %v6011
      %6179 = vmatmul.mubr.bf16.gmra.mrb[0].mxu0 %v6010
      %v6180 = vpop.f32.mrb[0].mxu0
      %v6181 = vadd.f32 0.0, %v6180
      %v6182 = vpop.f32.mrb[0].mxu0
      %v6183 = vpop.f32.mrb[0].mxu0
      %v6184 = vadd.f32 0.0, %v6183
      %v6185 = vpop.f32.mrb[0].mxu0
      %6186 = vmatprep.mubr.bf16.mxu0 %v6013
      %6187 = vmatmul.mubr.bf16.gmra.mrb[0].mxu0 %v6012
      %v6188 = vpop.f32.mrb[0].mxu0
      %v6189 = vadd.f32 0.0, %v6188
      %v6190 = vpop.f32.mrb[0].mxu0
      %v6191 = vpop.f32.mrb[0].mxu0
      %v6192 = vadd.f32 0.0, %v6191
      %v6193 = vpop.f32.mrb[0].mxu0
      %6194 = vmatprep.mubr.bf16.mxu0 %v6015
      %6195 = vmatmul.mubr.bf16.gmra.mrb[0].mxu0 %v6014
      %v6196 = vpop.f32.mrb[0].mxu0
      %v6197 = vadd.f32 0.0, %v6196
      %v6198 = vpop.f32.mrb[0].mxu0
      %v6199 = vpop.f32.mrb[0].mxu0
      %v6200 = vadd.f32 0.0, %v6199
      %v6201 = vpop.f32.mrb[0].mxu0
      %6202 = vmatprep.mubr.bf16.mxu0 %v6017
      %6203 = vmatmul.mubr.bf16.gmra.mrb[0].mxu0 %v6016
      %v6204 = vpop.f32.mrb[0].mxu0
      %v6205 = vadd.f32 0.0, %v6204
      %v6206 = vpop.f32.mrb[0].mxu0
      %v6207 = vpop.f32.mrb[0].mxu0
      %v6208 = vadd.f32 0.0, %v6207
      %v6209 = vpop.f32.mrb[0].mxu0
      %6210 = vdwg.mxu0
      %v6211 = vpack.c.bf16 %v6088, %v6085
      %v6212 = vpack.c.bf16 %v6096, %v6093
      %v6213 = vpack.c.bf16 %v6104, %v6101
      %v6214 = vpack.c.bf16 %v6112, %v6109
      %v6215 = vpack.c.bf16 %v6120, %v6117
      %v6216 = vpack.c.bf16 %v6128, %v6125
      %v6217 = vpack.c.bf16 %v6136, %v6133
      %v6218 = vpack.c.bf16 %v6144, %v6141
      %v6219 = vpack.c.bf16 %v6152, %v6149
      %v6220 = vpack.c.bf16 %v6160, %v6157
      %v6221 = vpack.c.bf16 %v6168, %v6165
      %v6222 = vpack.c.bf16 %v6176, %v6173
      %v6223 = vpack.c.bf16 %v6184, %v6181
      %v6224 = vpack.c.bf16 %v6192, %v6189
      %v6225 = vpack.c.bf16 %v6200, %v6197
      %v6226 = vpack.c.bf16 %v6208, %v6205
      %s6227 = scalar_lea.vmem %s7, 256
      %v6228 = vld [vmem:[%s6227] sm:$0xf]
      %v6229 = vld [vmem:[%s6227 + $0x4] sm:$0xf]
      %v6230 = vld [vmem:[%s6227 + $0x8] sm:$0xf]
      %v6231 = vld [vmem:[%s6227 + $0xc] sm:$0xf]
      %v6232 = vld [vmem:[%s6227 + $0x10] sm:$0xf]
      %v6233 = vld [vmem:[%s6227 + $0x14] sm:$0xf]
      %v6234 = vld [vmem:[%s6227 + $0x18] sm:$0xf]
      %v6235 = vld [vmem:[%s6227 + $0x1c] sm:$0xf]
      %v6244 = vunpack.c.l.b16 %v6228
      %v6245 = vunpack.c.l.b16 %v6229
      %v6246 = vunpack.c.l.b16 %v6230
      %v6247 = vunpack.c.l.b16 %v6231
      %v6248 = vunpack.c.l.b16 %v6232
      %v6249 = vunpack.c.l.b16 %v6233
      %v6250 = vunpack.c.l.b16 %v6234
      %v6251 = vunpack.c.l.b16 %v6235
      %v6252 = vpack.c.b16 %v6245, %v6244
      %v6253 = vpack.c.b16 %v6247, %v6246
      %v6254 = vpack.c.b16 %v6249, %v6248
      %v6255 = vpack.c.b16 %v6251, %v6250
      %v6261 = vsel %vm1550, %v6211, 0
      %v6264 = vsel %vm1550, %v6212, 0
      %v6267 = vsel %vm1550, %v6213, 0
      %v6270 = vsel %vm1550, %v6214, 0
      %v6273 = vsel %vm1550, %v6215, 0
      %v6276 = vsel %vm1550, %v6216, 0
      %v6279 = vsel %vm1550, %v6217, 0
      %v6282 = vsel %vm1550, %v6218, 0
      %v6285 = vsel %vm1550, %v6219, 0
      %v6288 = vsel %vm1550, %v6220, 0
      %v6291 = vsel %vm1550, %v6221, 0
      %v6294 = vsel %vm1550, %v6222, 0
      %v6297 = vsel %vm1550, %v6223, 0
      %v6300 = vsel %vm1550, %v6224, 0
      %v6303 = vsel %vm1550, %v6225, 0
      %v6306 = vsel %vm1550, %v6226, 0
      %6308 = vmatprep.subr.bf16.mxu0 0
      %6309 = vmatpush1.bf16.msra.mxu0 %v6252
      %6310 = vmatprep.subr.bf16.mxu0 0
      %6311 = vmatpush1.bf16.msra.mxu0 %v6253
      %6312 = vmatprep.subr.bf16.mxu0 0
      %6313 = vmatpush1.bf16.msra.mxu0 %v6254
      %6314 = vmatprep.subr.bf16.mxu0 0
      %6315 = vmatpush1.bf16.msra.mxu0 %v6255
      %6316 = vmatprep.subr.bf16.mxu0 0
      %6317 = vmatpush1.bf16.msra.mxu0 0
      %6318 = vmatprep.subr.bf16.mxu0 0
      %6319 = vmatpush1.bf16.msra.mxu0 0
      %6320 = vmatprep.subr.bf16.mxu0 0
      %6321 = vmatpush1.bf16.msra.mxu0 0
      %6322 = vmatprep.subr.bf16.mxu0 0
      %6323 = vmatpush1.bf16.msra.mxu0 0
      %6324 = vmatprep.subr.bf16.mxu0 0
      %6325 = vmatpush1.bf16.msra.mxu0 0
      %6326 = vmatprep.subr.bf16.mxu0 0
      %6327 = vmatpush1.bf16.msra.mxu0 0
      %6328 = vmatprep.subr.bf16.mxu0 0
      %6329 = vmatpush1.bf16.msra.mxu0 0
      %6330 = vmatprep.subr.bf16.mxu0 0
      %6331 = vmatpush1.bf16.msra.mxu0 0
      %6332 = vmatprep.subr.bf16.mxu0 0
      %6333 = vmatpush1.bf16.msra.mxu0 0
      %6334 = vmatprep.subr.bf16.mxu0 0
      %6335 = vmatpush1.bf16.msra.mxu0 0
      %6336 = vmatprep.subr.bf16.mxu0 0
      %6337 = vmatpush1.bf16.msra.mxu0 0
      %6338 = vmatprep.subr.bf16.mxu0 0
      %6339 = vmatpush1.bf16.msra.mxu0 0
      %6340 = vmatprep.mubr.bf16.mxu0 0
      %6341 = vmatmul.mubr.bf16.gmra.mrb[0].mxu0 %v6261
      %v6342 = vpop.f32.mrb[0].mxu0
      %v6343 = vadd.f32 0.0, %v6342
      %v6344 = vpop.f32.mrb[0].mxu0
      %v6345 = vpop.f32.mrb[0].mxu0
      %v6346 = vadd.f32 0.0, %v6345
      %v6347 = vpop.f32.mrb[0].mxu0
      %6348 = vmatprep.mubr.bf16.mxu0 0
      %6349 = vmatmul.mubr.bf16.gmra.mrb[0].mxu0 %v6264
      %v6350 = vpop.f32.mrb[0].mxu0
      %v6351 = vadd.f32 0.0, %v6350
      %v6352 = vpop.f32.mrb[0].mxu0
      %v6353 = vpop.f32.mrb[0].mxu0
      %v6354 = vadd.f32 0.0, %v6353
      %v6355 = vpop.f32.mrb[0].mxu0
      %6356 = vmatprep.mubr.bf16.mxu0 0
      %6357 = vmatmul.mubr.bf16.gmra.mrb[0].mxu0 %v6267
      %v6358 = vpop.f32.mrb[0].mxu0
      %v6359 = vadd.f32 0.0, %v6358
      %v6360 = vpop.f32.mrb[0].mxu0
      %v6361 = vpop.f32.mrb[0].mxu0
      %v6362 = vadd.f32 0.0, %v6361
      %v6363 = vpop.f32.mrb[0].mxu0
      %6364 = vmatprep.mubr.bf16.mxu0 0
      %6365 = vmatmul.mubr.bf16.gmra.mrb[0].mxu0 %v6270
      %v6366 = vpop.f32.mrb[0].mxu0
      %v6367 = vadd.f32 0.0, %v6366
      %v6368 = vpop.f32.mrb[0].mxu0
      %v6369 = vpop.f32.mrb[0].mxu0
      %v6370 = vadd.f32 0.0, %v6369
      %v6371 = vpop.f32.mrb[0].mxu0
      %6372 = vmatprep.mubr.bf16.mxu0 0
      %6373 = vmatmul.mubr.bf16.gmra.mrb[0].mxu0 %v6273
      %v6374 = vpop.f32.mrb[0].mxu0
      %v6375 = vadd.f32 0.0, %v6374
      %v6376 = vpop.f32.mrb[0].mxu0
      %v6377 = vpop.f32.mrb[0].mxu0
      %v6378 = vadd.f32 0.0, %v6377
      %v6379 = vpop.f32.mrb[0].mxu0
      %6380 = vmatprep.mubr.bf16.mxu0 0
      %6381 = vmatmul.mubr.bf16.gmra.mrb[0].mxu0 %v6276
      %v6382 = vpop.f32.mrb[0].mxu0
      %v6383 = vadd.f32 0.0, %v6382
      %v6384 = vpop.f32.mrb[0].mxu0
      %v6385 = vpop.f32.mrb[0].mxu0
      %v6386 = vadd.f32 0.0, %v6385
      %v6387 = vpop.f32.mrb[0].mxu0
      %6388 = vmatprep.mubr.bf16.mxu0 0
      %6389 = vmatmul.mubr.bf16.gmra.mrb[0].mxu0 %v6279
      %v6390 = vpop.f32.mrb[0].mxu0
      %v6391 = vadd.f32 0.0, %v6390
      %v6392 = vpop.f32.mrb[0].mxu0
      %v6393 = vpop.f32.mrb[0].mxu0
      %v6394 = vadd.f32 0.0, %v6393
      %v6395 = vpop.f32.mrb[0].mxu0
      %6396 = vmatprep.mubr.bf16.mxu0 0
      %6397 = vmatmul.mubr.bf16.gmra.mrb[0].mxu0 %v6282
      %v6398 = vpop.f32.mrb[0].mxu0
      %v6399 = vadd.f32 0.0, %v6398
      %v6400 = vpop.f32.mrb[0].mxu0
      %v6401 = vpop.f32.mrb[0].mxu0
      %v6402 = vadd.f32 0.0, %v6401
      %v6403 = vpop.f32.mrb[0].mxu0
      %6404 = vmatprep.mubr.bf16.mxu0 0
      %6405 = vmatmul.mubr.bf16.gmra.mrb[0].mxu0 %v6285
      %v6406 = vpop.f32.mrb[0].mxu0
      %v6407 = vadd.f32 0.0, %v6406
      %v6408 = vpop.f32.mrb[0].mxu0
      %v6409 = vpop.f32.mrb[0].mxu0
      %v6410 = vadd.f32 0.0, %v6409
      %v6411 = vpop.f32.mrb[0].mxu0
      %6412 = vmatprep.mubr.bf16.mxu0 0
      %6413 = vmatmul.mubr.bf16.gmra.mrb[0].mxu0 %v6288
      %v6414 = vpop.f32.mrb[0].mxu0
      %v6415 = vadd.f32 0.0, %v6414
      %v6416 = vpop.f32.mrb[0].mxu0
      %v6417 = vpop.f32.mrb[0].mxu0
      %v6418 = vadd.f32 0.0, %v6417
      %v6419 = vpop.f32.mrb[0].mxu0
      %6420 = vmatprep.mubr.bf16.mxu0 0
      %6421 = vmatmul.mubr.bf16.gmra.mrb[0].mxu0 %v6291
      %v6422 = vpop.f32.mrb[0].mxu0
      %v6423 = vadd.f32 0.0, %v6422
      %v6424 = vpop.f32.mrb[0].mxu0
      %v6425 = vpop.f32.mrb[0].mxu0
      %v6426 = vadd.f32 0.0, %v6425
      %v6427 = vpop.f32.mrb[0].mxu0
      %6428 = vmatprep.mubr.bf16.mxu0 0
      %6429 = vmatmul.mubr.bf16.gmra.mrb[0].mxu0 %v6294
      %v6430 = vpop.f32.mrb[0].mxu0
      %v6431 = vadd.f32 0.0, %v6430
      %v6432 = vpop.f32.mrb[0].mxu0
      %v6433 = vpop.f32.mrb[0].mxu0
      %v6434 = vadd.f32 0.0, %v6433
      %v6435 = vpop.f32.mrb[0].mxu0
      %6436 = vmatprep.mubr.bf16.mxu0 0
      %6437 = vmatmul.mubr.bf16.gmra.mrb[0].mxu0 %v6297
      %v6438 = vpop.f32.mrb[0].mxu0
      %v6439 = vadd.f32 0.0, %v6438
      %v6440 = vpop.f32.mrb[0].mxu0
      %v6441 = vpop.f32.mrb[0].mxu0
      %v6442 = vadd.f32 0.0, %v6441
      %v6443 = vpop.f32.mrb[0].mxu0
      %6444 = vmatprep.mubr.bf16.mxu0 0
      %6445 = vmatmul.mubr.bf16.gmra.mrb[0].mxu0 %v6300
      %v6446 = vpop.f32.mrb[0].mxu0
      %v6447 = vadd.f32 0.0, %v6446
      %v6448 = vpop.f32.mrb[0].mxu0
      %v6449 = vpop.f32.mrb[0].mxu0
      %v6450 = vadd.f32 0.0, %v6449
      %v6451 = vpop.f32.mrb[0].mxu0
      %6452 = vmatprep.mubr.bf16.mxu0 0
      %6453 = vmatmul.mubr.bf16.gmra.mrb[0].mxu0 %v6303
      %v6454 = vpop.f32.mrb[0].mxu0
      %v6455 = vadd.f32 0.0, %v6454
      %v6456 = vpop.f32.mrb[0].mxu0
      %v6457 = vpop.f32.mrb[0].mxu0
      %v6458 = vadd.f32 0.0, %v6457
      %v6459 = vpop.f32.mrb[0].mxu0
      %6460 = vmatprep.mubr.bf16.mxu0 0
      %6461 = vmatmul.mubr.bf16.gmra.mrb[0].mxu0 %v6306
      %v6462 = vpop.f32.mrb[0].mxu0
      %v6463 = vadd.f32 0.0, %v6462
      %v6464 = vpop.f32.mrb[0].mxu0
      %v6465 = vpop.f32.mrb[0].mxu0
      %v6466 = vadd.f32 0.0, %v6465
      %v6467 = vpop.f32.mrb[0].mxu0
      %6468 = vdwg.mxu0
      %v6469 = vadd.f32 %v5825, %v6343
      %v6470 = vadd.f32 %v5826, %v6346
      %v6471 = vadd.f32 %v5827, %v6351
      %v6472 = vadd.f32 %v5828, %v6354
      %v6473 = vadd.f32 %v5829, %v6359
      %v6474 = vadd.f32 %v5830, %v6362
      %v6475 = vadd.f32 %v5831, %v6367
      %v6476 = vadd.f32 %v5832, %v6370
      %v6477 = vadd.f32 %v5833, %v6375
      %v6478 = vadd.f32 %v5834, %v6378
      %v6479 = vadd.f32 %v5835, %v6383
      %v6480 = vadd.f32 %v5836, %v6386
      %v6481 = vadd.f32 %v5837, %v6391
      %v6482 = vadd.f32 %v5838, %v6394
      %v6483 = vadd.f32 %v5839, %v6399
      %v6484 = vadd.f32 %v5840, %v6402
      %v6485 = vadd.f32 %v5841, %v6407
      %v6486 = vadd.f32 %v5842, %v6410
      %v6487 = vadd.f32 %v5843, %v6415
      %v6488 = vadd.f32 %v5844, %v6418
      %v6489 = vadd.f32 %v5845, %v6423
      %v6490 = vadd.f32 %v5846, %v6426
      %v6491 = vadd.f32 %v5847, %v6431
      %v6492 = vadd.f32 %v5848, %v6434
      %v6493 = vadd.f32 %v5849, %v6439
      %v6494 = vadd.f32 %v5850, %v6442
      %v6495 = vadd.f32 %v5851, %v6447
      %v6496 = vadd.f32 %v5852, %v6450
      %v6497 = vadd.f32 %v5853, %v6455
      %v6498 = vadd.f32 %v5854, %v6458
      %v6499 = vadd.f32 %v5855, %v6463
      %v6500 = vadd.f32 %v5856, %v6466
      %v6501 = vld [vmem:[%s8] sm:$0x1]
      %v6503 = vlaneseq
      %v6504 = vshrl.u32 %v6503, 7
      %v6505 = vsub.s32 0, %v6504
      %v6506 = vrot.slane %v6501, %v6505
      %v6508 = vadd.f32 %v6469, %v6506
      %v6509 = vadd.f32 %v6470, %v6506
      %v6510 = vadd.f32 %v6471, %v6506
      %v6511 = vadd.f32 %v6472, %v6506
      %v6512 = vadd.f32 %v6473, %v6506
      %v6513 = vadd.f32 %v6474, %v6506
      %v6514 = vadd.f32 %v6475, %v6506
      %v6515 = vadd.f32 %v6476, %v6506
      %v6516 = vadd.f32 %v6477, %v6506
      %v6517 = vadd.f32 %v6478, %v6506
      %v6518 = vadd.f32 %v6479, %v6506
      %v6519 = vadd.f32 %v6480, %v6506
      %v6520 = vadd.f32 %v6481, %v6506
      %v6521 = vadd.f32 %v6482, %v6506
      %v6522 = vadd.f32 %v6483, %v6506
      %v6523 = vadd.f32 %v6484, %v6506
      %v6524 = vadd.f32 %v6485, %v6506
      %v6525 = vadd.f32 %v6486, %v6506
      %v6526 = vadd.f32 %v6487, %v6506
      %v6527 = vadd.f32 %v6488, %v6506
      %v6528 = vadd.f32 %v6489, %v6506
      %v6529 = vadd.f32 %v6490, %v6506
      %v6530 = vadd.f32 %v6491, %v6506
      %v6531 = vadd.f32 %v6492, %v6506
      %v6532 = vadd.f32 %v6493, %v6506
      %v6533 = vadd.f32 %v6494, %v6506
      %v6534 = vadd.f32 %v6495, %v6506
      %v6535 = vadd.f32 %v6496, %v6506
      %v6536 = vadd.f32 %v6497, %v6506
      %v6537 = vadd.f32 %v6498, %v6506
      %v6538 = vadd.f32 %v6499, %v6506
      %v6539 = vadd.f32 %v6500, %v6506
      %v6540 = vmax.f32 %v6508, 0.0
      %v6541 = vmax.f32 %v6509, 0.0
      %v6542 = vmax.f32 %v6510, 0.0
      %v6543 = vmax.f32 %v6511, 0.0
      %v6544 = vmax.f32 %v6512, 0.0
      %v6545 = vmax.f32 %v6513, 0.0
      %v6546 = vmax.f32 %v6514, 0.0
      %v6547 = vmax.f32 %v6515, 0.0
      %v6548 = vmax.f32 %v6516, 0.0
      %v6549 = vmax.f32 %v6517, 0.0
      %v6550 = vmax.f32 %v6518, 0.0
      %v6551 = vmax.f32 %v6519, 0.0
      %v6552 = vmax.f32 %v6520, 0.0
      %v6553 = vmax.f32 %v6521, 0.0
      %v6554 = vmax.f32 %v6522, 0.0
      %v6555 = vmax.f32 %v6523, 0.0
      %v6556 = vmax.f32 %v6524, 0.0
      %v6557 = vmax.f32 %v6525, 0.0
      %v6558 = vmax.f32 %v6526, 0.0
      %v6559 = vmax.f32 %v6527, 0.0
      %v6560 = vmax.f32 %v6528, 0.0
      %v6561 = vmax.f32 %v6529, 0.0
      %v6562 = vmax.f32 %v6530, 0.0
      %v6563 = vmax.f32 %v6531, 0.0
      %v6564 = vmax.f32 %v6532, 0.0
      %v6565 = vmax.f32 %v6533, 0.0
      %v6566 = vmax.f32 %v6534, 0.0
      %v6567 = vmax.f32 %v6535, 0.0
      %v6568 = vmax.f32 %v6536, 0.0
      %v6569 = vmax.f32 %v6537, 0.0
      %v6570 = vmax.f32 %v6538, 0.0
      %v6571 = vmax.f32 %v6539, 0.0
      %v6572 = vpack.c.bf16 %v6541, %v6540
      %v6573 = vpack.c.bf16 %v6543, %v6542
      %v6574 = vpack.c.bf16 %v6545, %v6544
      %v6575 = vpack.c.bf16 %v6547, %v6546
      %v6576 = vpack.c.bf16 %v6549, %v6548
      %v6577 = vpack.c.bf16 %v6551, %v6550
      %v6578 = vpack.c.bf16 %v6553, %v6552
      %v6579 = vpack.c.bf16 %v6555, %v6554
      %v6580 = vpack.c.bf16 %v6557, %v6556
      %v6581 = vpack.c.bf16 %v6559, %v6558
      %v6582 = vpack.c.bf16 %v6561, %v6560
      %v6583 = vpack.c.bf16 %v6563, %v6562
      %v6584 = vpack.c.bf16 %v6565, %v6564
      %v6585 = vpack.c.bf16 %v6567, %v6566
      %v6586 = vpack.c.bf16 %v6569, %v6568
      %v6587 = vpack.c.bf16 %v6571, %v6570
      %v6588 = vld [vmem:[%s1] sm:$0xff]
      %v6589 = vld [vmem:[%s1 + $0x8] sm:$0xff]
      %v6590 = vld [vmem:[%s1 + $0x10] sm:$0xff]
      %v6591 = vld [vmem:[%s1 + $0x18] sm:$0xff]
      %v6592 = vld [vmem:[%s1 + $0x20] sm:$0xff]
      %v6593 = vld [vmem:[%s1 + $0x28] sm:$0xff]
      %v6594 = vld [vmem:[%s1 + $0x30] sm:$0x11]
      %v6602 = vunpack.c.l.b16 %v6588
      %v6603 = vunpack.c.h.b16 %v6588
      %v6604 = vunpack.c.l.b16 %v6589
      %v6605 = vunpack.c.h.b16 %v6589
      %v6606 = vunpack.c.l.b16 %v6590
      %v6607 = vunpack.c.h.b16 %v6590
      %v6608 = vunpack.c.l.b16 %v6591
      %v6609 = vunpack.c.h.b16 %v6591
      %v6610 = vunpack.c.l.b16 %v6592
      %v6611 = vunpack.c.h.b16 %v6592
      %v6612 = vunpack.c.l.b16 %v6593
      %v6613 = vunpack.c.h.b16 %v6593
      %v6614 = vunpack.c.l.b16 %v6594
      %v6615 = vunpack.c.h.b16 %v6594
      %v6616 = vpack.c.b16 %v6604, %v6602
      %v6617 = vpack.c.b16 %v6605, %v6603
      %v6618 = vpack.c.b16 %v6608, %v6606
      %v6619 = vpack.c.b16 %v6609, %v6607
      %v6620 = vpack.c.b16 %v6612, %v6610
      %v6621 = vpack.c.b16 %v6613, %v6611
      %v6622 = vpack.c.b16 %v6614, %v6614
      %v6623 = vpack.c.b16 %v6615, %v6615
      %6648 = vmatprep.subr.bf16.mxu0 0
      %6649 = vmatpush1.bf16.msra.mxu0 %v492
      %6650 = vmatprep.subr.bf16.mxu0 0
      %6651 = vmatpush1.bf16.msra.mxu0 %v493
      %6652 = vmatprep.subr.bf16.mxu0 0
      %6653 = vmatpush1.bf16.msra.mxu0 %v494
      %6654 = vmatprep.subr.bf16.mxu0 0
      %6655 = vmatpush1.bf16.msra.mxu0 %v495
      %6656 = vmatprep.subr.bf16.mxu0 0
      %6657 = vmatpush1.bf16.msra.mxu0 %v496
      %6658 = vmatprep.subr.bf16.mxu0 0
      %6659 = vmatpush1.bf16.msra.mxu0 %v497
      %6660 = vmatprep.subr.bf16.mxu0 0
      %6661 = vmatpush1.bf16.msra.mxu0 %v498
      %6662 = vmatprep.subr.bf16.mxu0 0
      %6663 = vmatpush1.bf16.msra.mxu0 %v499
      %6664 = vmatprep.subr.bf16.mxu0 0
      %6665 = vmatpush1.bf16.msra.mxu0 %v500
      %6666 = vmatprep.subr.bf16.mxu0 0
      %6667 = vmatpush1.bf16.msra.mxu0 %v501
      %6668 = vmatprep.subr.bf16.mxu0 0
      %6669 = vmatpush1.bf16.msra.mxu0 %v502
      %6670 = vmatprep.subr.bf16.mxu0 0
      %6671 = vmatpush1.bf16.msra.mxu0 %v503
      %6672 = vmatprep.subr.bf16.mxu0 0
      %6673 = vmatpush1.bf16.msra.mxu0 %v504
      %6674 = vmatprep.subr.bf16.mxu0 0
      %6675 = vmatpush1.bf16.msra.mxu0 %v505
      %6676 = vmatprep.subr.bf16.mxu0 0
      %6677 = vmatpush1.bf16.msra.mxu0 %v506
      %6678 = vmatprep.subr.bf16.mxu0 0
      %6679 = vmatpush1.bf16.msra.mxu0 %v507
      %6680 = vmatprep.mubr.bf16.mxu0 %v6617
      %6681 = vmatmul.mubr.bf16.gmra.mrb[0].mxu0 %v6616
      %v6682 = vpop.f32.mrb[0].mxu0
      %v6683 = vadd.f32 0.0, %v6682
      %v6684 = vpop.f32.mrb[0].mxu0
      %v6685 = vpop.f32.mrb[0].mxu0
      %v6686 = vadd.f32 0.0, %v6685
      %v6687 = vpop.f32.mrb[0].mxu0
      %6688 = vmatprep.mubr.bf16.mxu0 %v6619
      %6689 = vmatmul.mubr.bf16.gmra.mrb[0].mxu0 %v6618
      %v6690 = vpop.f32.mrb[0].mxu0
      %v6691 = vadd.f32 0.0, %v6690
      %v6692 = vpop.f32.mrb[0].mxu0
      %v6693 = vpop.f32.mrb[0].mxu0
      %v6694 = vadd.f32 0.0, %v6693
      %v6695 = vpop.f32.mrb[0].mxu0
      %6696 = vmatprep.mubr.bf16.mxu0 %v6621
      %6697 = vmatmul.mubr.bf16.gmra.mrb[0].mxu0 %v6620
      %v6698 = vpop.f32.mrb[0].mxu0
      %v6699 = vadd.f32 0.0, %v6698
      %v6700 = vpop.f32.mrb[0].mxu0
      %v6701 = vpop.f32.mrb[0].mxu0
      %v6702 = vadd.f32 0.0, %v6701
      %v6703 = vpop.f32.mrb[0].mxu0
      %6704 = vmatprep.mubr.bf16.mxu0 %v6623
      %6705 = vmatmul.mubr.bf16.gmra.mrb[0].mxu0 %v6622
      %v6706 = vpop.f32.mrb[0].mxu0
      %v6707 = vadd.f32 0.0, %v6706
      %v6708 = vpop.f32.mrb[0].mxu0
      %v6709 = vpop.f32.mrb[0].mxu0
      %v6710 = vpop.f32.mrb[0].mxu0
      %6711 = vdwg.mxu0
      %v6712 = vpack.c.bf16 %v6686, %v6683
      %v6713 = vpack.c.bf16 %v6694, %v6691
      %v6714 = vpack.c.bf16 %v6702, %v6699
      %v6715 = vpack.c.bf16 %v6707, %v6707
      %v6716 = vld [vmem:[%s3] sm:$0x3f]
      %6717 = vmatprep.subr.bf16.mxu0 0
      %6718 = vmatpush1.bf16.msra.mxu0 %v6572
      %6719 = vmatprep.subr.bf16.mxu0 0
      %6720 = vmatpush1.bf16.msra.mxu0 %v6573
      %6721 = vmatprep.subr.bf16.mxu0 0
      %6722 = vmatpush1.bf16.msra.mxu0 %v6574
      %6723 = vmatprep.subr.bf16.mxu0 0
      %6724 = vmatpush1.bf16.msra.mxu0 %v6575
      %6725 = vmatprep.subr.bf16.mxu0 0
      %6726 = vmatpush1.bf16.msra.mxu0 %v6576
      %6727 = vmatprep.subr.bf16.mxu0 0
      %6728 = vmatpush1.bf16.msra.mxu0 %v6577
      %6729 = vmatprep.subr.bf16.mxu0 0
      %6730 = vmatpush1.bf16.msra.mxu0 %v6578
      %6731 = vmatprep.subr.bf16.mxu0 0
      %6732 = vmatpush1.bf16.msra.mxu0 %v6579
      %6733 = vmatprep.subr.bf16.mxu0 0
      %6734 = vmatpush1.bf16.msra.mxu0 %v6580
      %6735 = vmatprep.subr.bf16.mxu0 0
      %6736 = vmatpush1.bf16.msra.mxu0 %v6581
      %6737 = vmatprep.subr.bf16.mxu0 0
      %6738 = vmatpush1.bf16.msra.mxu0 %v6582
      %6739 = vmatprep.subr.bf16.mxu0 0
      %6740 = vmatpush1.bf16.msra.mxu0 %v6583
      %6741 = vmatprep.subr.bf16.mxu0 0
      %6742 = vmatpush1.bf16.msra.mxu0 %v6584
      %6743 = vmatprep.subr.bf16.mxu0 0
      %6744 = vmatpush1.bf16.msra.mxu0 %v6585
      %6745 = vmatprep.subr.bf16.mxu0 0
      %6746 = vmatpush1.bf16.msra.mxu0 %v6586
      %6747 = vmatprep.subr.bf16.mxu0 0
      %6748 = vmatpush1.bf16.msra.mxu0 %v6587
      %6749 = vmatprep.mubr.bf16.mxu0 %v6617
      %6750 = vmatmul.mubr.bf16.gmra.mrb[0].mxu0 %v6616
      %v6751 = vpop.f32.mrb[0].mxu0
      %v6752 = vadd.f32 0.0, %v6751
      %v6753 = vpop.f32.mrb[0].mxu0
      %v6754 = vpop.f32.mrb[0].mxu0
      %v6755 = vadd.f32 0.0, %v6754
      %v6756 = vpop.f32.mrb[0].mxu0
      %6757 = vmatprep.mubr.bf16.mxu0 %v6619
      %6758 = vmatmul.mubr.bf16.gmra.mrb[0].mxu0 %v6618
      %v6759 = vpop.f32.mrb[0].mxu0
      %v6760 = vadd.f32 0.0, %v6759
      %v6761 = vpop.f32.mrb[0].mxu0
      %v6762 = vpop.f32.mrb[0].mxu0
      %v6763 = vadd.f32 0.0, %v6762
      %v6764 = vpop.f32.mrb[0].mxu0
      %6765 = vmatprep.mubr.bf16.mxu0 %v6621
      %6766 = vmatmul.mubr.bf16.gmra.mrb[0].mxu0 %v6620
      %v6767 = vpop.f32.mrb[0].mxu0
      %v6768 = vadd.f32 0.0, %v6767
      %v6769 = vpop.f32.mrb[0].mxu0
      %v6770 = vpop.f32.mrb[0].mxu0
      %v6771 = vadd.f32 0.0, %v6770
      %v6772 = vpop.f32.mrb[0].mxu0
      %6773 = vmatprep.mubr.bf16.mxu0 %v6623
      %6774 = vmatmul.mubr.bf16.gmra.mrb[0].mxu0 %v6622
      %v6775 = vpop.f32.mrb[0].mxu0
      %v6776 = vadd.f32 0.0, %v6775
      %v6777 = vpop.f32.mrb[0].mxu0
      %v6778 = vpop.f32.mrb[0].mxu0
      %v6779 = vpop.f32.mrb[0].mxu0
      %6780 = vdwg.mxu0
      %v6781 = vpack.c.bf16 %v6755, %v6752
      %v6782 = vpack.c.bf16 %v6763, %v6760
      %v6783 = vpack.c.bf16 %v6771, %v6768
      %v6784 = vpack.c.bf16 %v6776, %v6776
      %v6785 = vld [vmem:[%s9] sm:$0xf]
      %v6786 = vld [vmem:[%s9 + $0x4] sm:$0xf]
      %v6787 = vld [vmem:[%s9 + $0x8] sm:$0xf]
      %v6788 = vld [vmem:[%s9 + $0xc] sm:$0xf]
      %v6789 = vld [vmem:[%s9 + $0x10] sm:$0xf]
      %v6790 = vld [vmem:[%s9 + $0x14] sm:$0xf]
      %v6791 = vld [vmem:[%s9 + $0x18] sm:$0xf]
      %v6792 = vld [vmem:[%s9 + $0x1c] sm:$0xf]
      %v6793 = vld [vmem:[%s9 + $0x20] sm:$0xf]
      %v6794 = vld [vmem:[%s9 + $0x24] sm:$0xf]
      %v6795 = vld [vmem:[%s9 + $0x28] sm:$0xf]
      %v6796 = vld [vmem:[%s9 + $0x2c] sm:$0xf]
      %s6797 = scalar_lea.vmem %s1, 56
      %v6798 = vld [vmem:[%s6797] sm:$0xff]
      %v6799 = vld [vmem:[%s6797 + $0x8] sm:$0xff]
      %v6800 = vld [vmem:[%s6797 + $0x10] sm:$0xff]
      %v6801 = vld [vmem:[%s6797 + $0x18] sm:$0xff]
      %v6802 = vld [vmem:[%s6797 + $0x20] sm:$0xff]
      %v6803 = vld [vmem:[%s6797 + $0x28] sm:$0xff]
      %v6804 = vld [vmem:[%s6797 + $0x30] sm:$0x11]
      %v6812 = vunpack.c.l.b16 %v6798
      %v6813 = vunpack.c.h.b16 %v6798
      %v6814 = vunpack.c.l.b16 %v6799
      %v6815 = vunpack.c.h.b16 %v6799
      %v6816 = vunpack.c.l.b16 %v6800
      %v6817 = vunpack.c.h.b16 %v6800
      %v6818 = vunpack.c.l.b16 %v6801
      %v6819 = vunpack.c.h.b16 %v6801
      %v6820 = vunpack.c.l.b16 %v6802
      %v6821 = vunpack.c.h.b16 %v6802
      %v6822 = vunpack.c.l.b16 %v6803
      %v6823 = vunpack.c.h.b16 %v6803
      %v6824 = vunpack.c.l.b16 %v6804
      %v6825 = vunpack.c.h.b16 %v6804
      %v6826 = vpack.c.b16 %v6814, %v6812
      %v6827 = vpack.c.b16 %v6815, %v6813
      %v6828 = vpack.c.b16 %v6818, %v6816
      %v6829 = vpack.c.b16 %v6819, %v6817
      %v6830 = vpack.c.b16 %v6822, %v6820
      %v6831 = vpack.c.b16 %v6823, %v6821
      %v6832 = vpack.c.b16 %v6824, %v6824
      %v6833 = vpack.c.b16 %v6825, %v6825
      %6842 = vmatprep.subr.bf16.mxu0 0
      %6843 = vmatpush1.bf16.msra.mxu0 %v492
      %6844 = vmatprep.subr.bf16.mxu0 0
      %6845 = vmatpush1.bf16.msra.mxu0 %v493
      %6846 = vmatprep.subr.bf16.mxu0 0
      %6847 = vmatpush1.bf16.msra.mxu0 %v494
      %6848 = vmatprep.subr.bf16.mxu0 0
      %6849 = vmatpush1.bf16.msra.mxu0 %v495
      %6850 = vmatprep.subr.bf16.mxu0 0
      %6851 = vmatpush1.bf16.msra.mxu0 %v496
      %6852 = vmatprep.subr.bf16.mxu0 0
      %6853 = vmatpush1.bf16.msra.mxu0 %v497
      %6854 = vmatprep.subr.bf16.mxu0 0
      %6855 = vmatpush1.bf16.msra.mxu0 %v498
      %6856 = vmatprep.subr.bf16.mxu0 0
      %6857 = vmatpush1.bf16.msra.mxu0 %v499
      %6858 = vmatprep.subr.bf16.mxu0 0
      %6859 = vmatpush1.bf16.msra.mxu0 %v500
      %6860 = vmatprep.subr.bf16.mxu0 0
      %6861 = vmatpush1.bf16.msra.mxu0 %v501
      %6862 = vmatprep.subr.bf16.mxu0 0
      %6863 = vmatpush1.bf16.msra.mxu0 %v502
      %6864 = vmatprep.subr.bf16.mxu0 0
      %6865 = vmatpush1.bf16.msra.mxu0 %v503
      %6866 = vmatprep.subr.bf16.mxu0 0
      %6867 = vmatpush1.bf16.msra.mxu0 %v504
      %6868 = vmatprep.subr.bf16.mxu0 0
      %6869 = vmatpush1.bf16.msra.mxu0 %v505
      %6870 = vmatprep.subr.bf16.mxu0 0
      %6871 = vmatpush1.bf16.msra.mxu0 %v506
      %6872 = vmatprep.subr.bf16.mxu0 0
      %6873 = vmatpush1.bf16.msra.mxu0 %v507
      %6874 = vmatprep.mubr.bf16.mxu0 %v6827
      %6875 = vmatmul.mubr.bf16.gmra.mrb[0].mxu0 %v6826
      %v6876 = vpop.f32.mrb[0].mxu0
      %v6877 = vadd.f32 0.0, %v6876
      %v6878 = vpop.f32.mrb[0].mxu0
      %v6879 = vpop.f32.mrb[0].mxu0
      %v6880 = vadd.f32 0.0, %v6879
      %v6881 = vpop.f32.mrb[0].mxu0
      %6882 = vmatprep.mubr.bf16.mxu0 %v6829
      %6883 = vmatmul.mubr.bf16.gmra.mrb[0].mxu0 %v6828
      %v6884 = vpop.f32.mrb[0].mxu0
      %v6885 = vadd.f32 0.0, %v6884
      %v6886 = vpop.f32.mrb[0].mxu0
      %v6887 = vpop.f32.mrb[0].mxu0
      %v6888 = vadd.f32 0.0, %v6887
      %v6889 = vpop.f32.mrb[0].mxu0
      %6890 = vmatprep.mubr.bf16.mxu0 %v6831
      %6891 = vmatmul.mubr.bf16.gmra.mrb[0].mxu0 %v6830
      %v6892 = vpop.f32.mrb[0].mxu0
      %v6893 = vadd.f32 0.0, %v6892
      %v6894 = vpop.f32.mrb[0].mxu0
      %v6895 = vpop.f32.mrb[0].mxu0
      %v6896 = vadd.f32 0.0, %v6895
      %v6897 = vpop.f32.mrb[0].mxu0
      %6898 = vmatprep.mubr.bf16.mxu0 %v6833
      %6899 = vmatmul.mubr.bf16.gmra.mrb[0].mxu0 %v6832
      %v6900 = vpop.f32.mrb[0].mxu0
      %v6901 = vadd.f32 0.0, %v6900
      %v6902 = vpop.f32.mrb[0].mxu0
      %v6903 = vpop.f32.mrb[0].mxu0
      %v6904 = vpop.f32.mrb[0].mxu0
      %6905 = vdwg.mxu0
      %v6906 = vmax.f32 %v6683, %v6877
      %v6907 = vmax.f32 %v6686, %v6880
      %v6908 = vmax.f32 %v6691, %v6885
      %v6909 = vmax.f32 %v6694, %v6888
      %v6910 = vmax.f32 %v6699, %v6893
      %v6911 = vmax.f32 %v6702, %v6896
      %v6912 = vmax.f32 %v6707, %v6901
      %v6913 = vpack.c.bf16 %v6880, %v6877
      %v6914 = vpack.c.bf16 %v6888, %v6885
      %v6915 = vpack.c.bf16 %v6896, %v6893
      %v6916 = vpack.c.bf16 %v6901, %v6901
      %s6917 = scalar_lea.vmem %s3, 6
      %v6918 = vld [vmem:[%s6917] sm:$0x3f]
      %v6920 = vcombine.high %v6918, %v6918
      %v6922 = vunpack.c.l.s4 1983009808
      %v6923 = vunpack.c.0.s8 %v6922
      %v6924 = vlaneseq
      %v6925 = vshrl.u32 %v6924, 7
      %v6926 = vsub.s32 %v6923, %v6925
      %v6927 = vrot.slane %v6918, %v6926
      %v6929 = vunpack.c.l.s4 1983009808
      %v6930 = vunpack.c.0.s8 %v6929
      %v6931 = vlaneseq
      %v6932 = vshrl.u32 %v6931, 7
      %v6933 = vsub.s32 %v6930, %v6932
      %v6934 = vrot.slane %v6920, %v6933
      %v6935 = vcombine.high %v6927, %v6927
      %v6937 = vsel %vm508, %v6913, 0
      %v6940 = vsel %vm508, %v6914, 0
      %v6943 = vsel %vm508, %v6915, 0
      %v6946 = vsel %vm508, %v6916, 0
      %v6949 = vsel %vm557, %v6927, 0
      %v6952 = vsel %vm557, %v6935, 0
      %v6955 = vsel %vm557, %v6934, 0
      %6957 = vmatprep.subr.bf16.mxu0 %v6952
      %6958 = vmatpush1.bf16.msra.mxu0 %v6949
      %6959 = vmatprep.subr.bf16.mxu0 0
      %6960 = vmatpush1.bf16.msra.mxu0 0
      %6961 = vmatprep.subr.bf16.mxu0 0
      %6962 = vmatpush1.bf16.msra.mxu0 0
      %6963 = vmatprep.subr.bf16.mxu0 0
      %6964 = vmatpush1.bf16.msra.mxu0 0
      %6965 = vmatprep.subr.bf16.mxu0 0
      %6966 = vmatpush1.bf16.msra.mxu0 0
      %6967 = vmatprep.subr.bf16.mxu0 0
      %6968 = vmatpush1.bf16.msra.mxu0 0
      %6969 = vmatprep.subr.bf16.mxu0 0
      %6970 = vmatpush1.bf16.msra.mxu0 0
      %6971 = vmatprep.subr.bf16.mxu0 0
      %6972 = vmatpush1.bf16.msra.mxu0 0
      %6973 = vmatprep.subr.bf16.mxu0 0
      %6974 = vmatpush1.bf16.msra.mxu0 0
      %6975 = vmatprep.subr.bf16.mxu0 0
      %6976 = vmatpush1.bf16.msra.mxu0 0
      %6977 = vmatprep.subr.bf16.mxu0 0
      %6978 = vmatpush1.bf16.msra.mxu0 0
      %6979 = vmatprep.subr.bf16.mxu0 0
      %6980 = vmatpush1.bf16.msra.mxu0 0
      %6981 = vmatprep.subr.bf16.mxu0 0
      %6982 = vmatpush1.bf16.msra.mxu0 0
      %6983 = vmatprep.subr.bf16.mxu0 0
      %6984 = vmatpush1.bf16.msra.mxu0 0
      %6985 = vmatprep.subr.bf16.mxu0 0
      %6986 = vmatpush1.bf16.msra.mxu0 0
      %6987 = vmatprep.subr.bf16.mxu0 0
      %6988 = vmatpush1.bf16.msra.mxu0 0
      %6989 = vmatprep.mubr.bf16.mxu0 0
      %6990 = vmatmul.mubr.bf16.gmra.mrb[0].mxu0 %v6937
      %v6991 = vpop.f32.mrb[0].mxu0
      %v6992 = vadd.f32 0.0, %v6991
      %v6993 = vpop.f32.mrb[0].mxu0
      %v6994 = vadd.f32 0.0, %v6993
      %v6995 = vpop.f32.mrb[0].mxu0
      %v6996 = vadd.f32 0.0, %v6995
      %v6997 = vpop.f32.mrb[0].mxu0
      %v6998 = vadd.f32 0.0, %v6997
      %6999 = vmatprep.mubr.bf16.mxu0 0
      %7000 = vmatmul.mubr.bf16.gmra.mrb[0].mxu0 %v6940
      %v7001 = vpop.f32.mrb[0].mxu0
      %v7002 = vadd.f32 0.0, %v7001
      %v7003 = vpop.f32.mrb[0].mxu0
      %v7004 = vadd.f32 0.0, %v7003
      %v7005 = vpop.f32.mrb[0].mxu0
      %v7006 = vadd.f32 0.0, %v7005
      %v7007 = vpop.f32.mrb[0].mxu0
      %v7008 = vadd.f32 0.0, %v7007
      %7009 = vmatprep.mubr.bf16.mxu0 0
      %7010 = vmatmul.mubr.bf16.gmra.mrb[0].mxu0 %v6943
      %v7011 = vpop.f32.mrb[0].mxu0
      %v7012 = vadd.f32 0.0, %v7011
      %v7013 = vpop.f32.mrb[0].mxu0
      %v7014 = vadd.f32 0.0, %v7013
      %v7015 = vpop.f32.mrb[0].mxu0
      %v7016 = vadd.f32 0.0, %v7015
      %v7017 = vpop.f32.mrb[0].mxu0
      %v7018 = vadd.f32 0.0, %v7017
      %7019 = vmatprep.mubr.bf16.mxu0 0
      %7020 = vmatmul.mubr.bf16.gmra.mrb[0].mxu0 %v6946
      %v7021 = vpop.f32.mrb[0].mxu0
      %v7022 = vadd.f32 0.0, %v7021
      %v7023 = vpop.f32.mrb[0].mxu0
      %v7024 = vadd.f32 0.0, %v7023
      %v7025 = vpop.f32.mrb[0].mxu0
      %v7026 = vpop.f32.mrb[0].mxu0
      %7027 = vdwg.mxu0
      %7028 = vmatprep.subr.bf16.mxu0 0
      %7029 = vmatpush1.bf16.msra.mxu0 %v6955
      %7030 = vmatprep.subr.bf16.mxu0 0
      %7031 = vmatpush1.bf16.msra.mxu0 0
      %7032 = vmatprep.subr.bf16.mxu0 0
      %7033 = vmatpush1.bf16.msra.mxu0 0
      %7034 = vmatprep.subr.bf16.mxu0 0
      %7035 = vmatpush1.bf16.msra.mxu0 0
      %7036 = vmatprep.subr.bf16.mxu0 0
      %7037 = vmatpush1.bf16.msra.mxu0 0
      %7038 = vmatprep.subr.bf16.mxu0 0
      %7039 = vmatpush1.bf16.msra.mxu0 0
      %7040 = vmatprep.subr.bf16.mxu0 0
      %7041 = vmatpush1.bf16.msra.mxu0 0
      %7042 = vmatprep.subr.bf16.mxu0 0
      %7043 = vmatpush1.bf16.msra.mxu0 0
      %7044 = vmatprep.subr.bf16.mxu0 0
      %7045 = vmatpush1.bf16.msra.mxu0 0
      %7046 = vmatprep.subr.bf16.mxu0 0
      %7047 = vmatpush1.bf16.msra.mxu0 0
      %7048 = vmatprep.subr.bf16.mxu0 0
      %7049 = vmatpush1.bf16.msra.mxu0 0
      %7050 = vmatprep.subr.bf16.mxu0 0
      %7051 = vmatpush1.bf16.msra.mxu0 0
      %7052 = vmatprep.subr.bf16.mxu0 0
      %7053 = vmatpush1.bf16.msra.mxu0 0
      %7054 = vmatprep.subr.bf16.mxu0 0
      %7055 = vmatpush1.bf16.msra.mxu0 0
      %7056 = vmatprep.subr.bf16.mxu0 0
      %7057 = vmatpush1.bf16.msra.mxu0 0
      %7058 = vmatprep.subr.bf16.mxu0 0
      %7059 = vmatpush1.bf16.msra.mxu0 0
      %7060 = vmatprep.mubr.bf16.mxu0 0
      %7061 = vmatmul.mubr.bf16.gmra.mrb[0].mxu0 %v6937
      %v7062 = vpop.f32.mrb[0].mxu0
      %v7063 = vadd.f32 0.0, %v7062
      %v7064 = vpop.f32.mrb[0].mxu0
      %v7065 = vpop.f32.mrb[0].mxu0
      %v7066 = vadd.f32 0.0, %v7065
      %v7067 = vpop.f32.mrb[0].mxu0
      %7068 = vmatprep.mubr.bf16.mxu0 0
      %7069 = vmatmul.mubr.bf16.gmra.mrb[0].mxu0 %v6940
      %v7070 = vpop.f32.mrb[0].mxu0
      %v7071 = vadd.f32 0.0, %v7070
      %v7072 = vpop.f32.mrb[0].mxu0
      %v7073 = vpop.f32.mrb[0].mxu0
      %v7074 = vadd.f32 0.0, %v7073
      %v7075 = vpop.f32.mrb[0].mxu0
      %7076 = vmatprep.mubr.bf16.mxu0 0
      %7077 = vmatmul.mubr.bf16.gmra.mrb[0].mxu0 %v6943
      %v7078 = vpop.f32.mrb[0].mxu0
      %v7079 = vadd.f32 0.0, %v7078
      %v7080 = vpop.f32.mrb[0].mxu0
      %v7081 = vpop.f32.mrb[0].mxu0
      %v7082 = vadd.f32 0.0, %v7081
      %v7083 = vpop.f32.mrb[0].mxu0
      %7084 = vmatprep.mubr.bf16.mxu0 0
      %7085 = vmatmul.mubr.bf16.gmra.mrb[0].mxu0 %v6946
      %v7086 = vpop.f32.mrb[0].mxu0
      %v7087 = vadd.f32 0.0, %v7086
      %v7088 = vpop.f32.mrb[0].mxu0
      %v7089 = vpop.f32.mrb[0].mxu0
      %v7090 = vpop.f32.mrb[0].mxu0
      %7091 = vdwg.mxu0
      %v7093 = vcombine.high %v6716, %v6716
      %v7095 = vunpack.c.l.s4 1983009808
      %v7096 = vunpack.c.0.s8 %v7095
      %v7097 = vlaneseq
      %v7098 = vshrl.u32 %v7097, 7
      %v7099 = vsub.s32 %v7096, %v7098
      %v7100 = vrot.slane %v6716, %v7099
      %v7102 = vunpack.c.l.s4 1983009808
      %v7103 = vunpack.c.0.s8 %v7102
      %v7104 = vlaneseq
      %v7105 = vshrl.u32 %v7104, 7
      %v7106 = vsub.s32 %v7103, %v7105
      %v7107 = vrot.slane %v7093, %v7106
      %v7108 = vcombine.high %v7100, %v7100
      %v7110 = vsel %vm508, %v6712, 0
      %v7113 = vsel %vm508, %v6713, 0
      %v7116 = vsel %vm508, %v6714, 0
      %v7119 = vsel %vm508, %v6715, 0
      %v7122 = vsel %vm557, %v7100, 0
      %v7125 = vsel %vm557, %v7108, 0
      %v7128 = vsel %vm557, %v7107, 0
      %7130 = vmatprep.subr.bf16.mxu0 %v7125
      %7131 = vmatpush1.bf16.msra.mxu0 %v7122
      %7132 = vmatprep.subr.bf16.mxu0 0
      %7133 = vmatpush1.bf16.msra.mxu0 0
      %7134 = vmatprep.subr.bf16.mxu0 0
      %7135 = vmatpush1.bf16.msra.mxu0 0
      %7136 = vmatprep.subr.bf16.mxu0 0
      %7137 = vmatpush1.bf16.msra.mxu0 0
      %7138 = vmatprep.subr.bf16.mxu0 0
      %7139 = vmatpush1.bf16.msra.mxu0 0
      %7140 = vmatprep.subr.bf16.mxu0 0
      %7141 = vmatpush1.bf16.msra.mxu0 0
      %7142 = vmatprep.subr.bf16.mxu0 0
      %7143 = vmatpush1.bf16.msra.mxu0 0
      %7144 = vmatprep.subr.bf16.mxu0 0
      %7145 = vmatpush1.bf16.msra.mxu0 0
      %7146 = vmatprep.subr.bf16.mxu0 0
      %7147 = vmatpush1.bf16.msra.mxu0 0
      %7148 = vmatprep.subr.bf16.mxu0 0
      %7149 = vmatpush1.bf16.msra.mxu0 0
      %7150 = vmatprep.subr.bf16.mxu0 0
      %7151 = vmatpush1.bf16.msra.mxu0 0
      %7152 = vmatprep.subr.bf16.mxu0 0
      %7153 = vmatpush1.bf16.msra.mxu0 0
      %7154 = vmatprep.subr.bf16.mxu0 0
      %7155 = vmatpush1.bf16.msra.mxu0 0
      %7156 = vmatprep.subr.bf16.mxu0 0
      %7157 = vmatpush1.bf16.msra.mxu0 0
      %7158 = vmatprep.subr.bf16.mxu0 0
      %7159 = vmatpush1.bf16.msra.mxu0 0
      %7160 = vmatprep.subr.bf16.mxu0 0
      %7161 = vmatpush1.bf16.msra.mxu0 0
      %7162 = vmatprep.mubr.bf16.mxu0 0
      %7163 = vmatmul.mubr.bf16.gmra.mrb[0].mxu0 %v7110
      %v7164 = vpop.f32.mrb[0].mxu0
      %v7165 = vadd.f32 %v6992, %v7164
      %v7166 = vpop.f32.mrb[0].mxu0
      %v7167 = vadd.f32 %v6994, %v7166
      %v7168 = vpop.f32.mrb[0].mxu0
      %v7169 = vadd.f32 %v6996, %v7168
      %v7170 = vpop.f32.mrb[0].mxu0
      %v7171 = vadd.f32 %v6998, %v7170
      %7172 = vmatprep.mubr.bf16.mxu0 0
      %7173 = vmatmul.mubr.bf16.gmra.mrb[0].mxu0 %v7113
      %v7174 = vpop.f32.mrb[0].mxu0
      %v7175 = vadd.f32 %v7002, %v7174
      %v7176 = vpop.f32.mrb[0].mxu0
      %v7177 = vadd.f32 %v7004, %v7176
      %v7178 = vpop.f32.mrb[0].mxu0
      %v7179 = vadd.f32 %v7006, %v7178
      %v7180 = vpop.f32.mrb[0].mxu0
      %v7181 = vadd.f32 %v7008, %v7180
      %7182 = vmatprep.mubr.bf16.mxu0 0
      %7183 = vmatmul.mubr.bf16.gmra.mrb[0].mxu0 %v7116
      %v7184 = vpop.f32.mrb[0].mxu0
      %v7185 = vadd.f32 %v7012, %v7184
      %v7186 = vpop.f32.mrb[0].mxu0
      %v7187 = vadd.f32 %v7014, %v7186
      %v7188 = vpop.f32.mrb[0].mxu0
      %v7189 = vadd.f32 %v7016, %v7188
      %v7190 = vpop.f32.mrb[0].mxu0
      %v7191 = vadd.f32 %v7018, %v7190
      %7192 = vmatprep.mubr.bf16.mxu0 0
      %7193 = vmatmul.mubr.bf16.gmra.mrb[0].mxu0 %v7119
      %v7194 = vpop.f32.mrb[0].mxu0
      %v7195 = vadd.f32 %v7022, %v7194
      %v7196 = vpop.f32.mrb[0].mxu0
      %v7197 = vadd.f32 %v7024, %v7196
      %v7198 = vpop.f32.mrb[0].mxu0
      %v7199 = vpop.f32.mrb[0].mxu0
      %7200 = vdwg.mxu0
      %7201 = vmatprep.subr.bf16.mxu0 0
      %7202 = vmatpush1.bf16.msra.mxu0 %v7128
      %7203 = vmatprep.subr.bf16.mxu0 0
      %7204 = vmatpush1.bf16.msra.mxu0 0
      %7205 = vmatprep.subr.bf16.mxu0 0
      %7206 = vmatpush1.bf16.msra.mxu0 0
      %7207 = vmatprep.subr.bf16.mxu0 0
      %7208 = vmatpush1.bf16.msra.mxu0 0
      %7209 = vmatprep.subr.bf16.mxu0 0
      %7210 = vmatpush1.bf16.msra.mxu0 0
      %7211 = vmatprep.subr.bf16.mxu0 0
      %7212 = vmatpush1.bf16.msra.mxu0 0
      %7213 = vmatprep.subr.bf16.mxu0 0
      %7214 = vmatpush1.bf16.msra.mxu0 0
      %7215 = vmatprep.subr.bf16.mxu0 0
      %7216 = vmatpush1.bf16.msra.mxu0 0
      %7217 = vmatprep.subr.bf16.mxu0 0
      %7218 = vmatpush1.bf16.msra.mxu0 0
      %7219 = vmatprep.subr.bf16.mxu0 0
      %7220 = vmatpush1.bf16.msra.mxu0 0
      %7221 = vmatprep.subr.bf16.mxu0 0
      %7222 = vmatpush1.bf16.msra.mxu0 0
      %7223 = vmatprep.subr.bf16.mxu0 0
      %7224 = vmatpush1.bf16.msra.mxu0 0
      %7225 = vmatprep.subr.bf16.mxu0 0
      %7226 = vmatpush1.bf16.msra.mxu0 0
      %7227 = vmatprep.subr.bf16.mxu0 0
      %7228 = vmatpush1.bf16.msra.mxu0 0
      %7229 = vmatprep.subr.bf16.mxu0 0
      %7230 = vmatpush1.bf16.msra.mxu0 0
      %7231 = vmatprep.subr.bf16.mxu0 0
      %7232 = vmatpush1.bf16.msra.mxu0 0
      %7233 = vmatprep.mubr.bf16.mxu0 0
      %7234 = vmatmul.mubr.bf16.gmra.mrb[0].mxu0 %v7110
      %v7235 = vpop.f32.mrb[0].mxu0
      %v7236 = vadd.f32 %v7063, %v7235
      %v7237 = vpop.f32.mrb[0].mxu0
      %v7238 = vpop.f32.mrb[0].mxu0
      %v7239 = vadd.f32 %v7066, %v7238
      %v7240 = vpop.f32.mrb[0].mxu0
      %7241 = vmatprep.mubr.bf16.mxu0 0
      %7242 = vmatmul.mubr.bf16.gmra.mrb[0].mxu0 %v7113
      %v7243 = vpop.f32.mrb[0].mxu0
      %v7244 = vadd.f32 %v7071, %v7243
      %v7245 = vpop.f32.mrb[0].mxu0
      %v7246 = vpop.f32.mrb[0].mxu0
      %v7247 = vadd.f32 %v7074, %v7246
      %v7248 = vpop.f32.mrb[0].mxu0
      %7249 = vmatprep.mubr.bf16.mxu0 0
      %7250 = vmatmul.mubr.bf16.gmra.mrb[0].mxu0 %v7116
      %v7251 = vpop.f32.mrb[0].mxu0
      %v7252 = vadd.f32 %v7079, %v7251
      %v7253 = vpop.f32.mrb[0].mxu0
      %v7254 = vpop.f32.mrb[0].mxu0
      %v7255 = vadd.f32 %v7082, %v7254
      %v7256 = vpop.f32.mrb[0].mxu0
      %7257 = vmatprep.mubr.bf16.mxu0 0
      %7258 = vmatmul.mubr.bf16.gmra.mrb[0].mxu0 %v7119
      %v7259 = vpop.f32.mrb[0].mxu0
      %v7260 = vadd.f32 %v7087, %v7259
      %v7261 = vpop.f32.mrb[0].mxu0
      %v7262 = vpop.f32.mrb[0].mxu0
      %v7263 = vpop.f32.mrb[0].mxu0
      %7264 = vdwg.mxu0
      %7265 = vmatprep.subr.bf16.mxu0 0
      %7266 = vmatpush1.bf16.msra.mxu0 %v6572
      %7267 = vmatprep.subr.bf16.mxu0 0
      %7268 = vmatpush1.bf16.msra.mxu0 %v6573
      %7269 = vmatprep.subr.bf16.mxu0 0
      %7270 = vmatpush1.bf16.msra.mxu0 %v6574
      %7271 = vmatprep.subr.bf16.mxu0 0
      %7272 = vmatpush1.bf16.msra.mxu0 %v6575
      %7273 = vmatprep.subr.bf16.mxu0 0
      %7274 = vmatpush1.bf16.msra.mxu0 %v6576
      %7275 = vmatprep.subr.bf16.mxu0 0
      %7276 = vmatpush1.bf16.msra.mxu0 %v6577
      %7277 = vmatprep.subr.bf16.mxu0 0
      %7278 = vmatpush1.bf16.msra.mxu0 %v6578
      %7279 = vmatprep.subr.bf16.mxu0 0
      %7280 = vmatpush1.bf16.msra.mxu0 %v6579
      %7281 = vmatprep.subr.bf16.mxu0 0
      %7282 = vmatpush1.bf16.msra.mxu0 %v6580
      %7283 = vmatprep.subr.bf16.mxu0 0
      %7284 = vmatpush1.bf16.msra.mxu0 %v6581
      %7285 = vmatprep.subr.bf16.mxu0 0
      %7286 = vmatpush1.bf16.msra.mxu0 %v6582
      %7287 = vmatprep.subr.bf16.mxu0 0
      %7288 = vmatpush1.bf16.msra.mxu0 %v6583
      %7289 = vmatprep.subr.bf16.mxu0 0
      %7290 = vmatpush1.bf16.msra.mxu0 %v6584
      %7291 = vmatprep.subr.bf16.mxu0 0
      %7292 = vmatpush1.bf16.msra.mxu0 %v6585
      %7293 = vmatprep.subr.bf16.mxu0 0
      %7294 = vmatpush1.bf16.msra.mxu0 %v6586
      %7295 = vmatprep.subr.bf16.mxu0 0
      %7296 = vmatpush1.bf16.msra.mxu0 %v6587
      %7297 = vmatprep.mubr.bf16.mxu0 %v6827
      %7298 = vmatmul.mubr.bf16.gmra.mrb[0].mxu0 %v6826
      %v7299 = vpop.f32.mrb[0].mxu0
      %v7300 = vadd.f32 0.0, %v7299
      %v7301 = vpop.f32.mrb[0].mxu0
      %v7302 = vpop.f32.mrb[0].mxu0
      %v7303 = vadd.f32 0.0, %v7302
      %v7304 = vpop.f32.mrb[0].mxu0
      %7305 = vmatprep.mubr.bf16.mxu0 %v6829
      %7306 = vmatmul.mubr.bf16.gmra.mrb[0].mxu0 %v6828
      %v7307 = vpop.f32.mrb[0].mxu0
      %v7308 = vadd.f32 0.0, %v7307
      %v7309 = vpop.f32.mrb[0].mxu0
      %v7310 = vpop.f32.mrb[0].mxu0
      %v7311 = vadd.f32 0.0, %v7310
      %v7312 = vpop.f32.mrb[0].mxu0
      %7313 = vmatprep.mubr.bf16.mxu0 %v6831
      %7314 = vmatmul.mubr.bf16.gmra.mrb[0].mxu0 %v6830
      %v7315 = vpop.f32.mrb[0].mxu0
      %v7316 = vadd.f32 0.0, %v7315
      %v7317 = vpop.f32.mrb[0].mxu0
      %v7318 = vpop.f32.mrb[0].mxu0
      %v7319 = vadd.f32 0.0, %v7318
      %v7320 = vpop.f32.mrb[0].mxu0
      %7321 = vmatprep.mubr.bf16.mxu0 %v6833
      %7322 = vmatmul.mubr.bf16.gmra.mrb[0].mxu0 %v6832
      %v7323 = vpop.f32.mrb[0].mxu0
      %v7324 = vadd.f32 0.0, %v7323
      %v7325 = vpop.f32.mrb[0].mxu0
      %v7326 = vpop.f32.mrb[0].mxu0
      %v7327 = vpop.f32.mrb[0].mxu0
      %7328 = vdwg.mxu0
      %v7329 = vpack.c.bf16 %v7303, %v7300
      %v7330 = vpack.c.bf16 %v7311, %v7308
      %v7331 = vpack.c.bf16 %v7319, %v7316
      %v7332 = vpack.c.bf16 %v7324, %v7324
      %s7333 = scalar_lea.vmem %s9, 48
      %v7334 = vld [vmem:[%s7333] sm:$0xf]
      %v7335 = vld [vmem:[%s7333 + $0x4] sm:$0xf]
      %v7336 = vld [vmem:[%s7333 + $0x8] sm:$0xf]
      %v7337 = vld [vmem:[%s7333 + $0xc] sm:$0xf]
      %v7338 = vld [vmem:[%s7333 + $0x10] sm:$0xf]
      %v7339 = vld [vmem:[%s7333 + $0x14] sm:$0xf]
      %v7340 = vld [vmem:[%s7333 + $0x18] sm:$0xf]
      %v7341 = vld [vmem:[%s7333 + $0x1c] sm:$0xf]
      %v7342 = vld [vmem:[%s7333 + $0x20] sm:$0xf]
      %v7343 = vld [vmem:[%s7333 + $0x24] sm:$0xf]
      %v7344 = vld [vmem:[%s7333 + $0x28] sm:$0xf]
      %v7345 = vld [vmem:[%s7333 + $0x2c] sm:$0xf]
      %v7358 = vunpack.c.l.b16 %v7334
      %v7359 = vunpack.c.l.b16 %v7335
      %v7360 = vunpack.c.l.b16 %v7336
      %v7361 = vunpack.c.l.b16 %v7337
      %v7362 = vunpack.c.l.b16 %v7338
      %v7363 = vunpack.c.l.b16 %v7339
      %v7364 = vunpack.c.l.b16 %v7340
      %v7365 = vunpack.c.l.b16 %v7341
      %v7366 = vunpack.c.l.b16 %v7342
      %v7367 = vunpack.c.l.b16 %v7343
      %v7368 = vunpack.c.l.b16 %v7344
      %v7369 = vunpack.c.l.b16 %v7345
      %v7370 = vpack.c.b16 %v7359, %v7358
      %v7371 = vpack.c.b16 %v7361, %v7360
      %v7372 = vpack.c.b16 %v7363, %v7362
      %v7373 = vpack.c.b16 %v7365, %v7364
      %v7374 = vpack.c.b16 %v7367, %v7366
      %v7375 = vpack.c.b16 %v7369, %v7368
      %vm7382 = vcmask 785408
      %v7384 = vsel %vm7382, %v7329, 0
      %v7387 = vsel %vm7382, %v7330, 0
      %v7390 = vsel %vm7382, %v7331, 0
      %v7393 = vsel %vm7382, %v7332, 0
      %7395 = vmatprep.subr.bf16.mxu0 0
      %7396 = vmatpush1.bf16.msra.mxu0 %v7370
      %7397 = vmatprep.subr.bf16.mxu0 0
      %7398 = vmatpush1.bf16.msra.mxu0 %v7371
      %7399 = vmatprep.subr.bf16.mxu0 0
      %7400 = vmatpush1.bf16.msra.mxu0 %v7372
      %7401 = vmatprep.subr.bf16.mxu0 0
      %7402 = vmatpush1.bf16.msra.mxu0 %v7373
      %7403 = vmatprep.subr.bf16.mxu0 0
      %7404 = vmatpush1.bf16.msra.mxu0 %v7374
      %7405 = vmatprep.subr.bf16.mxu0 0
      %7406 = vmatpush1.bf16.msra.mxu0 %v7375
      %7407 = vmatprep.subr.bf16.mxu0 0
      %7408 = vmatpush1.bf16.msra.mxu0 0
      %7409 = vmatprep.subr.bf16.mxu0 0
      %7410 = vmatpush1.bf16.msra.mxu0 0
      %7411 = vmatprep.subr.bf16.mxu0 0
      %7412 = vmatpush1.bf16.msra.mxu0 0
      %7413 = vmatprep.subr.bf16.mxu0 0
      %7414 = vmatpush1.bf16.msra.mxu0 0
      %7415 = vmatprep.subr.bf16.mxu0 0
      %7416 = vmatpush1.bf16.msra.mxu0 0
      %7417 = vmatprep.subr.bf16.mxu0 0
      %7418 = vmatpush1.bf16.msra.mxu0 0
      %7419 = vmatprep.subr.bf16.mxu0 0
      %7420 = vmatpush1.bf16.msra.mxu0 0
      %7421 = vmatprep.subr.bf16.mxu0 0
      %7422 = vmatpush1.bf16.msra.mxu0 0
      %7423 = vmatprep.subr.bf16.mxu0 0
      %7424 = vmatpush1.bf16.msra.mxu0 0
      %7425 = vmatprep.subr.bf16.mxu0 0
      %7426 = vmatpush1.bf16.msra.mxu0 0
      %7427 = vmatprep.mubr.bf16.mxu0 0
      %7428 = vmatmul.mubr.bf16.gmra.mrb[0].mxu0 %v7384
      %v7429 = vpop.f32.mrb[0].mxu0
      %v7430 = vadd.f32 0.0, %v7429
      %v7431 = vpop.f32.mrb[0].mxu0
      %v7432 = vpop.f32.mrb[0].mxu0
      %v7433 = vadd.f32 0.0, %v7432
      %v7434 = vpop.f32.mrb[0].mxu0
      %7435 = vmatprep.mubr.bf16.mxu0 0
      %7436 = vmatmul.mubr.bf16.gmra.mrb[0].mxu0 %v7387
      %v7437 = vpop.f32.mrb[0].mxu0
      %v7438 = vadd.f32 0.0, %v7437
      %v7439 = vpop.f32.mrb[0].mxu0
      %v7440 = vpop.f32.mrb[0].mxu0
      %v7441 = vadd.f32 0.0, %v7440
      %v7442 = vpop.f32.mrb[0].mxu0
      %7443 = vmatprep.mubr.bf16.mxu0 0
      %7444 = vmatmul.mubr.bf16.gmra.mrb[0].mxu0 %v7390
      %v7445 = vpop.f32.mrb[0].mxu0
      %v7446 = vadd.f32 0.0, %v7445
      %v7447 = vpop.f32.mrb[0].mxu0
      %v7448 = vpop.f32.mrb[0].mxu0
      %v7449 = vadd.f32 0.0, %v7448
      %v7450 = vpop.f32.mrb[0].mxu0
      %7451 = vmatprep.mubr.bf16.mxu0 0
      %7452 = vmatmul.mubr.bf16.gmra.mrb[0].mxu0 %v7393
      %v7453 = vpop.f32.mrb[0].mxu0
      %v7454 = vadd.f32 0.0, %v7453
      %v7455 = vpop.f32.mrb[0].mxu0
      %v7456 = vpop.f32.mrb[0].mxu0
      %v7457 = vpop.f32.mrb[0].mxu0
      %7458 = vdwg.mxu0
      %v7471 = vunpack.c.l.b16 %v6785
      %v7472 = vunpack.c.l.b16 %v6786
      %v7473 = vunpack.c.l.b16 %v6787
      %v7474 = vunpack.c.l.b16 %v6788
      %v7475 = vunpack.c.l.b16 %v6789
      %v7476 = vunpack.c.l.b16 %v6790
      %v7477 = vunpack.c.l.b16 %v6791
      %v7478 = vunpack.c.l.b16 %v6792
      %v7479 = vunpack.c.l.b16 %v6793
      %v7480 = vunpack.c.l.b16 %v6794
      %v7481 = vunpack.c.l.b16 %v6795
      %v7482 = vunpack.c.l.b16 %v6796
      %v7483 = vpack.c.b16 %v7472, %v7471
      %v7484 = vpack.c.b16 %v7474, %v7473
      %v7485 = vpack.c.b16 %v7476, %v7475
      %v7486 = vpack.c.b16 %v7478, %v7477
      %v7487 = vpack.c.b16 %v7480, %v7479
      %v7488 = vpack.c.b16 %v7482, %v7481
      %v7496 = vsel %vm7382, %v6781, 0
      %v7499 = vsel %vm7382, %v6782, 0
      %v7502 = vsel %vm7382, %v6783, 0
      %v7505 = vsel %vm7382, %v6784, 0
      %7507 = vmatprep.subr.bf16.mxu0 0
      %7508 = vmatpush1.bf16.msra.mxu0 %v7483
      %7509 = vmatprep.subr.bf16.mxu0 0
      %7510 = vmatpush1.bf16.msra.mxu0 %v7484
      %7511 = vmatprep.subr.bf16.mxu0 0
      %7512 = vmatpush1.bf16.msra.mxu0 %v7485
      %7513 = vmatprep.subr.bf16.mxu0 0
      %7514 = vmatpush1.bf16.msra.mxu0 %v7486
      %7515 = vmatprep.subr.bf16.mxu0 0
      %7516 = vmatpush1.bf16.msra.mxu0 %v7487
      %7517 = vmatprep.subr.bf16.mxu0 0
      %7518 = vmatpush1.bf16.msra.mxu0 %v7488
      %7519 = vmatprep.subr.bf16.mxu0 0
      %7520 = vmatpush1.bf16.msra.mxu0 0
      %7521 = vmatprep.subr.bf16.mxu0 0
      %7522 = vmatpush1.bf16.msra.mxu0 0
      %7523 = vmatprep.subr.bf16.mxu0 0
      %7524 = vmatpush1.bf16.msra.mxu0 0
      %7525 = vmatprep.subr.bf16.mxu0 0
      %7526 = vmatpush1.bf16.msra.mxu0 0
      %7527 = vmatprep.subr.bf16.mxu0 0
      %7528 = vmatpush1.bf16.msra.mxu0 0
      %7529 = vmatprep.subr.bf16.mxu0 0
      %7530 = vmatpush1.bf16.msra.mxu0 0
      %7531 = vmatprep.subr.bf16.mxu0 0
      %7532 = vmatpush1.bf16.msra.mxu0 0
      %7533 = vmatprep.subr.bf16.mxu0 0
      %7534 = vmatpush1.bf16.msra.mxu0 0
      %7535 = vmatprep.subr.bf16.mxu0 0
      %7536 = vmatpush1.bf16.msra.mxu0 0
      %7537 = vmatprep.subr.bf16.mxu0 0
      %7538 = vmatpush1.bf16.msra.mxu0 0
      %7539 = vmatprep.mubr.bf16.mxu0 0
      %7540 = vmatmul.mubr.bf16.gmra.mrb[0].mxu0 %v7496
      %v7541 = vpop.f32.mrb[0].mxu0
      %v7542 = vadd.f32 %v7430, %v7541
      %v7543 = vpop.f32.mrb[0].mxu0
      %v7544 = vpop.f32.mrb[0].mxu0
      %v7545 = vadd.f32 %v7433, %v7544
      %v7546 = vpop.f32.mrb[0].mxu0
      %7547 = vmatprep.mubr.bf16.mxu0 0
      %7548 = vmatmul.mubr.bf16.gmra.mrb[0].mxu0 %v7499
      %v7549 = vpop.f32.mrb[0].mxu0
      %v7550 = vadd.f32 %v7438, %v7549
      %v7551 = vpop.f32.mrb[0].mxu0
      %v7552 = vpop.f32.mrb[0].mxu0
      %v7553 = vadd.f32 %v7441, %v7552
      %v7554 = vpop.f32.mrb[0].mxu0
      %7555 = vmatprep.mubr.bf16.mxu0 0
      %7556 = vmatmul.mubr.bf16.gmra.mrb[0].mxu0 %v7502
      %v7557 = vpop.f32.mrb[0].mxu0
      %v7558 = vadd.f32 %v7446, %v7557
      %v7559 = vpop.f32.mrb[0].mxu0
      %v7560 = vpop.f32.mrb[0].mxu0
      %v7561 = vadd.f32 %v7449, %v7560
      %v7562 = vpop.f32.mrb[0].mxu0
      %7563 = vmatprep.mubr.bf16.mxu0 0
      %7564 = vmatmul.mubr.bf16.gmra.mrb[0].mxu0 %v7505
      %v7565 = vpop.f32.mrb[0].mxu0
      %v7566 = vadd.f32 %v7454, %v7565
      %v7567 = vpop.f32.mrb[0].mxu0
      %v7568 = vpop.f32.mrb[0].mxu0
      %v7569 = vpop.f32.mrb[0].mxu0
      %7570 = vdwg.mxu0
      %s7571 = scalar_lea.vmem %s1, 112
      %v7572 = vld [vmem:[%s7571] sm:$0xff]
      %v7573 = vld [vmem:[%s7571 + $0x8] sm:$0xff]
      %v7574 = vld [vmem:[%s7571 + $0x10] sm:$0xff]
      %v7575 = vld [vmem:[%s7571 + $0x18] sm:$0xff]
      %v7576 = vld [vmem:[%s7571 + $0x20] sm:$0xff]
      %v7577 = vld [vmem:[%s7571 + $0x28] sm:$0xff]
      %v7578 = vld [vmem:[%s7571 + $0x30] sm:$0x11]
      %v7586 = vunpack.c.l.b16 %v7572
      %v7587 = vunpack.c.h.b16 %v7572
      %v7588 = vunpack.c.l.b16 %v7573
      %v7589 = vunpack.c.h.b16 %v7573
      %v7590 = vunpack.c.l.b16 %v7574
      %v7591 = vunpack.c.h.b16 %v7574
      %v7592 = vunpack.c.l.b16 %v7575
      %v7593 = vunpack.c.h.b16 %v7575
      %v7594 = vunpack.c.l.b16 %v7576
      %v7595 = vunpack.c.h.b16 %v7576
      %v7596 = vunpack.c.l.b16 %v7577
      %v7597 = vunpack.c.h.b16 %v7577
      %v7598 = vunpack.c.l.b16 %v7578
      %v7599 = vunpack.c.h.b16 %v7578
      %v7600 = vpack.c.b16 %v7588, %v7586
      %v7601 = vpack.c.b16 %v7589, %v7587
      %v7602 = vpack.c.b16 %v7592, %v7590
      %v7603 = vpack.c.b16 %v7593, %v7591
      %v7604 = vpack.c.b16 %v7596, %v7594
      %v7605 = vpack.c.b16 %v7597, %v7595
      %v7606 = vpack.c.b16 %v7598, %v7598
      %v7607 = vpack.c.b16 %v7599, %v7599
      %7616 = vmatprep.subr.bf16.mxu0 0
      %7617 = vmatpush1.bf16.msra.mxu0 %v492
      %7618 = vmatprep.subr.bf16.mxu0 0
      %7619 = vmatpush1.bf16.msra.mxu0 %v493
      %7620 = vmatprep.subr.bf16.mxu0 0
      %7621 = vmatpush1.bf16.msra.mxu0 %v494
      %7622 = vmatprep.subr.bf16.mxu0 0
      %7623 = vmatpush1.bf16.msra.mxu0 %v495
      %7624 = vmatprep.subr.bf16.mxu0 0
      %7625 = vmatpush1.bf16.msra.mxu0 %v496
      %7626 = vmatprep.subr.bf16.mxu0 0
      %7627 = vmatpush1.bf16.msra.mxu0 %v497
      %7628 = vmatprep.subr.bf16.mxu0 0
      %7629 = vmatpush1.bf16.msra.mxu0 %v498
      %7630 = vmatprep.subr.bf16.mxu0 0
      %7631 = vmatpush1.bf16.msra.mxu0 %v499
      %7632 = vmatprep.subr.bf16.mxu0 0
      %7633 = vmatpush1.bf16.msra.mxu0 %v500
      %7634 = vmatprep.subr.bf16.mxu0 0
      %7635 = vmatpush1.bf16.msra.mxu0 %v501
      %7636 = vmatprep.subr.bf16.mxu0 0
      %7637 = vmatpush1.bf16.msra.mxu0 %v502
      %7638 = vmatprep.subr.bf16.mxu0 0
      %7639 = vmatpush1.bf16.msra.mxu0 %v503
      %7640 = vmatprep.subr.bf16.mxu0 0
      %7641 = vmatpush1.bf16.msra.mxu0 %v504
      %7642 = vmatprep.subr.bf16.mxu0 0
      %7643 = vmatpush1.bf16.msra.mxu0 %v505
      %7644 = vmatprep.subr.bf16.mxu0 0
      %7645 = vmatpush1.bf16.msra.mxu0 %v506
      %7646 = vmatprep.subr.bf16.mxu0 0
      %7647 = vmatpush1.bf16.msra.mxu0 %v507
      %7648 = vmatprep.mubr.bf16.mxu0 %v7601
      %7649 = vmatmul.mubr.bf16.gmra.mrb[0].mxu0 %v7600
      %v7650 = vpop.f32.mrb[0].mxu0
      %v7651 = vadd.f32 0.0, %v7650
      %v7652 = vpop.f32.mrb[0].mxu0
      %v7653 = vpop.f32.mrb[0].mxu0
      %v7654 = vadd.f32 0.0, %v7653
      %v7655 = vpop.f32.mrb[0].mxu0
      %7656 = vmatprep.mubr.bf16.mxu0 %v7603
      %7657 = vmatmul.mubr.bf16.gmra.mrb[0].mxu0 %v7602
      %v7658 = vpop.f32.mrb[0].mxu0
      %v7659 = vadd.f32 0.0, %v7658
      %v7660 = vpop.f32.mrb[0].mxu0
      %v7661 = vpop.f32.mrb[0].mxu0
      %v7662 = vadd.f32 0.0, %v7661
      %v7663 = vpop.f32.mrb[0].mxu0
      %7664 = vmatprep.mubr.bf16.mxu0 %v7605
      %7665 = vmatmul.mubr.bf16.gmra.mrb[0].mxu0 %v7604
      %v7666 = vpop.f32.mrb[0].mxu0
      %v7667 = vadd.f32 0.0, %v7666
      %v7668 = vpop.f32.mrb[0].mxu0
      %v7669 = vpop.f32.mrb[0].mxu0
      %v7670 = vadd.f32 0.0, %v7669
      %v7671 = vpop.f32.mrb[0].mxu0
      %7672 = vmatprep.mubr.bf16.mxu0 %v7607
      %7673 = vmatmul.mubr.bf16.gmra.mrb[0].mxu0 %v7606
      %v7674 = vpop.f32.mrb[0].mxu0
      %v7675 = vadd.f32 0.0, %v7674
      %v7676 = vpop.f32.mrb[0].mxu0
      %v7677 = vpop.f32.mrb[0].mxu0
      %v7678 = vpop.f32.mrb[0].mxu0
      %7679 = vdwg.mxu0
      %v7680 = vmax.f32 %v6906, %v7651
      %v7681 = vmax.f32 %v6907, %v7654
      %v7682 = vmax.f32 %v6908, %v7659
      %v7683 = vmax.f32 %v6909, %v7662
      %v7684 = vmax.f32 %v6910, %v7667
      %v7685 = vmax.f32 %v6911, %v7670
      %v7686 = vmax.f32 %v6912, %v7675
      %v7687 = vpack.c.bf16 %v7654, %v7651
      %v7688 = vpack.c.bf16 %v7662, %v7659
      %v7689 = vpack.c.bf16 %v7670, %v7667
      %v7690 = vpack.c.bf16 %v7675, %v7675
      %s7691 = scalar_lea.vmem %s3, 12
      %v7692 = vld [vmem:[%s7691] sm:$0x3f]
      %v7694 = vcombine.high %v7692, %v7692
      %v7696 = vunpack.c.l.s4 1983009808
      %v7697 = vunpack.c.0.s8 %v7696
      %v7698 = vlaneseq
      %v7699 = vshrl.u32 %v7698, 7
      %v7700 = vsub.s32 %v7697, %v7699
      %v7701 = vrot.slane %v7692, %v7700
      %v7703 = vunpack.c.l.s4 1983009808
      %v7704 = vunpack.c.0.s8 %v7703
      %v7705 = vlaneseq
      %v7706 = vshrl.u32 %v7705, 7
      %v7707 = vsub.s32 %v7704, %v7706
      %v7708 = vrot.slane %v7694, %v7707
      %v7709 = vcombine.high %v7701, %v7701
      %v7711 = vsel %vm508, %v7687, 0
      %v7714 = vsel %vm508, %v7688, 0
      %v7717 = vsel %vm508, %v7689, 0
      %v7720 = vsel %vm508, %v7690, 0
      %v7723 = vsel %vm557, %v7701, 0
      %v7726 = vsel %vm557, %v7709, 0
      %v7729 = vsel %vm557, %v7708, 0
      %7731 = vmatprep.subr.bf16.mxu0 %v7726
      %7732 = vmatpush1.bf16.msra.mxu0 %v7723
      %7733 = vmatprep.subr.bf16.mxu0 0
      %7734 = vmatpush1.bf16.msra.mxu0 0
      %7735 = vmatprep.subr.bf16.mxu0 0
      %7736 = vmatpush1.bf16.msra.mxu0 0
      %7737 = vmatprep.subr.bf16.mxu0 0
      %7738 = vmatpush1.bf16.msra.mxu0 0
      %7739 = vmatprep.subr.bf16.mxu0 0
      %7740 = vmatpush1.bf16.msra.mxu0 0
      %7741 = vmatprep.subr.bf16.mxu0 0
      %7742 = vmatpush1.bf16.msra.mxu0 0
      %7743 = vmatprep.subr.bf16.mxu0 0
      %7744 = vmatpush1.bf16.msra.mxu0 0
      %7745 = vmatprep.subr.bf16.mxu0 0
      %7746 = vmatpush1.bf16.msra.mxu0 0
      %7747 = vmatprep.subr.bf16.mxu0 0
      %7748 = vmatpush1.bf16.msra.mxu0 0
      %7749 = vmatprep.subr.bf16.mxu0 0
      %7750 = vmatpush1.bf16.msra.mxu0 0
      %7751 = vmatprep.subr.bf16.mxu0 0
      %7752 = vmatpush1.bf16.msra.mxu0 0
      %7753 = vmatprep.subr.bf16.mxu0 0
      %7754 = vmatpush1.bf16.msra.mxu0 0
      %7755 = vmatprep.subr.bf16.mxu0 0
      %7756 = vmatpush1.bf16.msra.mxu0 0
      %7757 = vmatprep.subr.bf16.mxu0 0
      %7758 = vmatpush1.bf16.msra.mxu0 0
      %7759 = vmatprep.subr.bf16.mxu0 0
      %7760 = vmatpush1.bf16.msra.mxu0 0
      %7761 = vmatprep.subr.bf16.mxu0 0
      %7762 = vmatpush1.bf16.msra.mxu0 0
      %7763 = vmatprep.mubr.bf16.mxu0 0
      %7764 = vmatmul.mubr.bf16.gmra.mrb[0].mxu0 %v7711
      %v7765 = vpop.f32.mrb[0].mxu0
      %v7766 = vadd.f32 0.0, %v7765
      %v7767 = vpop.f32.mrb[0].mxu0
      %v7768 = vadd.f32 0.0, %v7767
      %v7769 = vpop.f32.mrb[0].mxu0
      %v7770 = vadd.f32 0.0, %v7769
      %v7771 = vpop.f32.mrb[0].mxu0
      %v7772 = vadd.f32 0.0, %v7771
      %7773 = vmatprep.mubr.bf16.mxu0 0
      %7774 = vmatmul.mubr.bf16.gmra.mrb[0].mxu0 %v7714
      %v7775 = vpop.f32.mrb[0].mxu0
      %v7776 = vadd.f32 0.0, %v7775
      %v7777 = vpop.f32.mrb[0].mxu0
      %v7778 = vadd.f32 0.0, %v7777
      %v7779 = vpop.f32.mrb[0].mxu0
      %v7780 = vadd.f32 0.0, %v7779
      %v7781 = vpop.f32.mrb[0].mxu0
      %v7782 = vadd.f32 0.0, %v7781
      %7783 = vmatprep.mubr.bf16.mxu0 0
      %7784 = vmatmul.mubr.bf16.gmra.mrb[0].mxu0 %v7717
      %v7785 = vpop.f32.mrb[0].mxu0
      %v7786 = vadd.f32 0.0, %v7785
      %v7787 = vpop.f32.mrb[0].mxu0
      %v7788 = vadd.f32 0.0, %v7787
      %v7789 = vpop.f32.mrb[0].mxu0
      %v7790 = vadd.f32 0.0, %v7789
      %v7791 = vpop.f32.mrb[0].mxu0
      %v7792 = vadd.f32 0.0, %v7791
      %7793 = vmatprep.mubr.bf16.mxu0 0
      %7794 = vmatmul.mubr.bf16.gmra.mrb[0].mxu0 %v7720
      %v7795 = vpop.f32.mrb[0].mxu0
      %v7796 = vadd.f32 0.0, %v7795
      %v7797 = vpop.f32.mrb[0].mxu0
      %v7798 = vadd.f32 0.0, %v7797
      %v7799 = vpop.f32.mrb[0].mxu0
      %v7800 = vpop.f32.mrb[0].mxu0
      %7801 = vdwg.mxu0
      %7802 = vmatprep.subr.bf16.mxu0 0
      %7803 = vmatpush1.bf16.msra.mxu0 %v7729
      %7804 = vmatprep.subr.bf16.mxu0 0
      %7805 = vmatpush1.bf16.msra.mxu0 0
      %7806 = vmatprep.subr.bf16.mxu0 0
      %7807 = vmatpush1.bf16.msra.mxu0 0
      %7808 = vmatprep.subr.bf16.mxu0 0
      %7809 = vmatpush1.bf16.msra.mxu0 0
      %7810 = vmatprep.subr.bf16.mxu0 0
      %7811 = vmatpush1.bf16.msra.mxu0 0
      %7812 = vmatprep.subr.bf16.mxu0 0
      %7813 = vmatpush1.bf16.msra.mxu0 0
      %7814 = vmatprep.subr.bf16.mxu0 0
      %7815 = vmatpush1.bf16.msra.mxu0 0
      %7816 = vmatprep.subr.bf16.mxu0 0
      %7817 = vmatpush1.bf16.msra.mxu0 0
      %7818 = vmatprep.subr.bf16.mxu0 0
      %7819 = vmatpush1.bf16.msra.mxu0 0
      %7820 = vmatprep.subr.bf16.mxu0 0
      %7821 = vmatpush1.bf16.msra.mxu0 0
      %7822 = vmatprep.subr.bf16.mxu0 0
      %7823 = vmatpush1.bf16.msra.mxu0 0
      %7824 = vmatprep.subr.bf16.mxu0 0
      %7825 = vmatpush1.bf16.msra.mxu0 0
      %7826 = vmatprep.subr.bf16.mxu0 0
      %7827 = vmatpush1.bf16.msra.mxu0 0
      %7828 = vmatprep.subr.bf16.mxu0 0
      %7829 = vmatpush1.bf16.msra.mxu0 0
      %7830 = vmatprep.subr.bf16.mxu0 0
      %7831 = vmatpush1.bf16.msra.mxu0 0
      %7832 = vmatprep.subr.bf16.mxu0 0
      %7833 = vmatpush1.bf16.msra.mxu0 0
      %7834 = vmatprep.mubr.bf16.mxu0 0
      %7835 = vmatmul.mubr.bf16.gmra.mrb[0].mxu0 %v7711
      %v7836 = vpop.f32.mrb[0].mxu0
      %v7837 = vadd.f32 0.0, %v7836
      %v7838 = vpop.f32.mrb[0].mxu0
      %v7839 = vpop.f32.mrb[0].mxu0
      %v7840 = vadd.f32 0.0, %v7839
      %v7841 = vpop.f32.mrb[0].mxu0
      %7842 = vmatprep.mubr.bf16.mxu0 0
      %7843 = vmatmul.mubr.bf16.gmra.mrb[0].mxu0 %v7714
      %v7844 = vpop.f32.mrb[0].mxu0
      %v7845 = vadd.f32 0.0, %v7844
      %v7846 = vpop.f32.mrb[0].mxu0
      %v7847 = vpop.f32.mrb[0].mxu0
      %v7848 = vadd.f32 0.0, %v7847
      %v7849 = vpop.f32.mrb[0].mxu0
      %7850 = vmatprep.mubr.bf16.mxu0 0
      %7851 = vmatmul.mubr.bf16.gmra.mrb[0].mxu0 %v7717
      %v7852 = vpop.f32.mrb[0].mxu0
      %v7853 = vadd.f32 0.0, %v7852
      %v7854 = vpop.f32.mrb[0].mxu0
      %v7855 = vpop.f32.mrb[0].mxu0
      %v7856 = vadd.f32 0.0, %v7855
      %v7857 = vpop.f32.mrb[0].mxu0
      %7858 = vmatprep.mubr.bf16.mxu0 0
      %7859 = vmatmul.mubr.bf16.gmra.mrb[0].mxu0 %v7720
      %v7860 = vpop.f32.mrb[0].mxu0
      %v7861 = vadd.f32 0.0, %v7860
      %v7862 = vpop.f32.mrb[0].mxu0
      %v7863 = vpop.f32.mrb[0].mxu0
      %v7864 = vpop.f32.mrb[0].mxu0
      %7865 = vdwg.mxu0
      %v7866 = vadd.f32 %v7165, %v7766
      %v7867 = vadd.f32 %v7167, %v7768
      %v7868 = vadd.f32 %v7236, %v7837
      %v7869 = vadd.f32 %v7169, %v7770
      %v7870 = vadd.f32 %v7171, %v7772
      %v7871 = vadd.f32 %v7239, %v7840
      %v7872 = vadd.f32 %v7175, %v7776
      %v7873 = vadd.f32 %v7177, %v7778
      %v7874 = vadd.f32 %v7244, %v7845
      %v7875 = vadd.f32 %v7179, %v7780
      %v7876 = vadd.f32 %v7181, %v7782
      %v7877 = vadd.f32 %v7247, %v7848
      %v7878 = vadd.f32 %v7185, %v7786
      %v7879 = vadd.f32 %v7187, %v7788
      %v7880 = vadd.f32 %v7252, %v7853
      %v7881 = vadd.f32 %v7189, %v7790
      %v7882 = vadd.f32 %v7191, %v7792
      %v7883 = vadd.f32 %v7255, %v7856
      %v7884 = vadd.f32 %v7195, %v7796
      %v7885 = vadd.f32 %v7197, %v7798
      %v7886 = vadd.f32 %v7260, %v7861
      %7887 = vmatprep.subr.bf16.mxu0 0
      %7888 = vmatpush1.bf16.msra.mxu0 %v6572
      %7889 = vmatprep.subr.bf16.mxu0 0
      %7890 = vmatpush1.bf16.msra.mxu0 %v6573
      %7891 = vmatprep.subr.bf16.mxu0 0
      %7892 = vmatpush1.bf16.msra.mxu0 %v6574
      %7893 = vmatprep.subr.bf16.mxu0 0
      %7894 = vmatpush1.bf16.msra.mxu0 %v6575
      %7895 = vmatprep.subr.bf16.mxu0 0
      %7896 = vmatpush1.bf16.msra.mxu0 %v6576
      %7897 = vmatprep.subr.bf16.mxu0 0
      %7898 = vmatpush1.bf16.msra.mxu0 %v6577
      %7899 = vmatprep.subr.bf16.mxu0 0
      %7900 = vmatpush1.bf16.msra.mxu0 %v6578
      %7901 = vmatprep.subr.bf16.mxu0 0
      %7902 = vmatpush1.bf16.msra.mxu0 %v6579
      %7903 = vmatprep.subr.bf16.mxu0 0
      %7904 = vmatpush1.bf16.msra.mxu0 %v6580
      %7905 = vmatprep.subr.bf16.mxu0 0
      %7906 = vmatpush1.bf16.msra.mxu0 %v6581
      %7907 = vmatprep.subr.bf16.mxu0 0
      %7908 = vmatpush1.bf16.msra.mxu0 %v6582
      %7909 = vmatprep.subr.bf16.mxu0 0
      %7910 = vmatpush1.bf16.msra.mxu0 %v6583
      %7911 = vmatprep.subr.bf16.mxu0 0
      %7912 = vmatpush1.bf16.msra.mxu0 %v6584
      %7913 = vmatprep.subr.bf16.mxu0 0
      %7914 = vmatpush1.bf16.msra.mxu0 %v6585
      %7915 = vmatprep.subr.bf16.mxu0 0
      %7916 = vmatpush1.bf16.msra.mxu0 %v6586
      %7917 = vmatprep.subr.bf16.mxu0 0
      %7918 = vmatpush1.bf16.msra.mxu0 %v6587
      %7919 = vmatprep.mubr.bf16.mxu0 %v7601
      %7920 = vmatmul.mubr.bf16.gmra.mrb[0].mxu0 %v7600
      %v7921 = vpop.f32.mrb[0].mxu0
      %v7922 = vadd.f32 0.0, %v7921
      %v7923 = vpop.f32.mrb[0].mxu0
      %v7924 = vpop.f32.mrb[0].mxu0
      %v7925 = vadd.f32 0.0, %v7924
      %v7926 = vpop.f32.mrb[0].mxu0
      %7927 = vmatprep.mubr.bf16.mxu0 %v7603
      %7928 = vmatmul.mubr.bf16.gmra.mrb[0].mxu0 %v7602
      %v7929 = vpop.f32.mrb[0].mxu0
      %v7930 = vadd.f32 0.0, %v7929
      %v7931 = vpop.f32.mrb[0].mxu0
      %v7932 = vpop.f32.mrb[0].mxu0
      %v7933 = vadd.f32 0.0, %v7932
      %v7934 = vpop.f32.mrb[0].mxu0
      %7935 = vmatprep.mubr.bf16.mxu0 %v7605
      %7936 = vmatmul.mubr.bf16.gmra.mrb[0].mxu0 %v7604
      %v7937 = vpop.f32.mrb[0].mxu0
      %v7938 = vadd.f32 0.0, %v7937
      %v7939 = vpop.f32.mrb[0].mxu0
      %v7940 = vpop.f32.mrb[0].mxu0
      %v7941 = vadd.f32 0.0, %v7940
      %v7942 = vpop.f32.mrb[0].mxu0
      %7943 = vmatprep.mubr.bf16.mxu0 %v7607
      %7944 = vmatmul.mubr.bf16.gmra.mrb[0].mxu0 %v7606
      %v7945 = vpop.f32.mrb[0].mxu0
      %v7946 = vadd.f32 0.0, %v7945
      %v7947 = vpop.f32.mrb[0].mxu0
      %v7948 = vpop.f32.mrb[0].mxu0
      %v7949 = vpop.f32.mrb[0].mxu0
      %7950 = vdwg.mxu0
      %v7951 = vpack.c.bf16 %v7925, %v7922
      %v7952 = vpack.c.bf16 %v7933, %v7930
      %v7953 = vpack.c.bf16 %v7941, %v7938
      %v7954 = vpack.c.bf16 %v7946, %v7946
      %s7955 = scalar_lea.vmem %s9, 96
      %v7956 = vld [vmem:[%s7955] sm:$0xf]
      %v7957 = vld [vmem:[%s7955 + $0x4] sm:$0xf]
      %v7958 = vld [vmem:[%s7955 + $0x8] sm:$0xf]
      %v7959 = vld [vmem:[%s7955 + $0xc] sm:$0xf]
      %v7960 = vld [vmem:[%s7955 + $0x10] sm:$0xf]
      %v7961 = vld [vmem:[%s7955 + $0x14] sm:$0xf]
      %v7962 = vld [vmem:[%s7955 + $0x18] sm:$0xf]
      %v7963 = vld [vmem:[%s7955 + $0x1c] sm:$0xf]
      %v7964 = vld [vmem:[%s7955 + $0x20] sm:$0xf]
      %v7965 = vld [vmem:[%s7955 + $0x24] sm:$0xf]
      %v7966 = vld [vmem:[%s7955 + $0x28] sm:$0xf]
      %v7967 = vld [vmem:[%s7955 + $0x2c] sm:$0xf]
      %v7980 = vunpack.c.l.b16 %v7956
      %v7981 = vunpack.c.l.b16 %v7957
      %v7982 = vunpack.c.l.b16 %v7958
      %v7983 = vunpack.c.l.b16 %v7959
      %v7984 = vunpack.c.l.b16 %v7960
      %v7985 = vunpack.c.l.b16 %v7961
      %v7986 = vunpack.c.l.b16 %v7962
      %v7987 = vunpack.c.l.b16 %v7963
      %v7988 = vunpack.c.l.b16 %v7964
      %v7989 = vunpack.c.l.b16 %v7965
      %v7990 = vunpack.c.l.b16 %v7966
      %v7991 = vunpack.c.l.b16 %v7967
      %v7992 = vpack.c.b16 %v7981, %v7980
      %v7993 = vpack.c.b16 %v7983, %v7982
      %v7994 = vpack.c.b16 %v7985, %v7984
      %v7995 = vpack.c.b16 %v7987, %v7986
      %v7996 = vpack.c.b16 %v7989, %v7988
      %v7997 = vpack.c.b16 %v7991, %v7990
      %v8005 = vsel %vm7382, %v7951, 0
      %v8008 = vsel %vm7382, %v7952, 0
      %v8011 = vsel %vm7382, %v7953, 0
      %v8014 = vsel %vm7382, %v7954, 0
      %8016 = vmatprep.subr.bf16.mxu0 0
      %8017 = vmatpush1.bf16.msra.mxu0 %v7992
      %8018 = vmatprep.subr.bf16.mxu0 0
      %8019 = vmatpush1.bf16.msra.mxu0 %v7993
      %8020 = vmatprep.subr.bf16.mxu0 0
      %8021 = vmatpush1.bf16.msra.mxu0 %v7994
      %8022 = vmatprep.subr.bf16.mxu0 0
      %8023 = vmatpush1.bf16.msra.mxu0 %v7995
      %8024 = vmatprep.subr.bf16.mxu0 0
      %8025 = vmatpush1.bf16.msra.mxu0 %v7996
      %8026 = vmatprep.subr.bf16.mxu0 0
      %8027 = vmatpush1.bf16.msra.mxu0 %v7997
      %8028 = vmatprep.subr.bf16.mxu0 0
      %8029 = vmatpush1.bf16.msra.mxu0 0
      %8030 = vmatprep.subr.bf16.mxu0 0
      %8031 = vmatpush1.bf16.msra.mxu0 0
      %8032 = vmatprep.subr.bf16.mxu0 0
      %8033 = vmatpush1.bf16.msra.mxu0 0
      %8034 = vmatprep.subr.bf16.mxu0 0
      %8035 = vmatpush1.bf16.msra.mxu0 0
      %8036 = vmatprep.subr.bf16.mxu0 0
      %8037 = vmatpush1.bf16.msra.mxu0 0
      %8038 = vmatprep.subr.bf16.mxu0 0
      %8039 = vmatpush1.bf16.msra.mxu0 0
      %8040 = vmatprep.subr.bf16.mxu0 0
      %8041 = vmatpush1.bf16.msra.mxu0 0
      %8042 = vmatprep.subr.bf16.mxu0 0
      %8043 = vmatpush1.bf16.msra.mxu0 0
      %8044 = vmatprep.subr.bf16.mxu0 0
      %8045 = vmatpush1.bf16.msra.mxu0 0
      %8046 = vmatprep.subr.bf16.mxu0 0
      %8047 = vmatpush1.bf16.msra.mxu0 0
      %8048 = vmatprep.mubr.bf16.mxu0 0
      %8049 = vmatmul.mubr.bf16.gmra.mrb[0].mxu0 %v8005
      %v8050 = vpop.f32.mrb[0].mxu0
      %v8051 = vadd.f32 0.0, %v8050
      %v8052 = vpop.f32.mrb[0].mxu0
      %v8053 = vpop.f32.mrb[0].mxu0
      %v8054 = vadd.f32 0.0, %v8053
      %v8055 = vpop.f32.mrb[0].mxu0
      %8056 = vmatprep.mubr.bf16.mxu0 0
      %8057 = vmatmul.mubr.bf16.gmra.mrb[0].mxu0 %v8008
      %v8058 = vpop.f32.mrb[0].mxu0
      %v8059 = vadd.f32 0.0, %v8058
      %v8060 = vpop.f32.mrb[0].mxu0
      %v8061 = vpop.f32.mrb[0].mxu0
      %v8062 = vadd.f32 0.0, %v8061
      %v8063 = vpop.f32.mrb[0].mxu0
      %8064 = vmatprep.mubr.bf16.mxu0 0
      %8065 = vmatmul.mubr.bf16.gmra.mrb[0].mxu0 %v8011
      %v8066 = vpop.f32.mrb[0].mxu0
      %v8067 = vadd.f32 0.0, %v8066
      %v8068 = vpop.f32.mrb[0].mxu0
      %v8069 = vpop.f32.mrb[0].mxu0
      %v8070 = vadd.f32 0.0, %v8069
      %v8071 = vpop.f32.mrb[0].mxu0
      %8072 = vmatprep.mubr.bf16.mxu0 0
      %8073 = vmatmul.mubr.bf16.gmra.mrb[0].mxu0 %v8014
      %v8074 = vpop.f32.mrb[0].mxu0
      %v8075 = vadd.f32 0.0, %v8074
      %v8076 = vpop.f32.mrb[0].mxu0
      %v8077 = vpop.f32.mrb[0].mxu0
      %v8078 = vpop.f32.mrb[0].mxu0
      %8079 = vdwg.mxu0
      %v8080 = vadd.f32 %v7542, %v8051
      %v8081 = vadd.f32 %v7545, %v8054
      %v8082 = vadd.f32 %v7550, %v8059
      %v8083 = vadd.f32 %v7553, %v8062
      %v8084 = vadd.f32 %v7558, %v8067
      %v8085 = vadd.f32 %v7561, %v8070
      %v8086 = vadd.f32 %v7566, %v8075
      %s8087 = scalar_lea.vmem %s1, 168
      %v8088 = vld [vmem:[%s8087] sm:$0xff]
      %v8089 = vld [vmem:[%s8087 + $0x8] sm:$0xff]
      %v8090 = vld [vmem:[%s8087 + $0x10] sm:$0xff]
      %v8091 = vld [vmem:[%s8087 + $0x18] sm:$0xff]
      %v8092 = vld [vmem:[%s8087 + $0x20] sm:$0xff]
      %v8093 = vld [vmem:[%s8087 + $0x28] sm:$0xff]
      %v8094 = vld [vmem:[%s8087 + $0x30] sm:$0x11]
      %v8102 = vunpack.c.l.b16 %v8088
      %v8103 = vunpack.c.h.b16 %v8088
      %v8104 = vunpack.c.l.b16 %v8089
      %v8105 = vunpack.c.h.b16 %v8089
      %v8106 = vunpack.c.l.b16 %v8090
      %v8107 = vunpack.c.h.b16 %v8090
      %v8108 = vunpack.c.l.b16 %v8091
      %v8109 = vunpack.c.h.b16 %v8091
      %v8110 = vunpack.c.l.b16 %v8092
      %v8111 = vunpack.c.h.b16 %v8092
      %v8112 = vunpack.c.l.b16 %v8093
      %v8113 = vunpack.c.h.b16 %v8093
      %v8114 = vunpack.c.l.b16 %v8094
      %v8115 = vunpack.c.h.b16 %v8094
      %v8116 = vpack.c.b16 %v8104, %v8102
      %v8117 = vpack.c.b16 %v8105, %v8103
      %v8118 = vpack.c.b16 %v8108, %v8106
      %v8119 = vpack.c.b16 %v8109, %v8107
      %v8120 = vpack.c.b16 %v8112, %v8110
      %v8121 = vpack.c.b16 %v8113, %v8111
      %v8122 = vpack.c.b16 %v8114, %v8114
      %v8123 = vpack.c.b16 %v8115, %v8115
      %8132 = vmatprep.subr.bf16.mxu0 0
      %8133 = vmatpush1.bf16.msra.mxu0 %v492
      %8134 = vmatprep.subr.bf16.mxu0 0
      %8135 = vmatpush1.bf16.msra.mxu0 %v493
      %8136 = vmatprep.subr.bf16.mxu0 0
      %8137 = vmatpush1.bf16.msra.mxu0 %v494
      %8138 = vmatprep.subr.bf16.mxu0 0
      %8139 = vmatpush1.bf16.msra.mxu0 %v495
      %8140 = vmatprep.subr.bf16.mxu0 0
      %8141 = vmatpush1.bf16.msra.mxu0 %v496
      %8142 = vmatprep.subr.bf16.mxu0 0
      %8143 = vmatpush1.bf16.msra.mxu0 %v497
      %8144 = vmatprep.subr.bf16.mxu0 0
      %8145 = vmatpush1.bf16.msra.mxu0 %v498
      %8146 = vmatprep.subr.bf16.mxu0 0
      %8147 = vmatpush1.bf16.msra.mxu0 %v499
      %8148 = vmatprep.subr.bf16.mxu0 0
      %8149 = vmatpush1.bf16.msra.mxu0 %v500
      %8150 = vmatprep.subr.bf16.mxu0 0
      %8151 = vmatpush1.bf16.msra.mxu0 %v501
      %8152 = vmatprep.subr.bf16.mxu0 0
      %8153 = vmatpush1.bf16.msra.mxu0 %v502
      %8154 = vmatprep.subr.bf16.mxu0 0
      %8155 = vmatpush1.bf16.msra.mxu0 %v503
      %8156 = vmatprep.subr.bf16.mxu0 0
      %8157 = vmatpush1.bf16.msra.mxu0 %v504
      %8158 = vmatprep.subr.bf16.mxu0 0
      %8159 = vmatpush1.bf16.msra.mxu0 %v505
      %8160 = vmatprep.subr.bf16.mxu0 0
      %8161 = vmatpush1.bf16.msra.mxu0 %v506
      %8162 = vmatprep.subr.bf16.mxu0 0
      %8163 = vmatpush1.bf16.msra.mxu0 %v507
      %8164 = vmatprep.mubr.bf16.mxu0 %v8117
      %8165 = vmatmul.mubr.bf16.gmra.mrb[0].mxu0 %v8116
      %v8166 = vpop.f32.mrb[0].mxu0
      %v8167 = vadd.f32 0.0, %v8166
      %v8168 = vpop.f32.mrb[0].mxu0
      %v8169 = vpop.f32.mrb[0].mxu0
      %v8170 = vadd.f32 0.0, %v8169
      %v8171 = vpop.f32.mrb[0].mxu0
      %8172 = vmatprep.mubr.bf16.mxu0 %v8119
      %8173 = vmatmul.mubr.bf16.gmra.mrb[0].mxu0 %v8118
      %v8174 = vpop.f32.mrb[0].mxu0
      %v8175 = vadd.f32 0.0, %v8174
      %v8176 = vpop.f32.mrb[0].mxu0
      %v8177 = vpop.f32.mrb[0].mxu0
      %v8178 = vadd.f32 0.0, %v8177
      %v8179 = vpop.f32.mrb[0].mxu0
      %8180 = vmatprep.mubr.bf16.mxu0 %v8121
      %8181 = vmatmul.mubr.bf16.gmra.mrb[0].mxu0 %v8120
      %v8182 = vpop.f32.mrb[0].mxu0
      %v8183 = vadd.f32 0.0, %v8182
      %v8184 = vpop.f32.mrb[0].mxu0
      %v8185 = vpop.f32.mrb[0].mxu0
      %v8186 = vadd.f32 0.0, %v8185
      %v8187 = vpop.f32.mrb[0].mxu0
      %8188 = vmatprep.mubr.bf16.mxu0 %v8123
      %8189 = vmatmul.mubr.bf16.gmra.mrb[0].mxu0 %v8122
      %v8190 = vpop.f32.mrb[0].mxu0
      %v8191 = vadd.f32 0.0, %v8190
      %v8192 = vpop.f32.mrb[0].mxu0
      %v8193 = vpop.f32.mrb[0].mxu0
      %v8194 = vpop.f32.mrb[0].mxu0
      %8195 = vdwg.mxu0
      %v8196 = vmax.f32 %v7680, %v8167
      %v8197 = vmax.f32 %v7681, %v8170
      %v8198 = vmax.f32 %v7682, %v8175
      %v8199 = vmax.f32 %v7683, %v8178
      %v8200 = vmax.f32 %v7684, %v8183
      %v8201 = vmax.f32 %v7685, %v8186
      %v8202 = vmax.f32 %v7686, %v8191
      %v8203 = vpack.c.bf16 %v8170, %v8167
      %v8204 = vpack.c.bf16 %v8178, %v8175
      %v8205 = vpack.c.bf16 %v8186, %v8183
      %v8206 = vpack.c.bf16 %v8191, %v8191
      %s8207 = scalar_lea.vmem %s3, 18
      %v8208 = vld [vmem:[%s8207] sm:$0x3f]
      %v8210 = vcombine.high %v8208, %v8208
      %v8212 = vunpack.c.l.s4 1983009808
      %v8213 = vunpack.c.0.s8 %v8212
      %v8214 = vlaneseq
      %v8215 = vshrl.u32 %v8214, 7
      %v8216 = vsub.s32 %v8213, %v8215
      %v8217 = vrot.slane %v8208, %v8216
      %v8219 = vunpack.c.l.s4 1983009808
      %v8220 = vunpack.c.0.s8 %v8219
      %v8221 = vlaneseq
      %v8222 = vshrl.u32 %v8221, 7
      %v8223 = vsub.s32 %v8220, %v8222
      %v8224 = vrot.slane %v8210, %v8223
      %v8225 = vcombine.high %v8217, %v8217
      %v8227 = vsel %vm508, %v8203, 0
      %v8230 = vsel %vm508, %v8204, 0
      %v8233 = vsel %vm508, %v8205, 0
      %v8236 = vsel %vm508, %v8206, 0
      %v8239 = vsel %vm557, %v8217, 0
      %v8242 = vsel %vm557, %v8225, 0
      %v8245 = vsel %vm557, %v8224, 0
      %8247 = vmatprep.subr.bf16.mxu0 %v8242
      %8248 = vmatpush1.bf16.msra.mxu0 %v8239
      %8249 = vmatprep.subr.bf16.mxu0 0
      %8250 = vmatpush1.bf16.msra.mxu0 0
      %8251 = vmatprep.subr.bf16.mxu0 0
      %8252 = vmatpush1.bf16.msra.mxu0 0
      %8253 = vmatprep.subr.bf16.mxu0 0
      %8254 = vmatpush1.bf16.msra.mxu0 0
      %8255 = vmatprep.subr.bf16.mxu0 0
      %8256 = vmatpush1.bf16.msra.mxu0 0
      %8257 = vmatprep.subr.bf16.mxu0 0
      %8258 = vmatpush1.bf16.msra.mxu0 0
      %8259 = vmatprep.subr.bf16.mxu0 0
      %8260 = vmatpush1.bf16.msra.mxu0 0
      %8261 = vmatprep.subr.bf16.mxu0 0
      %8262 = vmatpush1.bf16.msra.mxu0 0
      %8263 = vmatprep.subr.bf16.mxu0 0
      %8264 = vmatpush1.bf16.msra.mxu0 0
      %8265 = vmatprep.subr.bf16.mxu0 0
      %8266 = vmatpush1.bf16.msra.mxu0 0
      %8267 = vmatprep.subr.bf16.mxu0 0
      %8268 = vmatpush1.bf16.msra.mxu0 0
      %8269 = vmatprep.subr.bf16.mxu0 0
      %8270 = vmatpush1.bf16.msra.mxu0 0
      %8271 = vmatprep.subr.bf16.mxu0 0
      %8272 = vmatpush1.bf16.msra.mxu0 0
      %8273 = vmatprep.subr.bf16.mxu0 0
      %8274 = vmatpush1.bf16.msra.mxu0 0
      %8275 = vmatprep.subr.bf16.mxu0 0
      %8276 = vmatpush1.bf16.msra.mxu0 0
      %8277 = vmatprep.subr.bf16.mxu0 0
      %8278 = vmatpush1.bf16.msra.mxu0 0
      %8279 = vmatprep.mubr.bf16.mxu0 0
      %8280 = vmatmul.mubr.bf16.gmra.mrb[0].mxu0 %v8227
      %v8281 = vpop.f32.mrb[0].mxu0
      %v8282 = vadd.f32 0.0, %v8281
      %v8283 = vpop.f32.mrb[0].mxu0
      %v8284 = vadd.f32 0.0, %v8283
      %v8285 = vpop.f32.mrb[0].mxu0
      %v8286 = vadd.f32 0.0, %v8285
      %v8287 = vpop.f32.mrb[0].mxu0
      %v8288 = vadd.f32 0.0, %v8287
      %8289 = vmatprep.mubr.bf16.mxu0 0
      %8290 = vmatmul.mubr.bf16.gmra.mrb[0].mxu0 %v8230
      %v8291 = vpop.f32.mrb[0].mxu0
      %v8292 = vadd.f32 0.0, %v8291
      %v8293 = vpop.f32.mrb[0].mxu0
      %v8294 = vadd.f32 0.0, %v8293
      %v8295 = vpop.f32.mrb[0].mxu0
      %v8296 = vadd.f32 0.0, %v8295
      %v8297 = vpop.f32.mrb[0].mxu0
      %v8298 = vadd.f32 0.0, %v8297
      %8299 = vmatprep.mubr.bf16.mxu0 0
      %8300 = vmatmul.mubr.bf16.gmra.mrb[0].mxu0 %v8233
      %v8301 = vpop.f32.mrb[0].mxu0
      %v8302 = vadd.f32 0.0, %v8301
      %v8303 = vpop.f32.mrb[0].mxu0
      %v8304 = vadd.f32 0.0, %v8303
      %v8305 = vpop.f32.mrb[0].mxu0
      %v8306 = vadd.f32 0.0, %v8305
      %v8307 = vpop.f32.mrb[0].mxu0
      %v8308 = vadd.f32 0.0, %v8307
      %8309 = vmatprep.mubr.bf16.mxu0 0
      %8310 = vmatmul.mubr.bf16.gmra.mrb[0].mxu0 %v8236
      %v8311 = vpop.f32.mrb[0].mxu0
      %v8312 = vadd.f32 0.0, %v8311
      %v8313 = vpop.f32.mrb[0].mxu0
      %v8314 = vadd.f32 0.0, %v8313
      %v8315 = vpop.f32.mrb[0].mxu0
      %v8316 = vpop.f32.mrb[0].mxu0
      %8317 = vdwg.mxu0
      %8318 = vmatprep.subr.bf16.mxu0 0
      %8319 = vmatpush1.bf16.msra.mxu0 %v8245
      %8320 = vmatprep.subr.bf16.mxu0 0
      %8321 = vmatpush1.bf16.msra.mxu0 0
      %8322 = vmatprep.subr.bf16.mxu0 0
      %8323 = vmatpush1.bf16.msra.mxu0 0
      %8324 = vmatprep.subr.bf16.mxu0 0
      %8325 = vmatpush1.bf16.msra.mxu0 0
      %8326 = vmatprep.subr.bf16.mxu0 0
      %8327 = vmatpush1.bf16.msra.mxu0 0
      %8328 = vmatprep.subr.bf16.mxu0 0
      %8329 = vmatpush1.bf16.msra.mxu0 0
      %8330 = vmatprep.subr.bf16.mxu0 0
      %8331 = vmatpush1.bf16.msra.mxu0 0
      %8332 = vmatprep.subr.bf16.mxu0 0
      %8333 = vmatpush1.bf16.msra.mxu0 0
      %8334 = vmatprep.subr.bf16.mxu0 0
      %8335 = vmatpush1.bf16.msra.mxu0 0
      %8336 = vmatprep.subr.bf16.mxu0 0
      %8337 = vmatpush1.bf16.msra.mxu0 0
      %8338 = vmatprep.subr.bf16.mxu0 0
      %8339 = vmatpush1.bf16.msra.mxu0 0
      %8340 = vmatprep.subr.bf16.mxu0 0
      %8341 = vmatpush1.bf16.msra.mxu0 0
      %8342 = vmatprep.subr.bf16.mxu0 0
      %8343 = vmatpush1.bf16.msra.mxu0 0
      %8344 = vmatprep.subr.bf16.mxu0 0
      %8345 = vmatpush1.bf16.msra.mxu0 0
      %8346 = vmatprep.subr.bf16.mxu0 0
      %8347 = vmatpush1.bf16.msra.mxu0 0
      %8348 = vmatprep.subr.bf16.mxu0 0
      %8349 = vmatpush1.bf16.msra.mxu0 0
      %8350 = vmatprep.mubr.bf16.mxu0 0
      %8351 = vmatmul.mubr.bf16.gmra.mrb[0].mxu0 %v8227
      %v8352 = vpop.f32.mrb[0].mxu0
      %v8353 = vadd.f32 0.0, %v8352
      %v8354 = vpop.f32.mrb[0].mxu0
      %v8355 = vpop.f32.mrb[0].mxu0
      %v8356 = vadd.f32 0.0, %v8355
      %v8357 = vpop.f32.mrb[0].mxu0
      %8358 = vmatprep.mubr.bf16.mxu0 0
      %8359 = vmatmul.mubr.bf16.gmra.mrb[0].mxu0 %v8230
      %v8360 = vpop.f32.mrb[0].mxu0
      %v8361 = vadd.f32 0.0, %v8360
      %v8362 = vpop.f32.mrb[0].mxu0
      %v8363 = vpop.f32.mrb[0].mxu0
      %v8364 = vadd.f32 0.0, %v8363
      %v8365 = vpop.f32.mrb[0].mxu0
      %8366 = vmatprep.mubr.bf16.mxu0 0
      %8367 = vmatmul.mubr.bf16.gmra.mrb[0].mxu0 %v8233
      %v8368 = vpop.f32.mrb[0].mxu0
      %v8369 = vadd.f32 0.0, %v8368
      %v8370 = vpop.f32.mrb[0].mxu0
      %v8371 = vpop.f32.mrb[0].mxu0
      %v8372 = vadd.f32 0.0, %v8371
      %v8373 = vpop.f32.mrb[0].mxu0
      %8374 = vmatprep.mubr.bf16.mxu0 0
      %8375 = vmatmul.mubr.bf16.gmra.mrb[0].mxu0 %v8236
      %v8376 = vpop.f32.mrb[0].mxu0
      %v8377 = vadd.f32 0.0, %v8376
      %v8378 = vpop.f32.mrb[0].mxu0
      %v8379 = vpop.f32.mrb[0].mxu0
      %v8380 = vpop.f32.mrb[0].mxu0
      %8381 = vdwg.mxu0
      %v8382 = vadd.f32 %v7866, %v8282
      %v8383 = vadd.f32 %v7867, %v8284
      %v8384 = vadd.f32 %v7868, %v8353
      %v8385 = vadd.f32 %v7869, %v8286
      %v8386 = vadd.f32 %v7870, %v8288
      %v8387 = vadd.f32 %v7871, %v8356
      %v8388 = vadd.f32 %v7872, %v8292
      %v8389 = vadd.f32 %v7873, %v8294
      %v8390 = vadd.f32 %v7874, %v8361
      %v8391 = vadd.f32 %v7875, %v8296
      %v8392 = vadd.f32 %v7876, %v8298
      %v8393 = vadd.f32 %v7877, %v8364
      %v8394 = vadd.f32 %v7878, %v8302
      %v8395 = vadd.f32 %v7879, %v8304
      %v8396 = vadd.f32 %v7880, %v8369
      %v8397 = vadd.f32 %v7881, %v8306
      %v8398 = vadd.f32 %v7882, %v8308
      %v8399 = vadd.f32 %v7883, %v8372
      %v8400 = vadd.f32 %v7884, %v8312
      %v8401 = vadd.f32 %v7885, %v8314
      %v8402 = vadd.f32 %v7886, %v8377
      %8403 = vmatprep.subr.bf16.mxu0 0
      %8404 = vmatpush1.bf16.msra.mxu0 %v6572
      %8405 = vmatprep.subr.bf16.mxu0 0
      %8406 = vmatpush1.bf16.msra.mxu0 %v6573
      %8407 = vmatprep.subr.bf16.mxu0 0
      %8408 = vmatpush1.bf16.msra.mxu0 %v6574
      %8409 = vmatprep.subr.bf16.mxu0 0
      %8410 = vmatpush1.bf16.msra.mxu0 %v6575
      %8411 = vmatprep.subr.bf16.mxu0 0
      %8412 = vmatpush1.bf16.msra.mxu0 %v6576
      %8413 = vmatprep.subr.bf16.mxu0 0
      %8414 = vmatpush1.bf16.msra.mxu0 %v6577
      %8415 = vmatprep.subr.bf16.mxu0 0
      %8416 = vmatpush1.bf16.msra.mxu0 %v6578
      %8417 = vmatprep.subr.bf16.mxu0 0
      %8418 = vmatpush1.bf16.msra.mxu0 %v6579
      %8419 = vmatprep.subr.bf16.mxu0 0
      %8420 = vmatpush1.bf16.msra.mxu0 %v6580
      %8421 = vmatprep.subr.bf16.mxu0 0
      %8422 = vmatpush1.bf16.msra.mxu0 %v6581
      %8423 = vmatprep.subr.bf16.mxu0 0
      %8424 = vmatpush1.bf16.msra.mxu0 %v6582
      %8425 = vmatprep.subr.bf16.mxu0 0
      %8426 = vmatpush1.bf16.msra.mxu0 %v6583
      %8427 = vmatprep.subr.bf16.mxu0 0
      %8428 = vmatpush1.bf16.msra.mxu0 %v6584
      %8429 = vmatprep.subr.bf16.mxu0 0
      %8430 = vmatpush1.bf16.msra.mxu0 %v6585
      %8431 = vmatprep.subr.bf16.mxu0 0
      %8432 = vmatpush1.bf16.msra.mxu0 %v6586
      %8433 = vmatprep.subr.bf16.mxu0 0
      %8434 = vmatpush1.bf16.msra.mxu0 %v6587
      %8435 = vmatprep.mubr.bf16.mxu0 %v8117
      %8436 = vmatmul.mubr.bf16.gmra.mrb[0].mxu0 %v8116
      %v8437 = vpop.f32.mrb[0].mxu0
      %v8438 = vadd.f32 0.0, %v8437
      %v8439 = vpop.f32.mrb[0].mxu0
      %v8440 = vpop.f32.mrb[0].mxu0
      %v8441 = vadd.f32 0.0, %v8440
      %v8442 = vpop.f32.mrb[0].mxu0
      %8443 = vmatprep.mubr.bf16.mxu0 %v8119
      %8444 = vmatmul.mubr.bf16.gmra.mrb[0].mxu0 %v8118
      %v8445 = vpop.f32.mrb[0].mxu0
      %v8446 = vadd.f32 0.0, %v8445
      %v8447 = vpop.f32.mrb[0].mxu0
      %v8448 = vpop.f32.mrb[0].mxu0
      %v8449 = vadd.f32 0.0, %v8448
      %v8450 = vpop.f32.mrb[0].mxu0
      %8451 = vmatprep.mubr.bf16.mxu0 %v8121
      %8452 = vmatmul.mubr.bf16.gmra.mrb[0].mxu0 %v8120
      %v8453 = vpop.f32.mrb[0].mxu0
      %v8454 = vadd.f32 0.0, %v8453
      %v8455 = vpop.f32.mrb[0].mxu0
      %v8456 = vpop.f32.mrb[0].mxu0
      %v8457 = vadd.f32 0.0, %v8456
      %v8458 = vpop.f32.mrb[0].mxu0
      %8459 = vmatprep.mubr.bf16.mxu0 %v8123
      %8460 = vmatmul.mubr.bf16.gmra.mrb[0].mxu0 %v8122
      %v8461 = vpop.f32.mrb[0].mxu0
      %v8462 = vadd.f32 0.0, %v8461
      %v8463 = vpop.f32.mrb[0].mxu0
      %v8464 = vpop.f32.mrb[0].mxu0
      %v8465 = vpop.f32.mrb[0].mxu0
      %8466 = vdwg.mxu0
      %v8467 = vpack.c.bf16 %v8441, %v8438
      %v8468 = vpack.c.bf16 %v8449, %v8446
      %v8469 = vpack.c.bf16 %v8457, %v8454
      %v8470 = vpack.c.bf16 %v8462, %v8462
      %s8471 = scalar_lea.vmem %s9, 144
      %v8472 = vld [vmem:[%s8471] sm:$0xf]
      %v8473 = vld [vmem:[%s8471 + $0x4] sm:$0xf]
      %v8474 = vld [vmem:[%s8471 + $0x8] sm:$0xf]
      %v8475 = vld [vmem:[%s8471 + $0xc] sm:$0xf]
      %v8476 = vld [vmem:[%s8471 + $0x10] sm:$0xf]
      %v8477 = vld [vmem:[%s8471 + $0x14] sm:$0xf]
      %v8478 = vld [vmem:[%s8471 + $0x18] sm:$0xf]
      %v8479 = vld [vmem:[%s8471 + $0x1c] sm:$0xf]
      %v8480 = vld [vmem:[%s8471 + $0x20] sm:$0xf]
      %v8481 = vld [vmem:[%s8471 + $0x24] sm:$0xf]
      %v8482 = vld [vmem:[%s8471 + $0x28] sm:$0xf]
      %v8483 = vld [vmem:[%s8471 + $0x2c] sm:$0xf]
      %v8496 = vunpack.c.l.b16 %v8472
      %v8497 = vunpack.c.l.b16 %v8473
      %v8498 = vunpack.c.l.b16 %v8474
      %v8499 = vunpack.c.l.b16 %v8475
      %v8500 = vunpack.c.l.b16 %v8476
      %v8501 = vunpack.c.l.b16 %v8477
      %v8502 = vunpack.c.l.b16 %v8478
      %v8503 = vunpack.c.l.b16 %v8479
      %v8504 = vunpack.c.l.b16 %v8480
      %v8505 = vunpack.c.l.b16 %v8481
      %v8506 = vunpack.c.l.b16 %v8482
      %v8507 = vunpack.c.l.b16 %v8483
      %v8508 = vpack.c.b16 %v8497, %v8496
      %v8509 = vpack.c.b16 %v8499, %v8498
      %v8510 = vpack.c.b16 %v8501, %v8500
      %v8511 = vpack.c.b16 %v8503, %v8502
      %v8512 = vpack.c.b16 %v8505, %v8504
      %v8513 = vpack.c.b16 %v8507, %v8506
      %v8521 = vsel %vm7382, %v8467, 0
      %v8524 = vsel %vm7382, %v8468, 0
      %v8527 = vsel %vm7382, %v8469, 0
      %v8530 = vsel %vm7382, %v8470, 0
      %8532 = vmatprep.subr.bf16.mxu0 0
      %8533 = vmatpush1.bf16.msra.mxu0 %v8508
      %8534 = vmatprep.subr.bf16.mxu0 0
      %8535 = vmatpush1.bf16.msra.mxu0 %v8509
      %8536 = vmatprep.subr.bf16.mxu0 0
      %8537 = vmatpush1.bf16.msra.mxu0 %v8510
      %8538 = vmatprep.subr.bf16.mxu0 0
      %8539 = vmatpush1.bf16.msra.mxu0 %v8511
      %8540 = vmatprep.subr.bf16.mxu0 0
      %8541 = vmatpush1.bf16.msra.mxu0 %v8512
      %8542 = vmatprep.subr.bf16.mxu0 0
      %8543 = vmatpush1.bf16.msra.mxu0 %v8513
      %8544 = vmatprep.subr.bf16.mxu0 0
      %8545 = vmatpush1.bf16.msra.mxu0 0
      %8546 = vmatprep.subr.bf16.mxu0 0
      %8547 = vmatpush1.bf16.msra.mxu0 0
      %8548 = vmatprep.subr.bf16.mxu0 0
      %8549 = vmatpush1.bf16.msra.mxu0 0
      %8550 = vmatprep.subr.bf16.mxu0 0
      %8551 = vmatpush1.bf16.msra.mxu0 0
      %8552 = vmatprep.subr.bf16.mxu0 0
      %8553 = vmatpush1.bf16.msra.mxu0 0
      %8554 = vmatprep.subr.bf16.mxu0 0
      %8555 = vmatpush1.bf16.msra.mxu0 0
      %8556 = vmatprep.subr.bf16.mxu0 0
      %8557 = vmatpush1.bf16.msra.mxu0 0
      %8558 = vmatprep.subr.bf16.mxu0 0
      %8559 = vmatpush1.bf16.msra.mxu0 0
      %8560 = vmatprep.subr.bf16.mxu0 0
      %8561 = vmatpush1.bf16.msra.mxu0 0
      %8562 = vmatprep.subr.bf16.mxu0 0
      %8563 = vmatpush1.bf16.msra.mxu0 0
      %8564 = vmatprep.mubr.bf16.mxu0 0
      %8565 = vmatmul.mubr.bf16.gmra.mrb[0].mxu0 %v8521
      %v8566 = vpop.f32.mrb[0].mxu0
      %v8567 = vadd.f32 0.0, %v8566
      %v8568 = vpop.f32.mrb[0].mxu0
      %v8569 = vpop.f32.mrb[0].mxu0
      %v8570 = vadd.f32 0.0, %v8569
      %v8571 = vpop.f32.mrb[0].mxu0
      %8572 = vmatprep.mubr.bf16.mxu0 0
      %8573 = vmatmul.mubr.bf16.gmra.mrb[0].mxu0 %v8524
      %v8574 = vpop.f32.mrb[0].mxu0
      %v8575 = vadd.f32 0.0, %v8574
      %v8576 = vpop.f32.mrb[0].mxu0
      %v8577 = vpop.f32.mrb[0].mxu0
      %v8578 = vadd.f32 0.0, %v8577
      %v8579 = vpop.f32.mrb[0].mxu0
      %8580 = vmatprep.mubr.bf16.mxu0 0
      %8581 = vmatmul.mubr.bf16.gmra.mrb[0].mxu0 %v8527
      %v8582 = vpop.f32.mrb[0].mxu0
      %v8583 = vadd.f32 0.0, %v8582
      %v8584 = vpop.f32.mrb[0].mxu0
      %v8585 = vpop.f32.mrb[0].mxu0
      %v8586 = vadd.f32 0.0, %v8585
      %v8587 = vpop.f32.mrb[0].mxu0
      %8588 = vmatprep.mubr.bf16.mxu0 0
      %8589 = vmatmul.mubr.bf16.gmra.mrb[0].mxu0 %v8530
      %v8590 = vpop.f32.mrb[0].mxu0
      %v8591 = vadd.f32 0.0, %v8590
      %v8592 = vpop.f32.mrb[0].mxu0
      %v8593 = vpop.f32.mrb[0].mxu0
      %v8594 = vpop.f32.mrb[0].mxu0
      %8595 = vdwg.mxu0
      %v8596 = vadd.f32 %v8080, %v8567
      %v8597 = vadd.f32 %v8081, %v8570
      %v8598 = vadd.f32 %v8082, %v8575
      %v8599 = vadd.f32 %v8083, %v8578
      %v8600 = vadd.f32 %v8084, %v8583
      %v8601 = vadd.f32 %v8085, %v8586
      %v8602 = vadd.f32 %v8086, %v8591
      %s8603 = scalar_lea.vmem %s1, 224
      %v8604 = vld [vmem:[%s8603] sm:$0xff]
      %v8605 = vld [vmem:[%s8603 + $0x8] sm:$0xff]
      %v8606 = vld [vmem:[%s8603 + $0x10] sm:$0xff]
      %v8607 = vld [vmem:[%s8603 + $0x18] sm:$0xff]
      %v8608 = vld [vmem:[%s8603 + $0x20] sm:$0xff]
      %v8609 = vld [vmem:[%s8603 + $0x28] sm:$0xff]
      %v8610 = vld [vmem:[%s8603 + $0x30] sm:$0x11]
      %v8618 = vunpack.c.l.b16 %v8604
      %v8619 = vunpack.c.h.b16 %v8604
      %v8620 = vunpack.c.l.b16 %v8605
      %v8621 = vunpack.c.h.b16 %v8605
      %v8622 = vunpack.c.l.b16 %v8606
      %v8623 = vunpack.c.h.b16 %v8606
      %v8624 = vunpack.c.l.b16 %v8607
      %v8625 = vunpack.c.h.b16 %v8607
      %v8626 = vunpack.c.l.b16 %v8608
      %v8627 = vunpack.c.h.b16 %v8608
      %v8628 = vunpack.c.l.b16 %v8609
      %v8629 = vunpack.c.h.b16 %v8609
      %v8630 = vunpack.c.l.b16 %v8610
      %v8631 = vunpack.c.h.b16 %v8610
      %v8632 = vpack.c.b16 %v8620, %v8618
      %v8633 = vpack.c.b16 %v8621, %v8619
      %v8634 = vpack.c.b16 %v8624, %v8622
      %v8635 = vpack.c.b16 %v8625, %v8623
      %v8636 = vpack.c.b16 %v8628, %v8626
      %v8637 = vpack.c.b16 %v8629, %v8627
      %v8638 = vpack.c.b16 %v8630, %v8630
      %v8639 = vpack.c.b16 %v8631, %v8631
      %8648 = vmatprep.subr.bf16.mxu0 0
      %8649 = vmatpush1.bf16.msra.mxu0 %v492
      %8650 = vmatprep.subr.bf16.mxu0 0
      %8651 = vmatpush1.bf16.msra.mxu0 %v493
      %8652 = vmatprep.subr.bf16.mxu0 0
      %8653 = vmatpush1.bf16.msra.mxu0 %v494
      %8654 = vmatprep.subr.bf16.mxu0 0
      %8655 = vmatpush1.bf16.msra.mxu0 %v495
      %8656 = vmatprep.subr.bf16.mxu0 0
      %8657 = vmatpush1.bf16.msra.mxu0 %v496
      %8658 = vmatprep.subr.bf16.mxu0 0
      %8659 = vmatpush1.bf16.msra.mxu0 %v497
      %8660 = vmatprep.subr.bf16.mxu0 0
      %8661 = vmatpush1.bf16.msra.mxu0 %v498
      %8662 = vmatprep.subr.bf16.mxu0 0
      %8663 = vmatpush1.bf16.msra.mxu0 %v499
      %8664 = vmatprep.subr.bf16.mxu0 0
      %8665 = vmatpush1.bf16.msra.mxu0 %v500
      %8666 = vmatprep.subr.bf16.mxu0 0
      %8667 = vmatpush1.bf16.msra.mxu0 %v501
      %8668 = vmatprep.subr.bf16.mxu0 0
      %8669 = vmatpush1.bf16.msra.mxu0 %v502
      %8670 = vmatprep.subr.bf16.mxu0 0
      %8671 = vmatpush1.bf16.msra.mxu0 %v503
      %8672 = vmatprep.subr.bf16.mxu0 0
      %8673 = vmatpush1.bf16.msra.mxu0 %v504
      %8674 = vmatprep.subr.bf16.mxu0 0
      %8675 = vmatpush1.bf16.msra.mxu0 %v505
      %8676 = vmatprep.subr.bf16.mxu0 0
      %8677 = vmatpush1.bf16.msra.mxu0 %v506
      %8678 = vmatprep.subr.bf16.mxu0 0
      %8679 = vmatpush1.bf16.msra.mxu0 %v507
      %8680 = vmatprep.mubr.bf16.mxu0 %v8633
      %8681 = vmatmul.mubr.bf16.gmra.mrb[0].mxu0 %v8632
      %v8682 = vpop.f32.mrb[0].mxu0
      %v8683 = vadd.f32 0.0, %v8682
      %v8684 = vpop.f32.mrb[0].mxu0
      %v8685 = vpop.f32.mrb[0].mxu0
      %v8686 = vadd.f32 0.0, %v8685
      %v8687 = vpop.f32.mrb[0].mxu0
      %8688 = vmatprep.mubr.bf16.mxu0 %v8635
      %8689 = vmatmul.mubr.bf16.gmra.mrb[0].mxu0 %v8634
      %v8690 = vpop.f32.mrb[0].mxu0
      %v8691 = vadd.f32 0.0, %v8690
      %v8692 = vpop.f32.mrb[0].mxu0
      %v8693 = vpop.f32.mrb[0].mxu0
      %v8694 = vadd.f32 0.0, %v8693
      %v8695 = vpop.f32.mrb[0].mxu0
      %8696 = vmatprep.mubr.bf16.mxu0 %v8637
      %8697 = vmatmul.mubr.bf16.gmra.mrb[0].mxu0 %v8636
      %v8698 = vpop.f32.mrb[0].mxu0
      %v8699 = vadd.f32 0.0, %v8698
      %v8700 = vpop.f32.mrb[0].mxu0
      %v8701 = vpop.f32.mrb[0].mxu0
      %v8702 = vadd.f32 0.0, %v8701
      %v8703 = vpop.f32.mrb[0].mxu0
      %8704 = vmatprep.mubr.bf16.mxu0 %v8639
      %8705 = vmatmul.mubr.bf16.gmra.mrb[0].mxu0 %v8638
      %v8706 = vpop.f32.mrb[0].mxu0
      %v8707 = vadd.f32 0.0, %v8706
      %v8708 = vpop.f32.mrb[0].mxu0
      %v8709 = vpop.f32.mrb[0].mxu0
      %v8710 = vpop.f32.mrb[0].mxu0
      %8711 = vdwg.mxu0
      %v8712 = vmax.f32 %v8196, %v8683
      %v8713 = vmax.f32 %v8197, %v8686
      %v8714 = vmax.f32 %v8198, %v8691
      %v8715 = vmax.f32 %v8199, %v8694
      %v8716 = vmax.f32 %v8200, %v8699
      %v8717 = vmax.f32 %v8201, %v8702
      %v8718 = vmax.f32 %v8202, %v8707
      %v8719 = vpack.c.bf16 %v8686, %v8683
      %v8720 = vpack.c.bf16 %v8694, %v8691
      %v8721 = vpack.c.bf16 %v8702, %v8699
      %v8722 = vpack.c.bf16 %v8707, %v8707
      %s8723 = scalar_lea.vmem %s3, 24
      %v8724 = vld [vmem:[%s8723] sm:$0x3f]
      %v8726 = vcombine.high %v8724, %v8724
      %v8728 = vunpack.c.l.s4 1983009808
      %v8729 = vunpack.c.0.s8 %v8728
      %v8730 = vlaneseq
      %v8731 = vshrl.u32 %v8730, 7
      %v8732 = vsub.s32 %v8729, %v8731
      %v8733 = vrot.slane %v8724, %v8732
      %v8735 = vunpack.c.l.s4 1983009808
      %v8736 = vunpack.c.0.s8 %v8735
      %v8737 = vlaneseq
      %v8738 = vshrl.u32 %v8737, 7
      %v8739 = vsub.s32 %v8736, %v8738
      %v8740 = vrot.slane %v8726, %v8739
      %v8741 = vcombine.high %v8733, %v8733
      %v8743 = vsel %vm508, %v8719, 0
      %v8746 = vsel %vm508, %v8720, 0
      %v8749 = vsel %vm508, %v8721, 0
      %v8752 = vsel %vm508, %v8722, 0
      %v8755 = vsel %vm557, %v8733, 0
      %v8758 = vsel %vm557, %v8741, 0
      %v8761 = vsel %vm557, %v8740, 0
      %8763 = vmatprep.subr.bf16.mxu0 %v8758
      %8764 = vmatpush1.bf16.msra.mxu0 %v8755
      %8765 = vmatprep.subr.bf16.mxu0 0
      %8766 = vmatpush1.bf16.msra.mxu0 0
      %8767 = vmatprep.subr.bf16.mxu0 0
      %8768 = vmatpush1.bf16.msra.mxu0 0
      %8769 = vmatprep.subr.bf16.mxu0 0
      %8770 = vmatpush1.bf16.msra.mxu0 0
      %8771 = vmatprep.subr.bf16.mxu0 0
      %8772 = vmatpush1.bf16.msra.mxu0 0
      %8773 = vmatprep.subr.bf16.mxu0 0
      %8774 = vmatpush1.bf16.msra.mxu0 0
      %8775 = vmatprep.subr.bf16.mxu0 0
      %8776 = vmatpush1.bf16.msra.mxu0 0
      %8777 = vmatprep.subr.bf16.mxu0 0
      %8778 = vmatpush1.bf16.msra.mxu0 0
      %8779 = vmatprep.subr.bf16.mxu0 0
      %8780 = vmatpush1.bf16.msra.mxu0 0
      %8781 = vmatprep.subr.bf16.mxu0 0
      %8782 = vmatpush1.bf16.msra.mxu0 0
      %8783 = vmatprep.subr.bf16.mxu0 0
      %8784 = vmatpush1.bf16.msra.mxu0 0
      %8785 = vmatprep.subr.bf16.mxu0 0
      %8786 = vmatpush1.bf16.msra.mxu0 0
      %8787 = vmatprep.subr.bf16.mxu0 0
      %8788 = vmatpush1.bf16.msra.mxu0 0
      %8789 = vmatprep.subr.bf16.mxu0 0
      %8790 = vmatpush1.bf16.msra.mxu0 0
      %8791 = vmatprep.subr.bf16.mxu0 0
      %8792 = vmatpush1.bf16.msra.mxu0 0
      %8793 = vmatprep.subr.bf16.mxu0 0
      %8794 = vmatpush1.bf16.msra.mxu0 0
      %8795 = vmatprep.mubr.bf16.mxu0 0
      %8796 = vmatmul.mubr.bf16.gmra.mrb[0].mxu0 %v8743
      %v8797 = vpop.f32.mrb[0].mxu0
      %v8798 = vadd.f32 0.0, %v8797
      %v8799 = vpop.f32.mrb[0].mxu0
      %v8800 = vadd.f32 0.0, %v8799
      %v8801 = vpop.f32.mrb[0].mxu0
      %v8802 = vadd.f32 0.0, %v8801
      %v8803 = vpop.f32.mrb[0].mxu0
      %v8804 = vadd.f32 0.0, %v8803
      %8805 = vmatprep.mubr.bf16.mxu0 0
      %8806 = vmatmul.mubr.bf16.gmra.mrb[0].mxu0 %v8746
      %v8807 = vpop.f32.mrb[0].mxu0
      %v8808 = vadd.f32 0.0, %v8807
      %v8809 = vpop.f32.mrb[0].mxu0
      %v8810 = vadd.f32 0.0, %v8809
      %v8811 = vpop.f32.mrb[0].mxu0
      %v8812 = vadd.f32 0.0, %v8811
      %v8813 = vpop.f32.mrb[0].mxu0
      %v8814 = vadd.f32 0.0, %v8813
      %8815 = vmatprep.mubr.bf16.mxu0 0
      %8816 = vmatmul.mubr.bf16.gmra.mrb[0].mxu0 %v8749
      %v8817 = vpop.f32.mrb[0].mxu0
      %v8818 = vadd.f32 0.0, %v8817
      %v8819 = vpop.f32.mrb[0].mxu0
      %v8820 = vadd.f32 0.0, %v8819
      %v8821 = vpop.f32.mrb[0].mxu0
      %v8822 = vadd.f32 0.0, %v8821
      %v8823 = vpop.f32.mrb[0].mxu0
      %v8824 = vadd.f32 0.0, %v8823
      %8825 = vmatprep.mubr.bf16.mxu0 0
      %8826 = vmatmul.mubr.bf16.gmra.mrb[0].mxu0 %v8752
      %v8827 = vpop.f32.mrb[0].mxu0
      %v8828 = vadd.f32 0.0, %v8827
      %v8829 = vpop.f32.mrb[0].mxu0
      %v8830 = vadd.f32 0.0, %v8829
      %v8831 = vpop.f32.mrb[0].mxu0
      %v8832 = vpop.f32.mrb[0].mxu0
      %8833 = vdwg.mxu0
      %8834 = vmatprep.subr.bf16.mxu0 0
      %8835 = vmatpush1.bf16.msra.mxu0 %v8761
      %8836 = vmatprep.subr.bf16.mxu0 0
      %8837 = vmatpush1.bf16.msra.mxu0 0
      %8838 = vmatprep.subr.bf16.mxu0 0
      %8839 = vmatpush1.bf16.msra.mxu0 0
      %8840 = vmatprep.subr.bf16.mxu0 0
      %8841 = vmatpush1.bf16.msra.mxu0 0
      %8842 = vmatprep.subr.bf16.mxu0 0
      %8843 = vmatpush1.bf16.msra.mxu0 0
      %8844 = vmatprep.subr.bf16.mxu0 0
      %8845 = vmatpush1.bf16.msra.mxu0 0
      %8846 = vmatprep.subr.bf16.mxu0 0
      %8847 = vmatpush1.bf16.msra.mxu0 0
      %8848 = vmatprep.subr.bf16.mxu0 0
      %8849 = vmatpush1.bf16.msra.mxu0 0
      %8850 = vmatprep.subr.bf16.mxu0 0
      %8851 = vmatpush1.bf16.msra.mxu0 0
      %8852 = vmatprep.subr.bf16.mxu0 0
      %8853 = vmatpush1.bf16.msra.mxu0 0
      %8854 = vmatprep.subr.bf16.mxu0 0
      %8855 = vmatpush1.bf16.msra.mxu0 0
      %8856 = vmatprep.subr.bf16.mxu0 0
      %8857 = vmatpush1.bf16.msra.mxu0 0
      %8858 = vmatprep.subr.bf16.mxu0 0
      %8859 = vmatpush1.bf16.msra.mxu0 0
      %8860 = vmatprep.subr.bf16.mxu0 0
      %8861 = vmatpush1.bf16.msra.mxu0 0
      %8862 = vmatprep.subr.bf16.mxu0 0
      %8863 = vmatpush1.bf16.msra.mxu0 0
      %8864 = vmatprep.subr.bf16.mxu0 0
      %8865 = vmatpush1.bf16.msra.mxu0 0
      %8866 = vmatprep.mubr.bf16.mxu0 0
      %8867 = vmatmul.mubr.bf16.gmra.mrb[0].mxu0 %v8743
      %v8868 = vpop.f32.mrb[0].mxu0
      %v8869 = vadd.f32 0.0, %v8868
      %v8870 = vpop.f32.mrb[0].mxu0
      %v8871 = vpop.f32.mrb[0].mxu0
      %v8872 = vadd.f32 0.0, %v8871
      %v8873 = vpop.f32.mrb[0].mxu0
      %8874 = vmatprep.mubr.bf16.mxu0 0
      %8875 = vmatmul.mubr.bf16.gmra.mrb[0].mxu0 %v8746
      %v8876 = vpop.f32.mrb[0].mxu0
      %v8877 = vadd.f32 0.0, %v8876
      %v8878 = vpop.f32.mrb[0].mxu0
      %v8879 = vpop.f32.mrb[0].mxu0
      %v8880 = vadd.f32 0.0, %v8879
      %v8881 = vpop.f32.mrb[0].mxu0
      %8882 = vmatprep.mubr.bf16.mxu0 0
      %8883 = vmatmul.mubr.bf16.gmra.mrb[0].mxu0 %v8749
      %v8884 = vpop.f32.mrb[0].mxu0
      %v8885 = vadd.f32 0.0, %v8884
      %v8886 = vpop.f32.mrb[0].mxu0
      %v8887 = vpop.f32.mrb[0].mxu0
      %v8888 = vadd.f32 0.0, %v8887
      %v8889 = vpop.f32.mrb[0].mxu0
      %8890 = vmatprep.mubr.bf16.mxu0 0
      %8891 = vmatmul.mubr.bf16.gmra.mrb[0].mxu0 %v8752
      %v8892 = vpop.f32.mrb[0].mxu0
      %v8893 = vadd.f32 0.0, %v8892
      %v8894 = vpop.f32.mrb[0].mxu0
      %v8895 = vpop.f32.mrb[0].mxu0
      %v8896 = vpop.f32.mrb[0].mxu0
      %8897 = vdwg.mxu0
      %v8898 = vadd.f32 %v8382, %v8798
      %v8899 = vadd.f32 %v8383, %v8800
      %v8900 = vadd.f32 %v8384, %v8869
      %v8901 = vadd.f32 %v8385, %v8802
      %v8902 = vadd.f32 %v8386, %v8804
      %v8903 = vadd.f32 %v8387, %v8872
      %v8904 = vadd.f32 %v8388, %v8808
      %v8905 = vadd.f32 %v8389, %v8810
      %v8906 = vadd.f32 %v8390, %v8877
      %v8907 = vadd.f32 %v8391, %v8812
      %v8908 = vadd.f32 %v8392, %v8814
      %v8909 = vadd.f32 %v8393, %v8880
      %v8910 = vadd.f32 %v8394, %v8818
      %v8911 = vadd.f32 %v8395, %v8820
      %v8912 = vadd.f32 %v8396, %v8885
      %v8913 = vadd.f32 %v8397, %v8822
      %v8914 = vadd.f32 %v8398, %v8824
      %v8915 = vadd.f32 %v8399, %v8888
      %v8916 = vadd.f32 %v8400, %v8828
      %v8917 = vadd.f32 %v8401, %v8830
      %v8918 = vadd.f32 %v8402, %v8893
      %8919 = vmatprep.subr.bf16.mxu0 0
      %8920 = vmatpush1.bf16.msra.mxu0 %v6572
      %8921 = vmatprep.subr.bf16.mxu0 0
      %8922 = vmatpush1.bf16.msra.mxu0 %v6573
      %8923 = vmatprep.subr.bf16.mxu0 0
      %8924 = vmatpush1.bf16.msra.mxu0 %v6574
      %8925 = vmatprep.subr.bf16.mxu0 0
      %8926 = vmatpush1.bf16.msra.mxu0 %v6575
      %8927 = vmatprep.subr.bf16.mxu0 0
      %8928 = vmatpush1.bf16.msra.mxu0 %v6576
      %8929 = vmatprep.subr.bf16.mxu0 0
      %8930 = vmatpush1.bf16.msra.mxu0 %v6577
      %8931 = vmatprep.subr.bf16.mxu0 0
      %8932 = vmatpush1.bf16.msra.mxu0 %v6578
      %8933 = vmatprep.subr.bf16.mxu0 0
      %8934 = vmatpush1.bf16.msra.mxu0 %v6579
      %8935 = vmatprep.subr.bf16.mxu0 0
      %8936 = vmatpush1.bf16.msra.mxu0 %v6580
      %8937 = vmatprep.subr.bf16.mxu0 0
      %8938 = vmatpush1.bf16.msra.mxu0 %v6581
      %8939 = vmatprep.subr.bf16.mxu0 0
      %8940 = vmatpush1.bf16.msra.mxu0 %v6582
      %8941 = vmatprep.subr.bf16.mxu0 0
      %8942 = vmatpush1.bf16.msra.mxu0 %v6583
      %8943 = vmatprep.subr.bf16.mxu0 0
      %8944 = vmatpush1.bf16.msra.mxu0 %v6584
      %8945 = vmatprep.subr.bf16.mxu0 0
      %8946 = vmatpush1.bf16.msra.mxu0 %v6585
      %8947 = vmatprep.subr.bf16.mxu0 0
      %8948 = vmatpush1.bf16.msra.mxu0 %v6586
      %8949 = vmatprep.subr.bf16.mxu0 0
      %8950 = vmatpush1.bf16.msra.mxu0 %v6587
      %8951 = vmatprep.mubr.bf16.mxu0 %v8633
      %8952 = vmatmul.mubr.bf16.gmra.mrb[0].mxu0 %v8632
      %v8953 = vpop.f32.mrb[0].mxu0
      %v8954 = vadd.f32 0.0, %v8953
      %v8955 = vpop.f32.mrb[0].mxu0
      %v8956 = vpop.f32.mrb[0].mxu0
      %v8957 = vadd.f32 0.0, %v8956
      %v8958 = vpop.f32.mrb[0].mxu0
      %8959 = vmatprep.mubr.bf16.mxu0 %v8635
      %8960 = vmatmul.mubr.bf16.gmra.mrb[0].mxu0 %v8634
      %v8961 = vpop.f32.mrb[0].mxu0
      %v8962 = vadd.f32 0.0, %v8961
      %v8963 = vpop.f32.mrb[0].mxu0
      %v8964 = vpop.f32.mrb[0].mxu0
      %v8965 = vadd.f32 0.0, %v8964
      %v8966 = vpop.f32.mrb[0].mxu0
      %8967 = vmatprep.mubr.bf16.mxu0 %v8637
      %8968 = vmatmul.mubr.bf16.gmra.mrb[0].mxu0 %v8636
      %v8969 = vpop.f32.mrb[0].mxu0
      %v8970 = vadd.f32 0.0, %v8969
      %v8971 = vpop.f32.mrb[0].mxu0
      %v8972 = vpop.f32.mrb[0].mxu0
      %v8973 = vadd.f32 0.0, %v8972
      %v8974 = vpop.f32.mrb[0].mxu0
      %8975 = vmatprep.mubr.bf16.mxu0 %v8639
      %8976 = vmatmul.mubr.bf16.gmra.mrb[0].mxu0 %v8638
      %v8977 = vpop.f32.mrb[0].mxu0
      %v8978 = vadd.f32 0.0, %v8977
      %v8979 = vpop.f32.mrb[0].mxu0
      %v8980 = vpop.f32.mrb[0].mxu0
      %v8981 = vpop.f32.mrb[0].mxu0
      %8982 = vdwg.mxu0
      %v8983 = vpack.c.bf16 %v8957, %v8954
      %v8984 = vpack.c.bf16 %v8965, %v8962
      %v8985 = vpack.c.bf16 %v8973, %v8970
      %v8986 = vpack.c.bf16 %v8978, %v8978
      %s8987 = scalar_lea.vmem %s9, 192
      %v8988 = vld [vmem:[%s8987] sm:$0xf]
      %v8989 = vld [vmem:[%s8987 + $0x4] sm:$0xf]
      %v8990 = vld [vmem:[%s8987 + $0x8] sm:$0xf]
      %v8991 = vld [vmem:[%s8987 + $0xc] sm:$0xf]
      %v8992 = vld [vmem:[%s8987 + $0x10] sm:$0xf]
      %v8993 = vld [vmem:[%s8987 + $0x14] sm:$0xf]
      %v8994 = vld [vmem:[%s8987 + $0x18] sm:$0xf]
      %v8995 = vld [vmem:[%s8987 + $0x1c] sm:$0xf]
      %v8996 = vld [vmem:[%s8987 + $0x20] sm:$0xf]
      %v8997 = vld [vmem:[%s8987 + $0x24] sm:$0xf]
      %v8998 = vld [vmem:[%s8987 + $0x28] sm:$0xf]
      %v8999 = vld [vmem:[%s8987 + $0x2c] sm:$0xf]
      %v9012 = vunpack.c.l.b16 %v8988
      %v9013 = vunpack.c.l.b16 %v8989
      %v9014 = vunpack.c.l.b16 %v8990
      %v9015 = vunpack.c.l.b16 %v8991
      %v9016 = vunpack.c.l.b16 %v8992
      %v9017 = vunpack.c.l.b16 %v8993
      %v9018 = vunpack.c.l.b16 %v8994
      %v9019 = vunpack.c.l.b16 %v8995
      %v9020 = vunpack.c.l.b16 %v8996
      %v9021 = vunpack.c.l.b16 %v8997
      %v9022 = vunpack.c.l.b16 %v8998
      %v9023 = vunpack.c.l.b16 %v8999
      %v9024 = vpack.c.b16 %v9013, %v9012
      %v9025 = vpack.c.b16 %v9015, %v9014
      %v9026 = vpack.c.b16 %v9017, %v9016
      %v9027 = vpack.c.b16 %v9019, %v9018
      %v9028 = vpack.c.b16 %v9021, %v9020
      %v9029 = vpack.c.b16 %v9023, %v9022
      %v9037 = vsel %vm7382, %v8983, 0
      %v9040 = vsel %vm7382, %v8984, 0
      %v9043 = vsel %vm7382, %v8985, 0
      %v9046 = vsel %vm7382, %v8986, 0
      %9048 = vmatprep.subr.bf16.mxu0 0
      %9049 = vmatpush1.bf16.msra.mxu0 %v9024
      %9050 = vmatprep.subr.bf16.mxu0 0
      %9051 = vmatpush1.bf16.msra.mxu0 %v9025
      %9052 = vmatprep.subr.bf16.mxu0 0
      %9053 = vmatpush1.bf16.msra.mxu0 %v9026
      %9054 = vmatprep.subr.bf16.mxu0 0
      %9055 = vmatpush1.bf16.msra.mxu0 %v9027
      %9056 = vmatprep.subr.bf16.mxu0 0
      %9057 = vmatpush1.bf16.msra.mxu0 %v9028
      %9058 = vmatprep.subr.bf16.mxu0 0
      %9059 = vmatpush1.bf16.msra.mxu0 %v9029
      %9060 = vmatprep.subr.bf16.mxu0 0
      %9061 = vmatpush1.bf16.msra.mxu0 0
      %9062 = vmatprep.subr.bf16.mxu0 0
      %9063 = vmatpush1.bf16.msra.mxu0 0
      %9064 = vmatprep.subr.bf16.mxu0 0
      %9065 = vmatpush1.bf16.msra.mxu0 0
      %9066 = vmatprep.subr.bf16.mxu0 0
      %9067 = vmatpush1.bf16.msra.mxu0 0
      %9068 = vmatprep.subr.bf16.mxu0 0
      %9069 = vmatpush1.bf16.msra.mxu0 0
      %9070 = vmatprep.subr.bf16.mxu0 0
      %9071 = vmatpush1.bf16.msra.mxu0 0
      %9072 = vmatprep.subr.bf16.mxu0 0
      %9073 = vmatpush1.bf16.msra.mxu0 0
      %9074 = vmatprep.subr.bf16.mxu0 0
      %9075 = vmatpush1.bf16.msra.mxu0 0
      %9076 = vmatprep.subr.bf16.mxu0 0
      %9077 = vmatpush1.bf16.msra.mxu0 0
      %9078 = vmatprep.subr.bf16.mxu0 0
      %9079 = vmatpush1.bf16.msra.mxu0 0
      %9080 = vmatprep.mubr.bf16.mxu0 0
      %9081 = vmatmul.mubr.bf16.gmra.mrb[0].mxu0 %v9037
      %v9082 = vpop.f32.mrb[0].mxu0
      %v9083 = vadd.f32 0.0, %v9082
      %v9084 = vpop.f32.mrb[0].mxu0
      %v9085 = vpop.f32.mrb[0].mxu0
      %v9086 = vadd.f32 0.0, %v9085
      %v9087 = vpop.f32.mrb[0].mxu0
      %9088 = vmatprep.mubr.bf16.mxu0 0
      %9089 = vmatmul.mubr.bf16.gmra.mrb[0].mxu0 %v9040
      %v9090 = vpop.f32.mrb[0].mxu0
      %v9091 = vadd.f32 0.0, %v9090
      %v9092 = vpop.f32.mrb[0].mxu0
      %v9093 = vpop.f32.mrb[0].mxu0
      %v9094 = vadd.f32 0.0, %v9093
      %v9095 = vpop.f32.mrb[0].mxu0
      %9096 = vmatprep.mubr.bf16.mxu0 0
      %9097 = vmatmul.mubr.bf16.gmra.mrb[0].mxu0 %v9043
      %v9098 = vpop.f32.mrb[0].mxu0
      %v9099 = vadd.f32 0.0, %v9098
      %v9100 = vpop.f32.mrb[0].mxu0
      %v9101 = vpop.f32.mrb[0].mxu0
      %v9102 = vadd.f32 0.0, %v9101
      %v9103 = vpop.f32.mrb[0].mxu0
      %9104 = vmatprep.mubr.bf16.mxu0 0
      %9105 = vmatmul.mubr.bf16.gmra.mrb[0].mxu0 %v9046
      %v9106 = vpop.f32.mrb[0].mxu0
      %v9107 = vadd.f32 0.0, %v9106
      %v9108 = vpop.f32.mrb[0].mxu0
      %v9109 = vpop.f32.mrb[0].mxu0
      %v9110 = vpop.f32.mrb[0].mxu0
      %9111 = vdwg.mxu0
      %v9112 = vadd.f32 %v8596, %v9083
      %v9113 = vadd.f32 %v8597, %v9086
      %v9114 = vadd.f32 %v8598, %v9091
      %v9115 = vadd.f32 %v8599, %v9094
      %v9116 = vadd.f32 %v8600, %v9099
      %v9117 = vadd.f32 %v8601, %v9102
      %v9118 = vadd.f32 %v8602, %v9107
      %s9119 = scalar_lea.vmem %s1, 280
      %v9120 = vld [vmem:[%s9119] sm:$0xff]
      %v9121 = vld [vmem:[%s9119 + $0x8] sm:$0xff]
      %v9122 = vld [vmem:[%s9119 + $0x10] sm:$0xff]
      %v9123 = vld [vmem:[%s9119 + $0x18] sm:$0xff]
      %v9124 = vld [vmem:[%s9119 + $0x20] sm:$0xff]
      %v9125 = vld [vmem:[%s9119 + $0x28] sm:$0xff]
      %v9126 = vld [vmem:[%s9119 + $0x30] sm:$0x11]
      %v9134 = vunpack.c.l.b16 %v9120
      %v9135 = vunpack.c.h.b16 %v9120
      %v9136 = vunpack.c.l.b16 %v9121
      %v9137 = vunpack.c.h.b16 %v9121
      %v9138 = vunpack.c.l.b16 %v9122
      %v9139 = vunpack.c.h.b16 %v9122
      %v9140 = vunpack.c.l.b16 %v9123
      %v9141 = vunpack.c.h.b16 %v9123
      %v9142 = vunpack.c.l.b16 %v9124
      %v9143 = vunpack.c.h.b16 %v9124
      %v9144 = vunpack.c.l.b16 %v9125
      %v9145 = vunpack.c.h.b16 %v9125
      %v9146 = vunpack.c.l.b16 %v9126
      %v9147 = vunpack.c.h.b16 %v9126
      %v9148 = vpack.c.b16 %v9136, %v9134
      %v9149 = vpack.c.b16 %v9137, %v9135
      %v9150 = vpack.c.b16 %v9140, %v9138
      %v9151 = vpack.c.b16 %v9141, %v9139
      %v9152 = vpack.c.b16 %v9144, %v9142
      %v9153 = vpack.c.b16 %v9145, %v9143
      %v9154 = vpack.c.b16 %v9146, %v9146
      %v9155 = vpack.c.b16 %v9147, %v9147
      %9164 = vmatprep.subr.bf16.mxu0 0
      %9165 = vmatpush1.bf16.msra.mxu0 %v492
      %9166 = vmatprep.subr.bf16.mxu0 0
      %9167 = vmatpush1.bf16.msra.mxu0 %v493
      %9168 = vmatprep.subr.bf16.mxu0 0
      %9169 = vmatpush1.bf16.msra.mxu0 %v494
      %9170 = vmatprep.subr.bf16.mxu0 0
      %9171 = vmatpush1.bf16.msra.mxu0 %v495
      %9172 = vmatprep.subr.bf16.mxu0 0
      %9173 = vmatpush1.bf16.msra.mxu0 %v496
      %9174 = vmatprep.subr.bf16.mxu0 0
      %9175 = vmatpush1.bf16.msra.mxu0 %v497
      %9176 = vmatprep.subr.bf16.mxu0 0
      %9177 = vmatpush1.bf16.msra.mxu0 %v498
      %9178 = vmatprep.subr.bf16.mxu0 0
      %9179 = vmatpush1.bf16.msra.mxu0 %v499
      %9180 = vmatprep.subr.bf16.mxu0 0
      %9181 = vmatpush1.bf16.msra.mxu0 %v500
      %9182 = vmatprep.subr.bf16.mxu0 0
      %9183 = vmatpush1.bf16.msra.mxu0 %v501
      %9184 = vmatprep.subr.bf16.mxu0 0
      %9185 = vmatpush1.bf16.msra.mxu0 %v502
      %9186 = vmatprep.subr.bf16.mxu0 0
      %9187 = vmatpush1.bf16.msra.mxu0 %v503
      %9188 = vmatprep.subr.bf16.mxu0 0
      %9189 = vmatpush1.bf16.msra.mxu0 %v504
      %9190 = vmatprep.subr.bf16.mxu0 0
      %9191 = vmatpush1.bf16.msra.mxu0 %v505
      %9192 = vmatprep.subr.bf16.mxu0 0
      %9193 = vmatpush1.bf16.msra.mxu0 %v506
      %9194 = vmatprep.subr.bf16.mxu0 0
      %9195 = vmatpush1.bf16.msra.mxu0 %v507
      %9196 = vmatprep.mubr.bf16.mxu0 %v9149
      %9197 = vmatmul.mubr.bf16.gmra.mrb[0].mxu0 %v9148
      %v9198 = vpop.f32.mrb[0].mxu0
      %v9199 = vadd.f32 0.0, %v9198
      %v9200 = vpop.f32.mrb[0].mxu0
      %v9201 = vpop.f32.mrb[0].mxu0
      %v9202 = vadd.f32 0.0, %v9201
      %v9203 = vpop.f32.mrb[0].mxu0
      %9204 = vmatprep.mubr.bf16.mxu0 %v9151
      %9205 = vmatmul.mubr.bf16.gmra.mrb[0].mxu0 %v9150
      %v9206 = vpop.f32.mrb[0].mxu0
      %v9207 = vadd.f32 0.0, %v9206
      %v9208 = vpop.f32.mrb[0].mxu0
      %v9209 = vpop.f32.mrb[0].mxu0
      %v9210 = vadd.f32 0.0, %v9209
      %v9211 = vpop.f32.mrb[0].mxu0
      %9212 = vmatprep.mubr.bf16.mxu0 %v9153
      %9213 = vmatmul.mubr.bf16.gmra.mrb[0].mxu0 %v9152
      %v9214 = vpop.f32.mrb[0].mxu0
      %v9215 = vadd.f32 0.0, %v9214
      %v9216 = vpop.f32.mrb[0].mxu0
      %v9217 = vpop.f32.mrb[0].mxu0
      %v9218 = vadd.f32 0.0, %v9217
      %v9219 = vpop.f32.mrb[0].mxu0
      %9220 = vmatprep.mubr.bf16.mxu0 %v9155
      %9221 = vmatmul.mubr.bf16.gmra.mrb[0].mxu0 %v9154
      %v9222 = vpop.f32.mrb[0].mxu0
      %v9223 = vadd.f32 0.0, %v9222
      %v9224 = vpop.f32.mrb[0].mxu0
      %v9225 = vpop.f32.mrb[0].mxu0
      %v9226 = vpop.f32.mrb[0].mxu0
      %9227 = vdwg.mxu0
      %v9228 = vmax.f32 %v8712, %v9199
      %v9229 = vmax.f32 %v8713, %v9202
      %v9230 = vmax.f32 %v8714, %v9207
      %v9231 = vmax.f32 %v8715, %v9210
      %v9232 = vmax.f32 %v8716, %v9215
      %v9233 = vmax.f32 %v8717, %v9218
      %v9234 = vmax.f32 %v8718, %v9223
      %v9235 = vpack.c.bf16 %v9202, %v9199
      %v9236 = vpack.c.bf16 %v9210, %v9207
      %v9237 = vpack.c.bf16 %v9218, %v9215
      %v9238 = vpack.c.bf16 %v9223, %v9223
      %s9239 = scalar_lea.vmem %s3, 30
      %v9240 = vld [vmem:[%s9239] sm:$0x3f]
      %v9242 = vcombine.high %v9240, %v9240
      %v9244 = vunpack.c.l.s4 1983009808
      %v9245 = vunpack.c.0.s8 %v9244
      %v9246 = vlaneseq
      %v9247 = vshrl.u32 %v9246, 7
      %v9248 = vsub.s32 %v9245, %v9247
      %v9249 = vrot.slane %v9240, %v9248
      %v9251 = vunpack.c.l.s4 1983009808
      %v9252 = vunpack.c.0.s8 %v9251
      %v9253 = vlaneseq
      %v9254 = vshrl.u32 %v9253, 7
      %v9255 = vsub.s32 %v9252, %v9254
      %v9256 = vrot.slane %v9242, %v9255
      %v9257 = vcombine.high %v9249, %v9249
      %v9259 = vsel %vm508, %v9235, 0
      %v9262 = vsel %vm508, %v9236, 0
      %v9265 = vsel %vm508, %v9237, 0
      %v9268 = vsel %vm508, %v9238, 0
      %v9271 = vsel %vm557, %v9249, 0
      %v9274 = vsel %vm557, %v9257, 0
      %v9277 = vsel %vm557, %v9256, 0
      %9279 = vmatprep.subr.bf16.mxu0 %v9274
      %9280 = vmatpush1.bf16.msra.mxu0 %v9271
      %9281 = vmatprep.subr.bf16.mxu0 0
      %9282 = vmatpush1.bf16.msra.mxu0 0
      %9283 = vmatprep.subr.bf16.mxu0 0
      %9284 = vmatpush1.bf16.msra.mxu0 0
      %9285 = vmatprep.subr.bf16.mxu0 0
      %9286 = vmatpush1.bf16.msra.mxu0 0
      %9287 = vmatprep.subr.bf16.mxu0 0
      %9288 = vmatpush1.bf16.msra.mxu0 0
      %9289 = vmatprep.subr.bf16.mxu0 0
      %9290 = vmatpush1.bf16.msra.mxu0 0
      %9291 = vmatprep.subr.bf16.mxu0 0
      %9292 = vmatpush1.bf16.msra.mxu0 0
      %9293 = vmatprep.subr.bf16.mxu0 0
      %9294 = vmatpush1.bf16.msra.mxu0 0
      %9295 = vmatprep.subr.bf16.mxu0 0
      %9296 = vmatpush1.bf16.msra.mxu0 0
      %9297 = vmatprep.subr.bf16.mxu0 0
      %9298 = vmatpush1.bf16.msra.mxu0 0
      %9299 = vmatprep.subr.bf16.mxu0 0
      %9300 = vmatpush1.bf16.msra.mxu0 0
      %9301 = vmatprep.subr.bf16.mxu0 0
      %9302 = vmatpush1.bf16.msra.mxu0 0
      %9303 = vmatprep.subr.bf16.mxu0 0
      %9304 = vmatpush1.bf16.msra.mxu0 0
      %9305 = vmatprep.subr.bf16.mxu0 0
      %9306 = vmatpush1.bf16.msra.mxu0 0
      %9307 = vmatprep.subr.bf16.mxu0 0
      %9308 = vmatpush1.bf16.msra.mxu0 0
      %9309 = vmatprep.subr.bf16.mxu0 0
      %9310 = vmatpush1.bf16.msra.mxu0 0
      %9311 = vmatprep.mubr.bf16.mxu0 0
      %9312 = vmatmul.mubr.bf16.gmra.mrb[0].mxu0 %v9259
      %v9313 = vpop.f32.mrb[0].mxu0
      %v9314 = vadd.f32 0.0, %v9313
      %v9315 = vpop.f32.mrb[0].mxu0
      %v9316 = vadd.f32 0.0, %v9315
      %v9317 = vpop.f32.mrb[0].mxu0
      %v9318 = vadd.f32 0.0, %v9317
      %v9319 = vpop.f32.mrb[0].mxu0
      %v9320 = vadd.f32 0.0, %v9319
      %9321 = vmatprep.mubr.bf16.mxu0 0
      %9322 = vmatmul.mubr.bf16.gmra.mrb[0].mxu0 %v9262
      %v9323 = vpop.f32.mrb[0].mxu0
      %v9324 = vadd.f32 0.0, %v9323
      %v9325 = vpop.f32.mrb[0].mxu0
      %v9326 = vadd.f32 0.0, %v9325
      %v9327 = vpop.f32.mrb[0].mxu0
      %v9328 = vadd.f32 0.0, %v9327
      %v9329 = vpop.f32.mrb[0].mxu0
      %v9330 = vadd.f32 0.0, %v9329
      %9331 = vmatprep.mubr.bf16.mxu0 0
      %9332 = vmatmul.mubr.bf16.gmra.mrb[0].mxu0 %v9265
      %v9333 = vpop.f32.mrb[0].mxu0
      %v9334 = vadd.f32 0.0, %v9333
      %v9335 = vpop.f32.mrb[0].mxu0
      %v9336 = vadd.f32 0.0, %v9335
      %v9337 = vpop.f32.mrb[0].mxu0
      %v9338 = vadd.f32 0.0, %v9337
      %v9339 = vpop.f32.mrb[0].mxu0
      %v9340 = vadd.f32 0.0, %v9339
      %9341 = vmatprep.mubr.bf16.mxu0 0
      %9342 = vmatmul.mubr.bf16.gmra.mrb[0].mxu0 %v9268
      %v9343 = vpop.f32.mrb[0].mxu0
      %v9344 = vadd.f32 0.0, %v9343
      %v9345 = vpop.f32.mrb[0].mxu0
      %v9346 = vadd.f32 0.0, %v9345
      %v9347 = vpop.f32.mrb[0].mxu0
      %v9348 = vpop.f32.mrb[0].mxu0
      %9349 = vdwg.mxu0
      %9350 = vmatprep.subr.bf16.mxu0 0
      %9351 = vmatpush1.bf16.msra.mxu0 %v9277
      %9352 = vmatprep.subr.bf16.mxu0 0
      %9353 = vmatpush1.bf16.msra.mxu0 0
      %9354 = vmatprep.subr.bf16.mxu0 0
      %9355 = vmatpush1.bf16.msra.mxu0 0
      %9356 = vmatprep.subr.bf16.mxu0 0
      %9357 = vmatpush1.bf16.msra.mxu0 0
      %9358 = vmatprep.subr.bf16.mxu0 0
      %9359 = vmatpush1.bf16.msra.mxu0 0
      %9360 = vmatprep.subr.bf16.mxu0 0
      %9361 = vmatpush1.bf16.msra.mxu0 0
      %9362 = vmatprep.subr.bf16.mxu0 0
      %9363 = vmatpush1.bf16.msra.mxu0 0
      %9364 = vmatprep.subr.bf16.mxu0 0
      %9365 = vmatpush1.bf16.msra.mxu0 0
      %9366 = vmatprep.subr.bf16.mxu0 0
      %9367 = vmatpush1.bf16.msra.mxu0 0
      %9368 = vmatprep.subr.bf16.mxu0 0
      %9369 = vmatpush1.bf16.msra.mxu0 0
      %9370 = vmatprep.subr.bf16.mxu0 0
      %9371 = vmatpush1.bf16.msra.mxu0 0
      %9372 = vmatprep.subr.bf16.mxu0 0
      %9373 = vmatpush1.bf16.msra.mxu0 0
      %9374 = vmatprep.subr.bf16.mxu0 0
      %9375 = vmatpush1.bf16.msra.mxu0 0
      %9376 = vmatprep.subr.bf16.mxu0 0
      %9377 = vmatpush1.bf16.msra.mxu0 0
      %9378 = vmatprep.subr.bf16.mxu0 0
      %9379 = vmatpush1.bf16.msra.mxu0 0
      %9380 = vmatprep.subr.bf16.mxu0 0
      %9381 = vmatpush1.bf16.msra.mxu0 0
      %9382 = vmatprep.mubr.bf16.mxu0 0
      %9383 = vmatmul.mubr.bf16.gmra.mrb[0].mxu0 %v9259
      %v9384 = vpop.f32.mrb[0].mxu0
      %v9385 = vadd.f32 0.0, %v9384
      %v9386 = vpop.f32.mrb[0].mxu0
      %v9387 = vpop.f32.mrb[0].mxu0
      %v9388 = vadd.f32 0.0, %v9387
      %v9389 = vpop.f32.mrb[0].mxu0
      %9390 = vmatprep.mubr.bf16.mxu0 0
      %9391 = vmatmul.mubr.bf16.gmra.mrb[0].mxu0 %v9262
      %v9392 = vpop.f32.mrb[0].mxu0
      %v9393 = vadd.f32 0.0, %v9392
      %v9394 = vpop.f32.mrb[0].mxu0
      %v9395 = vpop.f32.mrb[0].mxu0
      %v9396 = vadd.f32 0.0, %v9395
      %v9397 = vpop.f32.mrb[0].mxu0
      %9398 = vmatprep.mubr.bf16.mxu0 0
      %9399 = vmatmul.mubr.bf16.gmra.mrb[0].mxu0 %v9265
      %v9400 = vpop.f32.mrb[0].mxu0
      %v9401 = vadd.f32 0.0, %v9400
      %v9402 = vpop.f32.mrb[0].mxu0
      %v9403 = vpop.f32.mrb[0].mxu0
      %v9404 = vadd.f32 0.0, %v9403
      %v9405 = vpop.f32.mrb[0].mxu0
      %9406 = vmatprep.mubr.bf16.mxu0 0
      %9407 = vmatmul.mubr.bf16.gmra.mrb[0].mxu0 %v9268
      %v9408 = vpop.f32.mrb[0].mxu0
      %v9409 = vadd.f32 0.0, %v9408
      %v9410 = vpop.f32.mrb[0].mxu0
      %v9411 = vpop.f32.mrb[0].mxu0
      %v9412 = vpop.f32.mrb[0].mxu0
      %9413 = vdwg.mxu0
      %v9414 = vadd.f32 %v8898, %v9314
      %v9415 = vadd.f32 %v8899, %v9316
      %v9416 = vadd.f32 %v8900, %v9385
      %v9417 = vadd.f32 %v8901, %v9318
      %v9418 = vadd.f32 %v8902, %v9320
      %v9419 = vadd.f32 %v8903, %v9388
      %v9420 = vadd.f32 %v8904, %v9324
      %v9421 = vadd.f32 %v8905, %v9326
      %v9422 = vadd.f32 %v8906, %v9393
      %v9423 = vadd.f32 %v8907, %v9328
      %v9424 = vadd.f32 %v8908, %v9330
      %v9425 = vadd.f32 %v8909, %v9396
      %v9426 = vadd.f32 %v8910, %v9334
      %v9427 = vadd.f32 %v8911, %v9336
      %v9428 = vadd.f32 %v8912, %v9401
      %v9429 = vadd.f32 %v8913, %v9338
      %v9430 = vadd.f32 %v8914, %v9340
      %v9431 = vadd.f32 %v8915, %v9404
      %v9432 = vadd.f32 %v8916, %v9344
      %v9433 = vadd.f32 %v8917, %v9346
      %v9434 = vadd.f32 %v8918, %v9409
      %9435 = vmatprep.subr.bf16.mxu0 0
      %9436 = vmatpush1.bf16.msra.mxu0 %v6572
      %9437 = vmatprep.subr.bf16.mxu0 0
      %9438 = vmatpush1.bf16.msra.mxu0 %v6573
      %9439 = vmatprep.subr.bf16.mxu0 0
      %9440 = vmatpush1.bf16.msra.mxu0 %v6574
      %9441 = vmatprep.subr.bf16.mxu0 0
      %9442 = vmatpush1.bf16.msra.mxu0 %v6575
      %9443 = vmatprep.subr.bf16.mxu0 0
      %9444 = vmatpush1.bf16.msra.mxu0 %v6576
      %9445 = vmatprep.subr.bf16.mxu0 0
      %9446 = vmatpush1.bf16.msra.mxu0 %v6577
      %9447 = vmatprep.subr.bf16.mxu0 0
      %9448 = vmatpush1.bf16.msra.mxu0 %v6578
      %9449 = vmatprep.subr.bf16.mxu0 0
      %9450 = vmatpush1.bf16.msra.mxu0 %v6579
      %9451 = vmatprep.subr.bf16.mxu0 0
      %9452 = vmatpush1.bf16.msra.mxu0 %v6580
      %9453 = vmatprep.subr.bf16.mxu0 0
      %9454 = vmatpush1.bf16.msra.mxu0 %v6581
      %9455 = vmatprep.subr.bf16.mxu0 0
      %9456 = vmatpush1.bf16.msra.mxu0 %v6582
      %9457 = vmatprep.subr.bf16.mxu0 0
      %9458 = vmatpush1.bf16.msra.mxu0 %v6583
      %9459 = vmatprep.subr.bf16.mxu0 0
      %9460 = vmatpush1.bf16.msra.mxu0 %v6584
      %9461 = vmatprep.subr.bf16.mxu0 0
      %9462 = vmatpush1.bf16.msra.mxu0 %v6585
      %9463 = vmatprep.subr.bf16.mxu0 0
      %9464 = vmatpush1.bf16.msra.mxu0 %v6586
      %9465 = vmatprep.subr.bf16.mxu0 0
      %9466 = vmatpush1.bf16.msra.mxu0 %v6587
      %9467 = vmatprep.mubr.bf16.mxu0 %v9149
      %9468 = vmatmul.mubr.bf16.gmra.mrb[0].mxu0 %v9148
      %v9469 = vpop.f32.mrb[0].mxu0
      %v9470 = vadd.f32 0.0, %v9469
      %v9471 = vpop.f32.mrb[0].mxu0
      %v9472 = vpop.f32.mrb[0].mxu0
      %v9473 = vadd.f32 0.0, %v9472
      %v9474 = vpop.f32.mrb[0].mxu0
      %9475 = vmatprep.mubr.bf16.mxu0 %v9151
      %9476 = vmatmul.mubr.bf16.gmra.mrb[0].mxu0 %v9150
      %v9477 = vpop.f32.mrb[0].mxu0
      %v9478 = vadd.f32 0.0, %v9477
      %v9479 = vpop.f32.mrb[0].mxu0
      %v9480 = vpop.f32.mrb[0].mxu0
      %v9481 = vadd.f32 0.0, %v9480
      %v9482 = vpop.f32.mrb[0].mxu0
      %9483 = vmatprep.mubr.bf16.mxu0 %v9153
      %9484 = vmatmul.mubr.bf16.gmra.mrb[0].mxu0 %v9152
      %v9485 = vpop.f32.mrb[0].mxu0
      %v9486 = vadd.f32 0.0, %v9485
      %v9487 = vpop.f32.mrb[0].mxu0
      %v9488 = vpop.f32.mrb[0].mxu0
      %v9489 = vadd.f32 0.0, %v9488
      %v9490 = vpop.f32.mrb[0].mxu0
      %9491 = vmatprep.mubr.bf16.mxu0 %v9155
      %9492 = vmatmul.mubr.bf16.gmra.mrb[0].mxu0 %v9154
      %v9493 = vpop.f32.mrb[0].mxu0
      %v9494 = vadd.f32 0.0, %v9493
      %v9495 = vpop.f32.mrb[0].mxu0
      %v9496 = vpop.f32.mrb[0].mxu0
      %v9497 = vpop.f32.mrb[0].mxu0
      %9498 = vdwg.mxu0
      %v9499 = vpack.c.bf16 %v9473, %v9470
      %v9500 = vpack.c.bf16 %v9481, %v9478
      %v9501 = vpack.c.bf16 %v9489, %v9486
      %v9502 = vpack.c.bf16 %v9494, %v9494
      %s9503 = scalar_lea.vmem %s9, 240
      %v9504 = vld [vmem:[%s9503] sm:$0xf]
      %v9505 = vld [vmem:[%s9503 + $0x4] sm:$0xf]
      %v9506 = vld [vmem:[%s9503 + $0x8] sm:$0xf]
      %v9507 = vld [vmem:[%s9503 + $0xc] sm:$0xf]
      %v9508 = vld [vmem:[%s9503 + $0x10] sm:$0xf]
      %v9509 = vld [vmem:[%s9503 + $0x14] sm:$0xf]
      %v9510 = vld [vmem:[%s9503 + $0x18] sm:$0xf]
      %v9511 = vld [vmem:[%s9503 + $0x1c] sm:$0xf]
      %v9512 = vld [vmem:[%s9503 + $0x20] sm:$0xf]
      %v9513 = vld [vmem:[%s9503 + $0x24] sm:$0xf]
      %v9514 = vld [vmem:[%s9503 + $0x28] sm:$0xf]
      %v9515 = vld [vmem:[%s9503 + $0x2c] sm:$0xf]
      %v9528 = vunpack.c.l.b16 %v9504
      %v9529 = vunpack.c.l.b16 %v9505
      %v9530 = vunpack.c.l.b16 %v9506
      %v9531 = vunpack.c.l.b16 %v9507
      %v9532 = vunpack.c.l.b16 %v9508
      %v9533 = vunpack.c.l.b16 %v9509
      %v9534 = vunpack.c.l.b16 %v9510
      %v9535 = vunpack.c.l.b16 %v9511
      %v9536 = vunpack.c.l.b16 %v9512
      %v9537 = vunpack.c.l.b16 %v9513
      %v9538 = vunpack.c.l.b16 %v9514
      %v9539 = vunpack.c.l.b16 %v9515
      %v9540 = vpack.c.b16 %v9529, %v9528
      %v9541 = vpack.c.b16 %v9531, %v9530
      %v9542 = vpack.c.b16 %v9533, %v9532
      %v9543 = vpack.c.b16 %v9535, %v9534
      %v9544 = vpack.c.b16 %v9537, %v9536
      %v9545 = vpack.c.b16 %v9539, %v9538
      %v9553 = vsel %vm7382, %v9499, 0
      %v9556 = vsel %vm7382, %v9500, 0
      %v9559 = vsel %vm7382, %v9501, 0
      %v9562 = vsel %vm7382, %v9502, 0
      %9564 = vmatprep.subr.bf16.mxu0 0
      %9565 = vmatpush1.bf16.msra.mxu0 %v9540
      %9566 = vmatprep.subr.bf16.mxu0 0
      %9567 = vmatpush1.bf16.msra.mxu0 %v9541
      %9568 = vmatprep.subr.bf16.mxu0 0
      %9569 = vmatpush1.bf16.msra.mxu0 %v9542
      %9570 = vmatprep.subr.bf16.mxu0 0
      %9571 = vmatpush1.bf16.msra.mxu0 %v9543
      %9572 = vmatprep.subr.bf16.mxu0 0
      %9573 = vmatpush1.bf16.msra.mxu0 %v9544
      %9574 = vmatprep.subr.bf16.mxu0 0
      %9575 = vmatpush1.bf16.msra.mxu0 %v9545
      %9576 = vmatprep.subr.bf16.mxu0 0
      %9577 = vmatpush1.bf16.msra.mxu0 0
      %9578 = vmatprep.subr.bf16.mxu0 0
      %9579 = vmatpush1.bf16.msra.mxu0 0
      %9580 = vmatprep.subr.bf16.mxu0 0
      %9581 = vmatpush1.bf16.msra.mxu0 0
      %9582 = vmatprep.subr.bf16.mxu0 0
      %9583 = vmatpush1.bf16.msra.mxu0 0
      %9584 = vmatprep.subr.bf16.mxu0 0
      %9585 = vmatpush1.bf16.msra.mxu0 0
      %9586 = vmatprep.subr.bf16.mxu0 0
      %9587 = vmatpush1.bf16.msra.mxu0 0
      %9588 = vmatprep.subr.bf16.mxu0 0
      %9589 = vmatpush1.bf16.msra.mxu0 0
      %9590 = vmatprep.subr.bf16.mxu0 0
      %9591 = vmatpush1.bf16.msra.mxu0 0
      %9592 = vmatprep.subr.bf16.mxu0 0
      %9593 = vmatpush1.bf16.msra.mxu0 0
      %9594 = vmatprep.subr.bf16.mxu0 0
      %9595 = vmatpush1.bf16.msra.mxu0 0
      %9596 = vmatprep.mubr.bf16.mxu0 0
      %9597 = vmatmul.mubr.bf16.gmra.mrb[0].mxu0 %v9553
      %v9598 = vpop.f32.mrb[0].mxu0
      %v9599 = vadd.f32 0.0, %v9598
      %v9600 = vpop.f32.mrb[0].mxu0
      %v9601 = vpop.f32.mrb[0].mxu0
      %v9602 = vadd.f32 0.0, %v9601
      %v9603 = vpop.f32.mrb[0].mxu0
      %9604 = vmatprep.mubr.bf16.mxu0 0
      %9605 = vmatmul.mubr.bf16.gmra.mrb[0].mxu0 %v9556
      %v9606 = vpop.f32.mrb[0].mxu0
      %v9607 = vadd.f32 0.0, %v9606
      %v9608 = vpop.f32.mrb[0].mxu0
      %v9609 = vpop.f32.mrb[0].mxu0
      %v9610 = vadd.f32 0.0, %v9609
      %v9611 = vpop.f32.mrb[0].mxu0
      %9612 = vmatprep.mubr.bf16.mxu0 0
      %9613 = vmatmul.mubr.bf16.gmra.mrb[0].mxu0 %v9559
      %v9614 = vpop.f32.mrb[0].mxu0
      %v9615 = vadd.f32 0.0, %v9614
      %v9616 = vpop.f32.mrb[0].mxu0
      %v9617 = vpop.f32.mrb[0].mxu0
      %v9618 = vadd.f32 0.0, %v9617
      %v9619 = vpop.f32.mrb[0].mxu0
      %9620 = vmatprep.mubr.bf16.mxu0 0
      %9621 = vmatmul.mubr.bf16.gmra.mrb[0].mxu0 %v9562
      %v9622 = vpop.f32.mrb[0].mxu0
      %v9623 = vadd.f32 0.0, %v9622
      %v9624 = vpop.f32.mrb[0].mxu0
      %v9625 = vpop.f32.mrb[0].mxu0
      %v9626 = vpop.f32.mrb[0].mxu0
      %9627 = vdwg.mxu0
      %v9628 = vadd.f32 %v9112, %v9599
      %v9629 = vadd.f32 %v9113, %v9602
      %v9630 = vadd.f32 %v9114, %v9607
      %v9631 = vadd.f32 %v9115, %v9610
      %v9632 = vadd.f32 %v9116, %v9615
      %v9633 = vadd.f32 %v9117, %v9618
      %v9634 = vadd.f32 %v9118, %v9623
      %s9635 = scalar_lea.vmem %s1, 336
      %v9636 = vld [vmem:[%s9635] sm:$0xff]
      %v9637 = vld [vmem:[%s9635 + $0x8] sm:$0xff]
      %v9638 = vld [vmem:[%s9635 + $0x10] sm:$0xff]
      %v9639 = vld [vmem:[%s9635 + $0x18] sm:$0xff]
      %v9640 = vld [vmem:[%s9635 + $0x20] sm:$0xff]
      %v9641 = vld [vmem:[%s9635 + $0x28] sm:$0xff]
      %v9642 = vld [vmem:[%s9635 + $0x30] sm:$0x11]
      %v9650 = vunpack.c.l.b16 %v9636
      %v9651 = vunpack.c.h.b16 %v9636
      %v9652 = vunpack.c.l.b16 %v9637
      %v9653 = vunpack.c.h.b16 %v9637
      %v9654 = vunpack.c.l.b16 %v9638
      %v9655 = vunpack.c.h.b16 %v9638
      %v9656 = vunpack.c.l.b16 %v9639
      %v9657 = vunpack.c.h.b16 %v9639
      %v9658 = vunpack.c.l.b16 %v9640
      %v9659 = vunpack.c.h.b16 %v9640
      %v9660 = vunpack.c.l.b16 %v9641
      %v9661 = vunpack.c.h.b16 %v9641
      %v9662 = vunpack.c.l.b16 %v9642
      %v9663 = vunpack.c.h.b16 %v9642
      %v9664 = vpack.c.b16 %v9652, %v9650
      %v9665 = vpack.c.b16 %v9653, %v9651
      %v9666 = vpack.c.b16 %v9656, %v9654
      %v9667 = vpack.c.b16 %v9657, %v9655
      %v9668 = vpack.c.b16 %v9660, %v9658
      %v9669 = vpack.c.b16 %v9661, %v9659
      %v9670 = vpack.c.b16 %v9662, %v9662
      %v9671 = vpack.c.b16 %v9663, %v9663
      %9680 = vmatprep.subr.bf16.mxu0 0
      %9681 = vmatpush1.bf16.msra.mxu0 %v492
      %9682 = vmatprep.subr.bf16.mxu0 0
      %9683 = vmatpush1.bf16.msra.mxu0 %v493
      %9684 = vmatprep.subr.bf16.mxu0 0
      %9685 = vmatpush1.bf16.msra.mxu0 %v494
      %9686 = vmatprep.subr.bf16.mxu0 0
      %9687 = vmatpush1.bf16.msra.mxu0 %v495
      %9688 = vmatprep.subr.bf16.mxu0 0
      %9689 = vmatpush1.bf16.msra.mxu0 %v496
      %9690 = vmatprep.subr.bf16.mxu0 0
      %9691 = vmatpush1.bf16.msra.mxu0 %v497
      %9692 = vmatprep.subr.bf16.mxu0 0
      %9693 = vmatpush1.bf16.msra.mxu0 %v498
      %9694 = vmatprep.subr.bf16.mxu0 0
      %9695 = vmatpush1.bf16.msra.mxu0 %v499
      %9696 = vmatprep.subr.bf16.mxu0 0
      %9697 = vmatpush1.bf16.msra.mxu0 %v500
      %9698 = vmatprep.subr.bf16.mxu0 0
      %9699 = vmatpush1.bf16.msra.mxu0 %v501
      %9700 = vmatprep.subr.bf16.mxu0 0
      %9701 = vmatpush1.bf16.msra.mxu0 %v502
      %9702 = vmatprep.subr.bf16.mxu0 0
      %9703 = vmatpush1.bf16.msra.mxu0 %v503
      %9704 = vmatprep.subr.bf16.mxu0 0
      %9705 = vmatpush1.bf16.msra.mxu0 %v504
      %9706 = vmatprep.subr.bf16.mxu0 0
      %9707 = vmatpush1.bf16.msra.mxu0 %v505
      %9708 = vmatprep.subr.bf16.mxu0 0
      %9709 = vmatpush1.bf16.msra.mxu0 %v506
      %9710 = vmatprep.subr.bf16.mxu0 0
      %9711 = vmatpush1.bf16.msra.mxu0 %v507
      %9712 = vmatprep.mubr.bf16.mxu0 %v9665
      %9713 = vmatmul.mubr.bf16.gmra.mrb[0].mxu0 %v9664
      %v9714 = vpop.f32.mrb[0].mxu0
      %v9715 = vadd.f32 0.0, %v9714
      %v9716 = vpop.f32.mrb[0].mxu0
      %v9717 = vpop.f32.mrb[0].mxu0
      %v9718 = vadd.f32 0.0, %v9717
      %v9719 = vpop.f32.mrb[0].mxu0
      %9720 = vmatprep.mubr.bf16.mxu0 %v9667
      %9721 = vmatmul.mubr.bf16.gmra.mrb[0].mxu0 %v9666
      %v9722 = vpop.f32.mrb[0].mxu0
      %v9723 = vadd.f32 0.0, %v9722
      %v9724 = vpop.f32.mrb[0].mxu0
      %v9725 = vpop.f32.mrb[0].mxu0
      %v9726 = vadd.f32 0.0, %v9725
      %v9727 = vpop.f32.mrb[0].mxu0
      %9728 = vmatprep.mubr.bf16.mxu0 %v9669
      %9729 = vmatmul.mubr.bf16.gmra.mrb[0].mxu0 %v9668
      %v9730 = vpop.f32.mrb[0].mxu0
      %v9731 = vadd.f32 0.0, %v9730
      %v9732 = vpop.f32.mrb[0].mxu0
      %v9733 = vpop.f32.mrb[0].mxu0
      %v9734 = vadd.f32 0.0, %v9733
      %v9735 = vpop.f32.mrb[0].mxu0
      %9736 = vmatprep.mubr.bf16.mxu0 %v9671
      %9737 = vmatmul.mubr.bf16.gmra.mrb[0].mxu0 %v9670
      %v9738 = vpop.f32.mrb[0].mxu0
      %v9739 = vadd.f32 0.0, %v9738
      %v9740 = vpop.f32.mrb[0].mxu0
      %v9741 = vpop.f32.mrb[0].mxu0
      %v9742 = vpop.f32.mrb[0].mxu0
      %9743 = vdwg.mxu0
      %v9744 = vmax.f32 %v9228, %v9715
      %v9745 = vmax.f32 %v9229, %v9718
      %v9746 = vmax.f32 %v9230, %v9723
      %v9747 = vmax.f32 %v9231, %v9726
      %v9748 = vmax.f32 %v9232, %v9731
      %v9749 = vmax.f32 %v9233, %v9734
      %v9750 = vmax.f32 %v9234, %v9739
      %v9751 = vpack.c.bf16 %v9718, %v9715
      %v9752 = vpack.c.bf16 %v9726, %v9723
      %v9753 = vpack.c.bf16 %v9734, %v9731
      %v9754 = vpack.c.bf16 %v9739, %v9739
      %s9755 = scalar_lea.vmem %s3, 36
      %v9756 = vld [vmem:[%s9755] sm:$0x3f]
      %v9758 = vcombine.high %v9756, %v9756
      %v9760 = vunpack.c.l.s4 1983009808
      %v9761 = vunpack.c.0.s8 %v9760
      %v9762 = vlaneseq
      %v9763 = vshrl.u32 %v9762, 7
      %v9764 = vsub.s32 %v9761, %v9763
      %v9765 = vrot.slane %v9756, %v9764
      %v9767 = vunpack.c.l.s4 1983009808
      %v9768 = vunpack.c.0.s8 %v9767
      %v9769 = vlaneseq
      %v9770 = vshrl.u32 %v9769, 7
      %v9771 = vsub.s32 %v9768, %v9770
      %v9772 = vrot.slane %v9758, %v9771
      %v9773 = vcombine.high %v9765, %v9765
      %v9775 = vsel %vm508, %v9751, 0
      %v9778 = vsel %vm508, %v9752, 0
      %v9781 = vsel %vm508, %v9753, 0
      %v9784 = vsel %vm508, %v9754, 0
      %v9787 = vsel %vm557, %v9765, 0
      %v9790 = vsel %vm557, %v9773, 0
      %v9793 = vsel %vm557, %v9772, 0
      %9795 = vmatprep.subr.bf16.mxu0 %v9790
      %9796 = vmatpush1.bf16.msra.mxu0 %v9787
      %9797 = vmatprep.subr.bf16.mxu0 0
      %9798 = vmatpush1.bf16.msra.mxu0 0
      %9799 = vmatprep.subr.bf16.mxu0 0
      %9800 = vmatpush1.bf16.msra.mxu0 0
      %9801 = vmatprep.subr.bf16.mxu0 0
      %9802 = vmatpush1.bf16.msra.mxu0 0
      %9803 = vmatprep.subr.bf16.mxu0 0
      %9804 = vmatpush1.bf16.msra.mxu0 0
      %9805 = vmatprep.subr.bf16.mxu0 0
      %9806 = vmatpush1.bf16.msra.mxu0 0
      %9807 = vmatprep.subr.bf16.mxu0 0
      %9808 = vmatpush1.bf16.msra.mxu0 0
      %9809 = vmatprep.subr.bf16.mxu0 0
      %9810 = vmatpush1.bf16.msra.mxu0 0
      %9811 = vmatprep.subr.bf16.mxu0 0
      %9812 = vmatpush1.bf16.msra.mxu0 0
      %9813 = vmatprep.subr.bf16.mxu0 0
      %9814 = vmatpush1.bf16.msra.mxu0 0
      %9815 = vmatprep.subr.bf16.mxu0 0
      %9816 = vmatpush1.bf16.msra.mxu0 0
      %9817 = vmatprep.subr.bf16.mxu0 0
      %9818 = vmatpush1.bf16.msra.mxu0 0
      %9819 = vmatprep.subr.bf16.mxu0 0
      %9820 = vmatpush1.bf16.msra.mxu0 0
      %9821 = vmatprep.subr.bf16.mxu0 0
      %9822 = vmatpush1.bf16.msra.mxu0 0
      %9823 = vmatprep.subr.bf16.mxu0 0
      %9824 = vmatpush1.bf16.msra.mxu0 0
      %9825 = vmatprep.subr.bf16.mxu0 0
      %9826 = vmatpush1.bf16.msra.mxu0 0
      %9827 = vmatprep.mubr.bf16.mxu0 0
      %9828 = vmatmul.mubr.bf16.gmra.mrb[0].mxu0 %v9775
      %v9829 = vpop.f32.mrb[0].mxu0
      %v9830 = vadd.f32 0.0, %v9829
      %v9831 = vpop.f32.mrb[0].mxu0
      %v9832 = vadd.f32 0.0, %v9831
      %v9833 = vpop.f32.mrb[0].mxu0
      %v9834 = vadd.f32 0.0, %v9833
      %v9835 = vpop.f32.mrb[0].mxu0
      %v9836 = vadd.f32 0.0, %v9835
      %9837 = vmatprep.mubr.bf16.mxu0 0
      %9838 = vmatmul.mubr.bf16.gmra.mrb[0].mxu0 %v9778
      %v9839 = vpop.f32.mrb[0].mxu0
      %v9840 = vadd.f32 0.0, %v9839
      %v9841 = vpop.f32.mrb[0].mxu0
      %v9842 = vadd.f32 0.0, %v9841
      %v9843 = vpop.f32.mrb[0].mxu0
      %v9844 = vadd.f32 0.0, %v9843
      %v9845 = vpop.f32.mrb[0].mxu0
      %v9846 = vadd.f32 0.0, %v9845
      %9847 = vmatprep.mubr.bf16.mxu0 0
      %9848 = vmatmul.mubr.bf16.gmra.mrb[0].mxu0 %v9781
      %v9849 = vpop.f32.mrb[0].mxu0
      %v9850 = vadd.f32 0.0, %v9849
      %v9851 = vpop.f32.mrb[0].mxu0
      %v9852 = vadd.f32 0.0, %v9851
      %v9853 = vpop.f32.mrb[0].mxu0
      %v9854 = vadd.f32 0.0, %v9853
      %v9855 = vpop.f32.mrb[0].mxu0
      %v9856 = vadd.f32 0.0, %v9855
      %9857 = vmatprep.mubr.bf16.mxu0 0
      %9858 = vmatmul.mubr.bf16.gmra.mrb[0].mxu0 %v9784
      %v9859 = vpop.f32.mrb[0].mxu0
      %v9860 = vadd.f32 0.0, %v9859
      %v9861 = vpop.f32.mrb[0].mxu0
      %v9862 = vadd.f32 0.0, %v9861
      %v9863 = vpop.f32.mrb[0].mxu0
      %v9864 = vpop.f32.mrb[0].mxu0
      %9865 = vdwg.mxu0
      %9866 = vmatprep.subr.bf16.mxu0 0
      %9867 = vmatpush1.bf16.msra.mxu0 %v9793
      %9868 = vmatprep.subr.bf16.mxu0 0
      %9869 = vmatpush1.bf16.msra.mxu0 0
      %9870 = vmatprep.subr.bf16.mxu0 0
      %9871 = vmatpush1.bf16.msra.mxu0 0
      %9872 = vmatprep.subr.bf16.mxu0 0
      %9873 = vmatpush1.bf16.msra.mxu0 0
      %9874 = vmatprep.subr.bf16.mxu0 0
      %9875 = vmatpush1.bf16.msra.mxu0 0
      %9876 = vmatprep.subr.bf16.mxu0 0
      %9877 = vmatpush1.bf16.msra.mxu0 0
      %9878 = vmatprep.subr.bf16.mxu0 0
      %9879 = vmatpush1.bf16.msra.mxu0 0
      %9880 = vmatprep.subr.bf16.mxu0 0
      %9881 = vmatpush1.bf16.msra.mxu0 0
      %9882 = vmatprep.subr.bf16.mxu0 0
      %9883 = vmatpush1.bf16.msra.mxu0 0
      %9884 = vmatprep.subr.bf16.mxu0 0
      %9885 = vmatpush1.bf16.msra.mxu0 0
      %9886 = vmatprep.subr.bf16.mxu0 0
      %9887 = vmatpush1.bf16.msra.mxu0 0
      %9888 = vmatprep.subr.bf16.mxu0 0
      %9889 = vmatpush1.bf16.msra.mxu0 0
      %9890 = vmatprep.subr.bf16.mxu0 0
      %9891 = vmatpush1.bf16.msra.mxu0 0
      %9892 = vmatprep.subr.bf16.mxu0 0
      %9893 = vmatpush1.bf16.msra.mxu0 0
      %9894 = vmatprep.subr.bf16.mxu0 0
      %9895 = vmatpush1.bf16.msra.mxu0 0
      %9896 = vmatprep.subr.bf16.mxu0 0
      %9897 = vmatpush1.bf16.msra.mxu0 0
      %9898 = vmatprep.mubr.bf16.mxu0 0
      %9899 = vmatmul.mubr.bf16.gmra.mrb[0].mxu0 %v9775
      %v9900 = vpop.f32.mrb[0].mxu0
      %v9901 = vadd.f32 0.0, %v9900
      %v9902 = vpop.f32.mrb[0].mxu0
      %v9903 = vpop.f32.mrb[0].mxu0
      %v9904 = vadd.f32 0.0, %v9903
      %v9905 = vpop.f32.mrb[0].mxu0
      %9906 = vmatprep.mubr.bf16.mxu0 0
      %9907 = vmatmul.mubr.bf16.gmra.mrb[0].mxu0 %v9778
      %v9908 = vpop.f32.mrb[0].mxu0
      %v9909 = vadd.f32 0.0, %v9908
      %v9910 = vpop.f32.mrb[0].mxu0
      %v9911 = vpop.f32.mrb[0].mxu0
      %v9912 = vadd.f32 0.0, %v9911
      %v9913 = vpop.f32.mrb[0].mxu0
      %9914 = vmatprep.mubr.bf16.mxu0 0
      %9915 = vmatmul.mubr.bf16.gmra.mrb[0].mxu0 %v9781
      %v9916 = vpop.f32.mrb[0].mxu0
      %v9917 = vadd.f32 0.0, %v9916
      %v9918 = vpop.f32.mrb[0].mxu0
      %v9919 = vpop.f32.mrb[0].mxu0
      %v9920 = vadd.f32 0.0, %v9919
      %v9921 = vpop.f32.mrb[0].mxu0
      %9922 = vmatprep.mubr.bf16.mxu0 0
      %9923 = vmatmul.mubr.bf16.gmra.mrb[0].mxu0 %v9784
      %v9924 = vpop.f32.mrb[0].mxu0
      %v9925 = vadd.f32 0.0, %v9924
      %v9926 = vpop.f32.mrb[0].mxu0
      %v9927 = vpop.f32.mrb[0].mxu0
      %v9928 = vpop.f32.mrb[0].mxu0
      %9929 = vdwg.mxu0
      %v9930 = vadd.f32 %v9414, %v9830
      %v9931 = vadd.f32 %v9415, %v9832
      %v9932 = vadd.f32 %v9416, %v9901
      %v9933 = vadd.f32 %v9417, %v9834
      %v9934 = vadd.f32 %v9418, %v9836
      %v9935 = vadd.f32 %v9419, %v9904
      %v9936 = vadd.f32 %v9420, %v9840
      %v9937 = vadd.f32 %v9421, %v9842
      %v9938 = vadd.f32 %v9422, %v9909
      %v9939 = vadd.f32 %v9423, %v9844
      %v9940 = vadd.f32 %v9424, %v9846
      %v9941 = vadd.f32 %v9425, %v9912
      %v9942 = vadd.f32 %v9426, %v9850
      %v9943 = vadd.f32 %v9427, %v9852
      %v9944 = vadd.f32 %v9428, %v9917
      %v9945 = vadd.f32 %v9429, %v9854
      %v9946 = vadd.f32 %v9430, %v9856
      %v9947 = vadd.f32 %v9431, %v9920
      %v9948 = vadd.f32 %v9432, %v9860
      %v9949 = vadd.f32 %v9433, %v9862
      %v9950 = vadd.f32 %v9434, %v9925
      %9951 = vmatprep.subr.bf16.mxu0 0
      %9952 = vmatpush1.bf16.msra.mxu0 %v6572
      %9953 = vmatprep.subr.bf16.mxu0 0
      %9954 = vmatpush1.bf16.msra.mxu0 %v6573
      %9955 = vmatprep.subr.bf16.mxu0 0
      %9956 = vmatpush1.bf16.msra.mxu0 %v6574
      %9957 = vmatprep.subr.bf16.mxu0 0
      %9958 = vmatpush1.bf16.msra.mxu0 %v6575
      %9959 = vmatprep.subr.bf16.mxu0 0
      %9960 = vmatpush1.bf16.msra.mxu0 %v6576
      %9961 = vmatprep.subr.bf16.mxu0 0
      %9962 = vmatpush1.bf16.msra.mxu0 %v6577
      %9963 = vmatprep.subr.bf16.mxu0 0
      %9964 = vmatpush1.bf16.msra.mxu0 %v6578
      %9965 = vmatprep.subr.bf16.mxu0 0
      %9966 = vmatpush1.bf16.msra.mxu0 %v6579
      %9967 = vmatprep.subr.bf16.mxu0 0
      %9968 = vmatpush1.bf16.msra.mxu0 %v6580
      %9969 = vmatprep.subr.bf16.mxu0 0
      %9970 = vmatpush1.bf16.msra.mxu0 %v6581
      %9971 = vmatprep.subr.bf16.mxu0 0
      %9972 = vmatpush1.bf16.msra.mxu0 %v6582
      %9973 = vmatprep.subr.bf16.mxu0 0
      %9974 = vmatpush1.bf16.msra.mxu0 %v6583
      %9975 = vmatprep.subr.bf16.mxu0 0
      %9976 = vmatpush1.bf16.msra.mxu0 %v6584
      %9977 = vmatprep.subr.bf16.mxu0 0
      %9978 = vmatpush1.bf16.msra.mxu0 %v6585
      %9979 = vmatprep.subr.bf16.mxu0 0
      %9980 = vmatpush1.bf16.msra.mxu0 %v6586
      %9981 = vmatprep.subr.bf16.mxu0 0
      %9982 = vmatpush1.bf16.msra.mxu0 %v6587
      %9983 = vmatprep.mubr.bf16.mxu0 %v9665
      %9984 = vmatmul.mubr.bf16.gmra.mrb[0].mxu0 %v9664
      %v9985 = vpop.f32.mrb[0].mxu0
      %v9986 = vadd.f32 0.0, %v9985
      %v9987 = vpop.f32.mrb[0].mxu0
      %v9988 = vpop.f32.mrb[0].mxu0
      %v9989 = vadd.f32 0.0, %v9988
      %v9990 = vpop.f32.mrb[0].mxu0
      %9991 = vmatprep.mubr.bf16.mxu0 %v9667
      %9992 = vmatmul.mubr.bf16.gmra.mrb[0].mxu0 %v9666
      %v9993 = vpop.f32.mrb[0].mxu0
      %v9994 = vadd.f32 0.0, %v9993
      %v9995 = vpop.f32.mrb[0].mxu0
      %v9996 = vpop.f32.mrb[0].mxu0
      %v9997 = vadd.f32 0.0, %v9996
      %v9998 = vpop.f32.mrb[0].mxu0
      %9999 = vmatprep.mubr.bf16.mxu0 %v9669
      %10000 = vmatmul.mubr.bf16.gmra.mrb[0].mxu0 %v9668
      %v10001 = vpop.f32.mrb[0].mxu0
      %v10002 = vadd.f32 0.0, %v10001
      %v10003 = vpop.f32.mrb[0].mxu0
      %v10004 = vpop.f32.mrb[0].mxu0
      %v10005 = vadd.f32 0.0, %v10004
      %v10006 = vpop.f32.mrb[0].mxu0
      %10007 = vmatprep.mubr.bf16.mxu0 %v9671
      %10008 = vmatmul.mubr.bf16.gmra.mrb[0].mxu0 %v9670
      %v10009 = vpop.f32.mrb[0].mxu0
      %v10010 = vadd.f32 0.0, %v10009
      %v10011 = vpop.f32.mrb[0].mxu0
      %v10012 = vpop.f32.mrb[0].mxu0
      %v10013 = vpop.f32.mrb[0].mxu0
      %10014 = vdwg.mxu0
      %v10015 = vpack.c.bf16 %v9989, %v9986
      %v10016 = vpack.c.bf16 %v9997, %v9994
      %v10017 = vpack.c.bf16 %v10005, %v10002
      %v10018 = vpack.c.bf16 %v10010, %v10010
      %s10019 = scalar_lea.vmem %s9, 288
      %v10020 = vld [vmem:[%s10019] sm:$0xf]
      %v10021 = vld [vmem:[%s10019 + $0x4] sm:$0xf]
      %v10022 = vld [vmem:[%s10019 + $0x8] sm:$0xf]
      %v10023 = vld [vmem:[%s10019 + $0xc] sm:$0xf]
      %v10024 = vld [vmem:[%s10019 + $0x10] sm:$0xf]
      %v10025 = vld [vmem:[%s10019 + $0x14] sm:$0xf]
      %v10026 = vld [vmem:[%s10019 + $0x18] sm:$0xf]
      %v10027 = vld [vmem:[%s10019 + $0x1c] sm:$0xf]
      %v10028 = vld [vmem:[%s10019 + $0x20] sm:$0xf]
      %v10029 = vld [vmem:[%s10019 + $0x24] sm:$0xf]
      %v10030 = vld [vmem:[%s10019 + $0x28] sm:$0xf]
      %v10031 = vld [vmem:[%s10019 + $0x2c] sm:$0xf]
      %v10044 = vunpack.c.l.b16 %v10020
      %v10045 = vunpack.c.l.b16 %v10021
      %v10046 = vunpack.c.l.b16 %v10022
      %v10047 = vunpack.c.l.b16 %v10023
      %v10048 = vunpack.c.l.b16 %v10024
      %v10049 = vunpack.c.l.b16 %v10025
      %v10050 = vunpack.c.l.b16 %v10026
      %v10051 = vunpack.c.l.b16 %v10027
      %v10052 = vunpack.c.l.b16 %v10028
      %v10053 = vunpack.c.l.b16 %v10029
      %v10054 = vunpack.c.l.b16 %v10030
      %v10055 = vunpack.c.l.b16 %v10031
      %v10056 = vpack.c.b16 %v10045, %v10044
      %v10057 = vpack.c.b16 %v10047, %v10046
      %v10058 = vpack.c.b16 %v10049, %v10048
      %v10059 = vpack.c.b16 %v10051, %v10050
      %v10060 = vpack.c.b16 %v10053, %v10052
      %v10061 = vpack.c.b16 %v10055, %v10054
      %v10069 = vsel %vm7382, %v10015, 0
      %v10072 = vsel %vm7382, %v10016, 0
      %v10075 = vsel %vm7382, %v10017, 0
      %v10078 = vsel %vm7382, %v10018, 0
      %10080 = vmatprep.subr.bf16.mxu0 0
      %10081 = vmatpush1.bf16.msra.mxu0 %v10056
      %10082 = vmatprep.subr.bf16.mxu0 0
      %10083 = vmatpush1.bf16.msra.mxu0 %v10057
      %10084 = vmatprep.subr.bf16.mxu0 0
      %10085 = vmatpush1.bf16.msra.mxu0 %v10058
      %10086 = vmatprep.subr.bf16.mxu0 0
      %10087 = vmatpush1.bf16.msra.mxu0 %v10059
      %10088 = vmatprep.subr.bf16.mxu0 0
      %10089 = vmatpush1.bf16.msra.mxu0 %v10060
      %10090 = vmatprep.subr.bf16.mxu0 0
      %10091 = vmatpush1.bf16.msra.mxu0 %v10061
      %10092 = vmatprep.subr.bf16.mxu0 0
      %10093 = vmatpush1.bf16.msra.mxu0 0
      %10094 = vmatprep.subr.bf16.mxu0 0
      %10095 = vmatpush1.bf16.msra.mxu0 0
      %10096 = vmatprep.subr.bf16.mxu0 0
      %10097 = vmatpush1.bf16.msra.mxu0 0
      %10098 = vmatprep.subr.bf16.mxu0 0
      %10099 = vmatpush1.bf16.msra.mxu0 0
      %10100 = vmatprep.subr.bf16.mxu0 0
      %10101 = vmatpush1.bf16.msra.mxu0 0
      %10102 = vmatprep.subr.bf16.mxu0 0
      %10103 = vmatpush1.bf16.msra.mxu0 0
      %10104 = vmatprep.subr.bf16.mxu0 0
      %10105 = vmatpush1.bf16.msra.mxu0 0
      %10106 = vmatprep.subr.bf16.mxu0 0
      %10107 = vmatpush1.bf16.msra.mxu0 0
      %10108 = vmatprep.subr.bf16.mxu0 0
      %10109 = vmatpush1.bf16.msra.mxu0 0
      %10110 = vmatprep.subr.bf16.mxu0 0
      %10111 = vmatpush1.bf16.msra.mxu0 0
      %10112 = vmatprep.mubr.bf16.mxu0 0
      %10113 = vmatmul.mubr.bf16.gmra.mrb[0].mxu0 %v10069
      %v10114 = vpop.f32.mrb[0].mxu0
      %v10115 = vadd.f32 0.0, %v10114
      %v10116 = vpop.f32.mrb[0].mxu0
      %v10117 = vpop.f32.mrb[0].mxu0
      %v10118 = vadd.f32 0.0, %v10117
      %v10119 = vpop.f32.mrb[0].mxu0
      %10120 = vmatprep.mubr.bf16.mxu0 0
      %10121 = vmatmul.mubr.bf16.gmra.mrb[0].mxu0 %v10072
      %v10122 = vpop.f32.mrb[0].mxu0
      %v10123 = vadd.f32 0.0, %v10122
      %v10124 = vpop.f32.mrb[0].mxu0
      %v10125 = vpop.f32.mrb[0].mxu0
      %v10126 = vadd.f32 0.0, %v10125
      %v10127 = vpop.f32.mrb[0].mxu0
      %10128 = vmatprep.mubr.bf16.mxu0 0
      %10129 = vmatmul.mubr.bf16.gmra.mrb[0].mxu0 %v10075
      %v10130 = vpop.f32.mrb[0].mxu0
      %v10131 = vadd.f32 0.0, %v10130
      %v10132 = vpop.f32.mrb[0].mxu0
      %v10133 = vpop.f32.mrb[0].mxu0
      %v10134 = vadd.f32 0.0, %v10133
      %v10135 = vpop.f32.mrb[0].mxu0
      %10136 = vmatprep.mubr.bf16.mxu0 0
      %10137 = vmatmul.mubr.bf16.gmra.mrb[0].mxu0 %v10078
      %v10138 = vpop.f32.mrb[0].mxu0
      %v10139 = vadd.f32 0.0, %v10138
      %v10140 = vpop.f32.mrb[0].mxu0
      %v10141 = vpop.f32.mrb[0].mxu0
      %v10142 = vpop.f32.mrb[0].mxu0
      %10143 = vdwg.mxu0
      %v10144 = vadd.f32 %v9628, %v10115
      %v10145 = vadd.f32 %v9629, %v10118
      %v10146 = vadd.f32 %v9630, %v10123
      %v10147 = vadd.f32 %v9631, %v10126
      %v10148 = vadd.f32 %v9632, %v10131
      %v10149 = vadd.f32 %v9633, %v10134
      %v10150 = vadd.f32 %v9634, %v10139
      %s10151 = scalar_lea.vmem %s1, 392
      %v10152 = vld [vmem:[%s10151] sm:$0xff]
      %v10153 = vld [vmem:[%s10151 + $0x8] sm:$0xff]
      %v10154 = vld [vmem:[%s10151 + $0x10] sm:$0xff]
      %v10155 = vld [vmem:[%s10151 + $0x18] sm:$0xff]
      %v10156 = vld [vmem:[%s10151 + $0x20] sm:$0xff]
      %v10157 = vld [vmem:[%s10151 + $0x28] sm:$0xff]
      %v10158 = vld [vmem:[%s10151 + $0x30] sm:$0x11]
      %v10166 = vunpack.c.l.b16 %v10152
      %v10167 = vunpack.c.h.b16 %v10152
      %v10168 = vunpack.c.l.b16 %v10153
      %v10169 = vunpack.c.h.b16 %v10153
      %v10170 = vunpack.c.l.b16 %v10154
      %v10171 = vunpack.c.h.b16 %v10154
      %v10172 = vunpack.c.l.b16 %v10155
      %v10173 = vunpack.c.h.b16 %v10155
      %v10174 = vunpack.c.l.b16 %v10156
      %v10175 = vunpack.c.h.b16 %v10156
      %v10176 = vunpack.c.l.b16 %v10157
      %v10177 = vunpack.c.h.b16 %v10157
      %v10178 = vunpack.c.l.b16 %v10158
      %v10179 = vunpack.c.h.b16 %v10158
      %v10180 = vpack.c.b16 %v10168, %v10166
      %v10181 = vpack.c.b16 %v10169, %v10167
      %v10182 = vpack.c.b16 %v10172, %v10170
      %v10183 = vpack.c.b16 %v10173, %v10171
      %v10184 = vpack.c.b16 %v10176, %v10174
      %v10185 = vpack.c.b16 %v10177, %v10175
      %v10186 = vpack.c.b16 %v10178, %v10178
      %v10187 = vpack.c.b16 %v10179, %v10179
      %10196 = vmatprep.subr.bf16.mxu0 0
      %10197 = vmatpush1.bf16.msra.mxu0 %v492
      %10198 = vmatprep.subr.bf16.mxu0 0
      %10199 = vmatpush1.bf16.msra.mxu0 %v493
      %10200 = vmatprep.subr.bf16.mxu0 0
      %10201 = vmatpush1.bf16.msra.mxu0 %v494
      %10202 = vmatprep.subr.bf16.mxu0 0
      %10203 = vmatpush1.bf16.msra.mxu0 %v495
      %10204 = vmatprep.subr.bf16.mxu0 0
      %10205 = vmatpush1.bf16.msra.mxu0 %v496
      %10206 = vmatprep.subr.bf16.mxu0 0
      %10207 = vmatpush1.bf16.msra.mxu0 %v497
      %10208 = vmatprep.subr.bf16.mxu0 0
      %10209 = vmatpush1.bf16.msra.mxu0 %v498
      %10210 = vmatprep.subr.bf16.mxu0 0
      %10211 = vmatpush1.bf16.msra.mxu0 %v499
      %10212 = vmatprep.subr.bf16.mxu0 0
      %10213 = vmatpush1.bf16.msra.mxu0 %v500
      %10214 = vmatprep.subr.bf16.mxu0 0
      %10215 = vmatpush1.bf16.msra.mxu0 %v501
      %10216 = vmatprep.subr.bf16.mxu0 0
      %10217 = vmatpush1.bf16.msra.mxu0 %v502
      %10218 = vmatprep.subr.bf16.mxu0 0
      %10219 = vmatpush1.bf16.msra.mxu0 %v503
      %10220 = vmatprep.subr.bf16.mxu0 0
      %10221 = vmatpush1.bf16.msra.mxu0 %v504
      %10222 = vmatprep.subr.bf16.mxu0 0
      %10223 = vmatpush1.bf16.msra.mxu0 %v505
      %10224 = vmatprep.subr.bf16.mxu0 0
      %10225 = vmatpush1.bf16.msra.mxu0 %v506
      %10226 = vmatprep.subr.bf16.mxu0 0
      %10227 = vmatpush1.bf16.msra.mxu0 %v507
      %10228 = vmatprep.mubr.bf16.mxu0 %v10181
      %10229 = vmatmul.mubr.bf16.gmra.mrb[0].mxu0 %v10180
      %v10230 = vpop.f32.mrb[0].mxu0
      %v10231 = vadd.f32 0.0, %v10230
      %v10232 = vpop.f32.mrb[0].mxu0
      %v10233 = vpop.f32.mrb[0].mxu0
      %v10234 = vadd.f32 0.0, %v10233
      %v10235 = vpop.f32.mrb[0].mxu0
      %10236 = vmatprep.mubr.bf16.mxu0 %v10183
      %10237 = vmatmul.mubr.bf16.gmra.mrb[0].mxu0 %v10182
      %v10238 = vpop.f32.mrb[0].mxu0
      %v10239 = vadd.f32 0.0, %v10238
      %v10240 = vpop.f32.mrb[0].mxu0
      %v10241 = vpop.f32.mrb[0].mxu0
      %v10242 = vadd.f32 0.0, %v10241
      %v10243 = vpop.f32.mrb[0].mxu0
      %10244 = vmatprep.mubr.bf16.mxu0 %v10185
      %10245 = vmatmul.mubr.bf16.gmra.mrb[0].mxu0 %v10184
      %v10246 = vpop.f32.mrb[0].mxu0
      %v10247 = vadd.f32 0.0, %v10246
      %v10248 = vpop.f32.mrb[0].mxu0
      %v10249 = vpop.f32.mrb[0].mxu0
      %v10250 = vadd.f32 0.0, %v10249
      %v10251 = vpop.f32.mrb[0].mxu0
      %10252 = vmatprep.mubr.bf16.mxu0 %v10187
      %10253 = vmatmul.mubr.bf16.gmra.mrb[0].mxu0 %v10186
      %v10254 = vpop.f32.mrb[0].mxu0
      %v10255 = vadd.f32 0.0, %v10254
      %v10256 = vpop.f32.mrb[0].mxu0
      %v10257 = vpop.f32.mrb[0].mxu0
      %v10258 = vpop.f32.mrb[0].mxu0
      %10259 = vdwg.mxu0
      %v10260 = vmax.f32 %v9744, %v10231
      %v10261 = vmax.f32 %v9745, %v10234
      %v10262 = vmax.f32 %v9746, %v10239
      %v10263 = vmax.f32 %v9747, %v10242
      %v10264 = vmax.f32 %v9748, %v10247
      %v10265 = vmax.f32 %v9749, %v10250
      %v10266 = vmax.f32 %v9750, %v10255
      %v10267 = vpack.c.bf16 %v10234, %v10231
      %v10268 = vpack.c.bf16 %v10242, %v10239
      %v10269 = vpack.c.bf16 %v10250, %v10247
      %v10270 = vpack.c.bf16 %v10255, %v10255
      %s10271 = scalar_lea.vmem %s3, 42
      %v10272 = vld [vmem:[%s10271] sm:$0x3f]
      %v10274 = vcombine.high %v10272, %v10272
      %v10276 = vunpack.c.l.s4 1983009808
      %v10277 = vunpack.c.0.s8 %v10276
      %v10278 = vlaneseq
      %v10279 = vshrl.u32 %v10278, 7
      %v10280 = vsub.s32 %v10277, %v10279
      %v10281 = vrot.slane %v10272, %v10280
      %v10283 = vunpack.c.l.s4 1983009808
      %v10284 = vunpack.c.0.s8 %v10283
      %v10285 = vlaneseq
      %v10286 = vshrl.u32 %v10285, 7
      %v10287 = vsub.s32 %v10284, %v10286
      %v10288 = vrot.slane %v10274, %v10287
      %v10289 = vcombine.high %v10281, %v10281
      %v10291 = vsel %vm508, %v10267, 0
      %v10294 = vsel %vm508, %v10268, 0
      %v10297 = vsel %vm508, %v10269, 0
      %v10300 = vsel %vm508, %v10270, 0
      %v10303 = vsel %vm557, %v10281, 0
      %v10306 = vsel %vm557, %v10289, 0
      %v10309 = vsel %vm557, %v10288, 0
      %10311 = vmatprep.subr.bf16.mxu0 %v10306
      %10312 = vmatpush1.bf16.msra.mxu0 %v10303
      %10313 = vmatprep.subr.bf16.mxu0 0
      %10314 = vmatpush1.bf16.msra.mxu0 0
      %10315 = vmatprep.subr.bf16.mxu0 0
      %10316 = vmatpush1.bf16.msra.mxu0 0
      %10317 = vmatprep.subr.bf16.mxu0 0
      %10318 = vmatpush1.bf16.msra.mxu0 0
      %10319 = vmatprep.subr.bf16.mxu0 0
      %10320 = vmatpush1.bf16.msra.mxu0 0
      %10321 = vmatprep.subr.bf16.mxu0 0
      %10322 = vmatpush1.bf16.msra.mxu0 0
      %10323 = vmatprep.subr.bf16.mxu0 0
      %10324 = vmatpush1.bf16.msra.mxu0 0
      %10325 = vmatprep.subr.bf16.mxu0 0
      %10326 = vmatpush1.bf16.msra.mxu0 0
      %10327 = vmatprep.subr.bf16.mxu0 0
      %10328 = vmatpush1.bf16.msra.mxu0 0
      %10329 = vmatprep.subr.bf16.mxu0 0
      %10330 = vmatpush1.bf16.msra.mxu0 0
      %10331 = vmatprep.subr.bf16.mxu0 0
      %10332 = vmatpush1.bf16.msra.mxu0 0
      %10333 = vmatprep.subr.bf16.mxu0 0
      %10334 = vmatpush1.bf16.msra.mxu0 0
      %10335 = vmatprep.subr.bf16.mxu0 0
      %10336 = vmatpush1.bf16.msra.mxu0 0
      %10337 = vmatprep.subr.bf16.mxu0 0
      %10338 = vmatpush1.bf16.msra.mxu0 0
      %10339 = vmatprep.subr.bf16.mxu0 0
      %10340 = vmatpush1.bf16.msra.mxu0 0
      %10341 = vmatprep.subr.bf16.mxu0 0
      %10342 = vmatpush1.bf16.msra.mxu0 0
      %10343 = vmatprep.mubr.bf16.mxu0 0
      %10344 = vmatmul.mubr.bf16.gmra.mrb[0].mxu0 %v10291
      %v10345 = vpop.f32.mrb[0].mxu0
      %v10346 = vadd.f32 0.0, %v10345
      %v10347 = vpop.f32.mrb[0].mxu0
      %v10348 = vadd.f32 0.0, %v10347
      %v10349 = vpop.f32.mrb[0].mxu0
      %v10350 = vadd.f32 0.0, %v10349
      %v10351 = vpop.f32.mrb[0].mxu0
      %v10352 = vadd.f32 0.0, %v10351
      %10353 = vmatprep.mubr.bf16.mxu0 0
      %10354 = vmatmul.mubr.bf16.gmra.mrb[0].mxu0 %v10294
      %v10355 = vpop.f32.mrb[0].mxu0
      %v10356 = vadd.f32 0.0, %v10355
      %v10357 = vpop.f32.mrb[0].mxu0
      %v10358 = vadd.f32 0.0, %v10357
      %v10359 = vpop.f32.mrb[0].mxu0
      %v10360 = vadd.f32 0.0, %v10359
      %v10361 = vpop.f32.mrb[0].mxu0
      %v10362 = vadd.f32 0.0, %v10361
      %10363 = vmatprep.mubr.bf16.mxu0 0
      %10364 = vmatmul.mubr.bf16.gmra.mrb[0].mxu0 %v10297
      %v10365 = vpop.f32.mrb[0].mxu0
      %v10366 = vadd.f32 0.0, %v10365
      %v10367 = vpop.f32.mrb[0].mxu0
      %v10368 = vadd.f32 0.0, %v10367
      %v10369 = vpop.f32.mrb[0].mxu0
      %v10370 = vadd.f32 0.0, %v10369
      %v10371 = vpop.f32.mrb[0].mxu0
      %v10372 = vadd.f32 0.0, %v10371
      %10373 = vmatprep.mubr.bf16.mxu0 0
      %10374 = vmatmul.mubr.bf16.gmra.mrb[0].mxu0 %v10300
      %v10375 = vpop.f32.mrb[0].mxu0
      %v10376 = vadd.f32 0.0, %v10375
      %v10377 = vpop.f32.mrb[0].mxu0
      %v10378 = vadd.f32 0.0, %v10377
      %v10379 = vpop.f32.mrb[0].mxu0
      %v10380 = vpop.f32.mrb[0].mxu0
      %10381 = vdwg.mxu0
      %10382 = vmatprep.subr.bf16.mxu0 0
      %10383 = vmatpush1.bf16.msra.mxu0 %v10309
      %10384 = vmatprep.subr.bf16.mxu0 0
      %10385 = vmatpush1.bf16.msra.mxu0 0
      %10386 = vmatprep.subr.bf16.mxu0 0
      %10387 = vmatpush1.bf16.msra.mxu0 0
      %10388 = vmatprep.subr.bf16.mxu0 0
      %10389 = vmatpush1.bf16.msra.mxu0 0
      %10390 = vmatprep.subr.bf16.mxu0 0
      %10391 = vmatpush1.bf16.msra.mxu0 0
      %10392 = vmatprep.subr.bf16.mxu0 0
      %10393 = vmatpush1.bf16.msra.mxu0 0
      %10394 = vmatprep.subr.bf16.mxu0 0
      %10395 = vmatpush1.bf16.msra.mxu0 0
      %10396 = vmatprep.subr.bf16.mxu0 0
      %10397 = vmatpush1.bf16.msra.mxu0 0
      %10398 = vmatprep.subr.bf16.mxu0 0
      %10399 = vmatpush1.bf16.msra.mxu0 0
      %10400 = vmatprep.subr.bf16.mxu0 0
      %10401 = vmatpush1.bf16.msra.mxu0 0
      %10402 = vmatprep.subr.bf16.mxu0 0
      %10403 = vmatpush1.bf16.msra.mxu0 0
      %10404 = vmatprep.subr.bf16.mxu0 0
      %10405 = vmatpush1.bf16.msra.mxu0 0
      %10406 = vmatprep.subr.bf16.mxu0 0
      %10407 = vmatpush1.bf16.msra.mxu0 0
      %10408 = vmatprep.subr.bf16.mxu0 0
      %10409 = vmatpush1.bf16.msra.mxu0 0
      %10410 = vmatprep.subr.bf16.mxu0 0
      %10411 = vmatpush1.bf16.msra.mxu0 0
      %10412 = vmatprep.subr.bf16.mxu0 0
      %10413 = vmatpush1.bf16.msra.mxu0 0
      %10414 = vmatprep.mubr.bf16.mxu0 0
      %10415 = vmatmul.mubr.bf16.gmra.mrb[0].mxu0 %v10291
      %v10416 = vpop.f32.mrb[0].mxu0
      %v10417 = vadd.f32 0.0, %v10416
      %v10418 = vpop.f32.mrb[0].mxu0
      %v10419 = vpop.f32.mrb[0].mxu0
      %v10420 = vadd.f32 0.0, %v10419
      %v10421 = vpop.f32.mrb[0].mxu0
      %10422 = vmatprep.mubr.bf16.mxu0 0
      %10423 = vmatmul.mubr.bf16.gmra.mrb[0].mxu0 %v10294
      %v10424 = vpop.f32.mrb[0].mxu0
      %v10425 = vadd.f32 0.0, %v10424
      %v10426 = vpop.f32.mrb[0].mxu0
      %v10427 = vpop.f32.mrb[0].mxu0
      %v10428 = vadd.f32 0.0, %v10427
      %v10429 = vpop.f32.mrb[0].mxu0
      %10430 = vmatprep.mubr.bf16.mxu0 0
      %10431 = vmatmul.mubr.bf16.gmra.mrb[0].mxu0 %v10297
      %v10432 = vpop.f32.mrb[0].mxu0
      %v10433 = vadd.f32 0.0, %v10432
      %v10434 = vpop.f32.mrb[0].mxu0
      %v10435 = vpop.f32.mrb[0].mxu0
      %v10436 = vadd.f32 0.0, %v10435
      %v10437 = vpop.f32.mrb[0].mxu0
      %10438 = vmatprep.mubr.bf16.mxu0 0
      %10439 = vmatmul.mubr.bf16.gmra.mrb[0].mxu0 %v10300
      %v10440 = vpop.f32.mrb[0].mxu0
      %v10441 = vadd.f32 0.0, %v10440
      %v10442 = vpop.f32.mrb[0].mxu0
      %v10443 = vpop.f32.mrb[0].mxu0
      %v10444 = vpop.f32.mrb[0].mxu0
      %10445 = vdwg.mxu0
      %v10446 = vadd.f32 %v9930, %v10346
      %v10447 = vadd.f32 %v9931, %v10348
      %v10448 = vadd.f32 %v9932, %v10417
      %v10449 = vadd.f32 %v9933, %v10350
      %v10450 = vadd.f32 %v9934, %v10352
      %v10451 = vadd.f32 %v9935, %v10420
      %v10452 = vadd.f32 %v9936, %v10356
      %v10453 = vadd.f32 %v9937, %v10358
      %v10454 = vadd.f32 %v9938, %v10425
      %v10455 = vadd.f32 %v9939, %v10360
      %v10456 = vadd.f32 %v9940, %v10362
      %v10457 = vadd.f32 %v9941, %v10428
      %v10458 = vadd.f32 %v9942, %v10366
      %v10459 = vadd.f32 %v9943, %v10368
      %v10460 = vadd.f32 %v9944, %v10433
      %v10461 = vadd.f32 %v9945, %v10370
      %v10462 = vadd.f32 %v9946, %v10372
      %v10463 = vadd.f32 %v9947, %v10436
      %v10464 = vadd.f32 %v9948, %v10376
      %v10465 = vadd.f32 %v9949, %v10378
      %v10466 = vadd.f32 %v9950, %v10441
      %10467 = vmatprep.subr.bf16.mxu0 0
      %10468 = vmatpush1.bf16.msra.mxu0 %v6572
      %10469 = vmatprep.subr.bf16.mxu0 0
      %10470 = vmatpush1.bf16.msra.mxu0 %v6573
      %10471 = vmatprep.subr.bf16.mxu0 0
      %10472 = vmatpush1.bf16.msra.mxu0 %v6574
      %10473 = vmatprep.subr.bf16.mxu0 0
      %10474 = vmatpush1.bf16.msra.mxu0 %v6575
      %10475 = vmatprep.subr.bf16.mxu0 0
      %10476 = vmatpush1.bf16.msra.mxu0 %v6576
      %10477 = vmatprep.subr.bf16.mxu0 0
      %10478 = vmatpush1.bf16.msra.mxu0 %v6577
      %10479 = vmatprep.subr.bf16.mxu0 0
      %10480 = vmatpush1.bf16.msra.mxu0 %v6578
      %10481 = vmatprep.subr.bf16.mxu0 0
      %10482 = vmatpush1.bf16.msra.mxu0 %v6579
      %10483 = vmatprep.subr.bf16.mxu0 0
      %10484 = vmatpush1.bf16.msra.mxu0 %v6580
      %10485 = vmatprep.subr.bf16.mxu0 0
      %10486 = vmatpush1.bf16.msra.mxu0 %v6581
      %10487 = vmatprep.subr.bf16.mxu0 0
      %10488 = vmatpush1.bf16.msra.mxu0 %v6582
      %10489 = vmatprep.subr.bf16.mxu0 0
      %10490 = vmatpush1.bf16.msra.mxu0 %v6583
      %10491 = vmatprep.subr.bf16.mxu0 0
      %10492 = vmatpush1.bf16.msra.mxu0 %v6584
      %10493 = vmatprep.subr.bf16.mxu0 0
      %10494 = vmatpush1.bf16.msra.mxu0 %v6585
      %10495 = vmatprep.subr.bf16.mxu0 0
      %10496 = vmatpush1.bf16.msra.mxu0 %v6586
      %10497 = vmatprep.subr.bf16.mxu0 0
      %10498 = vmatpush1.bf16.msra.mxu0 %v6587
      %10499 = vmatprep.mubr.bf16.mxu0 %v10181
      %10500 = vmatmul.mubr.bf16.gmra.mrb[0].mxu0 %v10180
      %v10501 = vpop.f32.mrb[0].mxu0
      %v10502 = vadd.f32 0.0, %v10501
      %v10503 = vpop.f32.mrb[0].mxu0
      %v10504 = vpop.f32.mrb[0].mxu0
      %v10505 = vadd.f32 0.0, %v10504
      %v10506 = vpop.f32.mrb[0].mxu0
      %10507 = vmatprep.mubr.bf16.mxu0 %v10183
      %10508 = vmatmul.mubr.bf16.gmra.mrb[0].mxu0 %v10182
      %v10509 = vpop.f32.mrb[0].mxu0
      %v10510 = vadd.f32 0.0, %v10509
      %v10511 = vpop.f32.mrb[0].mxu0
      %v10512 = vpop.f32.mrb[0].mxu0
      %v10513 = vadd.f32 0.0, %v10512
      %v10514 = vpop.f32.mrb[0].mxu0
      %10515 = vmatprep.mubr.bf16.mxu0 %v10185
      %10516 = vmatmul.mubr.bf16.gmra.mrb[0].mxu0 %v10184
      %v10517 = vpop.f32.mrb[0].mxu0
      %v10518 = vadd.f32 0.0, %v10517
      %v10519 = vpop.f32.mrb[0].mxu0
      %v10520 = vpop.f32.mrb[0].mxu0
      %v10521 = vadd.f32 0.0, %v10520
      %v10522 = vpop.f32.mrb[0].mxu0
      %10523 = vmatprep.mubr.bf16.mxu0 %v10187
      %10524 = vmatmul.mubr.bf16.gmra.mrb[0].mxu0 %v10186
      %v10525 = vpop.f32.mrb[0].mxu0
      %v10526 = vadd.f32 0.0, %v10525
      %v10527 = vpop.f32.mrb[0].mxu0
      %v10528 = vpop.f32.mrb[0].mxu0
      %v10529 = vpop.f32.mrb[0].mxu0
      %10530 = vdwg.mxu0
      %v10531 = vpack.c.bf16 %v10505, %v10502
      %v10532 = vpack.c.bf16 %v10513, %v10510
      %v10533 = vpack.c.bf16 %v10521, %v10518
      %v10534 = vpack.c.bf16 %v10526, %v10526
      %s10535 = scalar_lea.vmem %s9, 336
      %v10536 = vld [vmem:[%s10535] sm:$0xf]
      %v10537 = vld [vmem:[%s10535 + $0x4] sm:$0xf]
      %v10538 = vld [vmem:[%s10535 + $0x8] sm:$0xf]
      %v10539 = vld [vmem:[%s10535 + $0xc] sm:$0xf]
      %v10540 = vld [vmem:[%s10535 + $0x10] sm:$0xf]
      %v10541 = vld [vmem:[%s10535 + $0x14] sm:$0xf]
      %v10542 = vld [vmem:[%s10535 + $0x18] sm:$0xf]
      %v10543 = vld [vmem:[%s10535 + $0x1c] sm:$0xf]
      %v10544 = vld [vmem:[%s10535 + $0x20] sm:$0xf]
      %v10545 = vld [vmem:[%s10535 + $0x24] sm:$0xf]
      %v10546 = vld [vmem:[%s10535 + $0x28] sm:$0xf]
      %v10547 = vld [vmem:[%s10535 + $0x2c] sm:$0xf]
      %v10560 = vunpack.c.l.b16 %v10536
      %v10561 = vunpack.c.l.b16 %v10537
      %v10562 = vunpack.c.l.b16 %v10538
      %v10563 = vunpack.c.l.b16 %v10539
      %v10564 = vunpack.c.l.b16 %v10540
      %v10565 = vunpack.c.l.b16 %v10541
      %v10566 = vunpack.c.l.b16 %v10542
      %v10567 = vunpack.c.l.b16 %v10543
      %v10568 = vunpack.c.l.b16 %v10544
      %v10569 = vunpack.c.l.b16 %v10545
      %v10570 = vunpack.c.l.b16 %v10546
      %v10571 = vunpack.c.l.b16 %v10547
      %v10572 = vpack.c.b16 %v10561, %v10560
      %v10573 = vpack.c.b16 %v10563, %v10562
      %v10574 = vpack.c.b16 %v10565, %v10564
      %v10575 = vpack.c.b16 %v10567, %v10566
      %v10576 = vpack.c.b16 %v10569, %v10568
      %v10577 = vpack.c.b16 %v10571, %v10570
      %v10585 = vsel %vm7382, %v10531, 0
      %v10588 = vsel %vm7382, %v10532, 0
      %v10591 = vsel %vm7382, %v10533, 0
      %v10594 = vsel %vm7382, %v10534, 0
      %10596 = vmatprep.subr.bf16.mxu0 0
      %10597 = vmatpush1.bf16.msra.mxu0 %v10572
      %10598 = vmatprep.subr.bf16.mxu0 0
      %10599 = vmatpush1.bf16.msra.mxu0 %v10573
      %10600 = vmatprep.subr.bf16.mxu0 0
      %10601 = vmatpush1.bf16.msra.mxu0 %v10574
      %10602 = vmatprep.subr.bf16.mxu0 0
      %10603 = vmatpush1.bf16.msra.mxu0 %v10575
      %10604 = vmatprep.subr.bf16.mxu0 0
      %10605 = vmatpush1.bf16.msra.mxu0 %v10576
      %10606 = vmatprep.subr.bf16.mxu0 0
      %10607 = vmatpush1.bf16.msra.mxu0 %v10577
      %10608 = vmatprep.subr.bf16.mxu0 0
      %10609 = vmatpush1.bf16.msra.mxu0 0
      %10610 = vmatprep.subr.bf16.mxu0 0
      %10611 = vmatpush1.bf16.msra.mxu0 0
      %10612 = vmatprep.subr.bf16.mxu0 0
      %10613 = vmatpush1.bf16.msra.mxu0 0
      %10614 = vmatprep.subr.bf16.mxu0 0
      %10615 = vmatpush1.bf16.msra.mxu0 0
      %10616 = vmatprep.subr.bf16.mxu0 0
      %10617 = vmatpush1.bf16.msra.mxu0 0
      %10618 = vmatprep.subr.bf16.mxu0 0
      %10619 = vmatpush1.bf16.msra.mxu0 0
      %10620 = vmatprep.subr.bf16.mxu0 0
      %10621 = vmatpush1.bf16.msra.mxu0 0
      %10622 = vmatprep.subr.bf16.mxu0 0
      %10623 = vmatpush1.bf16.msra.mxu0 0
      %10624 = vmatprep.subr.bf16.mxu0 0
      %10625 = vmatpush1.bf16.msra.mxu0 0
      %10626 = vmatprep.subr.bf16.mxu0 0
      %10627 = vmatpush1.bf16.msra.mxu0 0
      %10628 = vmatprep.mubr.bf16.mxu0 0
      %10629 = vmatmul.mubr.bf16.gmra.mrb[0].mxu0 %v10585
      %v10630 = vpop.f32.mrb[0].mxu0
      %v10631 = vadd.f32 0.0, %v10630
      %v10632 = vpop.f32.mrb[0].mxu0
      %v10633 = vpop.f32.mrb[0].mxu0
      %v10634 = vadd.f32 0.0, %v10633
      %v10635 = vpop.f32.mrb[0].mxu0
      %10636 = vmatprep.mubr.bf16.mxu0 0
      %10637 = vmatmul.mubr.bf16.gmra.mrb[0].mxu0 %v10588
      %v10638 = vpop.f32.mrb[0].mxu0
      %v10639 = vadd.f32 0.0, %v10638
      %v10640 = vpop.f32.mrb[0].mxu0
      %v10641 = vpop.f32.mrb[0].mxu0
      %v10642 = vadd.f32 0.0, %v10641
      %v10643 = vpop.f32.mrb[0].mxu0
      %10644 = vmatprep.mubr.bf16.mxu0 0
      %10645 = vmatmul.mubr.bf16.gmra.mrb[0].mxu0 %v10591
      %v10646 = vpop.f32.mrb[0].mxu0
      %v10647 = vadd.f32 0.0, %v10646
      %v10648 = vpop.f32.mrb[0].mxu0
      %v10649 = vpop.f32.mrb[0].mxu0
      %v10650 = vadd.f32 0.0, %v10649
      %v10651 = vpop.f32.mrb[0].mxu0
      %10652 = vmatprep.mubr.bf16.mxu0 0
      %10653 = vmatmul.mubr.bf16.gmra.mrb[0].mxu0 %v10594
      %v10654 = vpop.f32.mrb[0].mxu0
      %v10655 = vadd.f32 0.0, %v10654
      %v10656 = vpop.f32.mrb[0].mxu0
      %v10657 = vpop.f32.mrb[0].mxu0
      %v10658 = vpop.f32.mrb[0].mxu0
      %10659 = vdwg.mxu0
      %v10660 = vadd.f32 %v10144, %v10631
      %v10661 = vadd.f32 %v10145, %v10634
      %v10662 = vadd.f32 %v10146, %v10639
      %v10663 = vadd.f32 %v10147, %v10642
      %v10664 = vadd.f32 %v10148, %v10647
      %v10665 = vadd.f32 %v10149, %v10650
      %v10666 = vadd.f32 %v10150, %v10655
      %s10667 = scalar_lea.vmem %s1, 448
      %v10668 = vld [vmem:[%s10667] sm:$0xff]
      %v10669 = vld [vmem:[%s10667 + $0x8] sm:$0xff]
      %v10670 = vld [vmem:[%s10667 + $0x10] sm:$0xff]
      %v10671 = vld [vmem:[%s10667 + $0x18] sm:$0xff]
      %v10672 = vld [vmem:[%s10667 + $0x20] sm:$0xff]
      %v10673 = vld [vmem:[%s10667 + $0x28] sm:$0xff]
      %v10674 = vld [vmem:[%s10667 + $0x30] sm:$0x11]
      %v10682 = vunpack.c.l.b16 %v10668
      %v10683 = vunpack.c.h.b16 %v10668
      %v10684 = vunpack.c.l.b16 %v10669
      %v10685 = vunpack.c.h.b16 %v10669
      %v10686 = vunpack.c.l.b16 %v10670
      %v10687 = vunpack.c.h.b16 %v10670
      %v10688 = vunpack.c.l.b16 %v10671
      %v10689 = vunpack.c.h.b16 %v10671
      %v10690 = vunpack.c.l.b16 %v10672
      %v10691 = vunpack.c.h.b16 %v10672
      %v10692 = vunpack.c.l.b16 %v10673
      %v10693 = vunpack.c.h.b16 %v10673
      %v10694 = vunpack.c.l.b16 %v10674
      %v10695 = vunpack.c.h.b16 %v10674
      %v10696 = vpack.c.b16 %v10684, %v10682
      %v10697 = vpack.c.b16 %v10685, %v10683
      %v10698 = vpack.c.b16 %v10688, %v10686
      %v10699 = vpack.c.b16 %v10689, %v10687
      %v10700 = vpack.c.b16 %v10692, %v10690
      %v10701 = vpack.c.b16 %v10693, %v10691
      %v10702 = vpack.c.b16 %v10694, %v10694
      %v10703 = vpack.c.b16 %v10695, %v10695
      %10712 = vmatprep.subr.bf16.mxu0 0
      %10713 = vmatpush1.bf16.msra.mxu0 %v492
      %10714 = vmatprep.subr.bf16.mxu0 0
      %10715 = vmatpush1.bf16.msra.mxu0 %v493
      %10716 = vmatprep.subr.bf16.mxu0 0
      %10717 = vmatpush1.bf16.msra.mxu0 %v494
      %10718 = vmatprep.subr.bf16.mxu0 0
      %10719 = vmatpush1.bf16.msra.mxu0 %v495
      %10720 = vmatprep.subr.bf16.mxu0 0
      %10721 = vmatpush1.bf16.msra.mxu0 %v496
      %10722 = vmatprep.subr.bf16.mxu0 0
      %10723 = vmatpush1.bf16.msra.mxu0 %v497
      %10724 = vmatprep.subr.bf16.mxu0 0
      %10725 = vmatpush1.bf16.msra.mxu0 %v498
      %10726 = vmatprep.subr.bf16.mxu0 0
      %10727 = vmatpush1.bf16.msra.mxu0 %v499
      %10728 = vmatprep.subr.bf16.mxu0 0
      %10729 = vmatpush1.bf16.msra.mxu0 %v500
      %10730 = vmatprep.subr.bf16.mxu0 0
      %10731 = vmatpush1.bf16.msra.mxu0 %v501
      %10732 = vmatprep.subr.bf16.mxu0 0
      %10733 = vmatpush1.bf16.msra.mxu0 %v502
      %10734 = vmatprep.subr.bf16.mxu0 0
      %10735 = vmatpush1.bf16.msra.mxu0 %v503
      %10736 = vmatprep.subr.bf16.mxu0 0
      %10737 = vmatpush1.bf16.msra.mxu0 %v504
      %10738 = vmatprep.subr.bf16.mxu0 0
      %10739 = vmatpush1.bf16.msra.mxu0 %v505
      %10740 = vmatprep.subr.bf16.mxu0 0
      %10741 = vmatpush1.bf16.msra.mxu0 %v506
      %10742 = vmatprep.subr.bf16.mxu0 0
      %10743 = vmatpush1.bf16.msra.mxu0 %v507
      %10744 = vmatprep.mubr.bf16.mxu0 %v10697
      %10745 = vmatmul.mubr.bf16.gmra.mrb[0].mxu0 %v10696
      %v10746 = vpop.f32.mrb[0].mxu0
      %v10747 = vadd.f32 0.0, %v10746
      %v10748 = vpop.f32.mrb[0].mxu0
      %v10749 = vpop.f32.mrb[0].mxu0
      %v10750 = vadd.f32 0.0, %v10749
      %v10751 = vpop.f32.mrb[0].mxu0
      %10752 = vmatprep.mubr.bf16.mxu0 %v10699
      %10753 = vmatmul.mubr.bf16.gmra.mrb[0].mxu0 %v10698
      %v10754 = vpop.f32.mrb[0].mxu0
      %v10755 = vadd.f32 0.0, %v10754
      %v10756 = vpop.f32.mrb[0].mxu0
      %v10757 = vpop.f32.mrb[0].mxu0
      %v10758 = vadd.f32 0.0, %v10757
      %v10759 = vpop.f32.mrb[0].mxu0
      %10760 = vmatprep.mubr.bf16.mxu0 %v10701
      %10761 = vmatmul.mubr.bf16.gmra.mrb[0].mxu0 %v10700
      %v10762 = vpop.f32.mrb[0].mxu0
      %v10763 = vadd.f32 0.0, %v10762
      %v10764 = vpop.f32.mrb[0].mxu0
      %v10765 = vpop.f32.mrb[0].mxu0
      %v10766 = vadd.f32 0.0, %v10765
      %v10767 = vpop.f32.mrb[0].mxu0
      %10768 = vmatprep.mubr.bf16.mxu0 %v10703
      %10769 = vmatmul.mubr.bf16.gmra.mrb[0].mxu0 %v10702
      %v10770 = vpop.f32.mrb[0].mxu0
      %v10771 = vadd.f32 0.0, %v10770
      %v10772 = vpop.f32.mrb[0].mxu0
      %v10773 = vpop.f32.mrb[0].mxu0
      %v10774 = vpop.f32.mrb[0].mxu0
      %10775 = vdwg.mxu0
      %v10776 = vmax.f32 %v10260, %v10747
      %v10777 = vmax.f32 %v10261, %v10750
      %v10778 = vmax.f32 %v10262, %v10755
      %v10779 = vmax.f32 %v10263, %v10758
      %v10780 = vmax.f32 %v10264, %v10763
      %v10781 = vmax.f32 %v10265, %v10766
      %v10782 = vmax.f32 %v10266, %v10771
      %v10783 = vpack.c.bf16 %v10750, %v10747
      %v10784 = vpack.c.bf16 %v10758, %v10755
      %v10785 = vpack.c.bf16 %v10766, %v10763
      %v10786 = vpack.c.bf16 %v10771, %v10771
      %s10787 = scalar_lea.vmem %s3, 48
      %v10788 = vld [vmem:[%s10787] sm:$0x3f]
      %v10790 = vcombine.high %v10788, %v10788
      %v10792 = vunpack.c.l.s4 1983009808
      %v10793 = vunpack.c.0.s8 %v10792
      %v10794 = vlaneseq
      %v10795 = vshrl.u32 %v10794, 7
      %v10796 = vsub.s32 %v10793, %v10795
      %v10797 = vrot.slane %v10788, %v10796
      %v10799 = vunpack.c.l.s4 1983009808
      %v10800 = vunpack.c.0.s8 %v10799
      %v10801 = vlaneseq
      %v10802 = vshrl.u32 %v10801, 7
      %v10803 = vsub.s32 %v10800, %v10802
      %v10804 = vrot.slane %v10790, %v10803
      %v10805 = vcombine.high %v10797, %v10797
      %v10807 = vsel %vm508, %v10783, 0
      %v10810 = vsel %vm508, %v10784, 0
      %v10813 = vsel %vm508, %v10785, 0
      %v10816 = vsel %vm508, %v10786, 0
      %v10819 = vsel %vm557, %v10797, 0
      %v10822 = vsel %vm557, %v10805, 0
      %v10825 = vsel %vm557, %v10804, 0
      %10827 = vmatprep.subr.bf16.mxu0 %v10822
      %10828 = vmatpush1.bf16.msra.mxu0 %v10819
      %10829 = vmatprep.subr.bf16.mxu0 0
      %10830 = vmatpush1.bf16.msra.mxu0 0
      %10831 = vmatprep.subr.bf16.mxu0 0
      %10832 = vmatpush1.bf16.msra.mxu0 0
      %10833 = vmatprep.subr.bf16.mxu0 0
      %10834 = vmatpush1.bf16.msra.mxu0 0
      %10835 = vmatprep.subr.bf16.mxu0 0
      %10836 = vmatpush1.bf16.msra.mxu0 0
      %10837 = vmatprep.subr.bf16.mxu0 0
      %10838 = vmatpush1.bf16.msra.mxu0 0
      %10839 = vmatprep.subr.bf16.mxu0 0
      %10840 = vmatpush1.bf16.msra.mxu0 0
      %10841 = vmatprep.subr.bf16.mxu0 0
      %10842 = vmatpush1.bf16.msra.mxu0 0
      %10843 = vmatprep.subr.bf16.mxu0 0
      %10844 = vmatpush1.bf16.msra.mxu0 0
      %10845 = vmatprep.subr.bf16.mxu0 0
      %10846 = vmatpush1.bf16.msra.mxu0 0
      %10847 = vmatprep.subr.bf16.mxu0 0
      %10848 = vmatpush1.bf16.msra.mxu0 0
      %10849 = vmatprep.subr.bf16.mxu0 0
      %10850 = vmatpush1.bf16.msra.mxu0 0
      %10851 = vmatprep.subr.bf16.mxu0 0
      %10852 = vmatpush1.bf16.msra.mxu0 0
      %10853 = vmatprep.subr.bf16.mxu0 0
      %10854 = vmatpush1.bf16.msra.mxu0 0
      %10855 = vmatprep.subr.bf16.mxu0 0
      %10856 = vmatpush1.bf16.msra.mxu0 0
      %10857 = vmatprep.subr.bf16.mxu0 0
      %10858 = vmatpush1.bf16.msra.mxu0 0
      %10859 = vmatprep.mubr.bf16.mxu0 0
      %10860 = vmatmul.mubr.bf16.gmra.mrb[0].mxu0 %v10807
      %v10861 = vpop.f32.mrb[0].mxu0
      %v10862 = vadd.f32 0.0, %v10861
      %v10863 = vpop.f32.mrb[0].mxu0
      %v10864 = vadd.f32 0.0, %v10863
      %v10865 = vpop.f32.mrb[0].mxu0
      %v10866 = vadd.f32 0.0, %v10865
      %v10867 = vpop.f32.mrb[0].mxu0
      %v10868 = vadd.f32 0.0, %v10867
      %10869 = vmatprep.mubr.bf16.mxu0 0
      %10870 = vmatmul.mubr.bf16.gmra.mrb[0].mxu0 %v10810
      %v10871 = vpop.f32.mrb[0].mxu0
      %v10872 = vadd.f32 0.0, %v10871
      %v10873 = vpop.f32.mrb[0].mxu0
      %v10874 = vadd.f32 0.0, %v10873
      %v10875 = vpop.f32.mrb[0].mxu0
      %v10876 = vadd.f32 0.0, %v10875
      %v10877 = vpop.f32.mrb[0].mxu0
      %v10878 = vadd.f32 0.0, %v10877
      %10879 = vmatprep.mubr.bf16.mxu0 0
      %10880 = vmatmul.mubr.bf16.gmra.mrb[0].mxu0 %v10813
      %v10881 = vpop.f32.mrb[0].mxu0
      %v10882 = vadd.f32 0.0, %v10881
      %v10883 = vpop.f32.mrb[0].mxu0
      %v10884 = vadd.f32 0.0, %v10883
      %v10885 = vpop.f32.mrb[0].mxu0
      %v10886 = vadd.f32 0.0, %v10885
      %v10887 = vpop.f32.mrb[0].mxu0
      %v10888 = vadd.f32 0.0, %v10887
      %10889 = vmatprep.mubr.bf16.mxu0 0
      %10890 = vmatmul.mubr.bf16.gmra.mrb[0].mxu0 %v10816
      %v10891 = vpop.f32.mrb[0].mxu0
      %v10892 = vadd.f32 0.0, %v10891
      %v10893 = vpop.f32.mrb[0].mxu0
      %v10894 = vadd.f32 0.0, %v10893
      %v10895 = vpop.f32.mrb[0].mxu0
      %v10896 = vpop.f32.mrb[0].mxu0
      %10897 = vdwg.mxu0
      %10898 = vmatprep.subr.bf16.mxu0 0
      %10899 = vmatpush1.bf16.msra.mxu0 %v10825
      %10900 = vmatprep.subr.bf16.mxu0 0
      %10901 = vmatpush1.bf16.msra.mxu0 0
      %10902 = vmatprep.subr.bf16.mxu0 0
      %10903 = vmatpush1.bf16.msra.mxu0 0
      %10904 = vmatprep.subr.bf16.mxu0 0
      %10905 = vmatpush1.bf16.msra.mxu0 0
      %10906 = vmatprep.subr.bf16.mxu0 0
      %10907 = vmatpush1.bf16.msra.mxu0 0
      %10908 = vmatprep.subr.bf16.mxu0 0
      %10909 = vmatpush1.bf16.msra.mxu0 0
      %10910 = vmatprep.subr.bf16.mxu0 0
      %10911 = vmatpush1.bf16.msra.mxu0 0
      %10912 = vmatprep.subr.bf16.mxu0 0
      %10913 = vmatpush1.bf16.msra.mxu0 0
      %10914 = vmatprep.subr.bf16.mxu0 0
      %10915 = vmatpush1.bf16.msra.mxu0 0
      %10916 = vmatprep.subr.bf16.mxu0 0
      %10917 = vmatpush1.bf16.msra.mxu0 0
      %10918 = vmatprep.subr.bf16.mxu0 0
      %10919 = vmatpush1.bf16.msra.mxu0 0
      %10920 = vmatprep.subr.bf16.mxu0 0
      %10921 = vmatpush1.bf16.msra.mxu0 0
      %10922 = vmatprep.subr.bf16.mxu0 0
      %10923 = vmatpush1.bf16.msra.mxu0 0
      %10924 = vmatprep.subr.bf16.mxu0 0
      %10925 = vmatpush1.bf16.msra.mxu0 0
      %10926 = vmatprep.subr.bf16.mxu0 0
      %10927 = vmatpush1.bf16.msra.mxu0 0
      %10928 = vmatprep.subr.bf16.mxu0 0
      %10929 = vmatpush1.bf16.msra.mxu0 0
      %10930 = vmatprep.mubr.bf16.mxu0 0
      %10931 = vmatmul.mubr.bf16.gmra.mrb[0].mxu0 %v10807
      %v10932 = vpop.f32.mrb[0].mxu0
      %v10933 = vadd.f32 0.0, %v10932
      %v10934 = vpop.f32.mrb[0].mxu0
      %v10935 = vpop.f32.mrb[0].mxu0
      %v10936 = vadd.f32 0.0, %v10935
      %v10937 = vpop.f32.mrb[0].mxu0
      %10938 = vmatprep.mubr.bf16.mxu0 0
      %10939 = vmatmul.mubr.bf16.gmra.mrb[0].mxu0 %v10810
      %v10940 = vpop.f32.mrb[0].mxu0
      %v10941 = vadd.f32 0.0, %v10940
      %v10942 = vpop.f32.mrb[0].mxu0
      %v10943 = vpop.f32.mrb[0].mxu0
      %v10944 = vadd.f32 0.0, %v10943
      %v10945 = vpop.f32.mrb[0].mxu0
      %10946 = vmatprep.mubr.bf16.mxu0 0
      %10947 = vmatmul.mubr.bf16.gmra.mrb[0].mxu0 %v10813
      %v10948 = vpop.f32.mrb[0].mxu0
      %v10949 = vadd.f32 0.0, %v10948
      %v10950 = vpop.f32.mrb[0].mxu0
      %v10951 = vpop.f32.mrb[0].mxu0
      %v10952 = vadd.f32 0.0, %v10951
      %v10953 = vpop.f32.mrb[0].mxu0
      %10954 = vmatprep.mubr.bf16.mxu0 0
      %10955 = vmatmul.mubr.bf16.gmra.mrb[0].mxu0 %v10816
      %v10956 = vpop.f32.mrb[0].mxu0
      %v10957 = vadd.f32 0.0, %v10956
      %v10958 = vpop.f32.mrb[0].mxu0
      %v10959 = vpop.f32.mrb[0].mxu0
      %v10960 = vpop.f32.mrb[0].mxu0
      %10961 = vdwg.mxu0
      %v10962 = vadd.f32 %v10446, %v10862
      %v10963 = vadd.f32 %v10447, %v10864
      %v10964 = vadd.f32 %v10448, %v10933
      %v10965 = vadd.f32 %v10449, %v10866
      %v10966 = vadd.f32 %v10450, %v10868
      %v10967 = vadd.f32 %v10451, %v10936
      %v10968 = vadd.f32 %v10452, %v10872
      %v10969 = vadd.f32 %v10453, %v10874
      %v10970 = vadd.f32 %v10454, %v10941
      %v10971 = vadd.f32 %v10455, %v10876
      %v10972 = vadd.f32 %v10456, %v10878
      %v10973 = vadd.f32 %v10457, %v10944
      %v10974 = vadd.f32 %v10458, %v10882
      %v10975 = vadd.f32 %v10459, %v10884
      %v10976 = vadd.f32 %v10460, %v10949
      %v10977 = vadd.f32 %v10461, %v10886
      %v10978 = vadd.f32 %v10462, %v10888
      %v10979 = vadd.f32 %v10463, %v10952
      %v10980 = vadd.f32 %v10464, %v10892
      %v10981 = vadd.f32 %v10465, %v10894
      %v10982 = vadd.f32 %v10466, %v10957
      %10983 = vmatprep.subr.bf16.mxu0 0
      %10984 = vmatpush1.bf16.msra.mxu0 %v6572
      %10985 = vmatprep.subr.bf16.mxu0 0
      %10986 = vmatpush1.bf16.msra.mxu0 %v6573
      %10987 = vmatprep.subr.bf16.mxu0 0
      %10988 = vmatpush1.bf16.msra.mxu0 %v6574
      %10989 = vmatprep.subr.bf16.mxu0 0
      %10990 = vmatpush1.bf16.msra.mxu0 %v6575
      %10991 = vmatprep.subr.bf16.mxu0 0
      %10992 = vmatpush1.bf16.msra.mxu0 %v6576
      %10993 = vmatprep.subr.bf16.mxu0 0
      %10994 = vmatpush1.bf16.msra.mxu0 %v6577
      %10995 = vmatprep.subr.bf16.mxu0 0
      %10996 = vmatpush1.bf16.msra.mxu0 %v6578
      %10997 = vmatprep.subr.bf16.mxu0 0
      %10998 = vmatpush1.bf16.msra.mxu0 %v6579
      %10999 = vmatprep.subr.bf16.mxu0 0
      %11000 = vmatpush1.bf16.msra.mxu0 %v6580
      %11001 = vmatprep.subr.bf16.mxu0 0
      %11002 = vmatpush1.bf16.msra.mxu0 %v6581
      %11003 = vmatprep.subr.bf16.mxu0 0
      %11004 = vmatpush1.bf16.msra.mxu0 %v6582
      %11005 = vmatprep.subr.bf16.mxu0 0
      %11006 = vmatpush1.bf16.msra.mxu0 %v6583
      %11007 = vmatprep.subr.bf16.mxu0 0
      %11008 = vmatpush1.bf16.msra.mxu0 %v6584
      %11009 = vmatprep.subr.bf16.mxu0 0
      %11010 = vmatpush1.bf16.msra.mxu0 %v6585
      %11011 = vmatprep.subr.bf16.mxu0 0
      %11012 = vmatpush1.bf16.msra.mxu0 %v6586
      %11013 = vmatprep.subr.bf16.mxu0 0
      %11014 = vmatpush1.bf16.msra.mxu0 %v6587
      %11015 = vmatprep.mubr.bf16.mxu0 %v10697
      %11016 = vmatmul.mubr.bf16.gmra.mrb[0].mxu0 %v10696
      %v11017 = vpop.f32.mrb[0].mxu0
      %v11018 = vadd.f32 0.0, %v11017
      %v11019 = vpop.f32.mrb[0].mxu0
      %v11020 = vpop.f32.mrb[0].mxu0
      %v11021 = vadd.f32 0.0, %v11020
      %v11022 = vpop.f32.mrb[0].mxu0
      %11023 = vmatprep.mubr.bf16.mxu0 %v10699
      %11024 = vmatmul.mubr.bf16.gmra.mrb[0].mxu0 %v10698
      %v11025 = vpop.f32.mrb[0].mxu0
      %v11026 = vadd.f32 0.0, %v11025
      %v11027 = vpop.f32.mrb[0].mxu0
      %v11028 = vpop.f32.mrb[0].mxu0
      %v11029 = vadd.f32 0.0, %v11028
      %v11030 = vpop.f32.mrb[0].mxu0
      %11031 = vmatprep.mubr.bf16.mxu0 %v10701
      %11032 = vmatmul.mubr.bf16.gmra.mrb[0].mxu0 %v10700
      %v11033 = vpop.f32.mrb[0].mxu0
      %v11034 = vadd.f32 0.0, %v11033
      %v11035 = vpop.f32.mrb[0].mxu0
      %v11036 = vpop.f32.mrb[0].mxu0
      %v11037 = vadd.f32 0.0, %v11036
      %v11038 = vpop.f32.mrb[0].mxu0
      %11039 = vmatprep.mubr.bf16.mxu0 %v10703
      %11040 = vmatmul.mubr.bf16.gmra.mrb[0].mxu0 %v10702
      %v11041 = vpop.f32.mrb[0].mxu0
      %v11042 = vadd.f32 0.0, %v11041
      %v11043 = vpop.f32.mrb[0].mxu0
      %v11044 = vpop.f32.mrb[0].mxu0
      %v11045 = vpop.f32.mrb[0].mxu0
      %11046 = vdwg.mxu0
      %v11047 = vpack.c.bf16 %v11021, %v11018
      %v11048 = vpack.c.bf16 %v11029, %v11026
      %v11049 = vpack.c.bf16 %v11037, %v11034
      %v11050 = vpack.c.bf16 %v11042, %v11042
      %s11051 = scalar_lea.vmem %s9, 384
      %v11052 = vld [vmem:[%s11051] sm:$0xf]
      %v11053 = vld [vmem:[%s11051 + $0x4] sm:$0xf]
      %v11054 = vld [vmem:[%s11051 + $0x8] sm:$0xf]
      %v11055 = vld [vmem:[%s11051 + $0xc] sm:$0xf]
      %v11056 = vld [vmem:[%s11051 + $0x10] sm:$0xf]
      %v11057 = vld [vmem:[%s11051 + $0x14] sm:$0xf]
      %v11058 = vld [vmem:[%s11051 + $0x18] sm:$0xf]
      %v11059 = vld [vmem:[%s11051 + $0x1c] sm:$0xf]
      %v11060 = vld [vmem:[%s11051 + $0x20] sm:$0xf]
      %v11061 = vld [vmem:[%s11051 + $0x24] sm:$0xf]
      %v11062 = vld [vmem:[%s11051 + $0x28] sm:$0xf]
      %v11063 = vld [vmem:[%s11051 + $0x2c] sm:$0xf]
      %v11076 = vunpack.c.l.b16 %v11052
      %v11077 = vunpack.c.l.b16 %v11053
      %v11078 = vunpack.c.l.b16 %v11054
      %v11079 = vunpack.c.l.b16 %v11055
      %v11080 = vunpack.c.l.b16 %v11056
      %v11081 = vunpack.c.l.b16 %v11057
      %v11082 = vunpack.c.l.b16 %v11058
      %v11083 = vunpack.c.l.b16 %v11059
      %v11084 = vunpack.c.l.b16 %v11060
      %v11085 = vunpack.c.l.b16 %v11061
      %v11086 = vunpack.c.l.b16 %v11062
      %v11087 = vunpack.c.l.b16 %v11063
      %v11088 = vpack.c.b16 %v11077, %v11076
      %v11089 = vpack.c.b16 %v11079, %v11078
      %v11090 = vpack.c.b16 %v11081, %v11080
      %v11091 = vpack.c.b16 %v11083, %v11082
      %v11092 = vpack.c.b16 %v11085, %v11084
      %v11093 = vpack.c.b16 %v11087, %v11086
      %v11101 = vsel %vm7382, %v11047, 0
      %v11104 = vsel %vm7382, %v11048, 0
      %v11107 = vsel %vm7382, %v11049, 0
      %v11110 = vsel %vm7382, %v11050, 0
      %11112 = vmatprep.subr.bf16.mxu0 0
      %11113 = vmatpush1.bf16.msra.mxu0 %v11088
      %11114 = vmatprep.subr.bf16.mxu0 0
      %11115 = vmatpush1.bf16.msra.mxu0 %v11089
      %11116 = vmatprep.subr.bf16.mxu0 0
      %11117 = vmatpush1.bf16.msra.mxu0 %v11090
      %11118 = vmatprep.subr.bf16.mxu0 0
      %11119 = vmatpush1.bf16.msra.mxu0 %v11091
      %11120 = vmatprep.subr.bf16.mxu0 0
      %11121 = vmatpush1.bf16.msra.mxu0 %v11092
      %11122 = vmatprep.subr.bf16.mxu0 0
      %11123 = vmatpush1.bf16.msra.mxu0 %v11093
      %11124 = vmatprep.subr.bf16.mxu0 0
      %11125 = vmatpush1.bf16.msra.mxu0 0
      %11126 = vmatprep.subr.bf16.mxu0 0
      %11127 = vmatpush1.bf16.msra.mxu0 0
      %11128 = vmatprep.subr.bf16.mxu0 0
      %11129 = vmatpush1.bf16.msra.mxu0 0
      %11130 = vmatprep.subr.bf16.mxu0 0
      %11131 = vmatpush1.bf16.msra.mxu0 0
      %11132 = vmatprep.subr.bf16.mxu0 0
      %11133 = vmatpush1.bf16.msra.mxu0 0
      %11134 = vmatprep.subr.bf16.mxu0 0
      %11135 = vmatpush1.bf16.msra.mxu0 0
      %11136 = vmatprep.subr.bf16.mxu0 0
      %11137 = vmatpush1.bf16.msra.mxu0 0
      %11138 = vmatprep.subr.bf16.mxu0 0
      %11139 = vmatpush1.bf16.msra.mxu0 0
      %11140 = vmatprep.subr.bf16.mxu0 0
      %11141 = vmatpush1.bf16.msra.mxu0 0
      %11142 = vmatprep.subr.bf16.mxu0 0
      %11143 = vmatpush1.bf16.msra.mxu0 0
      %11144 = vmatprep.mubr.bf16.mxu0 0
      %11145 = vmatmul.mubr.bf16.gmra.mrb[0].mxu0 %v11101
      %v11146 = vpop.f32.mrb[0].mxu0
      %v11147 = vadd.f32 0.0, %v11146
      %v11148 = vpop.f32.mrb[0].mxu0
      %v11149 = vpop.f32.mrb[0].mxu0
      %v11150 = vadd.f32 0.0, %v11149
      %v11151 = vpop.f32.mrb[0].mxu0
      %11152 = vmatprep.mubr.bf16.mxu0 0
      %11153 = vmatmul.mubr.bf16.gmra.mrb[0].mxu0 %v11104
      %v11154 = vpop.f32.mrb[0].mxu0
      %v11155 = vadd.f32 0.0, %v11154
      %v11156 = vpop.f32.mrb[0].mxu0
      %v11157 = vpop.f32.mrb[0].mxu0
      %v11158 = vadd.f32 0.0, %v11157
      %v11159 = vpop.f32.mrb[0].mxu0
      %11160 = vmatprep.mubr.bf16.mxu0 0
      %11161 = vmatmul.mubr.bf16.gmra.mrb[0].mxu0 %v11107
      %v11162 = vpop.f32.mrb[0].mxu0
      %v11163 = vadd.f32 0.0, %v11162
      %v11164 = vpop.f32.mrb[0].mxu0
      %v11165 = vpop.f32.mrb[0].mxu0
      %v11166 = vadd.f32 0.0, %v11165
      %v11167 = vpop.f32.mrb[0].mxu0
      %11168 = vmatprep.mubr.bf16.mxu0 0
      %11169 = vmatmul.mubr.bf16.gmra.mrb[0].mxu0 %v11110
      %v11170 = vpop.f32.mrb[0].mxu0
      %v11171 = vadd.f32 0.0, %v11170
      %v11172 = vpop.f32.mrb[0].mxu0
      %v11173 = vpop.f32.mrb[0].mxu0
      %v11174 = vpop.f32.mrb[0].mxu0
      %11175 = vdwg.mxu0
      %v11176 = vadd.f32 %v10660, %v11147
      %v11177 = vadd.f32 %v10661, %v11150
      %v11178 = vadd.f32 %v10662, %v11155
      %v11179 = vadd.f32 %v10663, %v11158
      %v11180 = vadd.f32 %v10664, %v11163
      %v11181 = vadd.f32 %v10665, %v11166
      %v11182 = vadd.f32 %v10666, %v11171
      %v11183 = vld [vmem:[%s4] sm:$0x7]
      %v11185 = vlaneseq
      %v11186 = vshrl.u32 %v11185, 7
      %v11187 = vsub.s32 0, %v11186
      %v11188 = vrot.slane %v11183, %v11187
      %v11189 = vlaneseq
      %v11190 = vshrl.u32 %v11189, 7
      %v11191 = vsub.s32 1, %v11190
      %v11192 = vrot.slane %v11183, %v11191
      %v11193 = vlaneseq
      %v11194 = vshrl.u32 %v11193, 7
      %v11195 = vsub.s32 2, %v11194
      %v11196 = vrot.slane %v11183, %v11195
      %v11200 = vadd.f32 %v10962, %v11188
      %v11201 = vadd.f32 %v10963, %v11192
      %v11202 = vadd.f32 %v10964, %v11196
      %v11203 = vadd.f32 %v10965, %v11188
      %v11204 = vadd.f32 %v10966, %v11192
      %v11205 = vadd.f32 %v10967, %v11196
      %v11206 = vadd.f32 %v10968, %v11188
      %v11207 = vadd.f32 %v10969, %v11192
      %v11208 = vadd.f32 %v10970, %v11196
      %v11209 = vadd.f32 %v10971, %v11188
      %v11210 = vadd.f32 %v10972, %v11192
      %v11211 = vadd.f32 %v10973, %v11196
      %v11212 = vadd.f32 %v10974, %v11188
      %v11213 = vadd.f32 %v10975, %v11192
      %v11214 = vadd.f32 %v10976, %v11196
      %v11215 = vadd.f32 %v10977, %v11188
      %v11216 = vadd.f32 %v10978, %v11192
      %v11217 = vadd.f32 %v10979, %v11196
      %v11218 = vadd.f32 %v10980, %v11188
      %v11219 = vadd.f32 %v10981, %v11192
      %v11220 = vadd.f32 %v10982, %v11196
      %v11221 = vmax.f32 %v11200, 0.0
      %v11222 = vmax.f32 %v11201, 0.0
      %v11223 = vmax.f32 %v11202, 0.0
      %v11224 = vmax.f32 %v11203, 0.0
      %v11225 = vmax.f32 %v11204, 0.0
      %v11226 = vmax.f32 %v11205, 0.0
      %v11227 = vmax.f32 %v11206, 0.0
      %v11228 = vmax.f32 %v11207, 0.0
      %v11229 = vmax.f32 %v11208, 0.0
      %v11230 = vmax.f32 %v11209, 0.0
      %v11231 = vmax.f32 %v11210, 0.0
      %v11232 = vmax.f32 %v11211, 0.0
      %v11233 = vmax.f32 %v11212, 0.0
      %v11234 = vmax.f32 %v11213, 0.0
      %v11235 = vmax.f32 %v11214, 0.0
      %v11236 = vmax.f32 %v11215, 0.0
      %v11237 = vmax.f32 %v11216, 0.0
      %v11238 = vmax.f32 %v11217, 0.0
      %v11239 = vmax.f32 %v11218, 0.0
      %v11240 = vmax.f32 %v11219, 0.0
      %v11241 = vmax.f32 %v11220, 0.0
      %v11242 = vld [vmem:[%s10] sm:$0x1]
      %v11244 = vlaneseq
      %v11245 = vshrl.u32 %v11244, 7
      %v11246 = vsub.s32 0, %v11245
      %v11247 = vrot.slane %v11242, %v11246
      %v11249 = vadd.f32 %v11176, %v11247
      %v11250 = vadd.f32 %v11177, %v11247
      %v11251 = vadd.f32 %v11178, %v11247
      %v11252 = vadd.f32 %v11179, %v11247
      %v11253 = vadd.f32 %v11180, %v11247
      %v11254 = vadd.f32 %v11181, %v11247
      %v11255 = vadd.f32 %v11182, %v11247
      %v11256 = vmax.f32 %v11249, 0.0
      %v11257 = vmax.f32 %v11250, 0.0
      %v11258 = vmax.f32 %v11251, 0.0
      %v11259 = vmax.f32 %v11252, 0.0
      %v11260 = vmax.f32 %v11253, 0.0
      %v11261 = vmax.f32 %v11254, 0.0
      %v11262 = vmax.f32 %v11255, 0.0
      %11270 = vrot.lane.b32.xlu0 %v10776, 96
      %v11271 = vpop.permute.xlu0 %11270
      %11272 = vrot.lane.b32.xlu0 %v10777, 96
      %v11273 = vpop.permute.xlu0 %11272
      %11274 = vrot.lane.b32.xlu0 %v10778, 96
      %v11275 = vpop.permute.xlu0 %11274
      %11276 = vrot.lane.b32.xlu0 %v10779, 96
      %v11277 = vpop.permute.xlu0 %11276
      %11278 = vrot.lane.b32.xlu0 %v10780, 96
      %v11279 = vpop.permute.xlu0 %11278
      %11280 = vrot.lane.b32.xlu0 %v10781, 96
      %v11281 = vpop.permute.xlu0 %11280
      %11282 = vrot.lane.b32.xlu0 %v10782, 96
      %v11283 = vpop.permute.xlu0 %11282
      %v11291 = vsel %vm7382, %v11256, %v11271
      %v11292 = vsel %vm7382, %v11257, %v11273
      %v11293 = vsel %vm7382, %v11258, %v11275
      %v11294 = vsel %vm7382, %v11259, %v11277
      %v11295 = vsel %vm7382, %v11260, %v11279
      %v11296 = vsel %vm7382, %v11261, %v11281
      %v11297 = vsel %vm7382, %v11262, %v11283
      %11298 = vst [vmem:[%s386] sm:$0xff] %v11221
      %11299 = vst [vmem:[%s386 + $0x8] sm:$0xff] %v11222
      %11300 = vst [vmem:[%s386 + $0x10] sm:$0xff] %v11223
      %vm11301 = vcmask 818176
      %11302 = vst.msk [vmem:[%s386 + $0x18] sm:$0xff] %vm11301, %v11291
      %11303 = vst [vmem:[%s386 + $0x20] sm:$0xff] %v11224
      %11304 = vst [vmem:[%s386 + $0x28] sm:$0xff] %v11225
      %11305 = vst [vmem:[%s386 + $0x30] sm:$0xff] %v11226
      %11306 = vst.msk [vmem:[%s386 + $0x38] sm:$0xff] %vm11301, %v11292
      %11307 = vst [vmem:[%s386 + $0x40] sm:$0xff] %v11227
      %11308 = vst [vmem:[%s386 + $0x48] sm:$0xff] %v11228
      %11309 = vst [vmem:[%s386 + $0x50] sm:$0xff] %v11229
      %11310 = vst.msk [vmem:[%s386 + $0x58] sm:$0xff] %vm11301, %v11293
      %11311 = vst [vmem:[%s386 + $0x60] sm:$0xff] %v11230
      %11312 = vst [vmem:[%s386 + $0x68] sm:$0xff] %v11231
      %11313 = vst [vmem:[%s386 + $0x70] sm:$0xff] %v11232
      %11314 = vst.msk [vmem:[%s386 + $0x78] sm:$0xff] %vm11301, %v11294
      %11315 = vst [vmem:[%s386 + $0x80] sm:$0xff] %v11233
      %11316 = vst [vmem:[%s386 + $0x88] sm:$0xff] %v11234
      %11317 = vst [vmem:[%s386 + $0x90] sm:$0xff] %v11235
      %11318 = vst.msk [vmem:[%s386 + $0x98] sm:$0xff] %vm11301, %v11295
      %11319 = vst [vmem:[%s386 + $0xa0] sm:$0xff] %v11236
      %11320 = vst [vmem:[%s386 + $0xa8] sm:$0xff] %v11237
      %11321 = vst [vmem:[%s386 + $0xb0] sm:$0xff] %v11238
      %11322 = vst.msk [vmem:[%s386 + $0xb8] sm:$0xff] %vm11301, %v11296
      %11323 = vst [vmem:[%s386 + $0xc0] sm:$0x1] %v11239
      %11324 = vst [vmem:[%s386 + $0xc8] sm:$0x1] %v11240
      %11325 = vst [vmem:[%s386 + $0xd0] sm:$0x1] %v11241
      %vm11326 = vcmask 811008
      %11327 = vst.msk [vmem:[%s386 + $0xd8] sm:$0x1] %vm11326, %v11297
      %p11328 = scmp.lt.s32.totalorder %s22, 1
      %s11329 = scalar_select %p11328, %s22, 1
      %s11330 = smul.addr %s11329, 28
      %s11331 = smul.addr %s11330, 8
      %s11332 = scalar_lea.vmem %s11, %s11331
      // Predicated region
      $region65: #{inception_block_x2.1} parent=63 // pred_check
        %p11333 = pneg %p276
      $region66: #{inception_block_x2.1} parent=63 // pred_check_branch
        %11335 = sbr.rel (%p11333) target = $region68
      $region67: #{inception_block_x2.1} parent=63 // pred_region
        _
      $region68: #{inception_block_x2.1} parent=63 // pred_fallthru
        _
    $region64: #{inception_block_x2.1} parent=5 // pred_fallthru
      _
    %p11336 = scmp.le.s32.totalorder 2, %s17
    // Predicated region
    $region69: #{inception_block_x2.1} parent=5 // pred_check
      %p11337 = pneg %p11336
    $region70: #{inception_block_x2.1} parent=5 // pred_check_branch
      %11339 = sbr.rel (%p11337) target = $region72
    $region71: #{inception_block_x2.1} parent=5 // pred_region
      %s11340 = ssub.s32 %s17, 2
      // Predicated region
      $region73: #{inception_block_x2.1} parent=71 // pred_check
        %p11341 = pneg %p282
      $region74: #{inception_block_x2.1} parent=71 // pred_check_branch
        %11343 = sbr.rel (%p11341) target = $region76
      $region75: #{inception_block_x2.1} parent=71 // pred_region
        %p11344 = scmp.lt.s32.totalorder %s23, 1
        %s11345 = scalar_select %p11344, %s23, 1
        %s11346 = smul.addr %s11345, 28
        %s11347 = smul.addr %s11346, 8
        %s11348 = scalar_lea.vmem %s11, %s11347
      $region76: #{inception_block_x2.1} parent=71 // pred_fallthru
        _
    $region72: #{inception_block_x2.1} parent=5 // pred_fallthru
      _
  $region6: #{inception_block_x2.1} parent=0 // loop_footer
    %s21 = sadd.s32 1, %s17
  $region7: #{inception_block_x2.1} parent=0 // loop_footer_branch
    %16 = sbr.rel target = $region3
  $region8: #{inception_block_x2.1} parent=0 // loop_exit
    _

</llo_original>
